<compile_context>
chip_gen: v7x
topology: tpu7x:2x2x1
jax: 0.10.0
libtpu: 0.0.40
codegen_flags: <defaults>
</compile_context>

<pallas_src>
import functools

import jax
import jax.numpy as jnp
from jax.experimental import pallas as pl

D_MODEL = 32
NUM_HEADS = 4
SEQ = 8
BATCH = 2
LN_EPS = 1e-5  # PyTorch nn.LayerNorm default


# ----------------------------------------------------------------------------
# Fused kernel: the whole decoder layer in one pallas_call invocation.
# ----------------------------------------------------------------------------
def _decoder_layer_kernel(
    x_ref, post_ref, bias_ref,
    wq1_ref, bq1_ref, wk1_ref, bk1_ref, wv1_ref, bv1_ref, wo1_ref, bo1_ref,
    g1_ref, be1_ref,
    wq2_ref, bq2_ref, wk2_ref, bk2_ref, wv2_ref, bv2_ref, wo2_ref, bo2_ref,
    g2_ref, be2_ref,
    w1_ref, b1_ref, w2_ref, b2_ref, g3_ref, be3_ref,
    out_ref, attw1_ref, attw2_ref,
    *, batch, seq, num_heads):
  B, S, H = batch, seq, num_heads
  N = B * S

  x = x_ref[...]          # (N, D) float32, N = B*S
  post = post_ref[...]    # (N, D)
  bias = bias_ref[...]    # (S, S) additive mask bias (0 attend / -1e9 masked)

  def mha(q_in, kv_in, wq_ref, bq_ref, wk_ref, bk_ref, wv_ref, bv_ref,
          wo_ref, bo_ref):
    dk = wq_ref.shape[-1]
    # Per-head projections with wrapper-pre-split weights (no lane slicing).
    q_l, k_l, v_l = [], [], []
    for h in range(H):  # static unroll, H small
      q_l.append(jnp.dot(q_in, wq_ref[h],
                         preferred_element_type=jnp.float32) + bq_ref[h])
      k_l.append(jnp.dot(kv_in, wk_ref[h],
                         preferred_element_type=jnp.float32) + bk_ref[h])
      v_l.append(jnp.dot(kv_in, wv_ref[h],
                         preferred_element_type=jnp.float32) + bv_ref[h])
    # (H, N, dk) -> (H*B, S, dk): leading-dim reshapes only (layout preserved).
    qh = jnp.stack(q_l, axis=0).reshape(H * B, S, dk)
    kh = jnp.stack(k_l, axis=0).reshape(H * B, S, dk)
    vh = jnp.stack(v_l, axis=0).reshape(H * B, S, dk)

    # One batched matmul for all heads & batches; 1/sqrt(dk) already in wq.
    scores = jnp.einsum('nqe,nke->nqk', qh, kh,
                        preferred_element_type=jnp.float32) + bias
    m = jnp.max(scores, axis=-1, keepdims=True)
    p = jnp.exp(scores - m)
    attw = p * pl.reciprocal(jnp.sum(p, axis=-1, keepdims=True), approx=True)
    ctx = jnp.einsum('nqk,nke->nqe', attw, vh,
                     preferred_element_type=jnp.float32)   # (H*B, S, dk)

    # Output projection: accumulate per-head (replaces lane-axis concat).
    ctx = ctx.reshape(H, N, dk)
    acc = jnp.dot(ctx[0], wo_ref[0], preferred_element_type=jnp.float32)
    for h in range(1, H):
      acc = acc + jnp.dot(ctx[h], wo_ref[h],
                          preferred_element_type=jnp.float32)
    return acc + bo_ref[...], attw.reshape(H, B, S, S)

  def add_ln(a, b, g_ref, be_ref):
    s = a + b
    mean = jnp.mean(s, axis=-1, keepdims=True)
    c = s - mean
    var = jnp.mean(c * c, axis=-1, keepdims=True)
    return c * jax.lax.rsqrt(var + jnp.float32(LN_EPS)) * g_ref[...] + be_ref[...]

  # att1(q=x, k=x, v=x) ; out1 = LN(x + att1)
  att1, aw1 = mha(x, x, wq1_ref, bq1_ref, wk1_ref, bk1_ref, wv1_ref, bv1_ref,
                  wo1_ref, bo1_ref)
  out1 = add_ln(x, att1, g1_ref, be1_ref)

  # att2(q=post_skill, k=out1, v=out1) ; out2 = LN(out1 + att2)
  att2, aw2 = mha(post, out1, wq2_ref, bq2_ref, wk2_ref, bk2_ref, wv2_ref,
                  bv2_ref, wo2_ref, bo2_ref)
  out2 = add_ln(out1, att2, g2_ref, be2_ref)

  # FFN (dropout = identity) ; out3 = LN(out2 + ffn)
  hdn = jnp.maximum(
      jnp.dot(out2, w1_ref[...], preferred_element_type=jnp.float32) + b1_ref[...],
      jnp.float32(0.0))
  ffn = jnp.dot(hdn, w2_ref[...], preferred_element_type=jnp.float32) + b2_ref[...]
  out3 = add_ln(out2, ffn, g3_ref, be3_ref)

  out_ref[...] = out3.astype(out_ref.dtype)
  attw1_ref[...] = aw1.astype(attw1_ref.dtype)   # single full store
  attw2_ref[...] = aw2.astype(attw2_ref.dtype)   # single full store


# ----------------------------------------------------------------------------
# Wrapper: parameter pre-splitting + one pallas_call
# ----------------------------------------------------------------------------
def _prep_attention_params(p, d_model, num_heads):
  """Split (D, D) projections per head (outside the kernel) and fold scale."""
  H = num_heads
  dk = d_model // H
  inv_sqrt_dk = 1.0 / (dk ** 0.5)

  def split_in(w, b, scale):
    if scale != 1.0:
      w = w * scale
      b = b * scale
    w_h = w.reshape(d_model, H, dk).transpose(1, 0, 2)   # (H, D, dk)
    b_h = b.reshape(H, 1, dk)                            # (H, 1, dk)
    return w_h, b_h

  wq, bq = split_in(p["wq"], p["bq"], inv_sqrt_dk)   # scale folded into Q proj
  wk, bk = split_in(p["wk"], p["bk"], 1.0)
  wv, bv = split_in(p["wv"], p["bv"], 1.0)
  wo = p["wo"].reshape(H, dk, d_model)                 # (H, dk, D)
  bo = p["bo"].reshape(1, d_model)
  return (wq, bq, wk, bk, wv, bv, wo, bo)


@functools.partial(jax.jit, static_argnames=("num_heads",))
def decoder_layer_shuffle_forward(params, x, post_skill, look_ahead_mask,
                                  num_heads=NUM_HEADS):
  B, S, D = x.shape
  H = num_heads
  N = B * S

  x_flat = x.reshape(N, D).astype(jnp.float32)
  post_flat = post_skill.reshape(N, D).astype(jnp.float32)
  # additive bias: 0 where mask==1 (attend), -1e9 where mask==0 (masked)
  mask_bias = (look_ahead_mask.astype(jnp.float32) - 1.0) * 1e9

  att1 = _prep_attention_params(params["att1"], D, H)
  att2 = _prep_attention_params(params["att2"], D, H)

  def ln2d(p):
    return p["gamma"].reshape(1, D), p["beta"].reshape(1, D)

  g1, be1 = ln2d(params["ln1"])
  g2, be2 = ln2d(params["ln2"])
  g3, be3 = ln2d(params["ln3"])
  w1 = params["ffn"]["w1"]
  b1 = params["ffn"]["b1"].reshape(1, D)
  w2 = params["ffn"]["w2"]
  b2 = params["ffn"]["b2"].reshape(1, D)

  kernel = functools.partial(_decoder_layer_kernel, batch=B, seq=S, num_heads=H)
  # No grid: whole working set is one VMEM-resident block (single launch).
  out_flat, aw1, aw2 = pl.pallas_call(
      kernel,
      out_shape=(
          jax.ShapeDtypeStruct((N, D), jnp.float32),
          jax.ShapeDtypeStruct((H, B, S, S), jnp.float32),
          jax.ShapeDtypeStruct((H, B, S, S), jnp.float32),
      ),
  )(x_flat, post_flat, mask_bias,
    *att1, g1, be1,
    *att2, g2, be2,
    w1, b1, w2, b2, g3, be3)

  out3 = out_flat.reshape(B, S, D)
  att_w1 = jnp.transpose(aw1, (1, 0, 2, 3))   # -> (B, H, S, S), outside kernel
  att_w2 = jnp.transpose(aw2, (1, 0, 2, 3))
  return out3, att_w1, att_w2


# ----------------------------------------------------------------------------
# Deterministic parameter init
# ----------------------------------------------------------------------------
def _linear_init(key, din, dout, scale=0.05):
  kw, kb = jax.random.split(key)
  w = jax.random.normal(kw, (din, dout), jnp.float32) * scale
  b = jax.random.normal(kb, (dout,), jnp.float32) * 0.01
  return w, b


def init_params(key, d_model=D_MODEL):
  keys = jax.random.split(key, 12)

  def mha_params(k0, k1, k2, k3):
    wq, bq = _linear_init(k0, d_model, d_model)
    wk, bk = _linear_init(k1, d_model, d_model)
    wv, bv = _linear_init(k2, d_model, d_model)
    wo, bo = _linear_init(k3, d_model, d_model)
    return dict(wq=wq, bq=bq, wk=wk, bk=bk, wv=wv, bv=bv, wo=wo, bo=bo)

  def ln_params():
    return dict(gamma=jnp.ones((d_model,), jnp.float32),
                beta=jnp.zeros((d_model,), jnp.float32))

  w1, b1 = _linear_init(keys[8], d_model, d_model)
  w2, b2 = _linear_init(keys[9], d_model, d_model)

  return dict(
      att1=mha_params(keys[0], keys[1], keys[2], keys[3]),
      att2=mha_params(keys[4], keys[5], keys[6], keys[7]),
      ffn=dict(w1=w1, b1=b1, w2=w2, b2=b2),
      ln1=ln_params(), ln2=ln_params(), ln3=ln_params(),
  )


# ----------------------------------------------------------------------------
if __name__ == "__main__":
  key = jax.random.PRNGKey(0)
  kp, kx, ks = jax.random.split(key, 3)

  params = init_params(kp, D_MODEL)
  x = jax.random.normal(kx, (BATCH, SEQ, D_MODEL), jnp.float32)
  post_skill = jax.random.normal(ks, (BATCH, SEQ, D_MODEL), jnp.float32)
  # causal look-ahead mask: 1 = can attend, 0 = masked future position
  look_ahead_mask = jnp.tril(jnp.ones((SEQ, SEQ), jnp.float32))

  out3, att_w1, att_w2 = decoder_layer_shuffle_forward(
      params, x, post_skill, look_ahead_mask)

  jax.block_until_ready((out3, att_w1, att_w2))
  assert out3.shape == (BATCH, SEQ, D_MODEL)
  assert att_w1.shape == (BATCH, NUM_HEADS, SEQ, SEQ)
  assert att_w2.shape == (BATCH, NUM_HEADS, SEQ, SEQ)
  assert bool(jnp.all(jnp.isfinite(out3)))
  print("KERNEL_OK")
</pallas_src>

<mosaic_0001>
module attributes {stable_mosaic.version = 11 : i64} {
  func.func @_decoder_layer_kernel(%arg0: memref<16x32xf32, #tpu.memory_space<vmem>>, %arg1: memref<16x32xf32, #tpu.memory_space<vmem>>, %arg2: memref<8x8xf32, #tpu.memory_space<vmem>>, %arg3: memref<4x32x8xf32, #tpu.memory_space<vmem>>, %arg4: memref<4x1x8xf32, #tpu.memory_space<vmem>>, %arg5: memref<4x32x8xf32, #tpu.memory_space<vmem>>, %arg6: memref<4x1x8xf32, #tpu.memory_space<vmem>>, %arg7: memref<4x32x8xf32, #tpu.memory_space<vmem>>, %arg8: memref<4x1x8xf32, #tpu.memory_space<vmem>>, %arg9: memref<4x8x32xf32, #tpu.memory_space<vmem>>, %arg10: memref<1x32xf32, #tpu.memory_space<vmem>>, %arg11: memref<1x32xf32, #tpu.memory_space<vmem>>, %arg12: memref<1x32xf32, #tpu.memory_space<vmem>>, %arg13: memref<4x32x8xf32, #tpu.memory_space<vmem>>, %arg14: memref<4x1x8xf32, #tpu.memory_space<vmem>>, %arg15: memref<4x32x8xf32, #tpu.memory_space<vmem>>, %arg16: memref<4x1x8xf32, #tpu.memory_space<vmem>>, %arg17: memref<4x32x8xf32, #tpu.memory_space<vmem>>, %arg18: memref<4x1x8xf32, #tpu.memory_space<vmem>>, %arg19: memref<4x8x32xf32, #tpu.memory_space<vmem>>, %arg20: memref<1x32xf32, #tpu.memory_space<vmem>>, %arg21: memref<1x32xf32, #tpu.memory_space<vmem>>, %arg22: memref<1x32xf32, #tpu.memory_space<vmem>>, %arg23: memref<32x32xf32, #tpu.memory_space<vmem>>, %arg24: memref<1x32xf32, #tpu.memory_space<vmem>>, %arg25: memref<32x32xf32, #tpu.memory_space<vmem>>, %arg26: memref<1x32xf32, #tpu.memory_space<vmem>>, %arg27: memref<1x32xf32, #tpu.memory_space<vmem>>, %arg28: memref<1x32xf32, #tpu.memory_space<vmem>>, %arg29: memref<16x32xf32, #tpu.memory_space<vmem>>, %arg30: memref<4x2x8x8xf32, #tpu.memory_space<vmem>>, %arg31: memref<4x2x8x8xf32, #tpu.memory_space<vmem>>) attributes {dimension_semantics = [], scalar_prefetch = 0 : i64, scratch_operands = 0 : i64, tpu.core_type = #tpu.core_type<tc>} {
    %c0 = arith.constant 0 : index
    %c0_0 = arith.constant 0 : index
    %0 = vector.load %arg0[%c0, %c0_0] : memref<16x32xf32, #tpu.memory_space<vmem>>, vector<16x32xf32>
    %c0_1 = arith.constant 0 : index
    %c0_2 = arith.constant 0 : index
    %1 = vector.load %arg1[%c0_1, %c0_2] : memref<16x32xf32, #tpu.memory_space<vmem>>, vector<16x32xf32>
    %c0_3 = arith.constant 0 : index
    %c0_4 = arith.constant 0 : index
    %2 = vector.load %arg2[%c0_3, %c0_4] : memref<8x8xf32, #tpu.memory_space<vmem>>, vector<8x8xf32>
    %c0_5 = arith.constant 0 : index
    %c0_6 = arith.constant 0 : index
    %c0_7 = arith.constant 0 : index
    %3 = vector.load %arg3[%c0_5, %c0_6, %c0_7] : memref<4x32x8xf32, #tpu.memory_space<vmem>>, vector<1x32x8xf32>
    %4 = vector.shape_cast %3 : vector<1x32x8xf32> to vector<32x8xf32>
    %cst = arith.constant dense<0.000000e+00> : vector<16x8xf32>
    %5 = tpu.matmul %0, %4, %cst {dimension_numbers = #tpu.dot_dimension_numbers<[1], [0], [0], [1], [0, 0, 1, 1], [], []>} : vector<16x32xf32>, vector<32x8xf32>, vector<16x8xf32> -> vector<16x8xf32>
    %c0_8 = arith.constant 0 : index
    %c0_9 = arith.constant 0 : index
    %c0_10 = arith.constant 0 : index
    %6 = vector.load %arg4[%c0_8, %c0_9, %c0_10] : memref<4x1x8xf32, #tpu.memory_space<vmem>>, vector<1x1x8xf32>
    %7 = vector.shape_cast %6 : vector<1x1x8xf32> to vector<1x8xf32>
    %8 = vector.broadcast %7 : vector<1x8xf32> to vector<16x8xf32>
    %9 = arith.addf %5, %8 : vector<16x8xf32>
    %c0_11 = arith.constant 0 : index
    %c0_12 = arith.constant 0 : index
    %c0_13 = arith.constant 0 : index
    %10 = vector.load %arg5[%c0_11, %c0_12, %c0_13] : memref<4x32x8xf32, #tpu.memory_space<vmem>>, vector<1x32x8xf32>
    %11 = vector.shape_cast %10 : vector<1x32x8xf32> to vector<32x8xf32>
    %cst_14 = arith.constant dense<0.000000e+00> : vector<16x8xf32>
    %12 = tpu.matmul %0, %11, %cst_14 {dimension_numbers = #tpu.dot_dimension_numbers<[1], [0], [0], [1], [0, 0, 1, 1], [], []>} : vector<16x32xf32>, vector<32x8xf32>, vector<16x8xf32> -> vector<16x8xf32>
    %c0_15 = arith.constant 0 : index
    %c0_16 = arith.constant 0 : index
    %c0_17 = arith.constant 0 : index
    %13 = vector.load %arg6[%c0_15, %c0_16, %c0_17] : memref<4x1x8xf32, #tpu.memory_space<vmem>>, vector<1x1x8xf32>
    %14 = vector.shape_cast %13 : vector<1x1x8xf32> to vector<1x8xf32>
    %15 = vector.broadcast %14 : vector<1x8xf32> to vector<16x8xf32>
    %16 = arith.addf %12, %15 : vector<16x8xf32>
    %c0_18 = arith.constant 0 : index
    %c0_19 = arith.constant 0 : index
    %c0_20 = arith.constant 0 : index
    %17 = vector.load %arg7[%c0_18, %c0_19, %c0_20] : memref<4x32x8xf32, #tpu.memory_space<vmem>>, vector<1x32x8xf32>
    %18 = vector.shape_cast %17 : vector<1x32x8xf32> to vector<32x8xf32>
    %cst_21 = arith.constant dense<0.000000e+00> : vector<16x8xf32>
    %19 = tpu.matmul %0, %18, %cst_21 {dimension_numbers = #tpu.dot_dimension_numbers<[1], [0], [0], [1], [0, 0, 1, 1], [], []>} : vector<16x32xf32>, vector<32x8xf32>, vector<16x8xf32> -> vector<16x8xf32>
    %c0_22 = arith.constant 0 : index
    %c0_23 = arith.constant 0 : index
    %c0_24 = arith.constant 0 : index
    %20 = vector.load %arg8[%c0_22, %c0_23, %c0_24] : memref<4x1x8xf32, #tpu.memory_space<vmem>>, vector<1x1x8xf32>
    %21 = vector.shape_cast %20 : vector<1x1x8xf32> to vector<1x8xf32>
    %22 = vector.broadcast %21 : vector<1x8xf32> to vector<16x8xf32>
    %23 = arith.addf %19, %22 : vector<16x8xf32>
    %c1 = arith.constant 1 : index
    %c0_25 = arith.constant 0 : index
    %c0_26 = arith.constant 0 : index
    %24 = vector.load %arg3[%c1, %c0_25, %c0_26] : memref<4x32x8xf32, #tpu.memory_space<vmem>>, vector<1x32x8xf32>
    %25 = vector.shape_cast %24 : vector<1x32x8xf32> to vector<32x8xf32>
    %cst_27 = arith.constant dense<0.000000e+00> : vector<16x8xf32>
    %26 = tpu.matmul %0, %25, %cst_27 {dimension_numbers = #tpu.dot_dimension_numbers<[1], [0], [0], [1], [0, 0, 1, 1], [], []>} : vector<16x32xf32>, vector<32x8xf32>, vector<16x8xf32> -> vector<16x8xf32>
    %c1_28 = arith.constant 1 : index
    %c0_29 = arith.constant 0 : index
    %c0_30 = arith.constant 0 : index
    %27 = vector.load %arg4[%c1_28, %c0_29, %c0_30] : memref<4x1x8xf32, #tpu.memory_space<vmem>>, vector<1x1x8xf32>
    %28 = vector.shape_cast %27 : vector<1x1x8xf32> to vector<1x8xf32>
    %29 = vector.broadcast %28 : vector<1x8xf32> to vector<16x8xf32>
    %30 = arith.addf %26, %29 : vector<16x8xf32>
    %c1_31 = arith.constant 1 : index
    %c0_32 = arith.constant 0 : index
    %c0_33 = arith.constant 0 : index
    %31 = vector.load %arg5[%c1_31, %c0_32, %c0_33] : memref<4x32x8xf32, #tpu.memory_space<vmem>>, vector<1x32x8xf32>
    %32 = vector.shape_cast %31 : vector<1x32x8xf32> to vector<32x8xf32>
    %cst_34 = arith.constant dense<0.000000e+00> : vector<16x8xf32>
    %33 = tpu.matmul %0, %32, %cst_34 {dimension_numbers = #tpu.dot_dimension_numbers<[1], [0], [0], [1], [0, 0, 1, 1], [], []>} : vector<16x32xf32>, vector<32x8xf32>, vector<16x8xf32> -> vector<16x8xf32>
    %c1_35 = arith.constant 1 : index
    %c0_36 = arith.constant 0 : index
    %c0_37 = arith.constant 0 : index
    %34 = vector.load %arg6[%c1_35, %c0_36, %c0_37] : memref<4x1x8xf32, #tpu.memory_space<vmem>>, vector<1x1x8xf32>
    %35 = vector.shape_cast %34 : vector<1x1x8xf32> to vector<1x8xf32>
    %36 = vector.broadcast %35 : vector<1x8xf32> to vector<16x8xf32>
    %37 = arith.addf %33, %36 : vector<16x8xf32>
    %c1_38 = arith.constant 1 : index
    %c0_39 = arith.constant 0 : index
    %c0_40 = arith.constant 0 : index
    %38 = vector.load %arg7[%c1_38, %c0_39, %c0_40] : memref<4x32x8xf32, #tpu.memory_space<vmem>>, vector<1x32x8xf32>
    %39 = vector.shape_cast %38 : vector<1x32x8xf32> to vector<32x8xf32>
    %cst_41 = arith.constant dense<0.000000e+00> : vector<16x8xf32>
    %40 = tpu.matmul %0, %39, %cst_41 {dimension_numbers = #tpu.dot_dimension_numbers<[1], [0], [0], [1], [0, 0, 1, 1], [], []>} : vector<16x32xf32>, vector<32x8xf32>, vector<16x8xf32> -> vector<16x8xf32>
    %c1_42 = arith.constant 1 : index
    %c0_43 = arith.constant 0 : index
    %c0_44 = arith.constant 0 : index
    %41 = vector.load %arg8[%c1_42, %c0_43, %c0_44] : memref<4x1x8xf32, #tpu.memory_space<vmem>>, vector<1x1x8xf32>
    %42 = vector.shape_cast %41 : vector<1x1x8xf32> to vector<1x8xf32>
    %43 = vector.broadcast %42 : vector<1x8xf32> to vector<16x8xf32>
    %44 = arith.addf %40, %43 : vector<16x8xf32>
    %c2 = arith.constant 2 : index
    %c0_45 = arith.constant 0 : index
    %c0_46 = arith.constant 0 : index
    %45 = vector.load %arg3[%c2, %c0_45, %c0_46] : memref<4x32x8xf32, #tpu.memory_space<vmem>>, vector<1x32x8xf32>
    %46 = vector.shape_cast %45 : vector<1x32x8xf32> to vector<32x8xf32>
    %cst_47 = arith.constant dense<0.000000e+00> : vector<16x8xf32>
    %47 = tpu.matmul %0, %46, %cst_47 {dimension_numbers = #tpu.dot_dimension_numbers<[1], [0], [0], [1], [0, 0, 1, 1], [], []>} : vector<16x32xf32>, vector<32x8xf32>, vector<16x8xf32> -> vector<16x8xf32>
    %c2_48 = arith.constant 2 : index
    %c0_49 = arith.constant 0 : index
    %c0_50 = arith.constant 0 : index
    %48 = vector.load %arg4[%c2_48, %c0_49, %c0_50] : memref<4x1x8xf32, #tpu.memory_space<vmem>>, vector<1x1x8xf32>
    %49 = vector.shape_cast %48 : vector<1x1x8xf32> to vector<1x8xf32>
    %50 = vector.broadcast %49 : vector<1x8xf32> to vector<16x8xf32>
    %51 = arith.addf %47, %50 : vector<16x8xf32>
    %c2_51 = arith.constant 2 : index
    %c0_52 = arith.constant 0 : index
    %c0_53 = arith.constant 0 : index
    %52 = vector.load %arg5[%c2_51, %c0_52, %c0_53] : memref<4x32x8xf32, #tpu.memory_space<vmem>>, vector<1x32x8xf32>
    %53 = vector.shape_cast %52 : vector<1x32x8xf32> to vector<32x8xf32>
    %cst_54 = arith.constant dense<0.000000e+00> : vector<16x8xf32>
    %54 = tpu.matmul %0, %53, %cst_54 {dimension_numbers = #tpu.dot_dimension_numbers<[1], [0], [0], [1], [0, 0, 1, 1], [], []>} : vector<16x32xf32>, vector<32x8xf32>, vector<16x8xf32> -> vector<16x8xf32>
    %c2_55 = arith.constant 2 : index
    %c0_56 = arith.constant 0 : index
    %c0_57 = arith.constant 0 : index
    %55 = vector.load %arg6[%c2_55, %c0_56, %c0_57] : memref<4x1x8xf32, #tpu.memory_space<vmem>>, vector<1x1x8xf32>
    %56 = vector.shape_cast %55 : vector<1x1x8xf32> to vector<1x8xf32>
    %57 = vector.broadcast %56 : vector<1x8xf32> to vector<16x8xf32>
    %58 = arith.addf %54, %57 : vector<16x8xf32>
    %c2_58 = arith.constant 2 : index
    %c0_59 = arith.constant 0 : index
    %c0_60 = arith.constant 0 : index
    %59 = vector.load %arg7[%c2_58, %c0_59, %c0_60] : memref<4x32x8xf32, #tpu.memory_space<vmem>>, vector<1x32x8xf32>
    %60 = vector.shape_cast %59 : vector<1x32x8xf32> to vector<32x8xf32>
    %cst_61 = arith.constant dense<0.000000e+00> : vector<16x8xf32>
    %61 = tpu.matmul %0, %60, %cst_61 {dimension_numbers = #tpu.dot_dimension_numbers<[1], [0], [0], [1], [0, 0, 1, 1], [], []>} : vector<16x32xf32>, vector<32x8xf32>, vector<16x8xf32> -> vector<16x8xf32>
    %c2_62 = arith.constant 2 : index
    %c0_63 = arith.constant 0 : index
    %c0_64 = arith.constant 0 : index
    %62 = vector.load %arg8[%c2_62, %c0_63, %c0_64] : memref<4x1x8xf32, #tpu.memory_space<vmem>>, vector<1x1x8xf32>
    %63 = vector.shape_cast %62 : vector<1x1x8xf32> to vector<1x8xf32>
    %64 = vector.broadcast %63 : vector<1x8xf32> to vector<16x8xf32>
    %65 = arith.addf %61, %64 : vector<16x8xf32>
    %c3 = arith.constant 3 : index
    %c0_65 = arith.constant 0 : index
    %c0_66 = arith.constant 0 : index
    %66 = vector.load %arg3[%c3, %c0_65, %c0_66] : memref<4x32x8xf32, #tpu.memory_space<vmem>>, vector<1x32x8xf32>
    %67 = vector.shape_cast %66 : vector<1x32x8xf32> to vector<32x8xf32>
    %cst_67 = arith.constant dense<0.000000e+00> : vector<16x8xf32>
    %68 = tpu.matmul %0, %67, %cst_67 {dimension_numbers = #tpu.dot_dimension_numbers<[1], [0], [0], [1], [0, 0, 1, 1], [], []>} : vector<16x32xf32>, vector<32x8xf32>, vector<16x8xf32> -> vector<16x8xf32>
    %c3_68 = arith.constant 3 : index
    %c0_69 = arith.constant 0 : index
    %c0_70 = arith.constant 0 : index
    %69 = vector.load %arg4[%c3_68, %c0_69, %c0_70] : memref<4x1x8xf32, #tpu.memory_space<vmem>>, vector<1x1x8xf32>
    %70 = vector.shape_cast %69 : vector<1x1x8xf32> to vector<1x8xf32>
    %71 = vector.broadcast %70 : vector<1x8xf32> to vector<16x8xf32>
    %72 = arith.addf %68, %71 : vector<16x8xf32>
    %c3_71 = arith.constant 3 : index
    %c0_72 = arith.constant 0 : index
    %c0_73 = arith.constant 0 : index
    %73 = vector.load %arg5[%c3_71, %c0_72, %c0_73] : memref<4x32x8xf32, #tpu.memory_space<vmem>>, vector<1x32x8xf32>
    %74 = vector.shape_cast %73 : vector<1x32x8xf32> to vector<32x8xf32>
    %cst_74 = arith.constant dense<0.000000e+00> : vector<16x8xf32>
    %75 = tpu.matmul %0, %74, %cst_74 {dimension_numbers = #tpu.dot_dimension_numbers<[1], [0], [0], [1], [0, 0, 1, 1], [], []>} : vector<16x32xf32>, vector<32x8xf32>, vector<16x8xf32> -> vector<16x8xf32>
    %c3_75 = arith.constant 3 : index
    %c0_76 = arith.constant 0 : index
    %c0_77 = arith.constant 0 : index
    %76 = vector.load %arg6[%c3_75, %c0_76, %c0_77] : memref<4x1x8xf32, #tpu.memory_space<vmem>>, vector<1x1x8xf32>
    %77 = vector.shape_cast %76 : vector<1x1x8xf32> to vector<1x8xf32>
    %78 = vector.broadcast %77 : vector<1x8xf32> to vector<16x8xf32>
    %79 = arith.addf %75, %78 : vector<16x8xf32>
    %c3_78 = arith.constant 3 : index
    %c0_79 = arith.constant 0 : index
    %c0_80 = arith.constant 0 : index
    %80 = vector.load %arg7[%c3_78, %c0_79, %c0_80] : memref<4x32x8xf32, #tpu.memory_space<vmem>>, vector<1x32x8xf32>
    %81 = vector.shape_cast %80 : vector<1x32x8xf32> to vector<32x8xf32>
    %cst_81 = arith.constant dense<0.000000e+00> : vector<16x8xf32>
    %82 = tpu.matmul %0, %81, %cst_81 {dimension_numbers = #tpu.dot_dimension_numbers<[1], [0], [0], [1], [0, 0, 1, 1], [], []>} : vector<16x32xf32>, vector<32x8xf32>, vector<16x8xf32> -> vector<16x8xf32>
    %c3_82 = arith.constant 3 : index
    %c0_83 = arith.constant 0 : index
    %c0_84 = arith.constant 0 : index
    %83 = vector.load %arg8[%c3_82, %c0_83, %c0_84] : memref<4x1x8xf32, #tpu.memory_space<vmem>>, vector<1x1x8xf32>
    %84 = vector.shape_cast %83 : vector<1x1x8xf32> to vector<1x8xf32>
    %85 = vector.broadcast %84 : vector<1x8xf32> to vector<16x8xf32>
    %86 = arith.addf %82, %85 : vector<16x8xf32>
    %87 = vector.shape_cast %9 : vector<16x8xf32> to vector<1x16x8xf32>
    %88 = vector.shape_cast %30 : vector<16x8xf32> to vector<1x16x8xf32>
    %89 = vector.shape_cast %51 : vector<16x8xf32> to vector<1x16x8xf32>
    %90 = vector.shape_cast %72 : vector<16x8xf32> to vector<1x16x8xf32>
    %91 = tpu.concatenate %87, %88, %89, %90 in 0 : vector<1x16x8xf32>, vector<1x16x8xf32>, vector<1x16x8xf32>, vector<1x16x8xf32> -> vector<4x16x8xf32>
    %92 = vector.shape_cast %91 : vector<4x16x8xf32> to vector<8x8x8xf32>
    %93 = vector.shape_cast %16 : vector<16x8xf32> to vector<1x16x8xf32>
    %94 = vector.shape_cast %37 : vector<16x8xf32> to vector<1x16x8xf32>
    %95 = vector.shape_cast %58 : vector<16x8xf32> to vector<1x16x8xf32>
    %96 = vector.shape_cast %79 : vector<16x8xf32> to vector<1x16x8xf32>
    %97 = tpu.concatenate %93, %94, %95, %96 in 0 : vector<1x16x8xf32>, vector<1x16x8xf32>, vector<1x16x8xf32>, vector<1x16x8xf32> -> vector<4x16x8xf32>
    %98 = vector.shape_cast %97 : vector<4x16x8xf32> to vector<8x8x8xf32>
    %99 = vector.shape_cast %23 : vector<16x8xf32> to vector<1x16x8xf32>
    %100 = vector.shape_cast %44 : vector<16x8xf32> to vector<1x16x8xf32>
    %101 = vector.shape_cast %65 : vector<16x8xf32> to vector<1x16x8xf32>
    %102 = vector.shape_cast %86 : vector<16x8xf32> to vector<1x16x8xf32>
    %103 = tpu.concatenate %99, %100, %101, %102 in 0 : vector<1x16x8xf32>, vector<1x16x8xf32>, vector<1x16x8xf32>, vector<1x16x8xf32> -> vector<4x16x8xf32>
    %104 = vector.shape_cast %103 : vector<4x16x8xf32> to vector<8x8x8xf32>
    "tpu.trace_start"() <{level = 10 : i32, message = "nqe,nke->nqk"}> : () -> ()
    %cst_85 = arith.constant dense<0.000000e+00> : vector<8x8x8xf32>
    %105 = tpu.matmul %92, %98, %cst_85 {dimension_numbers = #tpu.dot_dimension_numbers<[2], [2], [1], [1], [0, 0, 0, 1, 1, 1], [0], [0]>} : vector<8x8x8xf32>, vector<8x8x8xf32>, vector<8x8x8xf32> -> vector<8x8x8xf32>
    "tpu.trace_stop"() : () -> ()
    %106 = vector.shape_cast %2 : vector<8x8xf32> to vector<1x8x8xf32>
    %107 = vector.broadcast %106 : vector<1x8x8xf32> to vector<8x8x8xf32>
    %108 = arith.addf %105, %107 : vector<8x8x8xf32>
    %cst_86 = arith.constant dense<0xFF800000> : vector<8x8xf32>
    %109 = vector.multi_reduction <maximumf>, %108, %cst_86 [2] : vector<8x8x8xf32> to vector<8x8xf32>
    %110 = vector.shape_cast %109 : vector<8x8xf32> to vector<8x8x1xf32>
    %111 = vector.broadcast %110 : vector<8x8x1xf32> to vector<8x8x8xf32>
    %112 = arith.subf %108, %111 : vector<8x8x8xf32>
    %113 = math.exp %112 : vector<8x8x8xf32>
    %cst_87 = arith.constant dense<0.000000e+00> : vector<8x8xf32>
    %114 = vector.multi_reduction <add>, %113, %cst_87 [2] : vector<8x8x8xf32> to vector<8x8xf32>
    %115 = vector.shape_cast %114 : vector<8x8xf32> to vector<8x8x1xf32>
    %116 = tpu.reciprocal %115 {approx = true} : vector<8x8x1xf32> -> vector<8x8x1xf32>
    %117 = vector.broadcast %116 : vector<8x8x1xf32> to vector<8x8x8xf32>
    %118 = arith.mulf %113, %117 : vector<8x8x8xf32>
    "tpu.trace_start"() <{level = 10 : i32, message = "nqk,nke->nqe"}> : () -> ()
    %cst_88 = arith.constant dense<0.000000e+00> : vector<8x8x8xf32>
    %119 = tpu.matmul %118, %104, %cst_88 {dimension_numbers = #tpu.dot_dimension_numbers<[2], [1], [1], [2], [0, 0, 0, 1, 1, 2], [0], [0]>} : vector<8x8x8xf32>, vector<8x8x8xf32>, vector<8x8x8xf32> -> vector<8x8x8xf32>
    "tpu.trace_stop"() : () -> ()
    %120 = vector.shape_cast %119 : vector<8x8x8xf32> to vector<4x16x8xf32>
    %121 = vector.extract_strided_slice %120 {offsets = [0, 0, 0], sizes = [1, 16, 8], strides = [1, 1, 1]} : vector<4x16x8xf32> to vector<1x16x8xf32>
    %122 = vector.shape_cast %121 : vector<1x16x8xf32> to vector<16x8xf32>
    %c0_89 = arith.constant 0 : index
    %c0_90 = arith.constant 0 : index
    %c0_91 = arith.constant 0 : index
    %123 = vector.load %arg9[%c0_89, %c0_90, %c0_91] : memref<4x8x32xf32, #tpu.memory_space<vmem>>, vector<1x8x32xf32>
    %124 = vector.shape_cast %123 : vector<1x8x32xf32> to vector<8x32xf32>
    %cst_92 = arith.constant dense<0.000000e+00> : vector<16x32xf32>
    %125 = tpu.matmul %122, %124, %cst_92 {dimension_numbers = #tpu.dot_dimension_numbers<[1], [0], [0], [1], [0, 0, 1, 1], [], []>} : vector<16x8xf32>, vector<8x32xf32>, vector<16x32xf32> -> vector<16x32xf32>
    %126 = vector.extract_strided_slice %120 {offsets = [1, 0, 0], sizes = [1, 16, 8], strides = [1, 1, 1]} : vector<4x16x8xf32> to vector<1x16x8xf32>
    %127 = vector.shape_cast %126 : vector<1x16x8xf32> to vector<16x8xf32>
    %c1_93 = arith.constant 1 : index
    %c0_94 = arith.constant 0 : index
    %c0_95 = arith.constant 0 : index
    %128 = vector.load %arg9[%c1_93, %c0_94, %c0_95] : memref<4x8x32xf32, #tpu.memory_space<vmem>>, vector<1x8x32xf32>
    %129 = vector.shape_cast %128 : vector<1x8x32xf32> to vector<8x32xf32>
    %cst_96 = arith.constant dense<0.000000e+00> : vector<16x32xf32>
    %130 = tpu.matmul %127, %129, %cst_96 {dimension_numbers = #tpu.dot_dimension_numbers<[1], [0], [0], [1], [0, 0, 1, 1], [], []>} : vector<16x8xf32>, vector<8x32xf32>, vector<16x32xf32> -> vector<16x32xf32>
    %131 = arith.addf %125, %130 : vector<16x32xf32>
    %132 = vector.extract_strided_slice %120 {offsets = [2, 0, 0], sizes = [1, 16, 8], strides = [1, 1, 1]} : vector<4x16x8xf32> to vector<1x16x8xf32>
    %133 = vector.shape_cast %132 : vector<1x16x8xf32> to vector<16x8xf32>
    %c2_97 = arith.constant 2 : index
    %c0_98 = arith.constant 0 : index
    %c0_99 = arith.constant 0 : index
    %134 = vector.load %arg9[%c2_97, %c0_98, %c0_99] : memref<4x8x32xf32, #tpu.memory_space<vmem>>, vector<1x8x32xf32>
    %135 = vector.shape_cast %134 : vector<1x8x32xf32> to vector<8x32xf32>
    %cst_100 = arith.constant dense<0.000000e+00> : vector<16x32xf32>
    %136 = tpu.matmul %133, %135, %cst_100 {dimension_numbers = #tpu.dot_dimension_numbers<[1], [0], [0], [1], [0, 0, 1, 1], [], []>} : vector<16x8xf32>, vector<8x32xf32>, vector<16x32xf32> -> vector<16x32xf32>
    %137 = arith.addf %131, %136 : vector<16x32xf32>
    %138 = vector.extract_strided_slice %120 {offsets = [3, 0, 0], sizes = [1, 16, 8], strides = [1, 1, 1]} : vector<4x16x8xf32> to vector<1x16x8xf32>
    %139 = vector.shape_cast %138 : vector<1x16x8xf32> to vector<16x8xf32>
    %c3_101 = arith.constant 3 : index
    %c0_102 = arith.constant 0 : index
    %c0_103 = arith.constant 0 : index
    %140 = vector.load %arg9[%c3_101, %c0_102, %c0_103] : memref<4x8x32xf32, #tpu.memory_space<vmem>>, vector<1x8x32xf32>
    %141 = vector.shape_cast %140 : vector<1x8x32xf32> to vector<8x32xf32>
    %cst_104 = arith.constant dense<0.000000e+00> : vector<16x32xf32>
    %142 = tpu.matmul %139, %141, %cst_104 {dimension_numbers = #tpu.dot_dimension_numbers<[1], [0], [0], [1], [0, 0, 1, 1], [], []>} : vector<16x8xf32>, vector<8x32xf32>, vector<16x32xf32> -> vector<16x32xf32>
    %143 = arith.addf %137, %142 : vector<16x32xf32>
    %c0_105 = arith.constant 0 : index
    %c0_106 = arith.constant 0 : index
    %144 = vector.load %arg10[%c0_105, %c0_106] : memref<1x32xf32, #tpu.memory_space<vmem>>, vector<1x32xf32>
    %145 = vector.broadcast %144 : vector<1x32xf32> to vector<16x32xf32>
    %146 = arith.addf %143, %145 : vector<16x32xf32>
    %147 = vector.shape_cast %118 : vector<8x8x8xf32> to vector<4x2x8x8xf32>
    %148 = arith.addf %0, %146 : vector<16x32xf32>
    %cst_107 = arith.constant dense<0.000000e+00> : vector<16xf32>
    %149 = vector.multi_reduction <add>, %148, %cst_107 [1] : vector<16x32xf32> to vector<16xf32>
    %150 = vector.shape_cast %149 : vector<16xf32> to vector<16x1xf32>
    %cst_108 = arith.constant 3.200000e+01 : f32
    %151 = vector.broadcast %cst_108 : f32 to vector<16x1xf32>
    %152 = arith.divf %150, %151 : vector<16x1xf32>
    %153 = vector.broadcast %152 : vector<16x1xf32> to vector<16x32xf32>
    %154 = arith.subf %148, %153 : vector<16x32xf32>
    %155 = arith.mulf %154, %154 : vector<16x32xf32>
    %cst_109 = arith.constant dense<0.000000e+00> : vector<16xf32>
    %156 = vector.multi_reduction <add>, %155, %cst_109 [1] : vector<16x32xf32> to vector<16xf32>
    %157 = vector.shape_cast %156 : vector<16xf32> to vector<16x1xf32>
    %cst_110 = arith.constant 3.200000e+01 : f32
    %158 = vector.broadcast %cst_110 : f32 to vector<16x1xf32>
    %159 = arith.divf %157, %158 : vector<16x1xf32>
    %cst_111 = arith.constant 9.99999974E-6 : f32
    %160 = vector.broadcast %cst_111 : f32 to vector<16x1xf32>
    %161 = arith.addf %159, %160 : vector<16x1xf32>
    %162 = math.rsqrt %161 : vector<16x1xf32>
    %163 = vector.broadcast %162 : vector<16x1xf32> to vector<16x32xf32>
    %164 = arith.mulf %154, %163 : vector<16x32xf32>
    %c0_112 = arith.constant 0 : index
    %c0_113 = arith.constant 0 : index
    %165 = vector.load %arg11[%c0_112, %c0_113] : memref<1x32xf32, #tpu.memory_space<vmem>>, vector<1x32xf32>
    %166 = vector.broadcast %165 : vector<1x32xf32> to vector<16x32xf32>
    %167 = arith.mulf %164, %166 : vector<16x32xf32>
    %c0_114 = arith.constant 0 : index
    %c0_115 = arith.constant 0 : index
    %168 = vector.load %arg12[%c0_114, %c0_115] : memref<1x32xf32, #tpu.memory_space<vmem>>, vector<1x32xf32>
    %169 = vector.broadcast %168 : vector<1x32xf32> to vector<16x32xf32>
    %170 = arith.addf %167, %169 : vector<16x32xf32>
    %c0_116 = arith.constant 0 : index
    %c0_117 = arith.constant 0 : index
    %c0_118 = arith.constant 0 : index
    %171 = vector.load %arg13[%c0_116, %c0_117, %c0_118] : memref<4x32x8xf32, #tpu.memory_space<vmem>>, vector<1x32x8xf32>
    %172 = vector.shape_cast %171 : vector<1x32x8xf32> to vector<32x8xf32>
    %cst_119 = arith.constant dense<0.000000e+00> : vector<16x8xf32>
    %173 = tpu.matmul %1, %172, %cst_119 {dimension_numbers = #tpu.dot_dimension_numbers<[1], [0], [0], [1], [0, 0, 1, 1], [], []>} : vector<16x32xf32>, vector<32x8xf32>, vector<16x8xf32> -> vector<16x8xf32>
    %c0_120 = arith.constant 0 : index
    %c0_121 = arith.constant 0 : index
    %c0_122 = arith.constant 0 : index
    %174 = vector.load %arg14[%c0_120, %c0_121, %c0_122] : memref<4x1x8xf32, #tpu.memory_space<vmem>>, vector<1x1x8xf32>
    %175 = vector.shape_cast %174 : vector<1x1x8xf32> to vector<1x8xf32>
    %176 = vector.broadcast %175 : vector<1x8xf32> to vector<16x8xf32>
    %177 = arith.addf %173, %176 : vector<16x8xf32>
    %c0_123 = arith.constant 0 : index
    %c0_124 = arith.constant 0 : index
    %c0_125 = arith.constant 0 : index
    %178 = vector.load %arg15[%c0_123, %c0_124, %c0_125] : memref<4x32x8xf32, #tpu.memory_space<vmem>>, vector<1x32x8xf32>
    %179 = vector.shape_cast %178 : vector<1x32x8xf32> to vector<32x8xf32>
    %cst_126 = arith.constant dense<0.000000e+00> : vector<16x8xf32>
    %180 = tpu.matmul %170, %179, %cst_126 {dimension_numbers = #tpu.dot_dimension_numbers<[1], [0], [0], [1], [0, 0, 1, 1], [], []>} : vector<16x32xf32>, vector<32x8xf32>, vector<16x8xf32> -> vector<16x8xf32>
    %c0_127 = arith.constant 0 : index
    %c0_128 = arith.constant 0 : index
    %c0_129 = arith.constant 0 : index
    %181 = vector.load %arg16[%c0_127, %c0_128, %c0_129] : memref<4x1x8xf32, #tpu.memory_space<vmem>>, vector<1x1x8xf32>
    %182 = vector.shape_cast %181 : vector<1x1x8xf32> to vector<1x8xf32>
    %183 = vector.broadcast %182 : vector<1x8xf32> to vector<16x8xf32>
    %184 = arith.addf %180, %183 : vector<16x8xf32>
    %c0_130 = arith.constant 0 : index
    %c0_131 = arith.constant 0 : index
    %c0_132 = arith.constant 0 : index
    %185 = vector.load %arg17[%c0_130, %c0_131, %c0_132] : memref<4x32x8xf32, #tpu.memory_space<vmem>>, vector<1x32x8xf32>
    %186 = vector.shape_cast %185 : vector<1x32x8xf32> to vector<32x8xf32>
    %cst_133 = arith.constant dense<0.000000e+00> : vector<16x8xf32>
    %187 = tpu.matmul %170, %186, %cst_133 {dimension_numbers = #tpu.dot_dimension_numbers<[1], [0], [0], [1], [0, 0, 1, 1], [], []>} : vector<16x32xf32>, vector<32x8xf32>, vector<16x8xf32> -> vector<16x8xf32>
    %c0_134 = arith.constant 0 : index
    %c0_135 = arith.constant 0 : index
    %c0_136 = arith.constant 0 : index
    %188 = vector.load %arg18[%c0_134, %c0_135, %c0_136] : memref<4x1x8xf32, #tpu.memory_space<vmem>>, vector<1x1x8xf32>
    %189 = vector.shape_cast %188 : vector<1x1x8xf32> to vector<1x8xf32>
    %190 = vector.broadcast %189 : vector<1x8xf32> to vector<16x8xf32>
    %191 = arith.addf %187, %190 : vector<16x8xf32>
    %c1_137 = arith.constant 1 : index
    %c0_138 = arith.constant 0 : index
    %c0_139 = arith.constant 0 : index
    %192 = vector.load %arg13[%c1_137, %c0_138, %c0_139] : memref<4x32x8xf32, #tpu.memory_space<vmem>>, vector<1x32x8xf32>
    %193 = vector.shape_cast %192 : vector<1x32x8xf32> to vector<32x8xf32>
    %cst_140 = arith.constant dense<0.000000e+00> : vector<16x8xf32>
    %194 = tpu.matmul %1, %193, %cst_140 {dimension_numbers = #tpu.dot_dimension_numbers<[1], [0], [0], [1], [0, 0, 1, 1], [], []>} : vector<16x32xf32>, vector<32x8xf32>, vector<16x8xf32> -> vector<16x8xf32>
    %c1_141 = arith.constant 1 : index
    %c0_142 = arith.constant 0 : index
    %c0_143 = arith.constant 0 : index
    %195 = vector.load %arg14[%c1_141, %c0_142, %c0_143] : memref<4x1x8xf32, #tpu.memory_space<vmem>>, vector<1x1x8xf32>
    %196 = vector.shape_cast %195 : vector<1x1x8xf32> to vector<1x8xf32>
    %197 = vector.broadcast %196 : vector<1x8xf32> to vector<16x8xf32>
    %198 = arith.addf %194, %197 : vector<16x8xf32>
    %c1_144 = arith.constant 1 : index
    %c0_145 = arith.constant 0 : index
    %c0_146 = arith.constant 0 : index
    %199 = vector.load %arg15[%c1_144, %c0_145, %c0_146] : memref<4x32x8xf32, #tpu.memory_space<vmem>>, vector<1x32x8xf32>
    %200 = vector.shape_cast %199 : vector<1x32x8xf32> to vector<32x8xf32>
    %cst_147 = arith.constant dense<0.000000e+00> : vector<16x8xf32>
    %201 = tpu.matmul %170, %200, %cst_147 {dimension_numbers = #tpu.dot_dimension_numbers<[1], [0], [0], [1], [0, 0, 1, 1], [], []>} : vector<16x32xf32>, vector<32x8xf32>, vector<16x8xf32> -> vector<16x8xf32>
    %c1_148 = arith.constant 1 : index
    %c0_149 = arith.constant 0 : index
    %c0_150 = arith.constant 0 : index
    %202 = vector.load %arg16[%c1_148, %c0_149, %c0_150] : memref<4x1x8xf32, #tpu.memory_space<vmem>>, vector<1x1x8xf32>
    %203 = vector.shape_cast %202 : vector<1x1x8xf32> to vector<1x8xf32>
    %204 = vector.broadcast %203 : vector<1x8xf32> to vector<16x8xf32>
    %205 = arith.addf %201, %204 : vector<16x8xf32>
    %c1_151 = arith.constant 1 : index
    %c0_152 = arith.constant 0 : index
    %c0_153 = arith.constant 0 : index
    %206 = vector.load %arg17[%c1_151, %c0_152, %c0_153] : memref<4x32x8xf32, #tpu.memory_space<vmem>>, vector<1x32x8xf32>
    %207 = vector.shape_cast %206 : vector<1x32x8xf32> to vector<32x8xf32>
    %cst_154 = arith.constant dense<0.000000e+00> : vector<16x8xf32>
    %208 = tpu.matmul %170, %207, %cst_154 {dimension_numbers = #tpu.dot_dimension_numbers<[1], [0], [0], [1], [0, 0, 1, 1], [], []>} : vector<16x32xf32>, vector<32x8xf32>, vector<16x8xf32> -> vector<16x8xf32>
    %c1_155 = arith.constant 1 : index
    %c0_156 = arith.constant 0 : index
    %c0_157 = arith.constant 0 : index
    %209 = vector.load %arg18[%c1_155, %c0_156, %c0_157] : memref<4x1x8xf32, #tpu.memory_space<vmem>>, vector<1x1x8xf32>
    %210 = vector.shape_cast %209 : vector<1x1x8xf32> to vector<1x8xf32>
    %211 = vector.broadcast %210 : vector<1x8xf32> to vector<16x8xf32>
    %212 = arith.addf %208, %211 : vector<16x8xf32>
    %c2_158 = arith.constant 2 : index
    %c0_159 = arith.constant 0 : index
    %c0_160 = arith.constant 0 : index
    %213 = vector.load %arg13[%c2_158, %c0_159, %c0_160] : memref<4x32x8xf32, #tpu.memory_space<vmem>>, vector<1x32x8xf32>
    %214 = vector.shape_cast %213 : vector<1x32x8xf32> to vector<32x8xf32>
    %cst_161 = arith.constant dense<0.000000e+00> : vector<16x8xf32>
    %215 = tpu.matmul %1, %214, %cst_161 {dimension_numbers = #tpu.dot_dimension_numbers<[1], [0], [0], [1], [0, 0, 1, 1], [], []>} : vector<16x32xf32>, vector<32x8xf32>, vector<16x8xf32> -> vector<16x8xf32>
    %c2_162 = arith.constant 2 : index
    %c0_163 = arith.constant 0 : index
    %c0_164 = arith.constant 0 : index
    %216 = vector.load %arg14[%c2_162, %c0_163, %c0_164] : memref<4x1x8xf32, #tpu.memory_space<vmem>>, vector<1x1x8xf32>
    %217 = vector.shape_cast %216 : vector<1x1x8xf32> to vector<1x8xf32>
    %218 = vector.broadcast %217 : vector<1x8xf32> to vector<16x8xf32>
    %219 = arith.addf %215, %218 : vector<16x8xf32>
    %c2_165 = arith.constant 2 : index
    %c0_166 = arith.constant 0 : index
    %c0_167 = arith.constant 0 : index
    %220 = vector.load %arg15[%c2_165, %c0_166, %c0_167] : memref<4x32x8xf32, #tpu.memory_space<vmem>>, vector<1x32x8xf32>
    %221 = vector.shape_cast %220 : vector<1x32x8xf32> to vector<32x8xf32>
    %cst_168 = arith.constant dense<0.000000e+00> : vector<16x8xf32>
    %222 = tpu.matmul %170, %221, %cst_168 {dimension_numbers = #tpu.dot_dimension_numbers<[1], [0], [0], [1], [0, 0, 1, 1], [], []>} : vector<16x32xf32>, vector<32x8xf32>, vector<16x8xf32> -> vector<16x8xf32>
    %c2_169 = arith.constant 2 : index
    %c0_170 = arith.constant 0 : index
    %c0_171 = arith.constant 0 : index
    %223 = vector.load %arg16[%c2_169, %c0_170, %c0_171] : memref<4x1x8xf32, #tpu.memory_space<vmem>>, vector<1x1x8xf32>
    %224 = vector.shape_cast %223 : vector<1x1x8xf32> to vector<1x8xf32>
    %225 = vector.broadcast %224 : vector<1x8xf32> to vector<16x8xf32>
    %226 = arith.addf %222, %225 : vector<16x8xf32>
    %c2_172 = arith.constant 2 : index
    %c0_173 = arith.constant 0 : index
    %c0_174 = arith.constant 0 : index
    %227 = vector.load %arg17[%c2_172, %c0_173, %c0_174] : memref<4x32x8xf32, #tpu.memory_space<vmem>>, vector<1x32x8xf32>
    %228 = vector.shape_cast %227 : vector<1x32x8xf32> to vector<32x8xf32>
    %cst_175 = arith.constant dense<0.000000e+00> : vector<16x8xf32>
    %229 = tpu.matmul %170, %228, %cst_175 {dimension_numbers = #tpu.dot_dimension_numbers<[1], [0], [0], [1], [0, 0, 1, 1], [], []>} : vector<16x32xf32>, vector<32x8xf32>, vector<16x8xf32> -> vector<16x8xf32>
    %c2_176 = arith.constant 2 : index
    %c0_177 = arith.constant 0 : index
    %c0_178 = arith.constant 0 : index
    %230 = vector.load %arg18[%c2_176, %c0_177, %c0_178] : memref<4x1x8xf32, #tpu.memory_space<vmem>>, vector<1x1x8xf32>
    %231 = vector.shape_cast %230 : vector<1x1x8xf32> to vector<1x8xf32>
    %232 = vector.broadcast %231 : vector<1x8xf32> to vector<16x8xf32>
    %233 = arith.addf %229, %232 : vector<16x8xf32>
    %c3_179 = arith.constant 3 : index
    %c0_180 = arith.constant 0 : index
    %c0_181 = arith.constant 0 : index
    %234 = vector.load %arg13[%c3_179, %c0_180, %c0_181] : memref<4x32x8xf32, #tpu.memory_space<vmem>>, vector<1x32x8xf32>
    %235 = vector.shape_cast %234 : vector<1x32x8xf32> to vector<32x8xf32>
    %cst_182 = arith.constant dense<0.000000e+00> : vector<16x8xf32>
    %236 = tpu.matmul %1, %235, %cst_182 {dimension_numbers = #tpu.dot_dimension_numbers<[1], [0], [0], [1], [0, 0, 1, 1], [], []>} : vector<16x32xf32>, vector<32x8xf32>, vector<16x8xf32> -> vector<16x8xf32>
    %c3_183 = arith.constant 3 : index
    %c0_184 = arith.constant 0 : index
    %c0_185 = arith.constant 0 : index
    %237 = vector.load %arg14[%c3_183, %c0_184, %c0_185] : memref<4x1x8xf32, #tpu.memory_space<vmem>>, vector<1x1x8xf32>
    %238 = vector.shape_cast %237 : vector<1x1x8xf32> to vector<1x8xf32>
    %239 = vector.broadcast %238 : vector<1x8xf32> to vector<16x8xf32>
    %240 = arith.addf %236, %239 : vector<16x8xf32>
    %c3_186 = arith.constant 3 : index
    %c0_187 = arith.constant 0 : index
    %c0_188 = arith.constant 0 : index
    %241 = vector.load %arg15[%c3_186, %c0_187, %c0_188] : memref<4x32x8xf32, #tpu.memory_space<vmem>>, vector<1x32x8xf32>
    %242 = vector.shape_cast %241 : vector<1x32x8xf32> to vector<32x8xf32>
    %cst_189 = arith.constant dense<0.000000e+00> : vector<16x8xf32>
    %243 = tpu.matmul %170, %242, %cst_189 {dimension_numbers = #tpu.dot_dimension_numbers<[1], [0], [0], [1], [0, 0, 1, 1], [], []>} : vector<16x32xf32>, vector<32x8xf32>, vector<16x8xf32> -> vector<16x8xf32>
    %c3_190 = arith.constant 3 : index
    %c0_191 = arith.constant 0 : index
    %c0_192 = arith.constant 0 : index
    %244 = vector.load %arg16[%c3_190, %c0_191, %c0_192] : memref<4x1x8xf32, #tpu.memory_space<vmem>>, vector<1x1x8xf32>
    %245 = vector.shape_cast %244 : vector<1x1x8xf32> to vector<1x8xf32>
    %246 = vector.broadcast %245 : vector<1x8xf32> to vector<16x8xf32>
    %247 = arith.addf %243, %246 : vector<16x8xf32>
    %c3_193 = arith.constant 3 : index
    %c0_194 = arith.constant 0 : index
    %c0_195 = arith.constant 0 : index
    %248 = vector.load %arg17[%c3_193, %c0_194, %c0_195] : memref<4x32x8xf32, #tpu.memory_space<vmem>>, vector<1x32x8xf32>
    %249 = vector.shape_cast %248 : vector<1x32x8xf32> to vector<32x8xf32>
    %cst_196 = arith.constant dense<0.000000e+00> : vector<16x8xf32>
    %250 = tpu.matmul %170, %249, %cst_196 {dimension_numbers = #tpu.dot_dimension_numbers<[1], [0], [0], [1], [0, 0, 1, 1], [], []>} : vector<16x32xf32>, vector<32x8xf32>, vector<16x8xf32> -> vector<16x8xf32>
    %c3_197 = arith.constant 3 : index
    %c0_198 = arith.constant 0 : index
    %c0_199 = arith.constant 0 : index
    %251 = vector.load %arg18[%c3_197, %c0_198, %c0_199] : memref<4x1x8xf32, #tpu.memory_space<vmem>>, vector<1x1x8xf32>
    %252 = vector.shape_cast %251 : vector<1x1x8xf32> to vector<1x8xf32>
    %253 = vector.broadcast %252 : vector<1x8xf32> to vector<16x8xf32>
    %254 = arith.addf %250, %253 : vector<16x8xf32>
    %255 = vector.shape_cast %177 : vector<16x8xf32> to vector<1x16x8xf32>
    %256 = vector.shape_cast %198 : vector<16x8xf32> to vector<1x16x8xf32>
    %257 = vector.shape_cast %219 : vector<16x8xf32> to vector<1x16x8xf32>
    %258 = vector.shape_cast %240 : vector<16x8xf32> to vector<1x16x8xf32>
    %259 = tpu.concatenate %255, %256, %257, %258 in 0 : vector<1x16x8xf32>, vector<1x16x8xf32>, vector<1x16x8xf32>, vector<1x16x8xf32> -> vector<4x16x8xf32>
    %260 = vector.shape_cast %259 : vector<4x16x8xf32> to vector<8x8x8xf32>
    %261 = vector.shape_cast %184 : vector<16x8xf32> to vector<1x16x8xf32>
    %262 = vector.shape_cast %205 : vector<16x8xf32> to vector<1x16x8xf32>
    %263 = vector.shape_cast %226 : vector<16x8xf32> to vector<1x16x8xf32>
    %264 = vector.shape_cast %247 : vector<16x8xf32> to vector<1x16x8xf32>
    %265 = tpu.concatenate %261, %262, %263, %264 in 0 : vector<1x16x8xf32>, vector<1x16x8xf32>, vector<1x16x8xf32>, vector<1x16x8xf32> -> vector<4x16x8xf32>
    %266 = vector.shape_cast %265 : vector<4x16x8xf32> to vector<8x8x8xf32>
    %267 = vector.shape_cast %191 : vector<16x8xf32> to vector<1x16x8xf32>
    %268 = vector.shape_cast %212 : vector<16x8xf32> to vector<1x16x8xf32>
    %269 = vector.shape_cast %233 : vector<16x8xf32> to vector<1x16x8xf32>
    %270 = vector.shape_cast %254 : vector<16x8xf32> to vector<1x16x8xf32>
    %271 = tpu.concatenate %267, %268, %269, %270 in 0 : vector<1x16x8xf32>, vector<1x16x8xf32>, vector<1x16x8xf32>, vector<1x16x8xf32> -> vector<4x16x8xf32>
    %272 = vector.shape_cast %271 : vector<4x16x8xf32> to vector<8x8x8xf32>
    "tpu.trace_start"() <{level = 10 : i32, message = "nqe,nke->nqk"}> : () -> ()
    %cst_200 = arith.constant dense<0.000000e+00> : vector<8x8x8xf32>
    %273 = tpu.matmul %260, %266, %cst_200 {dimension_numbers = #tpu.dot_dimension_numbers<[2], [2], [1], [1], [0, 0, 0, 1, 1, 1], [0], [0]>} : vector<8x8x8xf32>, vector<8x8x8xf32>, vector<8x8x8xf32> -> vector<8x8x8xf32>
    "tpu.trace_stop"() : () -> ()
    %274 = vector.shape_cast %2 : vector<8x8xf32> to vector<1x8x8xf32>
    %275 = vector.broadcast %274 : vector<1x8x8xf32> to vector<8x8x8xf32>
    %276 = arith.addf %273, %275 : vector<8x8x8xf32>
    %cst_201 = arith.constant dense<0xFF800000> : vector<8x8xf32>
    %277 = vector.multi_reduction <maximumf>, %276, %cst_201 [2] : vector<8x8x8xf32> to vector<8x8xf32>
    %278 = vector.shape_cast %277 : vector<8x8xf32> to vector<8x8x1xf32>
    %279 = vector.broadcast %278 : vector<8x8x1xf32> to vector<8x8x8xf32>
    %280 = arith.subf %276, %279 : vector<8x8x8xf32>
    %281 = math.exp %280 : vector<8x8x8xf32>
    %cst_202 = arith.constant dense<0.000000e+00> : vector<8x8xf32>
    %282 = vector.multi_reduction <add>, %281, %cst_202 [2] : vector<8x8x8xf32> to vector<8x8xf32>
    %283 = vector.shape_cast %282 : vector<8x8xf32> to vector<8x8x1xf32>
    %284 = tpu.reciprocal %283 {approx = true} : vector<8x8x1xf32> -> vector<8x8x1xf32>
    %285 = vector.broadcast %284 : vector<8x8x1xf32> to vector<8x8x8xf32>
    %286 = arith.mulf %281, %285 : vector<8x8x8xf32>
    "tpu.trace_start"() <{level = 10 : i32, message = "nqk,nke->nqe"}> : () -> ()
    %cst_203 = arith.constant dense<0.000000e+00> : vector<8x8x8xf32>
    %287 = tpu.matmul %286, %272, %cst_203 {dimension_numbers = #tpu.dot_dimension_numbers<[2], [1], [1], [2], [0, 0, 0, 1, 1, 2], [0], [0]>} : vector<8x8x8xf32>, vector<8x8x8xf32>, vector<8x8x8xf32> -> vector<8x8x8xf32>
    "tpu.trace_stop"() : () -> ()
    %288 = vector.shape_cast %287 : vector<8x8x8xf32> to vector<4x16x8xf32>
    %289 = vector.extract_strided_slice %288 {offsets = [0, 0, 0], sizes = [1, 16, 8], strides = [1, 1, 1]} : vector<4x16x8xf32> to vector<1x16x8xf32>
    %290 = vector.shape_cast %289 : vector<1x16x8xf32> to vector<16x8xf32>
    %c0_204 = arith.constant 0 : index
    %c0_205 = arith.constant 0 : index
    %c0_206 = arith.constant 0 : index
    %291 = vector.load %arg19[%c0_204, %c0_205, %c0_206] : memref<4x8x32xf32, #tpu.memory_space<vmem>>, vector<1x8x32xf32>
    %292 = vector.shape_cast %291 : vector<1x8x32xf32> to vector<8x32xf32>
    %cst_207 = arith.constant dense<0.000000e+00> : vector<16x32xf32>
    %293 = tpu.matmul %290, %292, %cst_207 {dimension_numbers = #tpu.dot_dimension_numbers<[1], [0], [0], [1], [0, 0, 1, 1], [], []>} : vector<16x8xf32>, vector<8x32xf32>, vector<16x32xf32> -> vector<16x32xf32>
    %294 = vector.extract_strided_slice %288 {offsets = [1, 0, 0], sizes = [1, 16, 8], strides = [1, 1, 1]} : vector<4x16x8xf32> to vector<1x16x8xf32>
    %295 = vector.shape_cast %294 : vector<1x16x8xf32> to vector<16x8xf32>
    %c1_208 = arith.constant 1 : index
    %c0_209 = arith.constant 0 : index
    %c0_210 = arith.constant 0 : index
    %296 = vector.load %arg19[%c1_208, %c0_209, %c0_210] : memref<4x8x32xf32, #tpu.memory_space<vmem>>, vector<1x8x32xf32>
    %297 = vector.shape_cast %296 : vector<1x8x32xf32> to vector<8x32xf32>
    %cst_211 = arith.constant dense<0.000000e+00> : vector<16x32xf32>
    %298 = tpu.matmul %295, %297, %cst_211 {dimension_numbers = #tpu.dot_dimension_numbers<[1], [0], [0], [1], [0, 0, 1, 1], [], []>} : vector<16x8xf32>, vector<8x32xf32>, vector<16x32xf32> -> vector<16x32xf32>
    %299 = arith.addf %293, %298 : vector<16x32xf32>
    %300 = vector.extract_strided_slice %288 {offsets = [2, 0, 0], sizes = [1, 16, 8], strides = [1, 1, 1]} : vector<4x16x8xf32> to vector<1x16x8xf32>
    %301 = vector.shape_cast %300 : vector<1x16x8xf32> to vector<16x8xf32>
    %c2_212 = arith.constant 2 : index
    %c0_213 = arith.constant 0 : index
    %c0_214 = arith.constant 0 : index
    %302 = vector.load %arg19[%c2_212, %c0_213, %c0_214] : memref<4x8x32xf32, #tpu.memory_space<vmem>>, vector<1x8x32xf32>
    %303 = vector.shape_cast %302 : vector<1x8x32xf32> to vector<8x32xf32>
    %cst_215 = arith.constant dense<0.000000e+00> : vector<16x32xf32>
    %304 = tpu.matmul %301, %303, %cst_215 {dimension_numbers = #tpu.dot_dimension_numbers<[1], [0], [0], [1], [0, 0, 1, 1], [], []>} : vector<16x8xf32>, vector<8x32xf32>, vector<16x32xf32> -> vector<16x32xf32>
    %305 = arith.addf %299, %304 : vector<16x32xf32>
    %306 = vector.extract_strided_slice %288 {offsets = [3, 0, 0], sizes = [1, 16, 8], strides = [1, 1, 1]} : vector<4x16x8xf32> to vector<1x16x8xf32>
    %307 = vector.shape_cast %306 : vector<1x16x8xf32> to vector<16x8xf32>
    %c3_216 = arith.constant 3 : index
    %c0_217 = arith.constant 0 : index
    %c0_218 = arith.constant 0 : index
    %308 = vector.load %arg19[%c3_216, %c0_217, %c0_218] : memref<4x8x32xf32, #tpu.memory_space<vmem>>, vector<1x8x32xf32>
    %309 = vector.shape_cast %308 : vector<1x8x32xf32> to vector<8x32xf32>
    %cst_219 = arith.constant dense<0.000000e+00> : vector<16x32xf32>
    %310 = tpu.matmul %307, %309, %cst_219 {dimension_numbers = #tpu.dot_dimension_numbers<[1], [0], [0], [1], [0, 0, 1, 1], [], []>} : vector<16x8xf32>, vector<8x32xf32>, vector<16x32xf32> -> vector<16x32xf32>
    %311 = arith.addf %305, %310 : vector<16x32xf32>
    %c0_220 = arith.constant 0 : index
    %c0_221 = arith.constant 0 : index
    %312 = vector.load %arg20[%c0_220, %c0_221] : memref<1x32xf32, #tpu.memory_space<vmem>>, vector<1x32xf32>
    %313 = vector.broadcast %312 : vector<1x32xf32> to vector<16x32xf32>
    %314 = arith.addf %311, %313 : vector<16x32xf32>
    %315 = vector.shape_cast %286 : vector<8x8x8xf32> to vector<4x2x8x8xf32>
    %316 = arith.addf %170, %314 : vector<16x32xf32>
    %cst_222 = arith.constant dense<0.000000e+00> : vector<16xf32>
    %317 = vector.multi_reduction <add>, %316, %cst_222 [1] : vector<16x32xf32> to vector<16xf32>
    %318 = vector.shape_cast %317 : vector<16xf32> to vector<16x1xf32>
    %cst_223 = arith.constant 3.200000e+01 : f32
    %319 = vector.broadcast %cst_223 : f32 to vector<16x1xf32>
    %320 = arith.divf %318, %319 : vector<16x1xf32>
    %321 = vector.broadcast %320 : vector<16x1xf32> to vector<16x32xf32>
    %322 = arith.subf %316, %321 : vector<16x32xf32>
    %323 = arith.mulf %322, %322 : vector<16x32xf32>
    %cst_224 = arith.constant dense<0.000000e+00> : vector<16xf32>
    %324 = vector.multi_reduction <add>, %323, %cst_224 [1] : vector<16x32xf32> to vector<16xf32>
    %325 = vector.shape_cast %324 : vector<16xf32> to vector<16x1xf32>
    %cst_225 = arith.constant 3.200000e+01 : f32
    %326 = vector.broadcast %cst_225 : f32 to vector<16x1xf32>
    %327 = arith.divf %325, %326 : vector<16x1xf32>
    %cst_226 = arith.constant 9.99999974E-6 : f32
    %328 = vector.broadcast %cst_226 : f32 to vector<16x1xf32>
    %329 = arith.addf %327, %328 : vector<16x1xf32>
    %330 = math.rsqrt %329 : vector<16x1xf32>
    %331 = vector.broadcast %330 : vector<16x1xf32> to vector<16x32xf32>
    %332 = arith.mulf %322, %331 : vector<16x32xf32>
    %c0_227 = arith.constant 0 : index
    %c0_228 = arith.constant 0 : index
    %333 = vector.load %arg21[%c0_227, %c0_228] : memref<1x32xf32, #tpu.memory_space<vmem>>, vector<1x32xf32>
    %334 = vector.broadcast %333 : vector<1x32xf32> to vector<16x32xf32>
    %335 = arith.mulf %332, %334 : vector<16x32xf32>
    %c0_229 = arith.constant 0 : index
    %c0_230 = arith.constant 0 : index
    %336 = vector.load %arg22[%c0_229, %c0_230] : memref<1x32xf32, #tpu.memory_space<vmem>>, vector<1x32xf32>
    %337 = vector.broadcast %336 : vector<1x32xf32> to vector<16x32xf32>
    %338 = arith.addf %335, %337 : vector<16x32xf32>
    %c0_231 = arith.constant 0 : index
    %c0_232 = arith.constant 0 : index
    %339 = vector.load %arg23[%c0_231, %c0_232] : memref<32x32xf32, #tpu.memory_space<vmem>>, vector<32x32xf32>
    %cst_233 = arith.constant dense<0.000000e+00> : vector<16x32xf32>
    %340 = tpu.matmul %338, %339, %cst_233 {dimension_numbers = #tpu.dot_dimension_numbers<[1], [0], [0], [1], [0, 0, 1, 1], [], []>} : vector<16x32xf32>, vector<32x32xf32>, vector<16x32xf32> -> vector<16x32xf32>
    %c0_234 = arith.constant 0 : index
    %c0_235 = arith.constant 0 : index
    %341 = vector.load %arg24[%c0_234, %c0_235] : memref<1x32xf32, #tpu.memory_space<vmem>>, vector<1x32xf32>
    %342 = vector.broadcast %341 : vector<1x32xf32> to vector<16x32xf32>
    %343 = arith.addf %340, %342 : vector<16x32xf32>
    %cst_236 = arith.constant 0.000000e+00 : f32
    %344 = vector.broadcast %cst_236 : f32 to vector<16x32xf32>
    %345 = arith.maximumf %343, %344 : vector<16x32xf32>
    %c0_237 = arith.constant 0 : index
    %c0_238 = arith.constant 0 : index
    %346 = vector.load %arg25[%c0_237, %c0_238] : memref<32x32xf32, #tpu.memory_space<vmem>>, vector<32x32xf32>
    %cst_239 = arith.constant dense<0.000000e+00> : vector<16x32xf32>
    %347 = tpu.matmul %345, %346, %cst_239 {dimension_numbers = #tpu.dot_dimension_numbers<[1], [0], [0], [1], [0, 0, 1, 1], [], []>} : vector<16x32xf32>, vector<32x32xf32>, vector<16x32xf32> -> vector<16x32xf32>
    %c0_240 = arith.constant 0 : index
    %c0_241 = arith.constant 0 : index
    %348 = vector.load %arg26[%c0_240, %c0_241] : memref<1x32xf32, #tpu.memory_space<vmem>>, vector<1x32xf32>
    %349 = vector.broadcast %348 : vector<1x32xf32> to vector<16x32xf32>
    %350 = arith.addf %347, %349 : vector<16x32xf32>
    %351 = arith.addf %338, %350 : vector<16x32xf32>
    %cst_242 = arith.constant dense<0.000000e+00> : vector<16xf32>
    %352 = vector.multi_reduction <add>, %351, %cst_242 [1] : vector<16x32xf32> to vector<16xf32>
    %353 = vector.shape_cast %352 : vector<16xf32> to vector<16x1xf32>
    %cst_243 = arith.constant 3.200000e+01 : f32
    %354 = vector.broadcast %cst_243 : f32 to vector<16x1xf32>
    %355 = arith.divf %353, %354 : vector<16x1xf32>
    %356 = vector.broadcast %355 : vector<16x1xf32> to vector<16x32xf32>
    %357 = arith.subf %351, %356 : vector<16x32xf32>
    %358 = arith.mulf %357, %357 : vector<16x32xf32>
    %cst_244 = arith.constant dense<0.000000e+00> : vector<16xf32>
    %359 = vector.multi_reduction <add>, %358, %cst_244 [1] : vector<16x32xf32> to vector<16xf32>
    %360 = vector.shape_cast %359 : vector<16xf32> to vector<16x1xf32>
    %cst_245 = arith.constant 3.200000e+01 : f32
    %361 = vector.broadcast %cst_245 : f32 to vector<16x1xf32>
    %362 = arith.divf %360, %361 : vector<16x1xf32>
    %cst_246 = arith.constant 9.99999974E-6 : f32
    %363 = vector.broadcast %cst_246 : f32 to vector<16x1xf32>
    %364 = arith.addf %362, %363 : vector<16x1xf32>
    %365 = math.rsqrt %364 : vector<16x1xf32>
    %366 = vector.broadcast %365 : vector<16x1xf32> to vector<16x32xf32>
    %367 = arith.mulf %357, %366 : vector<16x32xf32>
    %c0_247 = arith.constant 0 : index
    %c0_248 = arith.constant 0 : index
    %368 = vector.load %arg27[%c0_247, %c0_248] : memref<1x32xf32, #tpu.memory_space<vmem>>, vector<1x32xf32>
    %369 = vector.broadcast %368 : vector<1x32xf32> to vector<16x32xf32>
    %370 = arith.mulf %367, %369 : vector<16x32xf32>
    %c0_249 = arith.constant 0 : index
    %c0_250 = arith.constant 0 : index
    %371 = vector.load %arg28[%c0_249, %c0_250] : memref<1x32xf32, #tpu.memory_space<vmem>>, vector<1x32xf32>
    %372 = vector.broadcast %371 : vector<1x32xf32> to vector<16x32xf32>
    %373 = arith.addf %370, %372 : vector<16x32xf32>
    %c0_251 = arith.constant 0 : index
    %c0_252 = arith.constant 0 : index
    %374 = vector.load %arg29[%c0_251, %c0_252] : memref<16x32xf32, #tpu.memory_space<vmem>>, vector<16x32xf32>
    tpu.vector_store %arg29[%c0_251, %c0_252], %373 {strides = array<i32>} : memref<16x32xf32, #tpu.memory_space<vmem>>, vector<16x32xf32>,
    %c0_253 = arith.constant 0 : index
    %c0_254 = arith.constant 0 : index
    %c0_255 = arith.constant 0 : index
    %c0_256 = arith.constant 0 : index
    %375 = vector.load %arg30[%c0_253, %c0_254, %c0_255, %c0_256] : memref<4x2x8x8xf32, #tpu.memory_space<vmem>>, vector<4x2x8x8xf32>
    tpu.vector_store %arg30[%c0_253, %c0_254, %c0_255, %c0_256], %147 {strides = array<i32>} : memref<4x2x8x8xf32, #tpu.memory_space<vmem>>, vector<4x2x8x8xf32>,
    %c0_257 = arith.constant 0 : index
    %c0_258 = arith.constant 0 : index
    %c0_259 = arith.constant 0 : index
    %c0_260 = arith.constant 0 : index
    %376 = vector.load %arg31[%c0_257, %c0_258, %c0_259, %c0_260] : memref<4x2x8x8xf32, #tpu.memory_space<vmem>>, vector<4x2x8x8xf32>
    tpu.vector_store %arg31[%c0_257, %c0_258, %c0_259, %c0_260], %315 {strides = array<i32>} : memref<4x2x8x8xf32, #tpu.memory_space<vmem>>, vector<4x2x8x8xf32>,
    return
  }
}

</mosaic_0001>

<llo_original>
// kernel: decoder_layer_shuffle_forward.1
$region0: #{decoder_layer_shuffle_forward.1}
  #allocation0 [shape = 'u32[]', space=smem, size = 0x4, offset = 0x4, fixed_abs, tag = 'smem constant byte address 0x4 - core index']
  #allocation1 [shape = 'u32[144,128]{1,0:T(1,128)}', space=vmem, size = 0x12000, scoped, tag = 'internal scratch']
  %s0 = inlined_call_operand.smem [shape: u32[32], index: -1, kind: input, shape index: {}]
  %s1 = sld [smem:[%s0]]
  %s2 = scalar_lea.smem %s0, 1
  %s3 = sld [smem:[%s2]]
  %s4 = scalar_lea.smem %s0, 2
  %s5 = sld [smem:[%s4]]
  %s6 = scalar_lea.smem %s0, 3
  %s7 = sld [smem:[%s6]]
  %s8 = scalar_lea.smem %s0, 4
  %s9 = sld [smem:[%s8]]
  %s10 = scalar_lea.smem %s0, 5
  %s11 = sld [smem:[%s10]]
  %s12 = scalar_lea.smem %s0, 6
  %s13 = sld [smem:[%s12]]
  %s14 = scalar_lea.smem %s0, 7
  %s15 = sld [smem:[%s14]]
  %s16 = scalar_lea.smem %s0, 8
  %s17 = sld [smem:[%s16]]
  %s18 = scalar_lea.smem %s0, 9
  %s19 = sld [smem:[%s18]]
  %s20 = scalar_lea.smem %s0, 10
  %s21 = sld [smem:[%s20]]
  %s22 = scalar_lea.smem %s0, 11
  %s23 = sld [smem:[%s22]]
  %s24 = scalar_lea.smem %s0, 12
  %s25 = sld [smem:[%s24]]
  %s26 = scalar_lea.smem %s0, 13
  %s27 = sld [smem:[%s26]]
  %s28 = scalar_lea.smem %s0, 14
  %s29 = sld [smem:[%s28]]
  %s30 = scalar_lea.smem %s0, 15
  %s31 = sld [smem:[%s30]]
  %s32 = scalar_lea.smem %s0, 16
  %s33 = sld [smem:[%s32]]
  %s34 = scalar_lea.smem %s0, 17
  %s35 = sld [smem:[%s34]]
  %s36 = scalar_lea.smem %s0, 18
  %s37 = sld [smem:[%s36]]
  %s38 = scalar_lea.smem %s0, 19
  %s39 = sld [smem:[%s38]]
  %s40 = scalar_lea.smem %s0, 20
  %s41 = sld [smem:[%s40]]
  %s42 = scalar_lea.smem %s0, 21
  %s43 = sld [smem:[%s42]]
  %s44 = scalar_lea.smem %s0, 22
  %s45 = sld [smem:[%s44]]
  %s46 = scalar_lea.smem %s0, 23
  %s47 = sld [smem:[%s46]]
  %s48 = scalar_lea.smem %s0, 24
  %s49 = sld [smem:[%s48]]
  %s50 = scalar_lea.smem %s0, 25
  %s51 = sld [smem:[%s50]]
  %s52 = scalar_lea.smem %s0, 26
  %s53 = sld [smem:[%s52]]
  %s54 = scalar_lea.smem %s0, 27
  %s55 = sld [smem:[%s54]]
  %s56 = scalar_lea.smem %s0, 28
  %s57 = sld [smem:[%s56]]
  %s58 = scalar_lea.smem %s0, 29
  %s59 = sld [smem:[%s58]]
  %s60 = scalar_lea.smem %s0, 30
  %s61 = sld [smem:[%s60]]
  %s62 = scalar_lea.smem %s0, 31
  %s63 = sld [smem:[%s62]]
  %64 = xla_tuple %s59, %s61, %s63
  %s65 = sld [smem:[#allocation0]]
  $region142: #{decoder_layer_shuffle_forward.1} parent=0
    _
  %s67 = ssub.s32 1, %s65
  %s68 = scalar_select 0, %s67, %s65
  $region1: #{decoder_layer_shuffle_forward.1} parent=0
    #allocation2 [shape = 'u8[8192]{0}', space=vmem, size = 0x2000, scoped, tag = 'output window, operand 0, single buffered']
    #allocation3 [shape = 's32[1]{0}', space=sflag, size = 0x4, scoped, tag = 'scoped memory for decoder_layer_shuffle_forward.1']
    %69 = vsyncpa [#allocation3], 0
    // Predicated region
    $region2: #{decoder_layer_shuffle_forward.1} parent=1 // pred_check
      _
    $region3: #{decoder_layer_shuffle_forward.1} parent=1 // pred_check_branch
      %71 = sbr.rel (0) target = $region5
    $region4: #{decoder_layer_shuffle_forward.1} parent=1 // pred_region
      _
    $region5: #{decoder_layer_shuffle_forward.1} parent=1 // pred_fallthru
      _
    // Predicated region
    $region6: #{decoder_layer_shuffle_forward.1} parent=1 // pred_check
      _
    $region7: #{decoder_layer_shuffle_forward.1} parent=1 // pred_check_branch
      %73 = sbr.rel (0) target = $region9
    $region8: #{decoder_layer_shuffle_forward.1} parent=1 // pred_region
      _
    $region9: #{decoder_layer_shuffle_forward.1} parent=1 // pred_fallthru
      _
    // Predicated region
    $region10: #{decoder_layer_shuffle_forward.1} parent=1 // pred_check
      _
    $region11: #{decoder_layer_shuffle_forward.1} parent=1 // pred_check_branch
      %75 = sbr.rel (0) target = $region13
    $region12: #{decoder_layer_shuffle_forward.1} parent=1 // pred_region
      _
    $region13: #{decoder_layer_shuffle_forward.1} parent=1 // pred_fallthru
      _
    // Predicated region
    $region14: #{decoder_layer_shuffle_forward.1} parent=1 // pred_check
      _
    $region15: #{decoder_layer_shuffle_forward.1} parent=1 // pred_check_branch
      %77 = sbr.rel (0) target = $region17
    $region16: #{decoder_layer_shuffle_forward.1} parent=1 // pred_region
      _
    $region17: #{decoder_layer_shuffle_forward.1} parent=1 // pred_fallthru
      _
    // Predicated region
    $region18: #{decoder_layer_shuffle_forward.1} parent=1 // pred_check
      _
    $region19: #{decoder_layer_shuffle_forward.1} parent=1 // pred_check_branch
      %79 = sbr.rel (0) target = $region21
    $region20: #{decoder_layer_shuffle_forward.1} parent=1 // pred_region
      _
    $region21: #{decoder_layer_shuffle_forward.1} parent=1 // pred_fallthru
      _
    // Predicated region
    $region22: #{decoder_layer_shuffle_forward.1} parent=1 // pred_check
      _
    $region23: #{decoder_layer_shuffle_forward.1} parent=1 // pred_check_branch
      %81 = sbr.rel (0) target = $region25
    $region24: #{decoder_layer_shuffle_forward.1} parent=1 // pred_region
      _
    $region25: #{decoder_layer_shuffle_forward.1} parent=1 // pred_fallthru
      _
    // Predicated region
    $region26: #{decoder_layer_shuffle_forward.1} parent=1 // pred_check
      _
    $region27: #{decoder_layer_shuffle_forward.1} parent=1 // pred_check_branch
      %83 = sbr.rel (0) target = $region29
    $region28: #{decoder_layer_shuffle_forward.1} parent=1 // pred_region
      _
    $region29: #{decoder_layer_shuffle_forward.1} parent=1 // pred_fallthru
      _
    // Predicated region
    $region30: #{decoder_layer_shuffle_forward.1} parent=1 // pred_check
      _
    $region31: #{decoder_layer_shuffle_forward.1} parent=1 // pred_check_branch
      %85 = sbr.rel (0) target = $region33
    $region32: #{decoder_layer_shuffle_forward.1} parent=1 // pred_region
      _
    $region33: #{decoder_layer_shuffle_forward.1} parent=1 // pred_fallthru
      _
    // Predicated region
    $region34: #{decoder_layer_shuffle_forward.1} parent=1 // pred_check
      _
    $region35: #{decoder_layer_shuffle_forward.1} parent=1 // pred_check_branch
      %87 = sbr.rel (0) target = $region37
    $region36: #{decoder_layer_shuffle_forward.1} parent=1 // pred_region
      _
    $region37: #{decoder_layer_shuffle_forward.1} parent=1 // pred_fallthru
      _
    // Predicated region
    $region38: #{decoder_layer_shuffle_forward.1} parent=1 // pred_check
      _
    $region39: #{decoder_layer_shuffle_forward.1} parent=1 // pred_check_branch
      %89 = sbr.rel (0) target = $region41
    $region40: #{decoder_layer_shuffle_forward.1} parent=1 // pred_region
      _
    $region41: #{decoder_layer_shuffle_forward.1} parent=1 // pred_fallthru
      _
    // Predicated region
    $region42: #{decoder_layer_shuffle_forward.1} parent=1 // pred_check
      _
    $region43: #{decoder_layer_shuffle_forward.1} parent=1 // pred_check_branch
      %91 = sbr.rel (0) target = $region45
    $region44: #{decoder_layer_shuffle_forward.1} parent=1 // pred_region
      _
    $region45: #{decoder_layer_shuffle_forward.1} parent=1 // pred_fallthru
      _
    // Predicated region
    $region46: #{decoder_layer_shuffle_forward.1} parent=1 // pred_check
      _
    $region47: #{decoder_layer_shuffle_forward.1} parent=1 // pred_check_branch
      %93 = sbr.rel (0) target = $region49
    $region48: #{decoder_layer_shuffle_forward.1} parent=1 // pred_region
      _
    $region49: #{decoder_layer_shuffle_forward.1} parent=1 // pred_fallthru
      _
    // Predicated region
    $region50: #{decoder_layer_shuffle_forward.1} parent=1 // pred_check
      _
    $region51: #{decoder_layer_shuffle_forward.1} parent=1 // pred_check_branch
      %95 = sbr.rel (0) target = $region53
    $region52: #{decoder_layer_shuffle_forward.1} parent=1 // pred_region
      _
    $region53: #{decoder_layer_shuffle_forward.1} parent=1 // pred_fallthru
      _
    // Predicated region
    $region54: #{decoder_layer_shuffle_forward.1} parent=1 // pred_check
      _
    $region55: #{decoder_layer_shuffle_forward.1} parent=1 // pred_check_branch
      %97 = sbr.rel (0) target = $region57
    $region56: #{decoder_layer_shuffle_forward.1} parent=1 // pred_region
      _
    $region57: #{decoder_layer_shuffle_forward.1} parent=1 // pred_fallthru
      _
    // Predicated region
    $region58: #{decoder_layer_shuffle_forward.1} parent=1 // pred_check
      _
    $region59: #{decoder_layer_shuffle_forward.1} parent=1 // pred_check_branch
      %99 = sbr.rel (0) target = $region61
    $region60: #{decoder_layer_shuffle_forward.1} parent=1 // pred_region
      _
    $region61: #{decoder_layer_shuffle_forward.1} parent=1 // pred_fallthru
      _
    // Predicated region
    $region62: #{decoder_layer_shuffle_forward.1} parent=1 // pred_check
      _
    $region63: #{decoder_layer_shuffle_forward.1} parent=1 // pred_check_branch
      %101 = sbr.rel (0) target = $region65
    $region64: #{decoder_layer_shuffle_forward.1} parent=1 // pred_region
      _
    $region65: #{decoder_layer_shuffle_forward.1} parent=1 // pred_fallthru
      _
    // Predicated region
    $region66: #{decoder_layer_shuffle_forward.1} parent=1 // pred_check
      _
    $region67: #{decoder_layer_shuffle_forward.1} parent=1 // pred_check_branch
      %103 = sbr.rel (0) target = $region69
    $region68: #{decoder_layer_shuffle_forward.1} parent=1 // pred_region
      _
    $region69: #{decoder_layer_shuffle_forward.1} parent=1 // pred_fallthru
      _
    // Predicated region
    $region70: #{decoder_layer_shuffle_forward.1} parent=1 // pred_check
      _
    $region71: #{decoder_layer_shuffle_forward.1} parent=1 // pred_check_branch
      %105 = sbr.rel (0) target = $region73
    $region72: #{decoder_layer_shuffle_forward.1} parent=1 // pred_region
      _
    $region73: #{decoder_layer_shuffle_forward.1} parent=1 // pred_fallthru
      _
    // Predicated region
    $region74: #{decoder_layer_shuffle_forward.1} parent=1 // pred_check
      _
    $region75: #{decoder_layer_shuffle_forward.1} parent=1 // pred_check_branch
      %107 = sbr.rel (0) target = $region77
    $region76: #{decoder_layer_shuffle_forward.1} parent=1 // pred_region
      _
    $region77: #{decoder_layer_shuffle_forward.1} parent=1 // pred_fallthru
      _
    // Predicated region
    $region78: #{decoder_layer_shuffle_forward.1} parent=1 // pred_check
      _
    $region79: #{decoder_layer_shuffle_forward.1} parent=1 // pred_check_branch
      %109 = sbr.rel (0) target = $region81
    $region80: #{decoder_layer_shuffle_forward.1} parent=1 // pred_region
      _
    $region81: #{decoder_layer_shuffle_forward.1} parent=1 // pred_fallthru
      _
    // Predicated region
    $region82: #{decoder_layer_shuffle_forward.1} parent=1 // pred_check
      _
    $region83: #{decoder_layer_shuffle_forward.1} parent=1 // pred_check_branch
      %111 = sbr.rel (0) target = $region85
    $region84: #{decoder_layer_shuffle_forward.1} parent=1 // pred_region
      _
    $region85: #{decoder_layer_shuffle_forward.1} parent=1 // pred_fallthru
      _
    // Predicated region
    $region86: #{decoder_layer_shuffle_forward.1} parent=1 // pred_check
      _
    $region87: #{decoder_layer_shuffle_forward.1} parent=1 // pred_check_branch
      %113 = sbr.rel (0) target = $region89
    $region88: #{decoder_layer_shuffle_forward.1} parent=1 // pred_region
      _
    $region89: #{decoder_layer_shuffle_forward.1} parent=1 // pred_fallthru
      _
    // Predicated region
    $region90: #{decoder_layer_shuffle_forward.1} parent=1 // pred_check
      _
    $region91: #{decoder_layer_shuffle_forward.1} parent=1 // pred_check_branch
      %115 = sbr.rel (0) target = $region93
    $region92: #{decoder_layer_shuffle_forward.1} parent=1 // pred_region
      _
    $region93: #{decoder_layer_shuffle_forward.1} parent=1 // pred_fallthru
      _
    // Predicated region
    $region94: #{decoder_layer_shuffle_forward.1} parent=1 // pred_check
      _
    $region95: #{decoder_layer_shuffle_forward.1} parent=1 // pred_check_branch
      %117 = sbr.rel (0) target = $region97
    $region96: #{decoder_layer_shuffle_forward.1} parent=1 // pred_region
      _
    $region97: #{decoder_layer_shuffle_forward.1} parent=1 // pred_fallthru
      _
    // Predicated region
    $region98: #{decoder_layer_shuffle_forward.1} parent=1 // pred_check
      _
    $region99: #{decoder_layer_shuffle_forward.1} parent=1 // pred_check_branch
      %119 = sbr.rel (0) target = $region101
    $region100: #{decoder_layer_shuffle_forward.1} parent=1 // pred_region
      _
    $region101: #{decoder_layer_shuffle_forward.1} parent=1 // pred_fallthru
      _
    // Predicated region
    $region102: #{decoder_layer_shuffle_forward.1} parent=1 // pred_check
      _
    $region103: #{decoder_layer_shuffle_forward.1} parent=1 // pred_check_branch
      %121 = sbr.rel (0) target = $region105
    $region104: #{decoder_layer_shuffle_forward.1} parent=1 // pred_region
      _
    $region105: #{decoder_layer_shuffle_forward.1} parent=1 // pred_fallthru
      _
    // Predicated region
    $region106: #{decoder_layer_shuffle_forward.1} parent=1 // pred_check
      _
    $region107: #{decoder_layer_shuffle_forward.1} parent=1 // pred_check_branch
      %123 = sbr.rel (0) target = $region109
    $region108: #{decoder_layer_shuffle_forward.1} parent=1 // pred_region
      _
    $region109: #{decoder_layer_shuffle_forward.1} parent=1 // pred_fallthru
      _
    // Predicated region
    $region110: #{decoder_layer_shuffle_forward.1} parent=1 // pred_check
      _
    $region111: #{decoder_layer_shuffle_forward.1} parent=1 // pred_check_branch
      %125 = sbr.rel (0) target = $region113
    $region112: #{decoder_layer_shuffle_forward.1} parent=1 // pred_region
      _
    $region113: #{decoder_layer_shuffle_forward.1} parent=1 // pred_fallthru
      _
    // Predicated region
    $region114: #{decoder_layer_shuffle_forward.1} parent=1 // pred_check
      _
    $region115: #{decoder_layer_shuffle_forward.1} parent=1 // pred_check_branch
      %127 = sbr.rel (0) target = $region117
    $region116: #{decoder_layer_shuffle_forward.1} parent=1 // pred_region
      _
    $region117: #{decoder_layer_shuffle_forward.1} parent=1 // pred_fallthru
      _
    %v128 = vld [vmem:[%s1] sm:$0xff]
    %v129 = vld [vmem:[%s1 + $0x8] sm:$0xff]
    %v130 = vld [vmem:[%s3] sm:$0xff]
    %v131 = vld [vmem:[%s3 + $0x8] sm:$0xff]
    %v132 = vld [vmem:[%s5] sm:$0xff]
    %v133 = vld [vmem:[%s7] sm:$0xff]
    %v134 = vld [vmem:[%s7 + $0x8] sm:$0xff]
    %v135 = vld [vmem:[%s7 + $0x10] sm:$0xff]
    %v136 = vld [vmem:[%s7 + $0x18] sm:$0xff]
    %v137 = vld [vmem:[%s9] sm:$0x1]
    %v139 = vlaneseq
    %v140 = vshrl.u32 %v139, 7
    %v141 = vsub.s32 0, %v140
    %v142 = vrot.slane %v137, %v141
    %vm144 = vcmask 261120
    %v146 = vsel %vm144, %v128, 0
    %v149 = vsel %vm144, %v129, 0
    %151 = vmatprep.subr.mxu0 0.0
    %152 = vmatpush1.msra.mxu0 %v133
    %153 = vmatprep.subr.mxu0 0.0
    %154 = vmatpush1.msra.mxu0 %v134
    %155 = vmatprep.subr.mxu0 0.0
    %156 = vmatpush1.msra.mxu0 %v135
    %157 = vmatprep.subr.mxu0 0.0
    %158 = vmatpush1.msra.mxu0 %v136
    %159 = vmatprep.subr.mxu0 0.0
    %160 = vmatpush1.msra.mxu0 0.0
    %161 = vmatprep.subr.mxu0 0.0
    %162 = vmatpush1.msra.mxu0 0.0
    %163 = vmatprep.subr.mxu0 0.0
    %164 = vmatpush1.msra.mxu0 0.0
    %165 = vmatprep.subr.mxu0 0.0
    %166 = vmatpush1.msra.mxu0 0.0
    %167 = vmatprep.subr.mxu0 0.0
    %168 = vmatpush1.msra.mxu0 0.0
    %169 = vmatprep.subr.mxu0 0.0
    %170 = vmatpush1.msra.mxu0 0.0
    %171 = vmatprep.subr.mxu0 0.0
    %172 = vmatpush1.msra.mxu0 0.0
    %173 = vmatprep.subr.mxu0 0.0
    %174 = vmatpush1.msra.mxu0 0.0
    %175 = vmatprep.subr.mxu0 0.0
    %176 = vmatpush1.msra.mxu0 0.0
    %177 = vmatprep.subr.mxu0 0.0
    %178 = vmatpush1.msra.mxu0 0.0
    %179 = vmatprep.subr.mxu0 0.0
    %180 = vmatpush1.msra.mxu0 0.0
    %181 = vmatprep.subr.mxu0 0.0
    %182 = vmatpush1.msra.mxu0 0.0
    %183 = vmatprep.subr.mxu0 0.0
    %184 = vmatpush1.msra.mxu0 0.0
    %185 = vmatprep.subr.mxu0 0.0
    %186 = vmatpush1.msra.mxu0 0.0
    %187 = vmatprep.subr.mxu0 0.0
    %188 = vmatpush1.msra.mxu0 0.0
    %189 = vmatprep.subr.mxu0 0.0
    %190 = vmatpush1.msra.mxu0 0.0
    %191 = vmatprep.subr.mxu0 0.0
    %192 = vmatpush1.msra.mxu0 0.0
    %193 = vmatprep.subr.mxu0 0.0
    %194 = vmatpush1.msra.mxu0 0.0
    %195 = vmatprep.subr.mxu0 0.0
    %196 = vmatpush1.msra.mxu0 0.0
    %197 = vmatprep.subr.mxu0 0.0
    %198 = vmatpush1.msra.mxu0 0.0
    %199 = vmatprep.subr.mxu0 0.0
    %200 = vmatpush1.msra.mxu0 0.0
    %201 = vmatprep.subr.mxu0 0.0
    %202 = vmatpush1.msra.mxu0 0.0
    %203 = vmatprep.subr.mxu0 0.0
    %204 = vmatpush1.msra.mxu0 0.0
    %205 = vmatprep.subr.mxu0 0.0
    %206 = vmatpush1.msra.mxu0 0.0
    %207 = vmatprep.subr.mxu0 0.0
    %208 = vmatpush1.msra.mxu0 0.0
    %209 = vmatprep.subr.mxu0 0.0
    %210 = vmatpush1.msra.mxu0 0.0
    %211 = vmatprep.subr.mxu0 0.0
    %212 = vmatpush1.msra.mxu0 0.0
    %213 = vmatprep.subr.mxu0 0.0
    %214 = vmatpush1.msra.mxu0 0.0
    %215 = vmatprep.mubr.f32.mxu0 0.0
    %216 = vmatmul.mubr.f32.gmra.mrb[0].mxu0 %v146
    %v217 = vpop.f32.mrb[0].mxu0
    %v218 = vadd.f32 %v142, %v217
    %v219 = vpop.f32.mrb[0].mxu0
    %220 = vmatprep.mubr.f32.mxu0 0.0
    %221 = vmatmul.mubr.f32.gmra.mrb[0].mxu0 %v149
    %v222 = vpop.f32.mrb[0].mxu0
    %v223 = vadd.f32 %v142, %v222
    %v224 = vpop.f32.mrb[0].mxu0
    %225 = vdwg.mxu0
    %v226 = vld [vmem:[%s11] sm:$0xff]
    %v227 = vld [vmem:[%s11 + $0x8] sm:$0xff]
    %v228 = vld [vmem:[%s11 + $0x10] sm:$0xff]
    %v229 = vld [vmem:[%s11 + $0x18] sm:$0xff]
    %v230 = vld [vmem:[%s13] sm:$0x1]
    %v232 = vlaneseq
    %v233 = vshrl.u32 %v232, 7
    %v234 = vsub.s32 0, %v233
    %v235 = vrot.slane %v230, %v234
    %237 = vmatprep.subr.mxu0 0.0
    %238 = vmatpush1.msra.mxu0 %v226
    %239 = vmatprep.subr.mxu0 0.0
    %240 = vmatpush1.msra.mxu0 %v227
    %241 = vmatprep.subr.mxu0 0.0
    %242 = vmatpush1.msra.mxu0 %v228
    %243 = vmatprep.subr.mxu0 0.0
    %244 = vmatpush1.msra.mxu0 %v229
    %245 = vmatprep.subr.mxu0 0.0
    %246 = vmatpush1.msra.mxu0 0.0
    %247 = vmatprep.subr.mxu0 0.0
    %248 = vmatpush1.msra.mxu0 0.0
    %249 = vmatprep.subr.mxu0 0.0
    %250 = vmatpush1.msra.mxu0 0.0
    %251 = vmatprep.subr.mxu0 0.0
    %252 = vmatpush1.msra.mxu0 0.0
    %253 = vmatprep.subr.mxu0 0.0
    %254 = vmatpush1.msra.mxu0 0.0
    %255 = vmatprep.subr.mxu0 0.0
    %256 = vmatpush1.msra.mxu0 0.0
    %257 = vmatprep.subr.mxu0 0.0
    %258 = vmatpush1.msra.mxu0 0.0
    %259 = vmatprep.subr.mxu0 0.0
    %260 = vmatpush1.msra.mxu0 0.0
    %261 = vmatprep.subr.mxu0 0.0
    %262 = vmatpush1.msra.mxu0 0.0
    %263 = vmatprep.subr.mxu0 0.0
    %264 = vmatpush1.msra.mxu0 0.0
    %265 = vmatprep.subr.mxu0 0.0
    %266 = vmatpush1.msra.mxu0 0.0
    %267 = vmatprep.subr.mxu0 0.0
    %268 = vmatpush1.msra.mxu0 0.0
    %269 = vmatprep.subr.mxu0 0.0
    %270 = vmatpush1.msra.mxu0 0.0
    %271 = vmatprep.subr.mxu0 0.0
    %272 = vmatpush1.msra.mxu0 0.0
    %273 = vmatprep.subr.mxu0 0.0
    %274 = vmatpush1.msra.mxu0 0.0
    %275 = vmatprep.subr.mxu0 0.0
    %276 = vmatpush1.msra.mxu0 0.0
    %277 = vmatprep.subr.mxu0 0.0
    %278 = vmatpush1.msra.mxu0 0.0
    %279 = vmatprep.subr.mxu0 0.0
    %280 = vmatpush1.msra.mxu0 0.0
    %281 = vmatprep.subr.mxu0 0.0
    %282 = vmatpush1.msra.mxu0 0.0
    %283 = vmatprep.subr.mxu0 0.0
    %284 = vmatpush1.msra.mxu0 0.0
    %285 = vmatprep.subr.mxu0 0.0
    %286 = vmatpush1.msra.mxu0 0.0
    %287 = vmatprep.subr.mxu0 0.0
    %288 = vmatpush1.msra.mxu0 0.0
    %289 = vmatprep.subr.mxu0 0.0
    %290 = vmatpush1.msra.mxu0 0.0
    %291 = vmatprep.subr.mxu0 0.0
    %292 = vmatpush1.msra.mxu0 0.0
    %293 = vmatprep.subr.mxu0 0.0
    %294 = vmatpush1.msra.mxu0 0.0
    %295 = vmatprep.subr.mxu0 0.0
    %296 = vmatpush1.msra.mxu0 0.0
    %297 = vmatprep.subr.mxu0 0.0
    %298 = vmatpush1.msra.mxu0 0.0
    %299 = vmatprep.subr.mxu0 0.0
    %300 = vmatpush1.msra.mxu0 0.0
    %301 = vmatprep.mubr.f32.mxu0 0.0
    %302 = vmatmul.mubr.f32.gmra.mrb[0].mxu0 %v146
    %v303 = vpop.f32.mrb[0].mxu0
    %v304 = vadd.f32 %v235, %v303
    %v305 = vpop.f32.mrb[0].mxu0
    %306 = vmatprep.mubr.f32.mxu0 0.0
    %307 = vmatmul.mubr.f32.gmra.mrb[0].mxu0 %v149
    %v308 = vpop.f32.mrb[0].mxu0
    %v309 = vadd.f32 %v235, %v308
    %v310 = vpop.f32.mrb[0].mxu0
    %311 = vdwg.mxu0
    %v312 = vld [vmem:[%s15] sm:$0xff]
    %v313 = vld [vmem:[%s15 + $0x8] sm:$0xff]
    %v314 = vld [vmem:[%s15 + $0x10] sm:$0xff]
    %v315 = vld [vmem:[%s15 + $0x18] sm:$0xff]
    %v316 = vld [vmem:[%s17] sm:$0x1]
    %v318 = vlaneseq
    %v319 = vshrl.u32 %v318, 7
    %v320 = vsub.s32 0, %v319
    %v321 = vrot.slane %v316, %v320
    %323 = vmatprep.subr.mxu0 0.0
    %324 = vmatpush1.msra.mxu0 %v312
    %325 = vmatprep.subr.mxu0 0.0
    %326 = vmatpush1.msra.mxu0 %v313
    %327 = vmatprep.subr.mxu0 0.0
    %328 = vmatpush1.msra.mxu0 %v314
    %329 = vmatprep.subr.mxu0 0.0
    %330 = vmatpush1.msra.mxu0 %v315
    %331 = vmatprep.subr.mxu0 0.0
    %332 = vmatpush1.msra.mxu0 0.0
    %333 = vmatprep.subr.mxu0 0.0
    %334 = vmatpush1.msra.mxu0 0.0
    %335 = vmatprep.subr.mxu0 0.0
    %336 = vmatpush1.msra.mxu0 0.0
    %337 = vmatprep.subr.mxu0 0.0
    %338 = vmatpush1.msra.mxu0 0.0
    %339 = vmatprep.subr.mxu0 0.0
    %340 = vmatpush1.msra.mxu0 0.0
    %341 = vmatprep.subr.mxu0 0.0
    %342 = vmatpush1.msra.mxu0 0.0
    %343 = vmatprep.subr.mxu0 0.0
    %344 = vmatpush1.msra.mxu0 0.0
    %345 = vmatprep.subr.mxu0 0.0
    %346 = vmatpush1.msra.mxu0 0.0
    %347 = vmatprep.subr.mxu0 0.0
    %348 = vmatpush1.msra.mxu0 0.0
    %349 = vmatprep.subr.mxu0 0.0
    %350 = vmatpush1.msra.mxu0 0.0
    %351 = vmatprep.subr.mxu0 0.0
    %352 = vmatpush1.msra.mxu0 0.0
    %353 = vmatprep.subr.mxu0 0.0
    %354 = vmatpush1.msra.mxu0 0.0
    %355 = vmatprep.subr.mxu0 0.0
    %356 = vmatpush1.msra.mxu0 0.0
    %357 = vmatprep.subr.mxu0 0.0
    %358 = vmatpush1.msra.mxu0 0.0
    %359 = vmatprep.subr.mxu0 0.0
    %360 = vmatpush1.msra.mxu0 0.0
    %361 = vmatprep.subr.mxu0 0.0
    %362 = vmatpush1.msra.mxu0 0.0
    %363 = vmatprep.subr.mxu0 0.0
    %364 = vmatpush1.msra.mxu0 0.0
    %365 = vmatprep.subr.mxu0 0.0
    %366 = vmatpush1.msra.mxu0 0.0
    %367 = vmatprep.subr.mxu0 0.0
    %368 = vmatpush1.msra.mxu0 0.0
    %369 = vmatprep.subr.mxu0 0.0
    %370 = vmatpush1.msra.mxu0 0.0
    %371 = vmatprep.subr.mxu0 0.0
    %372 = vmatpush1.msra.mxu0 0.0
    %373 = vmatprep.subr.mxu0 0.0
    %374 = vmatpush1.msra.mxu0 0.0
    %375 = vmatprep.subr.mxu0 0.0
    %376 = vmatpush1.msra.mxu0 0.0
    %377 = vmatprep.subr.mxu0 0.0
    %378 = vmatpush1.msra.mxu0 0.0
    %379 = vmatprep.subr.mxu0 0.0
    %380 = vmatpush1.msra.mxu0 0.0
    %381 = vmatprep.subr.mxu0 0.0
    %382 = vmatpush1.msra.mxu0 0.0
    %383 = vmatprep.subr.mxu0 0.0
    %384 = vmatpush1.msra.mxu0 0.0
    %385 = vmatprep.subr.mxu0 0.0
    %386 = vmatpush1.msra.mxu0 0.0
    %387 = vmatprep.mubr.f32.mxu0 0.0
    %388 = vmatmul.mubr.f32.gmra.mrb[0].mxu0 %v146
    %v389 = vpop.f32.mrb[0].mxu0
    %v390 = vadd.f32 %v321, %v389
    %v391 = vpop.f32.mrb[0].mxu0
    %392 = vmatprep.mubr.f32.mxu0 0.0
    %393 = vmatmul.mubr.f32.gmra.mrb[0].mxu0 %v149
    %v394 = vpop.f32.mrb[0].mxu0
    %v395 = vadd.f32 %v321, %v394
    %v396 = vpop.f32.mrb[0].mxu0
    %397 = vdwg.mxu0
    %s398 = scalar_lea.vmem %s7, 32
    %v399 = vld [vmem:[%s398] sm:$0xff]
    %v400 = vld [vmem:[%s398 + $0x8] sm:$0xff]
    %v401 = vld [vmem:[%s398 + $0x10] sm:$0xff]
    %v402 = vld [vmem:[%s398 + $0x18] sm:$0xff]
    %s403 = scalar_lea.vmem %s9, 1
    %v404 = vld [vmem:[%s403] sm:$0x1]
    %v406 = vlaneseq
    %v407 = vshrl.u32 %v406, 7
    %v408 = vsub.s32 0, %v407
    %v409 = vrot.slane %v404, %v408
    %411 = vmatprep.subr.mxu0 0.0
    %412 = vmatpush1.msra.mxu0 %v399
    %413 = vmatprep.subr.mxu0 0.0
    %414 = vmatpush1.msra.mxu0 %v400
    %415 = vmatprep.subr.mxu0 0.0
    %416 = vmatpush1.msra.mxu0 %v401
    %417 = vmatprep.subr.mxu0 0.0
    %418 = vmatpush1.msra.mxu0 %v402
    %419 = vmatprep.subr.mxu0 0.0
    %420 = vmatpush1.msra.mxu0 0.0
    %421 = vmatprep.subr.mxu0 0.0
    %422 = vmatpush1.msra.mxu0 0.0
    %423 = vmatprep.subr.mxu0 0.0
    %424 = vmatpush1.msra.mxu0 0.0
    %425 = vmatprep.subr.mxu0 0.0
    %426 = vmatpush1.msra.mxu0 0.0
    %427 = vmatprep.subr.mxu0 0.0
    %428 = vmatpush1.msra.mxu0 0.0
    %429 = vmatprep.subr.mxu0 0.0
    %430 = vmatpush1.msra.mxu0 0.0
    %431 = vmatprep.subr.mxu0 0.0
    %432 = vmatpush1.msra.mxu0 0.0
    %433 = vmatprep.subr.mxu0 0.0
    %434 = vmatpush1.msra.mxu0 0.0
    %435 = vmatprep.subr.mxu0 0.0
    %436 = vmatpush1.msra.mxu0 0.0
    %437 = vmatprep.subr.mxu0 0.0
    %438 = vmatpush1.msra.mxu0 0.0
    %439 = vmatprep.subr.mxu0 0.0
    %440 = vmatpush1.msra.mxu0 0.0
    %441 = vmatprep.subr.mxu0 0.0
    %442 = vmatpush1.msra.mxu0 0.0
    %443 = vmatprep.subr.mxu0 0.0
    %444 = vmatpush1.msra.mxu0 0.0
    %445 = vmatprep.subr.mxu0 0.0
    %446 = vmatpush1.msra.mxu0 0.0
    %447 = vmatprep.subr.mxu0 0.0
    %448 = vmatpush1.msra.mxu0 0.0
    %449 = vmatprep.subr.mxu0 0.0
    %450 = vmatpush1.msra.mxu0 0.0
    %451 = vmatprep.subr.mxu0 0.0
    %452 = vmatpush1.msra.mxu0 0.0
    %453 = vmatprep.subr.mxu0 0.0
    %454 = vmatpush1.msra.mxu0 0.0
    %455 = vmatprep.subr.mxu0 0.0
    %456 = vmatpush1.msra.mxu0 0.0
    %457 = vmatprep.subr.mxu0 0.0
    %458 = vmatpush1.msra.mxu0 0.0
    %459 = vmatprep.subr.mxu0 0.0
    %460 = vmatpush1.msra.mxu0 0.0
    %461 = vmatprep.subr.mxu0 0.0
    %462 = vmatpush1.msra.mxu0 0.0
    %463 = vmatprep.subr.mxu0 0.0
    %464 = vmatpush1.msra.mxu0 0.0
    %465 = vmatprep.subr.mxu0 0.0
    %466 = vmatpush1.msra.mxu0 0.0
    %467 = vmatprep.subr.mxu0 0.0
    %468 = vmatpush1.msra.mxu0 0.0
    %469 = vmatprep.subr.mxu0 0.0
    %470 = vmatpush1.msra.mxu0 0.0
    %471 = vmatprep.subr.mxu0 0.0
    %472 = vmatpush1.msra.mxu0 0.0
    %473 = vmatprep.subr.mxu0 0.0
    %474 = vmatpush1.msra.mxu0 0.0
    %475 = vmatprep.mubr.f32.mxu0 0.0
    %476 = vmatmul.mubr.f32.gmra.mrb[0].mxu0 %v146
    %v477 = vpop.f32.mrb[0].mxu0
    %v478 = vadd.f32 %v409, %v477
    %v479 = vpop.f32.mrb[0].mxu0
    %480 = vmatprep.mubr.f32.mxu0 0.0
    %481 = vmatmul.mubr.f32.gmra.mrb[0].mxu0 %v149
    %v482 = vpop.f32.mrb[0].mxu0
    %v483 = vadd.f32 %v409, %v482
    %v484 = vpop.f32.mrb[0].mxu0
    %485 = vdwg.mxu0
    %s486 = scalar_lea.vmem %s11, 32
    %v487 = vld [vmem:[%s486] sm:$0xff]
    %v488 = vld [vmem:[%s486 + $0x8] sm:$0xff]
    %v489 = vld [vmem:[%s486 + $0x10] sm:$0xff]
    %v490 = vld [vmem:[%s486 + $0x18] sm:$0xff]
    %s491 = scalar_lea.vmem %s13, 1
    %v492 = vld [vmem:[%s491] sm:$0x1]
    %v494 = vlaneseq
    %v495 = vshrl.u32 %v494, 7
    %v496 = vsub.s32 0, %v495
    %v497 = vrot.slane %v492, %v496
    %499 = vmatprep.subr.mxu0 0.0
    %500 = vmatpush1.msra.mxu0 %v487
    %501 = vmatprep.subr.mxu0 0.0
    %502 = vmatpush1.msra.mxu0 %v488
    %503 = vmatprep.subr.mxu0 0.0
    %504 = vmatpush1.msra.mxu0 %v489
    %505 = vmatprep.subr.mxu0 0.0
    %506 = vmatpush1.msra.mxu0 %v490
    %507 = vmatprep.subr.mxu0 0.0
    %508 = vmatpush1.msra.mxu0 0.0
    %509 = vmatprep.subr.mxu0 0.0
    %510 = vmatpush1.msra.mxu0 0.0
    %511 = vmatprep.subr.mxu0 0.0
    %512 = vmatpush1.msra.mxu0 0.0
    %513 = vmatprep.subr.mxu0 0.0
    %514 = vmatpush1.msra.mxu0 0.0
    %515 = vmatprep.subr.mxu0 0.0
    %516 = vmatpush1.msra.mxu0 0.0
    %517 = vmatprep.subr.mxu0 0.0
    %518 = vmatpush1.msra.mxu0 0.0
    %519 = vmatprep.subr.mxu0 0.0
    %520 = vmatpush1.msra.mxu0 0.0
    %521 = vmatprep.subr.mxu0 0.0
    %522 = vmatpush1.msra.mxu0 0.0
    %523 = vmatprep.subr.mxu0 0.0
    %524 = vmatpush1.msra.mxu0 0.0
    %525 = vmatprep.subr.mxu0 0.0
    %526 = vmatpush1.msra.mxu0 0.0
    %527 = vmatprep.subr.mxu0 0.0
    %528 = vmatpush1.msra.mxu0 0.0
    %529 = vmatprep.subr.mxu0 0.0
    %530 = vmatpush1.msra.mxu0 0.0
    %531 = vmatprep.subr.mxu0 0.0
    %532 = vmatpush1.msra.mxu0 0.0
    %533 = vmatprep.subr.mxu0 0.0
    %534 = vmatpush1.msra.mxu0 0.0
    %535 = vmatprep.subr.mxu0 0.0
    %536 = vmatpush1.msra.mxu0 0.0
    %537 = vmatprep.subr.mxu0 0.0
    %538 = vmatpush1.msra.mxu0 0.0
    %539 = vmatprep.subr.mxu0 0.0
    %540 = vmatpush1.msra.mxu0 0.0
    %541 = vmatprep.subr.mxu0 0.0
    %542 = vmatpush1.msra.mxu0 0.0
    %543 = vmatprep.subr.mxu0 0.0
    %544 = vmatpush1.msra.mxu0 0.0
    %545 = vmatprep.subr.mxu0 0.0
    %546 = vmatpush1.msra.mxu0 0.0
    %547 = vmatprep.subr.mxu0 0.0
    %548 = vmatpush1.msra.mxu0 0.0
    %549 = vmatprep.subr.mxu0 0.0
    %550 = vmatpush1.msra.mxu0 0.0
    %551 = vmatprep.subr.mxu0 0.0
    %552 = vmatpush1.msra.mxu0 0.0
    %553 = vmatprep.subr.mxu0 0.0
    %554 = vmatpush1.msra.mxu0 0.0
    %555 = vmatprep.subr.mxu0 0.0
    %556 = vmatpush1.msra.mxu0 0.0
    %557 = vmatprep.subr.mxu0 0.0
    %558 = vmatpush1.msra.mxu0 0.0
    %559 = vmatprep.subr.mxu0 0.0
    %560 = vmatpush1.msra.mxu0 0.0
    %561 = vmatprep.subr.mxu0 0.0
    %562 = vmatpush1.msra.mxu0 0.0
    %563 = vmatprep.mubr.f32.mxu0 0.0
    %564 = vmatmul.mubr.f32.gmra.mrb[0].mxu0 %v146
    %v565 = vpop.f32.mrb[0].mxu0
    %v566 = vadd.f32 %v497, %v565
    %v567 = vpop.f32.mrb[0].mxu0
    %568 = vmatprep.mubr.f32.mxu0 0.0
    %569 = vmatmul.mubr.f32.gmra.mrb[0].mxu0 %v149
    %v570 = vpop.f32.mrb[0].mxu0
    %v571 = vadd.f32 %v497, %v570
    %v572 = vpop.f32.mrb[0].mxu0
    %573 = vdwg.mxu0
    %s574 = scalar_lea.vmem %s15, 32
    %v575 = vld [vmem:[%s574] sm:$0xff]
    %v576 = vld [vmem:[%s574 + $0x8] sm:$0xff]
    %v577 = vld [vmem:[%s574 + $0x10] sm:$0xff]
    %v578 = vld [vmem:[%s574 + $0x18] sm:$0xff]
    %s579 = scalar_lea.vmem %s17, 1
    %v580 = vld [vmem:[%s579] sm:$0x1]
    %v582 = vlaneseq
    %v583 = vshrl.u32 %v582, 7
    %v584 = vsub.s32 0, %v583
    %v585 = vrot.slane %v580, %v584
    %587 = vmatprep.subr.mxu0 0.0
    %588 = vmatpush1.msra.mxu0 %v575
    %589 = vmatprep.subr.mxu0 0.0
    %590 = vmatpush1.msra.mxu0 %v576
    %591 = vmatprep.subr.mxu0 0.0
    %592 = vmatpush1.msra.mxu0 %v577
    %593 = vmatprep.subr.mxu0 0.0
    %594 = vmatpush1.msra.mxu0 %v578
    %595 = vmatprep.subr.mxu0 0.0
    %596 = vmatpush1.msra.mxu0 0.0
    %597 = vmatprep.subr.mxu0 0.0
    %598 = vmatpush1.msra.mxu0 0.0
    %599 = vmatprep.subr.mxu0 0.0
    %600 = vmatpush1.msra.mxu0 0.0
    %601 = vmatprep.subr.mxu0 0.0
    %602 = vmatpush1.msra.mxu0 0.0
    %603 = vmatprep.subr.mxu0 0.0
    %604 = vmatpush1.msra.mxu0 0.0
    %605 = vmatprep.subr.mxu0 0.0
    %606 = vmatpush1.msra.mxu0 0.0
    %607 = vmatprep.subr.mxu0 0.0
    %608 = vmatpush1.msra.mxu0 0.0
    %609 = vmatprep.subr.mxu0 0.0
    %610 = vmatpush1.msra.mxu0 0.0
    %611 = vmatprep.subr.mxu0 0.0
    %612 = vmatpush1.msra.mxu0 0.0
    %613 = vmatprep.subr.mxu0 0.0
    %614 = vmatpush1.msra.mxu0 0.0
    %615 = vmatprep.subr.mxu0 0.0
    %616 = vmatpush1.msra.mxu0 0.0
    %617 = vmatprep.subr.mxu0 0.0
    %618 = vmatpush1.msra.mxu0 0.0
    %619 = vmatprep.subr.mxu0 0.0
    %620 = vmatpush1.msra.mxu0 0.0
    %621 = vmatprep.subr.mxu0 0.0
    %622 = vmatpush1.msra.mxu0 0.0
    %623 = vmatprep.subr.mxu0 0.0
    %624 = vmatpush1.msra.mxu0 0.0
    %625 = vmatprep.subr.mxu0 0.0
    %626 = vmatpush1.msra.mxu0 0.0
    %627 = vmatprep.subr.mxu0 0.0
    %628 = vmatpush1.msra.mxu0 0.0
    %629 = vmatprep.subr.mxu0 0.0
    %630 = vmatpush1.msra.mxu0 0.0
    %631 = vmatprep.subr.mxu0 0.0
    %632 = vmatpush1.msra.mxu0 0.0
    %633 = vmatprep.subr.mxu0 0.0
    %634 = vmatpush1.msra.mxu0 0.0
    %635 = vmatprep.subr.mxu0 0.0
    %636 = vmatpush1.msra.mxu0 0.0
    %637 = vmatprep.subr.mxu0 0.0
    %638 = vmatpush1.msra.mxu0 0.0
    %639 = vmatprep.subr.mxu0 0.0
    %640 = vmatpush1.msra.mxu0 0.0
    %641 = vmatprep.subr.mxu0 0.0
    %642 = vmatpush1.msra.mxu0 0.0
    %643 = vmatprep.subr.mxu0 0.0
    %644 = vmatpush1.msra.mxu0 0.0
    %645 = vmatprep.subr.mxu0 0.0
    %646 = vmatpush1.msra.mxu0 0.0
    %647 = vmatprep.subr.mxu0 0.0
    %648 = vmatpush1.msra.mxu0 0.0
    %649 = vmatprep.subr.mxu0 0.0
    %650 = vmatpush1.msra.mxu0 0.0
    %651 = vmatprep.mubr.f32.mxu0 0.0
    %652 = vmatmul.mubr.f32.gmra.mrb[0].mxu0 %v146
    %v653 = vpop.f32.mrb[0].mxu0
    %v654 = vadd.f32 %v585, %v653
    %v655 = vpop.f32.mrb[0].mxu0
    %656 = vmatprep.mubr.f32.mxu0 0.0
    %657 = vmatmul.mubr.f32.gmra.mrb[0].mxu0 %v149
    %v658 = vpop.f32.mrb[0].mxu0
    %v659 = vadd.f32 %v585, %v658
    %v660 = vpop.f32.mrb[0].mxu0
    %661 = vdwg.mxu0
    %s662 = scalar_lea.vmem %s7, 64
    %v663 = vld [vmem:[%s662] sm:$0xff]
    %v664 = vld [vmem:[%s662 + $0x8] sm:$0xff]
    %v665 = vld [vmem:[%s662 + $0x10] sm:$0xff]
    %v666 = vld [vmem:[%s662 + $0x18] sm:$0xff]
    %s667 = scalar_lea.vmem %s9, 2
    %v668 = vld [vmem:[%s667] sm:$0x1]
    %v670 = vlaneseq
    %v671 = vshrl.u32 %v670, 7
    %v672 = vsub.s32 0, %v671
    %v673 = vrot.slane %v668, %v672
    %675 = vmatprep.subr.mxu0 0.0
    %676 = vmatpush1.msra.mxu0 %v663
    %677 = vmatprep.subr.mxu0 0.0
    %678 = vmatpush1.msra.mxu0 %v664
    %679 = vmatprep.subr.mxu0 0.0
    %680 = vmatpush1.msra.mxu0 %v665
    %681 = vmatprep.subr.mxu0 0.0
    %682 = vmatpush1.msra.mxu0 %v666
    %683 = vmatprep.subr.mxu0 0.0
    %684 = vmatpush1.msra.mxu0 0.0
    %685 = vmatprep.subr.mxu0 0.0
    %686 = vmatpush1.msra.mxu0 0.0
    %687 = vmatprep.subr.mxu0 0.0
    %688 = vmatpush1.msra.mxu0 0.0
    %689 = vmatprep.subr.mxu0 0.0
    %690 = vmatpush1.msra.mxu0 0.0
    %691 = vmatprep.subr.mxu0 0.0
    %692 = vmatpush1.msra.mxu0 0.0
    %693 = vmatprep.subr.mxu0 0.0
    %694 = vmatpush1.msra.mxu0 0.0
    %695 = vmatprep.subr.mxu0 0.0
    %696 = vmatpush1.msra.mxu0 0.0
    %697 = vmatprep.subr.mxu0 0.0
    %698 = vmatpush1.msra.mxu0 0.0
    %699 = vmatprep.subr.mxu0 0.0
    %700 = vmatpush1.msra.mxu0 0.0
    %701 = vmatprep.subr.mxu0 0.0
    %702 = vmatpush1.msra.mxu0 0.0
    %703 = vmatprep.subr.mxu0 0.0
    %704 = vmatpush1.msra.mxu0 0.0
    %705 = vmatprep.subr.mxu0 0.0
    %706 = vmatpush1.msra.mxu0 0.0
    %707 = vmatprep.subr.mxu0 0.0
    %708 = vmatpush1.msra.mxu0 0.0
    %709 = vmatprep.subr.mxu0 0.0
    %710 = vmatpush1.msra.mxu0 0.0
    %711 = vmatprep.subr.mxu0 0.0
    %712 = vmatpush1.msra.mxu0 0.0
    %713 = vmatprep.subr.mxu0 0.0
    %714 = vmatpush1.msra.mxu0 0.0
    %715 = vmatprep.subr.mxu0 0.0
    %716 = vmatpush1.msra.mxu0 0.0
    %717 = vmatprep.subr.mxu0 0.0
    %718 = vmatpush1.msra.mxu0 0.0
    %719 = vmatprep.subr.mxu0 0.0
    %720 = vmatpush1.msra.mxu0 0.0
    %721 = vmatprep.subr.mxu0 0.0
    %722 = vmatpush1.msra.mxu0 0.0
    %723 = vmatprep.subr.mxu0 0.0
    %724 = vmatpush1.msra.mxu0 0.0
    %725 = vmatprep.subr.mxu0 0.0
    %726 = vmatpush1.msra.mxu0 0.0
    %727 = vmatprep.subr.mxu0 0.0
    %728 = vmatpush1.msra.mxu0 0.0
    %729 = vmatprep.subr.mxu0 0.0
    %730 = vmatpush1.msra.mxu0 0.0
    %731 = vmatprep.subr.mxu0 0.0
    %732 = vmatpush1.msra.mxu0 0.0
    %733 = vmatprep.subr.mxu0 0.0
    %734 = vmatpush1.msra.mxu0 0.0
    %735 = vmatprep.subr.mxu0 0.0
    %736 = vmatpush1.msra.mxu0 0.0
    %737 = vmatprep.subr.mxu0 0.0
    %738 = vmatpush1.msra.mxu0 0.0
    %739 = vmatprep.mubr.f32.mxu0 0.0
    %740 = vmatmul.mubr.f32.gmra.mrb[0].mxu0 %v146
    %v741 = vpop.f32.mrb[0].mxu0
    %v742 = vadd.f32 %v673, %v741
    %v743 = vpop.f32.mrb[0].mxu0
    %744 = vmatprep.mubr.f32.mxu0 0.0
    %745 = vmatmul.mubr.f32.gmra.mrb[0].mxu0 %v149
    %v746 = vpop.f32.mrb[0].mxu0
    %v747 = vadd.f32 %v673, %v746
    %v748 = vpop.f32.mrb[0].mxu0
    %749 = vdwg.mxu0
    %s750 = scalar_lea.vmem %s11, 64
    %v751 = vld [vmem:[%s750] sm:$0xff]
    %v752 = vld [vmem:[%s750 + $0x8] sm:$0xff]
    %v753 = vld [vmem:[%s750 + $0x10] sm:$0xff]
    %v754 = vld [vmem:[%s750 + $0x18] sm:$0xff]
    %s755 = scalar_lea.vmem %s13, 2
    %v756 = vld [vmem:[%s755] sm:$0x1]
    %v758 = vlaneseq
    %v759 = vshrl.u32 %v758, 7
    %v760 = vsub.s32 0, %v759
    %v761 = vrot.slane %v756, %v760
    %763 = vmatprep.subr.mxu0 0.0
    %764 = vmatpush1.msra.mxu0 %v751
    %765 = vmatprep.subr.mxu0 0.0
    %766 = vmatpush1.msra.mxu0 %v752
    %767 = vmatprep.subr.mxu0 0.0
    %768 = vmatpush1.msra.mxu0 %v753
    %769 = vmatprep.subr.mxu0 0.0
    %770 = vmatpush1.msra.mxu0 %v754
    %771 = vmatprep.subr.mxu0 0.0
    %772 = vmatpush1.msra.mxu0 0.0
    %773 = vmatprep.subr.mxu0 0.0
    %774 = vmatpush1.msra.mxu0 0.0
    %775 = vmatprep.subr.mxu0 0.0
    %776 = vmatpush1.msra.mxu0 0.0
    %777 = vmatprep.subr.mxu0 0.0
    %778 = vmatpush1.msra.mxu0 0.0
    %779 = vmatprep.subr.mxu0 0.0
    %780 = vmatpush1.msra.mxu0 0.0
    %781 = vmatprep.subr.mxu0 0.0
    %782 = vmatpush1.msra.mxu0 0.0
    %783 = vmatprep.subr.mxu0 0.0
    %784 = vmatpush1.msra.mxu0 0.0
    %785 = vmatprep.subr.mxu0 0.0
    %786 = vmatpush1.msra.mxu0 0.0
    %787 = vmatprep.subr.mxu0 0.0
    %788 = vmatpush1.msra.mxu0 0.0
    %789 = vmatprep.subr.mxu0 0.0
    %790 = vmatpush1.msra.mxu0 0.0
    %791 = vmatprep.subr.mxu0 0.0
    %792 = vmatpush1.msra.mxu0 0.0
    %793 = vmatprep.subr.mxu0 0.0
    %794 = vmatpush1.msra.mxu0 0.0
    %795 = vmatprep.subr.mxu0 0.0
    %796 = vmatpush1.msra.mxu0 0.0
    %797 = vmatprep.subr.mxu0 0.0
    %798 = vmatpush1.msra.mxu0 0.0
    %799 = vmatprep.subr.mxu0 0.0
    %800 = vmatpush1.msra.mxu0 0.0
    %801 = vmatprep.subr.mxu0 0.0
    %802 = vmatpush1.msra.mxu0 0.0
    %803 = vmatprep.subr.mxu0 0.0
    %804 = vmatpush1.msra.mxu0 0.0
    %805 = vmatprep.subr.mxu0 0.0
    %806 = vmatpush1.msra.mxu0 0.0
    %807 = vmatprep.subr.mxu0 0.0
    %808 = vmatpush1.msra.mxu0 0.0
    %809 = vmatprep.subr.mxu0 0.0
    %810 = vmatpush1.msra.mxu0 0.0
    %811 = vmatprep.subr.mxu0 0.0
    %812 = vmatpush1.msra.mxu0 0.0
    %813 = vmatprep.subr.mxu0 0.0
    %814 = vmatpush1.msra.mxu0 0.0
    %815 = vmatprep.subr.mxu0 0.0
    %816 = vmatpush1.msra.mxu0 0.0
    %817 = vmatprep.subr.mxu0 0.0
    %818 = vmatpush1.msra.mxu0 0.0
    %819 = vmatprep.subr.mxu0 0.0
    %820 = vmatpush1.msra.mxu0 0.0
    %821 = vmatprep.subr.mxu0 0.0
    %822 = vmatpush1.msra.mxu0 0.0
    %823 = vmatprep.subr.mxu0 0.0
    %824 = vmatpush1.msra.mxu0 0.0
    %825 = vmatprep.subr.mxu0 0.0
    %826 = vmatpush1.msra.mxu0 0.0
    %827 = vmatprep.mubr.f32.mxu0 0.0
    %828 = vmatmul.mubr.f32.gmra.mrb[0].mxu0 %v146
    %v829 = vpop.f32.mrb[0].mxu0
    %v830 = vadd.f32 %v761, %v829
    %v831 = vpop.f32.mrb[0].mxu0
    %832 = vmatprep.mubr.f32.mxu0 0.0
    %833 = vmatmul.mubr.f32.gmra.mrb[0].mxu0 %v149
    %v834 = vpop.f32.mrb[0].mxu0
    %v835 = vadd.f32 %v761, %v834
    %v836 = vpop.f32.mrb[0].mxu0
    %837 = vdwg.mxu0
    %s838 = scalar_lea.vmem %s15, 64
    %v839 = vld [vmem:[%s838] sm:$0xff]
    %v840 = vld [vmem:[%s838 + $0x8] sm:$0xff]
    %v841 = vld [vmem:[%s838 + $0x10] sm:$0xff]
    %v842 = vld [vmem:[%s838 + $0x18] sm:$0xff]
    %s843 = scalar_lea.vmem %s17, 2
    %v844 = vld [vmem:[%s843] sm:$0x1]
    %v846 = vlaneseq
    %v847 = vshrl.u32 %v846, 7
    %v848 = vsub.s32 0, %v847
    %v849 = vrot.slane %v844, %v848
    %851 = vmatprep.subr.mxu0 0.0
    %852 = vmatpush1.msra.mxu0 %v839
    %853 = vmatprep.subr.mxu0 0.0
    %854 = vmatpush1.msra.mxu0 %v840
    %855 = vmatprep.subr.mxu0 0.0
    %856 = vmatpush1.msra.mxu0 %v841
    %857 = vmatprep.subr.mxu0 0.0
    %858 = vmatpush1.msra.mxu0 %v842
    %859 = vmatprep.subr.mxu0 0.0
    %860 = vmatpush1.msra.mxu0 0.0
    %861 = vmatprep.subr.mxu0 0.0
    %862 = vmatpush1.msra.mxu0 0.0
    %863 = vmatprep.subr.mxu0 0.0
    %864 = vmatpush1.msra.mxu0 0.0
    %865 = vmatprep.subr.mxu0 0.0
    %866 = vmatpush1.msra.mxu0 0.0
    %867 = vmatprep.subr.mxu0 0.0
    %868 = vmatpush1.msra.mxu0 0.0
    %869 = vmatprep.subr.mxu0 0.0
    %870 = vmatpush1.msra.mxu0 0.0
    %871 = vmatprep.subr.mxu0 0.0
    %872 = vmatpush1.msra.mxu0 0.0
    %873 = vmatprep.subr.mxu0 0.0
    %874 = vmatpush1.msra.mxu0 0.0
    %875 = vmatprep.subr.mxu0 0.0
    %876 = vmatpush1.msra.mxu0 0.0
    %877 = vmatprep.subr.mxu0 0.0
    %878 = vmatpush1.msra.mxu0 0.0
    %879 = vmatprep.subr.mxu0 0.0
    %880 = vmatpush1.msra.mxu0 0.0
    %881 = vmatprep.subr.mxu0 0.0
    %882 = vmatpush1.msra.mxu0 0.0
    %883 = vmatprep.subr.mxu0 0.0
    %884 = vmatpush1.msra.mxu0 0.0
    %885 = vmatprep.subr.mxu0 0.0
    %886 = vmatpush1.msra.mxu0 0.0
    %887 = vmatprep.subr.mxu0 0.0
    %888 = vmatpush1.msra.mxu0 0.0
    %889 = vmatprep.subr.mxu0 0.0
    %890 = vmatpush1.msra.mxu0 0.0
    %891 = vmatprep.subr.mxu0 0.0
    %892 = vmatpush1.msra.mxu0 0.0
    %893 = vmatprep.subr.mxu0 0.0
    %894 = vmatpush1.msra.mxu0 0.0
    %895 = vmatprep.subr.mxu0 0.0
    %896 = vmatpush1.msra.mxu0 0.0
    %897 = vmatprep.subr.mxu0 0.0
    %898 = vmatpush1.msra.mxu0 0.0
    %899 = vmatprep.subr.mxu0 0.0
    %900 = vmatpush1.msra.mxu0 0.0
    %901 = vmatprep.subr.mxu0 0.0
    %902 = vmatpush1.msra.mxu0 0.0
    %903 = vmatprep.subr.mxu0 0.0
    %904 = vmatpush1.msra.mxu0 0.0
    %905 = vmatprep.subr.mxu0 0.0
    %906 = vmatpush1.msra.mxu0 0.0
    %907 = vmatprep.subr.mxu0 0.0
    %908 = vmatpush1.msra.mxu0 0.0
    %909 = vmatprep.subr.mxu0 0.0
    %910 = vmatpush1.msra.mxu0 0.0
    %911 = vmatprep.subr.mxu0 0.0
    %912 = vmatpush1.msra.mxu0 0.0
    %913 = vmatprep.subr.mxu0 0.0
    %914 = vmatpush1.msra.mxu0 0.0
    %915 = vmatprep.mubr.f32.mxu0 0.0
    %916 = vmatmul.mubr.f32.gmra.mrb[0].mxu0 %v146
    %v917 = vpop.f32.mrb[0].mxu0
    %v918 = vadd.f32 %v849, %v917
    %v919 = vpop.f32.mrb[0].mxu0
    %920 = vmatprep.mubr.f32.mxu0 0.0
    %921 = vmatmul.mubr.f32.gmra.mrb[0].mxu0 %v149
    %v922 = vpop.f32.mrb[0].mxu0
    %v923 = vadd.f32 %v849, %v922
    %v924 = vpop.f32.mrb[0].mxu0
    %925 = vdwg.mxu0
    %s926 = scalar_lea.vmem %s7, 96
    %v927 = vld [vmem:[%s926] sm:$0xff]
    %v928 = vld [vmem:[%s926 + $0x8] sm:$0xff]
    %v929 = vld [vmem:[%s926 + $0x10] sm:$0xff]
    %v930 = vld [vmem:[%s926 + $0x18] sm:$0xff]
    %s931 = scalar_lea.vmem %s9, 3
    %v932 = vld [vmem:[%s931] sm:$0x1]
    %v934 = vlaneseq
    %v935 = vshrl.u32 %v934, 7
    %v936 = vsub.s32 0, %v935
    %v937 = vrot.slane %v932, %v936
    %939 = vmatprep.subr.mxu0 0.0
    %940 = vmatpush1.msra.mxu0 %v927
    %941 = vmatprep.subr.mxu0 0.0
    %942 = vmatpush1.msra.mxu0 %v928
    %943 = vmatprep.subr.mxu0 0.0
    %944 = vmatpush1.msra.mxu0 %v929
    %945 = vmatprep.subr.mxu0 0.0
    %946 = vmatpush1.msra.mxu0 %v930
    %947 = vmatprep.subr.mxu0 0.0
    %948 = vmatpush1.msra.mxu0 0.0
    %949 = vmatprep.subr.mxu0 0.0
    %950 = vmatpush1.msra.mxu0 0.0
    %951 = vmatprep.subr.mxu0 0.0
    %952 = vmatpush1.msra.mxu0 0.0
    %953 = vmatprep.subr.mxu0 0.0
    %954 = vmatpush1.msra.mxu0 0.0
    %955 = vmatprep.subr.mxu0 0.0
    %956 = vmatpush1.msra.mxu0 0.0
    %957 = vmatprep.subr.mxu0 0.0
    %958 = vmatpush1.msra.mxu0 0.0
    %959 = vmatprep.subr.mxu0 0.0
    %960 = vmatpush1.msra.mxu0 0.0
    %961 = vmatprep.subr.mxu0 0.0
    %962 = vmatpush1.msra.mxu0 0.0
    %963 = vmatprep.subr.mxu0 0.0
    %964 = vmatpush1.msra.mxu0 0.0
    %965 = vmatprep.subr.mxu0 0.0
    %966 = vmatpush1.msra.mxu0 0.0
    %967 = vmatprep.subr.mxu0 0.0
    %968 = vmatpush1.msra.mxu0 0.0
    %969 = vmatprep.subr.mxu0 0.0
    %970 = vmatpush1.msra.mxu0 0.0
    %971 = vmatprep.subr.mxu0 0.0
    %972 = vmatpush1.msra.mxu0 0.0
    %973 = vmatprep.subr.mxu0 0.0
    %974 = vmatpush1.msra.mxu0 0.0
    %975 = vmatprep.subr.mxu0 0.0
    %976 = vmatpush1.msra.mxu0 0.0
    %977 = vmatprep.subr.mxu0 0.0
    %978 = vmatpush1.msra.mxu0 0.0
    %979 = vmatprep.subr.mxu0 0.0
    %980 = vmatpush1.msra.mxu0 0.0
    %981 = vmatprep.subr.mxu0 0.0
    %982 = vmatpush1.msra.mxu0 0.0
    %983 = vmatprep.subr.mxu0 0.0
    %984 = vmatpush1.msra.mxu0 0.0
    %985 = vmatprep.subr.mxu0 0.0
    %986 = vmatpush1.msra.mxu0 0.0
    %987 = vmatprep.subr.mxu0 0.0
    %988 = vmatpush1.msra.mxu0 0.0
    %989 = vmatprep.subr.mxu0 0.0
    %990 = vmatpush1.msra.mxu0 0.0
    %991 = vmatprep.subr.mxu0 0.0
    %992 = vmatpush1.msra.mxu0 0.0
    %993 = vmatprep.subr.mxu0 0.0
    %994 = vmatpush1.msra.mxu0 0.0
    %995 = vmatprep.subr.mxu0 0.0
    %996 = vmatpush1.msra.mxu0 0.0
    %997 = vmatprep.subr.mxu0 0.0
    %998 = vmatpush1.msra.mxu0 0.0
    %999 = vmatprep.subr.mxu0 0.0
    %1000 = vmatpush1.msra.mxu0 0.0
    %1001 = vmatprep.subr.mxu0 0.0
    %1002 = vmatpush1.msra.mxu0 0.0
    %1003 = vmatprep.mubr.f32.mxu0 0.0
    %1004 = vmatmul.mubr.f32.gmra.mrb[0].mxu0 %v146
    %v1005 = vpop.f32.mrb[0].mxu0
    %v1006 = vadd.f32 %v937, %v1005
    %v1007 = vpop.f32.mrb[0].mxu0
    %1008 = vmatprep.mubr.f32.mxu0 0.0
    %1009 = vmatmul.mubr.f32.gmra.mrb[0].mxu0 %v149
    %v1010 = vpop.f32.mrb[0].mxu0
    %v1011 = vadd.f32 %v937, %v1010
    %v1012 = vpop.f32.mrb[0].mxu0
    %1013 = vdwg.mxu0
    %s1014 = scalar_lea.vmem %s11, 96
    %v1015 = vld [vmem:[%s1014] sm:$0xff]
    %v1016 = vld [vmem:[%s1014 + $0x8] sm:$0xff]
    %v1017 = vld [vmem:[%s1014 + $0x10] sm:$0xff]
    %v1018 = vld [vmem:[%s1014 + $0x18] sm:$0xff]
    %s1019 = scalar_lea.vmem %s13, 3
    %v1020 = vld [vmem:[%s1019] sm:$0x1]
    %v1022 = vlaneseq
    %v1023 = vshrl.u32 %v1022, 7
    %v1024 = vsub.s32 0, %v1023
    %v1025 = vrot.slane %v1020, %v1024
    %1027 = vmatprep.subr.mxu0 0.0
    %1028 = vmatpush1.msra.mxu0 %v1015
    %1029 = vmatprep.subr.mxu0 0.0
    %1030 = vmatpush1.msra.mxu0 %v1016
    %1031 = vmatprep.subr.mxu0 0.0
    %1032 = vmatpush1.msra.mxu0 %v1017
    %1033 = vmatprep.subr.mxu0 0.0
    %1034 = vmatpush1.msra.mxu0 %v1018
    %1035 = vmatprep.subr.mxu0 0.0
    %1036 = vmatpush1.msra.mxu0 0.0
    %1037 = vmatprep.subr.mxu0 0.0
    %1038 = vmatpush1.msra.mxu0 0.0
    %1039 = vmatprep.subr.mxu0 0.0
    %1040 = vmatpush1.msra.mxu0 0.0
    %1041 = vmatprep.subr.mxu0 0.0
    %1042 = vmatpush1.msra.mxu0 0.0
    %1043 = vmatprep.subr.mxu0 0.0
    %1044 = vmatpush1.msra.mxu0 0.0
    %1045 = vmatprep.subr.mxu0 0.0
    %1046 = vmatpush1.msra.mxu0 0.0
    %1047 = vmatprep.subr.mxu0 0.0
    %1048 = vmatpush1.msra.mxu0 0.0
    %1049 = vmatprep.subr.mxu0 0.0
    %1050 = vmatpush1.msra.mxu0 0.0
    %1051 = vmatprep.subr.mxu0 0.0
    %1052 = vmatpush1.msra.mxu0 0.0
    %1053 = vmatprep.subr.mxu0 0.0
    %1054 = vmatpush1.msra.mxu0 0.0
    %1055 = vmatprep.subr.mxu0 0.0
    %1056 = vmatpush1.msra.mxu0 0.0
    %1057 = vmatprep.subr.mxu0 0.0
    %1058 = vmatpush1.msra.mxu0 0.0
    %1059 = vmatprep.subr.mxu0 0.0
    %1060 = vmatpush1.msra.mxu0 0.0
    %1061 = vmatprep.subr.mxu0 0.0
    %1062 = vmatpush1.msra.mxu0 0.0
    %1063 = vmatprep.subr.mxu0 0.0
    %1064 = vmatpush1.msra.mxu0 0.0
    %1065 = vmatprep.subr.mxu0 0.0
    %1066 = vmatpush1.msra.mxu0 0.0
    %1067 = vmatprep.subr.mxu0 0.0
    %1068 = vmatpush1.msra.mxu0 0.0
    %1069 = vmatprep.subr.mxu0 0.0
    %1070 = vmatpush1.msra.mxu0 0.0
    %1071 = vmatprep.subr.mxu0 0.0
    %1072 = vmatpush1.msra.mxu0 0.0
    %1073 = vmatprep.subr.mxu0 0.0
    %1074 = vmatpush1.msra.mxu0 0.0
    %1075 = vmatprep.subr.mxu0 0.0
    %1076 = vmatpush1.msra.mxu0 0.0
    %1077 = vmatprep.subr.mxu0 0.0
    %1078 = vmatpush1.msra.mxu0 0.0
    %1079 = vmatprep.subr.mxu0 0.0
    %1080 = vmatpush1.msra.mxu0 0.0
    %1081 = vmatprep.subr.mxu0 0.0
    %1082 = vmatpush1.msra.mxu0 0.0
    %1083 = vmatprep.subr.mxu0 0.0
    %1084 = vmatpush1.msra.mxu0 0.0
    %1085 = vmatprep.subr.mxu0 0.0
    %1086 = vmatpush1.msra.mxu0 0.0
    %1087 = vmatprep.subr.mxu0 0.0
    %1088 = vmatpush1.msra.mxu0 0.0
    %1089 = vmatprep.subr.mxu0 0.0
    %1090 = vmatpush1.msra.mxu0 0.0
    %1091 = vmatprep.mubr.f32.mxu0 0.0
    %1092 = vmatmul.mubr.f32.gmra.mrb[0].mxu0 %v146
    %v1093 = vpop.f32.mrb[0].mxu0
    %v1094 = vadd.f32 %v1025, %v1093
    %v1095 = vpop.f32.mrb[0].mxu0
    %1096 = vmatprep.mubr.f32.mxu0 0.0
    %1097 = vmatmul.mubr.f32.gmra.mrb[0].mxu0 %v149
    %v1098 = vpop.f32.mrb[0].mxu0
    %v1099 = vadd.f32 %v1025, %v1098
    %v1100 = vpop.f32.mrb[0].mxu0
    %1101 = vdwg.mxu0
    %s1102 = scalar_lea.vmem %s15, 96
    %v1103 = vld [vmem:[%s1102] sm:$0xff]
    %v1104 = vld [vmem:[%s1102 + $0x8] sm:$0xff]
    %v1105 = vld [vmem:[%s1102 + $0x10] sm:$0xff]
    %v1106 = vld [vmem:[%s1102 + $0x18] sm:$0xff]
    %s1107 = scalar_lea.vmem %s17, 3
    %v1108 = vld [vmem:[%s1107] sm:$0x1]
    %v1110 = vlaneseq
    %v1111 = vshrl.u32 %v1110, 7
    %v1112 = vsub.s32 0, %v1111
    %v1113 = vrot.slane %v1108, %v1112
    %1115 = vmatprep.subr.mxu0 0.0
    %1116 = vmatpush1.msra.mxu0 %v1103
    %1117 = vmatprep.subr.mxu0 0.0
    %1118 = vmatpush1.msra.mxu0 %v1104
    %1119 = vmatprep.subr.mxu0 0.0
    %1120 = vmatpush1.msra.mxu0 %v1105
    %1121 = vmatprep.subr.mxu0 0.0
    %1122 = vmatpush1.msra.mxu0 %v1106
    %1123 = vmatprep.subr.mxu0 0.0
    %1124 = vmatpush1.msra.mxu0 0.0
    %1125 = vmatprep.subr.mxu0 0.0
    %1126 = vmatpush1.msra.mxu0 0.0
    %1127 = vmatprep.subr.mxu0 0.0
    %1128 = vmatpush1.msra.mxu0 0.0
    %1129 = vmatprep.subr.mxu0 0.0
    %1130 = vmatpush1.msra.mxu0 0.0
    %1131 = vmatprep.subr.mxu0 0.0
    %1132 = vmatpush1.msra.mxu0 0.0
    %1133 = vmatprep.subr.mxu0 0.0
    %1134 = vmatpush1.msra.mxu0 0.0
    %1135 = vmatprep.subr.mxu0 0.0
    %1136 = vmatpush1.msra.mxu0 0.0
    %1137 = vmatprep.subr.mxu0 0.0
    %1138 = vmatpush1.msra.mxu0 0.0
    %1139 = vmatprep.subr.mxu0 0.0
    %1140 = vmatpush1.msra.mxu0 0.0
    %1141 = vmatprep.subr.mxu0 0.0
    %1142 = vmatpush1.msra.mxu0 0.0
    %1143 = vmatprep.subr.mxu0 0.0
    %1144 = vmatpush1.msra.mxu0 0.0
    %1145 = vmatprep.subr.mxu0 0.0
    %1146 = vmatpush1.msra.mxu0 0.0
    %1147 = vmatprep.subr.mxu0 0.0
    %1148 = vmatpush1.msra.mxu0 0.0
    %1149 = vmatprep.subr.mxu0 0.0
    %1150 = vmatpush1.msra.mxu0 0.0
    %1151 = vmatprep.subr.mxu0 0.0
    %1152 = vmatpush1.msra.mxu0 0.0
    %1153 = vmatprep.subr.mxu0 0.0
    %1154 = vmatpush1.msra.mxu0 0.0
    %1155 = vmatprep.subr.mxu0 0.0
    %1156 = vmatpush1.msra.mxu0 0.0
    %1157 = vmatprep.subr.mxu0 0.0
    %1158 = vmatpush1.msra.mxu0 0.0
    %1159 = vmatprep.subr.mxu0 0.0
    %1160 = vmatpush1.msra.mxu0 0.0
    %1161 = vmatprep.subr.mxu0 0.0
    %1162 = vmatpush1.msra.mxu0 0.0
    %1163 = vmatprep.subr.mxu0 0.0
    %1164 = vmatpush1.msra.mxu0 0.0
    %1165 = vmatprep.subr.mxu0 0.0
    %1166 = vmatpush1.msra.mxu0 0.0
    %1167 = vmatprep.subr.mxu0 0.0
    %1168 = vmatpush1.msra.mxu0 0.0
    %1169 = vmatprep.subr.mxu0 0.0
    %1170 = vmatpush1.msra.mxu0 0.0
    %1171 = vmatprep.subr.mxu0 0.0
    %1172 = vmatpush1.msra.mxu0 0.0
    %1173 = vmatprep.subr.mxu0 0.0
    %1174 = vmatpush1.msra.mxu0 0.0
    %1175 = vmatprep.subr.mxu0 0.0
    %1176 = vmatpush1.msra.mxu0 0.0
    %1177 = vmatprep.subr.mxu0 0.0
    %1178 = vmatpush1.msra.mxu0 0.0
    %1179 = vmatprep.mubr.f32.mxu0 0.0
    %1180 = vmatmul.mubr.f32.gmra.mrb[0].mxu0 %v146
    %v1181 = vpop.f32.mrb[0].mxu0
    %v1182 = vadd.f32 %v1113, %v1181
    %v1183 = vpop.f32.mrb[0].mxu0
    %1184 = vmatprep.mubr.f32.mxu0 0.0
    %1185 = vmatmul.mubr.f32.gmra.mrb[0].mxu0 %v149
    %v1186 = vpop.f32.mrb[0].mxu0
    %v1187 = vadd.f32 %v1113, %v1186
    %v1188 = vpop.f32.mrb[0].mxu0
    %1189 = vdwg.mxu0
    %vm1190 = vcmask 64512
    %v1192 = vsel %vm1190, %v218, 0
    %v1195 = vsel %vm1190, %v304, 0
    %1197 = vmatprep.subr.mxu0 0.0
    %1198 = vmatpush1.xpose.msra.mxu0 %v1195
    %1199 = vmatprep.subr.mxu0 0.0
    %1200 = vmatpush1.xpose.msra.mxu0 0.0
    %1201 = vmatprep.subr.mxu0 0.0
    %1202 = vmatpush1.xpose.msra.mxu0 0.0
    %1203 = vmatprep.subr.mxu0 0.0
    %1204 = vmatpush1.xpose.msra.mxu0 0.0
    %1205 = vmatprep.subr.mxu0 0.0
    %1206 = vmatpush1.xpose.msra.mxu0 0.0
    %1207 = vmatprep.subr.mxu0 0.0
    %1208 = vmatpush1.xpose.msra.mxu0 0.0
    %1209 = vmatprep.subr.mxu0 0.0
    %1210 = vmatpush1.xpose.msra.mxu0 0.0
    %1211 = vmatprep.subr.mxu0 0.0
    %1212 = vmatpush1.xpose.msra.mxu0 0.0
    %1213 = vmatprep.subr.mxu0 0.0
    %1214 = vmatpush1.xpose.msra.mxu0 0.0
    %1215 = vmatprep.subr.mxu0 0.0
    %1216 = vmatpush1.xpose.msra.mxu0 0.0
    %1217 = vmatprep.subr.mxu0 0.0
    %1218 = vmatpush1.xpose.msra.mxu0 0.0
    %1219 = vmatprep.subr.mxu0 0.0
    %1220 = vmatpush1.xpose.msra.mxu0 0.0
    %1221 = vmatprep.subr.mxu0 0.0
    %1222 = vmatpush1.xpose.msra.mxu0 0.0
    %1223 = vmatprep.subr.mxu0 0.0
    %1224 = vmatpush1.xpose.msra.mxu0 0.0
    %1225 = vmatprep.subr.mxu0 0.0
    %1226 = vmatpush1.xpose.msra.mxu0 0.0
    %1227 = vmatprep.subr.mxu0 0.0
    %1228 = vmatpush1.xpose.msra.mxu0 0.0
    %1229 = vmatprep.subr.mxu0 0.0
    %1230 = vmatpush1.xpose.msra.mxu0 0.0
    %1231 = vmatprep.subr.mxu0 0.0
    %1232 = vmatpush1.xpose.msra.mxu0 0.0
    %1233 = vmatprep.subr.mxu0 0.0
    %1234 = vmatpush1.xpose.msra.mxu0 0.0
    %1235 = vmatprep.subr.mxu0 0.0
    %1236 = vmatpush1.xpose.msra.mxu0 0.0
    %1237 = vmatprep.subr.mxu0 0.0
    %1238 = vmatpush1.xpose.msra.mxu0 0.0
    %1239 = vmatprep.subr.mxu0 0.0
    %1240 = vmatpush1.xpose.msra.mxu0 0.0
    %1241 = vmatprep.subr.mxu0 0.0
    %1242 = vmatpush1.xpose.msra.mxu0 0.0
    %1243 = vmatprep.subr.mxu0 0.0
    %1244 = vmatpush1.xpose.msra.mxu0 0.0
    %1245 = vmatprep.subr.mxu0 0.0
    %1246 = vmatpush1.xpose.msra.mxu0 0.0
    %1247 = vmatprep.subr.mxu0 0.0
    %1248 = vmatpush1.xpose.msra.mxu0 0.0
    %1249 = vmatprep.subr.mxu0 0.0
    %1250 = vmatpush1.xpose.msra.mxu0 0.0
    %1251 = vmatprep.subr.mxu0 0.0
    %1252 = vmatpush1.xpose.msra.mxu0 0.0
    %1253 = vmatprep.subr.mxu0 0.0
    %1254 = vmatpush1.xpose.msra.mxu0 0.0
    %1255 = vmatprep.subr.mxu0 0.0
    %1256 = vmatpush1.xpose.msra.mxu0 0.0
    %1257 = vmatprep.subr.mxu0 0.0
    %1258 = vmatpush1.xpose.msra.mxu0 0.0
    %1259 = vmatprep.subr.mxu0 0.0
    %1260 = vmatpush1.xpose.msra.mxu0 0.0
    %1261 = vmatprep.mubr.f32.mxu0 0.0
    %1262 = vmatmul.mubr.f32.gmra.mrb[0].mxu0 %v1192
    %v1263 = vpop.f32.mrb[0].mxu0
    %v1264 = vadd.f32 %v132, %v1263
    %v1265 = vpop.f32.mrb[0].mxu0
    %1266 = vdwg.mxu0
    %v1268 = vsel %vm1190, %v223, 0
    %v1271 = vsel %vm1190, %v309, 0
    %1273 = vmatprep.subr.mxu0 0.0
    %1274 = vmatpush1.xpose.msra.mxu0 %v1271
    %1275 = vmatprep.subr.mxu0 0.0
    %1276 = vmatpush1.xpose.msra.mxu0 0.0
    %1277 = vmatprep.subr.mxu0 0.0
    %1278 = vmatpush1.xpose.msra.mxu0 0.0
    %1279 = vmatprep.subr.mxu0 0.0
    %1280 = vmatpush1.xpose.msra.mxu0 0.0
    %1281 = vmatprep.subr.mxu0 0.0
    %1282 = vmatpush1.xpose.msra.mxu0 0.0
    %1283 = vmatprep.subr.mxu0 0.0
    %1284 = vmatpush1.xpose.msra.mxu0 0.0
    %1285 = vmatprep.subr.mxu0 0.0
    %1286 = vmatpush1.xpose.msra.mxu0 0.0
    %1287 = vmatprep.subr.mxu0 0.0
    %1288 = vmatpush1.xpose.msra.mxu0 0.0
    %1289 = vmatprep.subr.mxu0 0.0
    %1290 = vmatpush1.xpose.msra.mxu0 0.0
    %1291 = vmatprep.subr.mxu0 0.0
    %1292 = vmatpush1.xpose.msra.mxu0 0.0
    %1293 = vmatprep.subr.mxu0 0.0
    %1294 = vmatpush1.xpose.msra.mxu0 0.0
    %1295 = vmatprep.subr.mxu0 0.0
    %1296 = vmatpush1.xpose.msra.mxu0 0.0
    %1297 = vmatprep.subr.mxu0 0.0
    %1298 = vmatpush1.xpose.msra.mxu0 0.0
    %1299 = vmatprep.subr.mxu0 0.0
    %1300 = vmatpush1.xpose.msra.mxu0 0.0
    %1301 = vmatprep.subr.mxu0 0.0
    %1302 = vmatpush1.xpose.msra.mxu0 0.0
    %1303 = vmatprep.subr.mxu0 0.0
    %1304 = vmatpush1.xpose.msra.mxu0 0.0
    %1305 = vmatprep.subr.mxu0 0.0
    %1306 = vmatpush1.xpose.msra.mxu0 0.0
    %1307 = vmatprep.subr.mxu0 0.0
    %1308 = vmatpush1.xpose.msra.mxu0 0.0
    %1309 = vmatprep.subr.mxu0 0.0
    %1310 = vmatpush1.xpose.msra.mxu0 0.0
    %1311 = vmatprep.subr.mxu0 0.0
    %1312 = vmatpush1.xpose.msra.mxu0 0.0
    %1313 = vmatprep.subr.mxu0 0.0
    %1314 = vmatpush1.xpose.msra.mxu0 0.0
    %1315 = vmatprep.subr.mxu0 0.0
    %1316 = vmatpush1.xpose.msra.mxu0 0.0
    %1317 = vmatprep.subr.mxu0 0.0
    %1318 = vmatpush1.xpose.msra.mxu0 0.0
    %1319 = vmatprep.subr.mxu0 0.0
    %1320 = vmatpush1.xpose.msra.mxu0 0.0
    %1321 = vmatprep.subr.mxu0 0.0
    %1322 = vmatpush1.xpose.msra.mxu0 0.0
    %1323 = vmatprep.subr.mxu0 0.0
    %1324 = vmatpush1.xpose.msra.mxu0 0.0
    %1325 = vmatprep.subr.mxu0 0.0
    %1326 = vmatpush1.xpose.msra.mxu0 0.0
    %1327 = vmatprep.subr.mxu0 0.0
    %1328 = vmatpush1.xpose.msra.mxu0 0.0
    %1329 = vmatprep.subr.mxu0 0.0
    %1330 = vmatpush1.xpose.msra.mxu0 0.0
    %1331 = vmatprep.subr.mxu0 0.0
    %1332 = vmatpush1.xpose.msra.mxu0 0.0
    %1333 = vmatprep.subr.mxu0 0.0
    %1334 = vmatpush1.xpose.msra.mxu0 0.0
    %1335 = vmatprep.subr.mxu0 0.0
    %1336 = vmatpush1.xpose.msra.mxu0 0.0
    %1337 = vmatprep.mubr.f32.mxu0 0.0
    %1338 = vmatmul.mubr.f32.gmra.mrb[0].mxu0 %v1268
    %v1339 = vpop.f32.mrb[0].mxu0
    %v1340 = vadd.f32 %v132, %v1339
    %v1341 = vpop.f32.mrb[0].mxu0
    %1342 = vdwg.mxu0
    %v1344 = vsel %vm1190, %v478, 0
    %v1347 = vsel %vm1190, %v566, 0
    %1349 = vmatprep.subr.mxu0 0.0
    %1350 = vmatpush1.xpose.msra.mxu0 %v1347
    %1351 = vmatprep.subr.mxu0 0.0
    %1352 = vmatpush1.xpose.msra.mxu0 0.0
    %1353 = vmatprep.subr.mxu0 0.0
    %1354 = vmatpush1.xpose.msra.mxu0 0.0
    %1355 = vmatprep.subr.mxu0 0.0
    %1356 = vmatpush1.xpose.msra.mxu0 0.0
    %1357 = vmatprep.subr.mxu0 0.0
    %1358 = vmatpush1.xpose.msra.mxu0 0.0
    %1359 = vmatprep.subr.mxu0 0.0
    %1360 = vmatpush1.xpose.msra.mxu0 0.0
    %1361 = vmatprep.subr.mxu0 0.0
    %1362 = vmatpush1.xpose.msra.mxu0 0.0
    %1363 = vmatprep.subr.mxu0 0.0
    %1364 = vmatpush1.xpose.msra.mxu0 0.0
    %1365 = vmatprep.subr.mxu0 0.0
    %1366 = vmatpush1.xpose.msra.mxu0 0.0
    %1367 = vmatprep.subr.mxu0 0.0
    %1368 = vmatpush1.xpose.msra.mxu0 0.0
    %1369 = vmatprep.subr.mxu0 0.0
    %1370 = vmatpush1.xpose.msra.mxu0 0.0
    %1371 = vmatprep.subr.mxu0 0.0
    %1372 = vmatpush1.xpose.msra.mxu0 0.0
    %1373 = vmatprep.subr.mxu0 0.0
    %1374 = vmatpush1.xpose.msra.mxu0 0.0
    %1375 = vmatprep.subr.mxu0 0.0
    %1376 = vmatpush1.xpose.msra.mxu0 0.0
    %1377 = vmatprep.subr.mxu0 0.0
    %1378 = vmatpush1.xpose.msra.mxu0 0.0
    %1379 = vmatprep.subr.mxu0 0.0
    %1380 = vmatpush1.xpose.msra.mxu0 0.0
    %1381 = vmatprep.subr.mxu0 0.0
    %1382 = vmatpush1.xpose.msra.mxu0 0.0
    %1383 = vmatprep.subr.mxu0 0.0
    %1384 = vmatpush1.xpose.msra.mxu0 0.0
    %1385 = vmatprep.subr.mxu0 0.0
    %1386 = vmatpush1.xpose.msra.mxu0 0.0
    %1387 = vmatprep.subr.mxu0 0.0
    %1388 = vmatpush1.xpose.msra.mxu0 0.0
    %1389 = vmatprep.subr.mxu0 0.0
    %1390 = vmatpush1.xpose.msra.mxu0 0.0
    %1391 = vmatprep.subr.mxu0 0.0
    %1392 = vmatpush1.xpose.msra.mxu0 0.0
    %1393 = vmatprep.subr.mxu0 0.0
    %1394 = vmatpush1.xpose.msra.mxu0 0.0
    %1395 = vmatprep.subr.mxu0 0.0
    %1396 = vmatpush1.xpose.msra.mxu0 0.0
    %1397 = vmatprep.subr.mxu0 0.0
    %1398 = vmatpush1.xpose.msra.mxu0 0.0
    %1399 = vmatprep.subr.mxu0 0.0
    %1400 = vmatpush1.xpose.msra.mxu0 0.0
    %1401 = vmatprep.subr.mxu0 0.0
    %1402 = vmatpush1.xpose.msra.mxu0 0.0
    %1403 = vmatprep.subr.mxu0 0.0
    %1404 = vmatpush1.xpose.msra.mxu0 0.0
    %1405 = vmatprep.subr.mxu0 0.0
    %1406 = vmatpush1.xpose.msra.mxu0 0.0
    %1407 = vmatprep.subr.mxu0 0.0
    %1408 = vmatpush1.xpose.msra.mxu0 0.0
    %1409 = vmatprep.subr.mxu0 0.0
    %1410 = vmatpush1.xpose.msra.mxu0 0.0
    %1411 = vmatprep.subr.mxu0 0.0
    %1412 = vmatpush1.xpose.msra.mxu0 0.0
    %1413 = vmatprep.mubr.f32.mxu0 0.0
    %1414 = vmatmul.mubr.f32.gmra.mrb[0].mxu0 %v1344
    %v1415 = vpop.f32.mrb[0].mxu0
    %v1416 = vadd.f32 %v132, %v1415
    %v1417 = vpop.f32.mrb[0].mxu0
    %1418 = vdwg.mxu0
    %v1420 = vsel %vm1190, %v483, 0
    %v1423 = vsel %vm1190, %v571, 0
    %1425 = vmatprep.subr.mxu0 0.0
    %1426 = vmatpush1.xpose.msra.mxu0 %v1423
    %1427 = vmatprep.subr.mxu0 0.0
    %1428 = vmatpush1.xpose.msra.mxu0 0.0
    %1429 = vmatprep.subr.mxu0 0.0
    %1430 = vmatpush1.xpose.msra.mxu0 0.0
    %1431 = vmatprep.subr.mxu0 0.0
    %1432 = vmatpush1.xpose.msra.mxu0 0.0
    %1433 = vmatprep.subr.mxu0 0.0
    %1434 = vmatpush1.xpose.msra.mxu0 0.0
    %1435 = vmatprep.subr.mxu0 0.0
    %1436 = vmatpush1.xpose.msra.mxu0 0.0
    %1437 = vmatprep.subr.mxu0 0.0
    %1438 = vmatpush1.xpose.msra.mxu0 0.0
    %1439 = vmatprep.subr.mxu0 0.0
    %1440 = vmatpush1.xpose.msra.mxu0 0.0
    %1441 = vmatprep.subr.mxu0 0.0
    %1442 = vmatpush1.xpose.msra.mxu0 0.0
    %1443 = vmatprep.subr.mxu0 0.0
    %1444 = vmatpush1.xpose.msra.mxu0 0.0
    %1445 = vmatprep.subr.mxu0 0.0
    %1446 = vmatpush1.xpose.msra.mxu0 0.0
    %1447 = vmatprep.subr.mxu0 0.0
    %1448 = vmatpush1.xpose.msra.mxu0 0.0
    %1449 = vmatprep.subr.mxu0 0.0
    %1450 = vmatpush1.xpose.msra.mxu0 0.0
    %1451 = vmatprep.subr.mxu0 0.0
    %1452 = vmatpush1.xpose.msra.mxu0 0.0
    %1453 = vmatprep.subr.mxu0 0.0
    %1454 = vmatpush1.xpose.msra.mxu0 0.0
    %1455 = vmatprep.subr.mxu0 0.0
    %1456 = vmatpush1.xpose.msra.mxu0 0.0
    %1457 = vmatprep.subr.mxu0 0.0
    %1458 = vmatpush1.xpose.msra.mxu0 0.0
    %1459 = vmatprep.subr.mxu0 0.0
    %1460 = vmatpush1.xpose.msra.mxu0 0.0
    %1461 = vmatprep.subr.mxu0 0.0
    %1462 = vmatpush1.xpose.msra.mxu0 0.0
    %1463 = vmatprep.subr.mxu0 0.0
    %1464 = vmatpush1.xpose.msra.mxu0 0.0
    %1465 = vmatprep.subr.mxu0 0.0
    %1466 = vmatpush1.xpose.msra.mxu0 0.0
    %1467 = vmatprep.subr.mxu0 0.0
    %1468 = vmatpush1.xpose.msra.mxu0 0.0
    %1469 = vmatprep.subr.mxu0 0.0
    %1470 = vmatpush1.xpose.msra.mxu0 0.0
    %1471 = vmatprep.subr.mxu0 0.0
    %1472 = vmatpush1.xpose.msra.mxu0 0.0
    %1473 = vmatprep.subr.mxu0 0.0
    %1474 = vmatpush1.xpose.msra.mxu0 0.0
    %1475 = vmatprep.subr.mxu0 0.0
    %1476 = vmatpush1.xpose.msra.mxu0 0.0
    %1477 = vmatprep.subr.mxu0 0.0
    %1478 = vmatpush1.xpose.msra.mxu0 0.0
    %1479 = vmatprep.subr.mxu0 0.0
    %1480 = vmatpush1.xpose.msra.mxu0 0.0
    %1481 = vmatprep.subr.mxu0 0.0
    %1482 = vmatpush1.xpose.msra.mxu0 0.0
    %1483 = vmatprep.subr.mxu0 0.0
    %1484 = vmatpush1.xpose.msra.mxu0 0.0
    %1485 = vmatprep.subr.mxu0 0.0
    %1486 = vmatpush1.xpose.msra.mxu0 0.0
    %1487 = vmatprep.subr.mxu0 0.0
    %1488 = vmatpush1.xpose.msra.mxu0 0.0
    %1489 = vmatprep.mubr.f32.mxu0 0.0
    %1490 = vmatmul.mubr.f32.gmra.mrb[0].mxu0 %v1420
    %v1491 = vpop.f32.mrb[0].mxu0
    %v1492 = vadd.f32 %v132, %v1491
    %v1493 = vpop.f32.mrb[0].mxu0
    %1494 = vdwg.mxu0
    %v1496 = vsel %vm1190, %v742, 0
    %v1499 = vsel %vm1190, %v830, 0
    %1501 = vmatprep.subr.mxu0 0.0
    %1502 = vmatpush1.xpose.msra.mxu0 %v1499
    %1503 = vmatprep.subr.mxu0 0.0
    %1504 = vmatpush1.xpose.msra.mxu0 0.0
    %1505 = vmatprep.subr.mxu0 0.0
    %1506 = vmatpush1.xpose.msra.mxu0 0.0
    %1507 = vmatprep.subr.mxu0 0.0
    %1508 = vmatpush1.xpose.msra.mxu0 0.0
    %1509 = vmatprep.subr.mxu0 0.0
    %1510 = vmatpush1.xpose.msra.mxu0 0.0
    %1511 = vmatprep.subr.mxu0 0.0
    %1512 = vmatpush1.xpose.msra.mxu0 0.0
    %1513 = vmatprep.subr.mxu0 0.0
    %1514 = vmatpush1.xpose.msra.mxu0 0.0
    %1515 = vmatprep.subr.mxu0 0.0
    %1516 = vmatpush1.xpose.msra.mxu0 0.0
    %1517 = vmatprep.subr.mxu0 0.0
    %1518 = vmatpush1.xpose.msra.mxu0 0.0
    %1519 = vmatprep.subr.mxu0 0.0
    %1520 = vmatpush1.xpose.msra.mxu0 0.0
    %1521 = vmatprep.subr.mxu0 0.0
    %1522 = vmatpush1.xpose.msra.mxu0 0.0
    %1523 = vmatprep.subr.mxu0 0.0
    %1524 = vmatpush1.xpose.msra.mxu0 0.0
    %1525 = vmatprep.subr.mxu0 0.0
    %1526 = vmatpush1.xpose.msra.mxu0 0.0
    %1527 = vmatprep.subr.mxu0 0.0
    %1528 = vmatpush1.xpose.msra.mxu0 0.0
    %1529 = vmatprep.subr.mxu0 0.0
    %1530 = vmatpush1.xpose.msra.mxu0 0.0
    %1531 = vmatprep.subr.mxu0 0.0
    %1532 = vmatpush1.xpose.msra.mxu0 0.0
    %1533 = vmatprep.subr.mxu0 0.0
    %1534 = vmatpush1.xpose.msra.mxu0 0.0
    %1535 = vmatprep.subr.mxu0 0.0
    %1536 = vmatpush1.xpose.msra.mxu0 0.0
    %1537 = vmatprep.subr.mxu0 0.0
    %1538 = vmatpush1.xpose.msra.mxu0 0.0
    %1539 = vmatprep.subr.mxu0 0.0
    %1540 = vmatpush1.xpose.msra.mxu0 0.0
    %1541 = vmatprep.subr.mxu0 0.0
    %1542 = vmatpush1.xpose.msra.mxu0 0.0
    %1543 = vmatprep.subr.mxu0 0.0
    %1544 = vmatpush1.xpose.msra.mxu0 0.0
    %1545 = vmatprep.subr.mxu0 0.0
    %1546 = vmatpush1.xpose.msra.mxu0 0.0
    %1547 = vmatprep.subr.mxu0 0.0
    %1548 = vmatpush1.xpose.msra.mxu0 0.0
    %1549 = vmatprep.subr.mxu0 0.0
    %1550 = vmatpush1.xpose.msra.mxu0 0.0
    %1551 = vmatprep.subr.mxu0 0.0
    %1552 = vmatpush1.xpose.msra.mxu0 0.0
    %1553 = vmatprep.subr.mxu0 0.0
    %1554 = vmatpush1.xpose.msra.mxu0 0.0
    %1555 = vmatprep.subr.mxu0 0.0
    %1556 = vmatpush1.xpose.msra.mxu0 0.0
    %1557 = vmatprep.subr.mxu0 0.0
    %1558 = vmatpush1.xpose.msra.mxu0 0.0
    %1559 = vmatprep.subr.mxu0 0.0
    %1560 = vmatpush1.xpose.msra.mxu0 0.0
    %1561 = vmatprep.subr.mxu0 0.0
    %1562 = vmatpush1.xpose.msra.mxu0 0.0
    %1563 = vmatprep.subr.mxu0 0.0
    %1564 = vmatpush1.xpose.msra.mxu0 0.0
    %1565 = vmatprep.mubr.f32.mxu0 0.0
    %1566 = vmatmul.mubr.f32.gmra.mrb[0].mxu0 %v1496
    %v1567 = vpop.f32.mrb[0].mxu0
    %v1568 = vadd.f32 %v132, %v1567
    %v1569 = vpop.f32.mrb[0].mxu0
    %1570 = vdwg.mxu0
    %v1572 = vsel %vm1190, %v747, 0
    %v1575 = vsel %vm1190, %v835, 0
    %1577 = vmatprep.subr.mxu0 0.0
    %1578 = vmatpush1.xpose.msra.mxu0 %v1575
    %1579 = vmatprep.subr.mxu0 0.0
    %1580 = vmatpush1.xpose.msra.mxu0 0.0
    %1581 = vmatprep.subr.mxu0 0.0
    %1582 = vmatpush1.xpose.msra.mxu0 0.0
    %1583 = vmatprep.subr.mxu0 0.0
    %1584 = vmatpush1.xpose.msra.mxu0 0.0
    %1585 = vmatprep.subr.mxu0 0.0
    %1586 = vmatpush1.xpose.msra.mxu0 0.0
    %1587 = vmatprep.subr.mxu0 0.0
    %1588 = vmatpush1.xpose.msra.mxu0 0.0
    %1589 = vmatprep.subr.mxu0 0.0
    %1590 = vmatpush1.xpose.msra.mxu0 0.0
    %1591 = vmatprep.subr.mxu0 0.0
    %1592 = vmatpush1.xpose.msra.mxu0 0.0
    %1593 = vmatprep.subr.mxu0 0.0
    %1594 = vmatpush1.xpose.msra.mxu0 0.0
    %1595 = vmatprep.subr.mxu0 0.0
    %1596 = vmatpush1.xpose.msra.mxu0 0.0
    %1597 = vmatprep.subr.mxu0 0.0
    %1598 = vmatpush1.xpose.msra.mxu0 0.0
    %1599 = vmatprep.subr.mxu0 0.0
    %1600 = vmatpush1.xpose.msra.mxu0 0.0
    %1601 = vmatprep.subr.mxu0 0.0
    %1602 = vmatpush1.xpose.msra.mxu0 0.0
    %1603 = vmatprep.subr.mxu0 0.0
    %1604 = vmatpush1.xpose.msra.mxu0 0.0
    %1605 = vmatprep.subr.mxu0 0.0
    %1606 = vmatpush1.xpose.msra.mxu0 0.0
    %1607 = vmatprep.subr.mxu0 0.0
    %1608 = vmatpush1.xpose.msra.mxu0 0.0
    %1609 = vmatprep.subr.mxu0 0.0
    %1610 = vmatpush1.xpose.msra.mxu0 0.0
    %1611 = vmatprep.subr.mxu0 0.0
    %1612 = vmatpush1.xpose.msra.mxu0 0.0
    %1613 = vmatprep.subr.mxu0 0.0
    %1614 = vmatpush1.xpose.msra.mxu0 0.0
    %1615 = vmatprep.subr.mxu0 0.0
    %1616 = vmatpush1.xpose.msra.mxu0 0.0
    %1617 = vmatprep.subr.mxu0 0.0
    %1618 = vmatpush1.xpose.msra.mxu0 0.0
    %1619 = vmatprep.subr.mxu0 0.0
    %1620 = vmatpush1.xpose.msra.mxu0 0.0
    %1621 = vmatprep.subr.mxu0 0.0
    %1622 = vmatpush1.xpose.msra.mxu0 0.0
    %1623 = vmatprep.subr.mxu0 0.0
    %1624 = vmatpush1.xpose.msra.mxu0 0.0
    %1625 = vmatprep.subr.mxu0 0.0
    %1626 = vmatpush1.xpose.msra.mxu0 0.0
    %1627 = vmatprep.subr.mxu0 0.0
    %1628 = vmatpush1.xpose.msra.mxu0 0.0
    %1629 = vmatprep.subr.mxu0 0.0
    %1630 = vmatpush1.xpose.msra.mxu0 0.0
    %1631 = vmatprep.subr.mxu0 0.0
    %1632 = vmatpush1.xpose.msra.mxu0 0.0
    %1633 = vmatprep.subr.mxu0 0.0
    %1634 = vmatpush1.xpose.msra.mxu0 0.0
    %1635 = vmatprep.subr.mxu0 0.0
    %1636 = vmatpush1.xpose.msra.mxu0 0.0
    %1637 = vmatprep.subr.mxu0 0.0
    %1638 = vmatpush1.xpose.msra.mxu0 0.0
    %1639 = vmatprep.subr.mxu0 0.0
    %1640 = vmatpush1.xpose.msra.mxu0 0.0
    %1641 = vmatprep.mubr.f32.mxu0 0.0
    %1642 = vmatmul.mubr.f32.gmra.mrb[0].mxu0 %v1572
    %v1643 = vpop.f32.mrb[0].mxu0
    %v1644 = vadd.f32 %v132, %v1643
    %v1645 = vpop.f32.mrb[0].mxu0
    %1646 = vdwg.mxu0
    %v1648 = vsel %vm1190, %v1006, 0
    %v1651 = vsel %vm1190, %v1094, 0
    %1653 = vmatprep.subr.mxu0 0.0
    %1654 = vmatpush1.xpose.msra.mxu0 %v1651
    %1655 = vmatprep.subr.mxu0 0.0
    %1656 = vmatpush1.xpose.msra.mxu0 0.0
    %1657 = vmatprep.subr.mxu0 0.0
    %1658 = vmatpush1.xpose.msra.mxu0 0.0
    %1659 = vmatprep.subr.mxu0 0.0
    %1660 = vmatpush1.xpose.msra.mxu0 0.0
    %1661 = vmatprep.subr.mxu0 0.0
    %1662 = vmatpush1.xpose.msra.mxu0 0.0
    %1663 = vmatprep.subr.mxu0 0.0
    %1664 = vmatpush1.xpose.msra.mxu0 0.0
    %1665 = vmatprep.subr.mxu0 0.0
    %1666 = vmatpush1.xpose.msra.mxu0 0.0
    %1667 = vmatprep.subr.mxu0 0.0
    %1668 = vmatpush1.xpose.msra.mxu0 0.0
    %1669 = vmatprep.subr.mxu0 0.0
    %1670 = vmatpush1.xpose.msra.mxu0 0.0
    %1671 = vmatprep.subr.mxu0 0.0
    %1672 = vmatpush1.xpose.msra.mxu0 0.0
    %1673 = vmatprep.subr.mxu0 0.0
    %1674 = vmatpush1.xpose.msra.mxu0 0.0
    %1675 = vmatprep.subr.mxu0 0.0
    %1676 = vmatpush1.xpose.msra.mxu0 0.0
    %1677 = vmatprep.subr.mxu0 0.0
    %1678 = vmatpush1.xpose.msra.mxu0 0.0
    %1679 = vmatprep.subr.mxu0 0.0
    %1680 = vmatpush1.xpose.msra.mxu0 0.0
    %1681 = vmatprep.subr.mxu0 0.0
    %1682 = vmatpush1.xpose.msra.mxu0 0.0
    %1683 = vmatprep.subr.mxu0 0.0
    %1684 = vmatpush1.xpose.msra.mxu0 0.0
    %1685 = vmatprep.subr.mxu0 0.0
    %1686 = vmatpush1.xpose.msra.mxu0 0.0
    %1687 = vmatprep.subr.mxu0 0.0
    %1688 = vmatpush1.xpose.msra.mxu0 0.0
    %1689 = vmatprep.subr.mxu0 0.0
    %1690 = vmatpush1.xpose.msra.mxu0 0.0
    %1691 = vmatprep.subr.mxu0 0.0
    %1692 = vmatpush1.xpose.msra.mxu0 0.0
    %1693 = vmatprep.subr.mxu0 0.0
    %1694 = vmatpush1.xpose.msra.mxu0 0.0
    %1695 = vmatprep.subr.mxu0 0.0
    %1696 = vmatpush1.xpose.msra.mxu0 0.0
    %1697 = vmatprep.subr.mxu0 0.0
    %1698 = vmatpush1.xpose.msra.mxu0 0.0
    %1699 = vmatprep.subr.mxu0 0.0
    %1700 = vmatpush1.xpose.msra.mxu0 0.0
    %1701 = vmatprep.subr.mxu0 0.0
    %1702 = vmatpush1.xpose.msra.mxu0 0.0
    %1703 = vmatprep.subr.mxu0 0.0
    %1704 = vmatpush1.xpose.msra.mxu0 0.0
    %1705 = vmatprep.subr.mxu0 0.0
    %1706 = vmatpush1.xpose.msra.mxu0 0.0
    %1707 = vmatprep.subr.mxu0 0.0
    %1708 = vmatpush1.xpose.msra.mxu0 0.0
    %1709 = vmatprep.subr.mxu0 0.0
    %1710 = vmatpush1.xpose.msra.mxu0 0.0
    %1711 = vmatprep.subr.mxu0 0.0
    %1712 = vmatpush1.xpose.msra.mxu0 0.0
    %1713 = vmatprep.subr.mxu0 0.0
    %1714 = vmatpush1.xpose.msra.mxu0 0.0
    %1715 = vmatprep.subr.mxu0 0.0
    %1716 = vmatpush1.xpose.msra.mxu0 0.0
    %1717 = vmatprep.mubr.f32.mxu0 0.0
    %1718 = vmatmul.mubr.f32.gmra.mrb[0].mxu0 %v1648
    %v1719 = vpop.f32.mrb[0].mxu0
    %v1720 = vadd.f32 %v132, %v1719
    %v1721 = vpop.f32.mrb[0].mxu0
    %1722 = vdwg.mxu0
    %v1724 = vsel %vm1190, %v1011, 0
    %v1727 = vsel %vm1190, %v1099, 0
    %1729 = vmatprep.subr.mxu0 0.0
    %1730 = vmatpush1.xpose.msra.mxu0 %v1727
    %1731 = vmatprep.subr.mxu0 0.0
    %1732 = vmatpush1.xpose.msra.mxu0 0.0
    %1733 = vmatprep.subr.mxu0 0.0
    %1734 = vmatpush1.xpose.msra.mxu0 0.0
    %1735 = vmatprep.subr.mxu0 0.0
    %1736 = vmatpush1.xpose.msra.mxu0 0.0
    %1737 = vmatprep.subr.mxu0 0.0
    %1738 = vmatpush1.xpose.msra.mxu0 0.0
    %1739 = vmatprep.subr.mxu0 0.0
    %1740 = vmatpush1.xpose.msra.mxu0 0.0
    %1741 = vmatprep.subr.mxu0 0.0
    %1742 = vmatpush1.xpose.msra.mxu0 0.0
    %1743 = vmatprep.subr.mxu0 0.0
    %1744 = vmatpush1.xpose.msra.mxu0 0.0
    %1745 = vmatprep.subr.mxu0 0.0
    %1746 = vmatpush1.xpose.msra.mxu0 0.0
    %1747 = vmatprep.subr.mxu0 0.0
    %1748 = vmatpush1.xpose.msra.mxu0 0.0
    %1749 = vmatprep.subr.mxu0 0.0
    %1750 = vmatpush1.xpose.msra.mxu0 0.0
    %1751 = vmatprep.subr.mxu0 0.0
    %1752 = vmatpush1.xpose.msra.mxu0 0.0
    %1753 = vmatprep.subr.mxu0 0.0
    %1754 = vmatpush1.xpose.msra.mxu0 0.0
    %1755 = vmatprep.subr.mxu0 0.0
    %1756 = vmatpush1.xpose.msra.mxu0 0.0
    %1757 = vmatprep.subr.mxu0 0.0
    %1758 = vmatpush1.xpose.msra.mxu0 0.0
    %1759 = vmatprep.subr.mxu0 0.0
    %1760 = vmatpush1.xpose.msra.mxu0 0.0
    %1761 = vmatprep.subr.mxu0 0.0
    %1762 = vmatpush1.xpose.msra.mxu0 0.0
    %1763 = vmatprep.subr.mxu0 0.0
    %1764 = vmatpush1.xpose.msra.mxu0 0.0
    %1765 = vmatprep.subr.mxu0 0.0
    %1766 = vmatpush1.xpose.msra.mxu0 0.0
    %1767 = vmatprep.subr.mxu0 0.0
    %1768 = vmatpush1.xpose.msra.mxu0 0.0
    %1769 = vmatprep.subr.mxu0 0.0
    %1770 = vmatpush1.xpose.msra.mxu0 0.0
    %1771 = vmatprep.subr.mxu0 0.0
    %1772 = vmatpush1.xpose.msra.mxu0 0.0
    %1773 = vmatprep.subr.mxu0 0.0
    %1774 = vmatpush1.xpose.msra.mxu0 0.0
    %1775 = vmatprep.subr.mxu0 0.0
    %1776 = vmatpush1.xpose.msra.mxu0 0.0
    %1777 = vmatprep.subr.mxu0 0.0
    %1778 = vmatpush1.xpose.msra.mxu0 0.0
    %1779 = vmatprep.subr.mxu0 0.0
    %1780 = vmatpush1.xpose.msra.mxu0 0.0
    %1781 = vmatprep.subr.mxu0 0.0
    %1782 = vmatpush1.xpose.msra.mxu0 0.0
    %1783 = vmatprep.subr.mxu0 0.0
    %1784 = vmatpush1.xpose.msra.mxu0 0.0
    %1785 = vmatprep.subr.mxu0 0.0
    %1786 = vmatpush1.xpose.msra.mxu0 0.0
    %1787 = vmatprep.subr.mxu0 0.0
    %1788 = vmatpush1.xpose.msra.mxu0 0.0
    %1789 = vmatprep.subr.mxu0 0.0
    %1790 = vmatpush1.xpose.msra.mxu0 0.0
    %1791 = vmatprep.subr.mxu0 0.0
    %1792 = vmatpush1.xpose.msra.mxu0 0.0
    %1793 = vmatprep.mubr.f32.mxu0 0.0
    %1794 = vmatmul.mubr.f32.gmra.mrb[0].mxu0 %v1724
    %v1795 = vpop.f32.mrb[0].mxu0
    %v1796 = vadd.f32 %v132, %v1795
    %v1797 = vpop.f32.mrb[0].mxu0
    %1798 = vdwg.mxu0
    %v1799 = vsel %vm1190, %v1264, -inf
    %1800 = vmax.xlane.f32.xlu0 %v1799
    %v1801 = vpop.xlane.xlu0 %1800
    %v1802 = vsel %vm1190, %v1340, -inf
    %1803 = vmax.xlane.f32.xlu0 %v1802
    %v1804 = vpop.xlane.xlu0 %1803
    %v1805 = vsel %vm1190, %v1416, -inf
    %1806 = vmax.xlane.f32.xlu0 %v1805
    %v1807 = vpop.xlane.xlu0 %1806
    %v1808 = vsel %vm1190, %v1492, -inf
    %1809 = vmax.xlane.f32.xlu0 %v1808
    %v1810 = vpop.xlane.xlu0 %1809
    %v1811 = vsel %vm1190, %v1568, -inf
    %1812 = vmax.xlane.f32.xlu0 %v1811
    %v1813 = vpop.xlane.xlu0 %1812
    %v1814 = vsel %vm1190, %v1644, -inf
    %1815 = vmax.xlane.f32.xlu0 %v1814
    %v1816 = vpop.xlane.xlu0 %1815
    %v1817 = vsel %vm1190, %v1720, -inf
    %1818 = vmax.xlane.f32.xlu0 %v1817
    %v1819 = vpop.xlane.xlu0 %1818
    %v1820 = vsel %vm1190, %v1796, -inf
    %1821 = vmax.xlane.f32.xlu0 %v1820
    %v1822 = vpop.xlane.xlu0 %1821
    %v1823 = vsub.f32 %v1264, %v1801
    %v1824 = vsub.f32 %v1340, %v1804
    %v1825 = vsub.f32 %v1416, %v1807
    %v1826 = vsub.f32 %v1492, %v1810
    %v1827 = vsub.f32 %v1568, %v1813
    %v1828 = vsub.f32 %v1644, %v1816
    %v1829 = vsub.f32 %v1720, %v1819
    %v1830 = vsub.f32 %v1796, %v1822
    %v1831 = vmul.f32 %v1823, 1.442695
    %v1832 = vpow.pop %v1831
    %v1833 = vmul.f32 %v1824, 1.442695
    %v1834 = vpow.pop %v1833
    %v1835 = vmul.f32 %v1825, 1.442695
    %v1836 = vpow.pop %v1835
    %v1837 = vmul.f32 %v1826, 1.442695
    %v1838 = vpow.pop %v1837
    %v1839 = vmul.f32 %v1827, 1.442695
    %v1840 = vpow.pop %v1839
    %v1841 = vmul.f32 %v1828, 1.442695
    %v1842 = vpow.pop %v1841
    %v1843 = vmul.f32 %v1829, 1.442695
    %v1844 = vpow.pop %v1843
    %v1845 = vmul.f32 %v1830, 1.442695
    %v1846 = vpow.pop %v1845
    %v1847 = vsel %vm1190, %v1832, 0.0
    %1848 = vadd.xlane.f32.xlu0 %v1847
    %v1849 = vpop.xlane.xlu0 %1848
    %v1850 = vsel %vm1190, %v1834, 0.0
    %1851 = vadd.xlane.f32.xlu0 %v1850
    %v1852 = vpop.xlane.xlu0 %1851
    %v1853 = vsel %vm1190, %v1836, 0.0
    %1854 = vadd.xlane.f32.xlu0 %v1853
    %v1855 = vpop.xlane.xlu0 %1854
    %v1856 = vsel %vm1190, %v1838, 0.0
    %1857 = vadd.xlane.f32.xlu0 %v1856
    %v1858 = vpop.xlane.xlu0 %1857
    %v1859 = vsel %vm1190, %v1840, 0.0
    %1860 = vadd.xlane.f32.xlu0 %v1859
    %v1861 = vpop.xlane.xlu0 %1860
    %v1862 = vsel %vm1190, %v1842, 0.0
    %1863 = vadd.xlane.f32.xlu0 %v1862
    %v1864 = vpop.xlane.xlu0 %1863
    %v1865 = vsel %vm1190, %v1844, 0.0
    %1866 = vadd.xlane.f32.xlu0 %v1865
    %v1867 = vpop.xlane.xlu0 %1866
    %v1868 = vsel %vm1190, %v1846, 0.0
    %1869 = vadd.xlane.f32.xlu0 %v1868
    %v1870 = vpop.xlane.xlu0 %1869
    %v1871 = vrcp.pop %v1849
    %v1872 = vrcp.pop %v1852
    %v1873 = vrcp.pop %v1855
    %v1874 = vrcp.pop %v1858
    %v1875 = vrcp.pop %v1861
    %v1876 = vrcp.pop %v1864
    %v1877 = vrcp.pop %v1867
    %v1878 = vrcp.pop %v1870
    %v1879 = vmul.f32 %v1832, %v1871
    %v1880 = vmul.f32 %v1834, %v1872
    %v1881 = vmul.f32 %v1836, %v1873
    %v1882 = vmul.f32 %v1838, %v1874
    %v1883 = vmul.f32 %v1840, %v1875
    %v1884 = vmul.f32 %v1842, %v1876
    %v1885 = vmul.f32 %v1844, %v1877
    %v1886 = vmul.f32 %v1846, %v1878
    %v1888 = vsel %vm1190, %v1879, 0
    %1890 = vmatprep.subr.mxu0 0.0
    %1891 = vmatpush1.msra.mxu0 %v390
    %1892 = vmatprep.subr.mxu0 0.0
    %1893 = vmatpush1.msra.mxu0 0.0
    %1894 = vmatprep.subr.mxu0 0.0
    %1895 = vmatpush1.msra.mxu0 0.0
    %1896 = vmatprep.subr.mxu0 0.0
    %1897 = vmatpush1.msra.mxu0 0.0
    %1898 = vmatprep.subr.mxu0 0.0
    %1899 = vmatpush1.msra.mxu0 0.0
    %1900 = vmatprep.subr.mxu0 0.0
    %1901 = vmatpush1.msra.mxu0 0.0
    %1902 = vmatprep.subr.mxu0 0.0
    %1903 = vmatpush1.msra.mxu0 0.0
    %1904 = vmatprep.subr.mxu0 0.0
    %1905 = vmatpush1.msra.mxu0 0.0
    %1906 = vmatprep.subr.mxu0 0.0
    %1907 = vmatpush1.msra.mxu0 0.0
    %1908 = vmatprep.subr.mxu0 0.0
    %1909 = vmatpush1.msra.mxu0 0.0
    %1910 = vmatprep.subr.mxu0 0.0
    %1911 = vmatpush1.msra.mxu0 0.0
    %1912 = vmatprep.subr.mxu0 0.0
    %1913 = vmatpush1.msra.mxu0 0.0
    %1914 = vmatprep.subr.mxu0 0.0
    %1915 = vmatpush1.msra.mxu0 0.0
    %1916 = vmatprep.subr.mxu0 0.0
    %1917 = vmatpush1.msra.mxu0 0.0
    %1918 = vmatprep.subr.mxu0 0.0
    %1919 = vmatpush1.msra.mxu0 0.0
    %1920 = vmatprep.subr.mxu0 0.0
    %1921 = vmatpush1.msra.mxu0 0.0
    %1922 = vmatprep.subr.mxu0 0.0
    %1923 = vmatpush1.msra.mxu0 0.0
    %1924 = vmatprep.subr.mxu0 0.0
    %1925 = vmatpush1.msra.mxu0 0.0
    %1926 = vmatprep.subr.mxu0 0.0
    %1927 = vmatpush1.msra.mxu0 0.0
    %1928 = vmatprep.subr.mxu0 0.0
    %1929 = vmatpush1.msra.mxu0 0.0
    %1930 = vmatprep.subr.mxu0 0.0
    %1931 = vmatpush1.msra.mxu0 0.0
    %1932 = vmatprep.subr.mxu0 0.0
    %1933 = vmatpush1.msra.mxu0 0.0
    %1934 = vmatprep.subr.mxu0 0.0
    %1935 = vmatpush1.msra.mxu0 0.0
    %1936 = vmatprep.subr.mxu0 0.0
    %1937 = vmatpush1.msra.mxu0 0.0
    %1938 = vmatprep.subr.mxu0 0.0
    %1939 = vmatpush1.msra.mxu0 0.0
    %1940 = vmatprep.subr.mxu0 0.0
    %1941 = vmatpush1.msra.mxu0 0.0
    %1942 = vmatprep.subr.mxu0 0.0
    %1943 = vmatpush1.msra.mxu0 0.0
    %1944 = vmatprep.subr.mxu0 0.0
    %1945 = vmatpush1.msra.mxu0 0.0
    %1946 = vmatprep.subr.mxu0 0.0
    %1947 = vmatpush1.msra.mxu0 0.0
    %1948 = vmatprep.subr.mxu0 0.0
    %1949 = vmatpush1.msra.mxu0 0.0
    %1950 = vmatprep.subr.mxu0 0.0
    %1951 = vmatpush1.msra.mxu0 0.0
    %1952 = vmatprep.subr.mxu0 0.0
    %1953 = vmatpush1.msra.mxu0 0.0
    %1954 = vmatprep.mubr.f32.mxu0 0.0
    %1955 = vmatmul.mubr.f32.gmra.mrb[0].mxu0 %v1888
    %v1956 = vpop.f32.mrb[0].mxu0
    %v1957 = vadd.f32 0.0, %v1956
    %v1958 = vpop.f32.mrb[0].mxu0
    %1959 = vdwg.mxu0
    %v1961 = vsel %vm1190, %v1880, 0
    %1963 = vmatprep.subr.mxu0 0.0
    %1964 = vmatpush1.msra.mxu0 %v395
    %1965 = vmatprep.subr.mxu0 0.0
    %1966 = vmatpush1.msra.mxu0 0.0
    %1967 = vmatprep.subr.mxu0 0.0
    %1968 = vmatpush1.msra.mxu0 0.0
    %1969 = vmatprep.subr.mxu0 0.0
    %1970 = vmatpush1.msra.mxu0 0.0
    %1971 = vmatprep.subr.mxu0 0.0
    %1972 = vmatpush1.msra.mxu0 0.0
    %1973 = vmatprep.subr.mxu0 0.0
    %1974 = vmatpush1.msra.mxu0 0.0
    %1975 = vmatprep.subr.mxu0 0.0
    %1976 = vmatpush1.msra.mxu0 0.0
    %1977 = vmatprep.subr.mxu0 0.0
    %1978 = vmatpush1.msra.mxu0 0.0
    %1979 = vmatprep.subr.mxu0 0.0
    %1980 = vmatpush1.msra.mxu0 0.0
    %1981 = vmatprep.subr.mxu0 0.0
    %1982 = vmatpush1.msra.mxu0 0.0
    %1983 = vmatprep.subr.mxu0 0.0
    %1984 = vmatpush1.msra.mxu0 0.0
    %1985 = vmatprep.subr.mxu0 0.0
    %1986 = vmatpush1.msra.mxu0 0.0
    %1987 = vmatprep.subr.mxu0 0.0
    %1988 = vmatpush1.msra.mxu0 0.0
    %1989 = vmatprep.subr.mxu0 0.0
    %1990 = vmatpush1.msra.mxu0 0.0
    %1991 = vmatprep.subr.mxu0 0.0
    %1992 = vmatpush1.msra.mxu0 0.0
    %1993 = vmatprep.subr.mxu0 0.0
    %1994 = vmatpush1.msra.mxu0 0.0
    %1995 = vmatprep.subr.mxu0 0.0
    %1996 = vmatpush1.msra.mxu0 0.0
    %1997 = vmatprep.subr.mxu0 0.0
    %1998 = vmatpush1.msra.mxu0 0.0
    %1999 = vmatprep.subr.mxu0 0.0
    %2000 = vmatpush1.msra.mxu0 0.0
    %2001 = vmatprep.subr.mxu0 0.0
    %2002 = vmatpush1.msra.mxu0 0.0
    %2003 = vmatprep.subr.mxu0 0.0
    %2004 = vmatpush1.msra.mxu0 0.0
    %2005 = vmatprep.subr.mxu0 0.0
    %2006 = vmatpush1.msra.mxu0 0.0
    %2007 = vmatprep.subr.mxu0 0.0
    %2008 = vmatpush1.msra.mxu0 0.0
    %2009 = vmatprep.subr.mxu0 0.0
    %2010 = vmatpush1.msra.mxu0 0.0
    %2011 = vmatprep.subr.mxu0 0.0
    %2012 = vmatpush1.msra.mxu0 0.0
    %2013 = vmatprep.subr.mxu0 0.0
    %2014 = vmatpush1.msra.mxu0 0.0
    %2015 = vmatprep.subr.mxu0 0.0
    %2016 = vmatpush1.msra.mxu0 0.0
    %2017 = vmatprep.subr.mxu0 0.0
    %2018 = vmatpush1.msra.mxu0 0.0
    %2019 = vmatprep.subr.mxu0 0.0
    %2020 = vmatpush1.msra.mxu0 0.0
    %2021 = vmatprep.subr.mxu0 0.0
    %2022 = vmatpush1.msra.mxu0 0.0
    %2023 = vmatprep.subr.mxu0 0.0
    %2024 = vmatpush1.msra.mxu0 0.0
    %2025 = vmatprep.subr.mxu0 0.0
    %2026 = vmatpush1.msra.mxu0 0.0
    %2027 = vmatprep.mubr.f32.mxu0 0.0
    %2028 = vmatmul.mubr.f32.gmra.mrb[0].mxu0 %v1961
    %v2029 = vpop.f32.mrb[0].mxu0
    %v2030 = vadd.f32 0.0, %v2029
    %v2031 = vpop.f32.mrb[0].mxu0
    %2032 = vdwg.mxu0
    %v2034 = vsel %vm1190, %v1881, 0
    %2036 = vmatprep.subr.mxu0 0.0
    %2037 = vmatpush1.msra.mxu0 %v654
    %2038 = vmatprep.subr.mxu0 0.0
    %2039 = vmatpush1.msra.mxu0 0.0
    %2040 = vmatprep.subr.mxu0 0.0
    %2041 = vmatpush1.msra.mxu0 0.0
    %2042 = vmatprep.subr.mxu0 0.0
    %2043 = vmatpush1.msra.mxu0 0.0
    %2044 = vmatprep.subr.mxu0 0.0
    %2045 = vmatpush1.msra.mxu0 0.0
    %2046 = vmatprep.subr.mxu0 0.0
    %2047 = vmatpush1.msra.mxu0 0.0
    %2048 = vmatprep.subr.mxu0 0.0
    %2049 = vmatpush1.msra.mxu0 0.0
    %2050 = vmatprep.subr.mxu0 0.0
    %2051 = vmatpush1.msra.mxu0 0.0
    %2052 = vmatprep.subr.mxu0 0.0
    %2053 = vmatpush1.msra.mxu0 0.0
    %2054 = vmatprep.subr.mxu0 0.0
    %2055 = vmatpush1.msra.mxu0 0.0
    %2056 = vmatprep.subr.mxu0 0.0
    %2057 = vmatpush1.msra.mxu0 0.0
    %2058 = vmatprep.subr.mxu0 0.0
    %2059 = vmatpush1.msra.mxu0 0.0
    %2060 = vmatprep.subr.mxu0 0.0
    %2061 = vmatpush1.msra.mxu0 0.0
    %2062 = vmatprep.subr.mxu0 0.0
    %2063 = vmatpush1.msra.mxu0 0.0
    %2064 = vmatprep.subr.mxu0 0.0
    %2065 = vmatpush1.msra.mxu0 0.0
    %2066 = vmatprep.subr.mxu0 0.0
    %2067 = vmatpush1.msra.mxu0 0.0
    %2068 = vmatprep.subr.mxu0 0.0
    %2069 = vmatpush1.msra.mxu0 0.0
    %2070 = vmatprep.subr.mxu0 0.0
    %2071 = vmatpush1.msra.mxu0 0.0
    %2072 = vmatprep.subr.mxu0 0.0
    %2073 = vmatpush1.msra.mxu0 0.0
    %2074 = vmatprep.subr.mxu0 0.0
    %2075 = vmatpush1.msra.mxu0 0.0
    %2076 = vmatprep.subr.mxu0 0.0
    %2077 = vmatpush1.msra.mxu0 0.0
    %2078 = vmatprep.subr.mxu0 0.0
    %2079 = vmatpush1.msra.mxu0 0.0
    %2080 = vmatprep.subr.mxu0 0.0
    %2081 = vmatpush1.msra.mxu0 0.0
    %2082 = vmatprep.subr.mxu0 0.0
    %2083 = vmatpush1.msra.mxu0 0.0
    %2084 = vmatprep.subr.mxu0 0.0
    %2085 = vmatpush1.msra.mxu0 0.0
    %2086 = vmatprep.subr.mxu0 0.0
    %2087 = vmatpush1.msra.mxu0 0.0
    %2088 = vmatprep.subr.mxu0 0.0
    %2089 = vmatpush1.msra.mxu0 0.0
    %2090 = vmatprep.subr.mxu0 0.0
    %2091 = vmatpush1.msra.mxu0 0.0
    %2092 = vmatprep.subr.mxu0 0.0
    %2093 = vmatpush1.msra.mxu0 0.0
    %2094 = vmatprep.subr.mxu0 0.0
    %2095 = vmatpush1.msra.mxu0 0.0
    %2096 = vmatprep.subr.mxu0 0.0
    %2097 = vmatpush1.msra.mxu0 0.0
    %2098 = vmatprep.subr.mxu0 0.0
    %2099 = vmatpush1.msra.mxu0 0.0
    %2100 = vmatprep.mubr.f32.mxu0 0.0
    %2101 = vmatmul.mubr.f32.gmra.mrb[0].mxu0 %v2034
    %v2102 = vpop.f32.mrb[0].mxu0
    %v2103 = vadd.f32 0.0, %v2102
    %v2104 = vpop.f32.mrb[0].mxu0
    %2105 = vdwg.mxu0
    %v2107 = vsel %vm1190, %v1882, 0
    %2109 = vmatprep.subr.mxu0 0.0
    %2110 = vmatpush1.msra.mxu0 %v659
    %2111 = vmatprep.subr.mxu0 0.0
    %2112 = vmatpush1.msra.mxu0 0.0
    %2113 = vmatprep.subr.mxu0 0.0
    %2114 = vmatpush1.msra.mxu0 0.0
    %2115 = vmatprep.subr.mxu0 0.0
    %2116 = vmatpush1.msra.mxu0 0.0
    %2117 = vmatprep.subr.mxu0 0.0
    %2118 = vmatpush1.msra.mxu0 0.0
    %2119 = vmatprep.subr.mxu0 0.0
    %2120 = vmatpush1.msra.mxu0 0.0
    %2121 = vmatprep.subr.mxu0 0.0
    %2122 = vmatpush1.msra.mxu0 0.0
    %2123 = vmatprep.subr.mxu0 0.0
    %2124 = vmatpush1.msra.mxu0 0.0
    %2125 = vmatprep.subr.mxu0 0.0
    %2126 = vmatpush1.msra.mxu0 0.0
    %2127 = vmatprep.subr.mxu0 0.0
    %2128 = vmatpush1.msra.mxu0 0.0
    %2129 = vmatprep.subr.mxu0 0.0
    %2130 = vmatpush1.msra.mxu0 0.0
    %2131 = vmatprep.subr.mxu0 0.0
    %2132 = vmatpush1.msra.mxu0 0.0
    %2133 = vmatprep.subr.mxu0 0.0
    %2134 = vmatpush1.msra.mxu0 0.0
    %2135 = vmatprep.subr.mxu0 0.0
    %2136 = vmatpush1.msra.mxu0 0.0
    %2137 = vmatprep.subr.mxu0 0.0
    %2138 = vmatpush1.msra.mxu0 0.0
    %2139 = vmatprep.subr.mxu0 0.0
    %2140 = vmatpush1.msra.mxu0 0.0
    %2141 = vmatprep.subr.mxu0 0.0
    %2142 = vmatpush1.msra.mxu0 0.0
    %2143 = vmatprep.subr.mxu0 0.0
    %2144 = vmatpush1.msra.mxu0 0.0
    %2145 = vmatprep.subr.mxu0 0.0
    %2146 = vmatpush1.msra.mxu0 0.0
    %2147 = vmatprep.subr.mxu0 0.0
    %2148 = vmatpush1.msra.mxu0 0.0
    %2149 = vmatprep.subr.mxu0 0.0
    %2150 = vmatpush1.msra.mxu0 0.0
    %2151 = vmatprep.subr.mxu0 0.0
    %2152 = vmatpush1.msra.mxu0 0.0
    %2153 = vmatprep.subr.mxu0 0.0
    %2154 = vmatpush1.msra.mxu0 0.0
    %2155 = vmatprep.subr.mxu0 0.0
    %2156 = vmatpush1.msra.mxu0 0.0
    %2157 = vmatprep.subr.mxu0 0.0
    %2158 = vmatpush1.msra.mxu0 0.0
    %2159 = vmatprep.subr.mxu0 0.0
    %2160 = vmatpush1.msra.mxu0 0.0
    %2161 = vmatprep.subr.mxu0 0.0
    %2162 = vmatpush1.msra.mxu0 0.0
    %2163 = vmatprep.subr.mxu0 0.0
    %2164 = vmatpush1.msra.mxu0 0.0
    %2165 = vmatprep.subr.mxu0 0.0
    %2166 = vmatpush1.msra.mxu0 0.0
    %2167 = vmatprep.subr.mxu0 0.0
    %2168 = vmatpush1.msra.mxu0 0.0
    %2169 = vmatprep.subr.mxu0 0.0
    %2170 = vmatpush1.msra.mxu0 0.0
    %2171 = vmatprep.subr.mxu0 0.0
    %2172 = vmatpush1.msra.mxu0 0.0
    %2173 = vmatprep.mubr.f32.mxu0 0.0
    %2174 = vmatmul.mubr.f32.gmra.mrb[0].mxu0 %v2107
    %v2175 = vpop.f32.mrb[0].mxu0
    %v2176 = vadd.f32 0.0, %v2175
    %v2177 = vpop.f32.mrb[0].mxu0
    %2178 = vdwg.mxu0
    %v2180 = vsel %vm1190, %v1883, 0
    %2182 = vmatprep.subr.mxu0 0.0
    %2183 = vmatpush1.msra.mxu0 %v918
    %2184 = vmatprep.subr.mxu0 0.0
    %2185 = vmatpush1.msra.mxu0 0.0
    %2186 = vmatprep.subr.mxu0 0.0
    %2187 = vmatpush1.msra.mxu0 0.0
    %2188 = vmatprep.subr.mxu0 0.0
    %2189 = vmatpush1.msra.mxu0 0.0
    %2190 = vmatprep.subr.mxu0 0.0
    %2191 = vmatpush1.msra.mxu0 0.0
    %2192 = vmatprep.subr.mxu0 0.0
    %2193 = vmatpush1.msra.mxu0 0.0
    %2194 = vmatprep.subr.mxu0 0.0
    %2195 = vmatpush1.msra.mxu0 0.0
    %2196 = vmatprep.subr.mxu0 0.0
    %2197 = vmatpush1.msra.mxu0 0.0
    %2198 = vmatprep.subr.mxu0 0.0
    %2199 = vmatpush1.msra.mxu0 0.0
    %2200 = vmatprep.subr.mxu0 0.0
    %2201 = vmatpush1.msra.mxu0 0.0
    %2202 = vmatprep.subr.mxu0 0.0
    %2203 = vmatpush1.msra.mxu0 0.0
    %2204 = vmatprep.subr.mxu0 0.0
    %2205 = vmatpush1.msra.mxu0 0.0
    %2206 = vmatprep.subr.mxu0 0.0
    %2207 = vmatpush1.msra.mxu0 0.0
    %2208 = vmatprep.subr.mxu0 0.0
    %2209 = vmatpush1.msra.mxu0 0.0
    %2210 = vmatprep.subr.mxu0 0.0
    %2211 = vmatpush1.msra.mxu0 0.0
    %2212 = vmatprep.subr.mxu0 0.0
    %2213 = vmatpush1.msra.mxu0 0.0
    %2214 = vmatprep.subr.mxu0 0.0
    %2215 = vmatpush1.msra.mxu0 0.0
    %2216 = vmatprep.subr.mxu0 0.0
    %2217 = vmatpush1.msra.mxu0 0.0
    %2218 = vmatprep.subr.mxu0 0.0
    %2219 = vmatpush1.msra.mxu0 0.0
    %2220 = vmatprep.subr.mxu0 0.0
    %2221 = vmatpush1.msra.mxu0 0.0
    %2222 = vmatprep.subr.mxu0 0.0
    %2223 = vmatpush1.msra.mxu0 0.0
    %2224 = vmatprep.subr.mxu0 0.0
    %2225 = vmatpush1.msra.mxu0 0.0
    %2226 = vmatprep.subr.mxu0 0.0
    %2227 = vmatpush1.msra.mxu0 0.0
    %2228 = vmatprep.subr.mxu0 0.0
    %2229 = vmatpush1.msra.mxu0 0.0
    %2230 = vmatprep.subr.mxu0 0.0
    %2231 = vmatpush1.msra.mxu0 0.0
    %2232 = vmatprep.subr.mxu0 0.0
    %2233 = vmatpush1.msra.mxu0 0.0
    %2234 = vmatprep.subr.mxu0 0.0
    %2235 = vmatpush1.msra.mxu0 0.0
    %2236 = vmatprep.subr.mxu0 0.0
    %2237 = vmatpush1.msra.mxu0 0.0
    %2238 = vmatprep.subr.mxu0 0.0
    %2239 = vmatpush1.msra.mxu0 0.0
    %2240 = vmatprep.subr.mxu0 0.0
    %2241 = vmatpush1.msra.mxu0 0.0
    %2242 = vmatprep.subr.mxu0 0.0
    %2243 = vmatpush1.msra.mxu0 0.0
    %2244 = vmatprep.subr.mxu0 0.0
    %2245 = vmatpush1.msra.mxu0 0.0
    %2246 = vmatprep.mubr.f32.mxu0 0.0
    %2247 = vmatmul.mubr.f32.gmra.mrb[0].mxu0 %v2180
    %v2248 = vpop.f32.mrb[0].mxu0
    %v2249 = vadd.f32 0.0, %v2248
    %v2250 = vpop.f32.mrb[0].mxu0
    %2251 = vdwg.mxu0
    %v2253 = vsel %vm1190, %v1884, 0
    %2255 = vmatprep.subr.mxu0 0.0
    %2256 = vmatpush1.msra.mxu0 %v923
    %2257 = vmatprep.subr.mxu0 0.0
    %2258 = vmatpush1.msra.mxu0 0.0
    %2259 = vmatprep.subr.mxu0 0.0
    %2260 = vmatpush1.msra.mxu0 0.0
    %2261 = vmatprep.subr.mxu0 0.0
    %2262 = vmatpush1.msra.mxu0 0.0
    %2263 = vmatprep.subr.mxu0 0.0
    %2264 = vmatpush1.msra.mxu0 0.0
    %2265 = vmatprep.subr.mxu0 0.0
    %2266 = vmatpush1.msra.mxu0 0.0
    %2267 = vmatprep.subr.mxu0 0.0
    %2268 = vmatpush1.msra.mxu0 0.0
    %2269 = vmatprep.subr.mxu0 0.0
    %2270 = vmatpush1.msra.mxu0 0.0
    %2271 = vmatprep.subr.mxu0 0.0
    %2272 = vmatpush1.msra.mxu0 0.0
    %2273 = vmatprep.subr.mxu0 0.0
    %2274 = vmatpush1.msra.mxu0 0.0
    %2275 = vmatprep.subr.mxu0 0.0
    %2276 = vmatpush1.msra.mxu0 0.0
    %2277 = vmatprep.subr.mxu0 0.0
    %2278 = vmatpush1.msra.mxu0 0.0
    %2279 = vmatprep.subr.mxu0 0.0
    %2280 = vmatpush1.msra.mxu0 0.0
    %2281 = vmatprep.subr.mxu0 0.0
    %2282 = vmatpush1.msra.mxu0 0.0
    %2283 = vmatprep.subr.mxu0 0.0
    %2284 = vmatpush1.msra.mxu0 0.0
    %2285 = vmatprep.subr.mxu0 0.0
    %2286 = vmatpush1.msra.mxu0 0.0
    %2287 = vmatprep.subr.mxu0 0.0
    %2288 = vmatpush1.msra.mxu0 0.0
    %2289 = vmatprep.subr.mxu0 0.0
    %2290 = vmatpush1.msra.mxu0 0.0
    %2291 = vmatprep.subr.mxu0 0.0
    %2292 = vmatpush1.msra.mxu0 0.0
    %2293 = vmatprep.subr.mxu0 0.0
    %2294 = vmatpush1.msra.mxu0 0.0
    %2295 = vmatprep.subr.mxu0 0.0
    %2296 = vmatpush1.msra.mxu0 0.0
    %2297 = vmatprep.subr.mxu0 0.0
    %2298 = vmatpush1.msra.mxu0 0.0
    %2299 = vmatprep.subr.mxu0 0.0
    %2300 = vmatpush1.msra.mxu0 0.0
    %2301 = vmatprep.subr.mxu0 0.0
    %2302 = vmatpush1.msra.mxu0 0.0
    %2303 = vmatprep.subr.mxu0 0.0
    %2304 = vmatpush1.msra.mxu0 0.0
    %2305 = vmatprep.subr.mxu0 0.0
    %2306 = vmatpush1.msra.mxu0 0.0
    %2307 = vmatprep.subr.mxu0 0.0
    %2308 = vmatpush1.msra.mxu0 0.0
    %2309 = vmatprep.subr.mxu0 0.0
    %2310 = vmatpush1.msra.mxu0 0.0
    %2311 = vmatprep.subr.mxu0 0.0
    %2312 = vmatpush1.msra.mxu0 0.0
    %2313 = vmatprep.subr.mxu0 0.0
    %2314 = vmatpush1.msra.mxu0 0.0
    %2315 = vmatprep.subr.mxu0 0.0
    %2316 = vmatpush1.msra.mxu0 0.0
    %2317 = vmatprep.subr.mxu0 0.0
    %2318 = vmatpush1.msra.mxu0 0.0
    %2319 = vmatprep.mubr.f32.mxu0 0.0
    %2320 = vmatmul.mubr.f32.gmra.mrb[0].mxu0 %v2253
    %v2321 = vpop.f32.mrb[0].mxu0
    %v2322 = vadd.f32 0.0, %v2321
    %v2323 = vpop.f32.mrb[0].mxu0
    %2324 = vdwg.mxu0
    %v2326 = vsel %vm1190, %v1885, 0
    %2328 = vmatprep.subr.mxu0 0.0
    %2329 = vmatpush1.msra.mxu0 %v1182
    %2330 = vmatprep.subr.mxu0 0.0
    %2331 = vmatpush1.msra.mxu0 0.0
    %2332 = vmatprep.subr.mxu0 0.0
    %2333 = vmatpush1.msra.mxu0 0.0
    %2334 = vmatprep.subr.mxu0 0.0
    %2335 = vmatpush1.msra.mxu0 0.0
    %2336 = vmatprep.subr.mxu0 0.0
    %2337 = vmatpush1.msra.mxu0 0.0
    %2338 = vmatprep.subr.mxu0 0.0
    %2339 = vmatpush1.msra.mxu0 0.0
    %2340 = vmatprep.subr.mxu0 0.0
    %2341 = vmatpush1.msra.mxu0 0.0
    %2342 = vmatprep.subr.mxu0 0.0
    %2343 = vmatpush1.msra.mxu0 0.0
    %2344 = vmatprep.subr.mxu0 0.0
    %2345 = vmatpush1.msra.mxu0 0.0
    %2346 = vmatprep.subr.mxu0 0.0
    %2347 = vmatpush1.msra.mxu0 0.0
    %2348 = vmatprep.subr.mxu0 0.0
    %2349 = vmatpush1.msra.mxu0 0.0
    %2350 = vmatprep.subr.mxu0 0.0
    %2351 = vmatpush1.msra.mxu0 0.0
    %2352 = vmatprep.subr.mxu0 0.0
    %2353 = vmatpush1.msra.mxu0 0.0
    %2354 = vmatprep.subr.mxu0 0.0
    %2355 = vmatpush1.msra.mxu0 0.0
    %2356 = vmatprep.subr.mxu0 0.0
    %2357 = vmatpush1.msra.mxu0 0.0
    %2358 = vmatprep.subr.mxu0 0.0
    %2359 = vmatpush1.msra.mxu0 0.0
    %2360 = vmatprep.subr.mxu0 0.0
    %2361 = vmatpush1.msra.mxu0 0.0
    %2362 = vmatprep.subr.mxu0 0.0
    %2363 = vmatpush1.msra.mxu0 0.0
    %2364 = vmatprep.subr.mxu0 0.0
    %2365 = vmatpush1.msra.mxu0 0.0
    %2366 = vmatprep.subr.mxu0 0.0
    %2367 = vmatpush1.msra.mxu0 0.0
    %2368 = vmatprep.subr.mxu0 0.0
    %2369 = vmatpush1.msra.mxu0 0.0
    %2370 = vmatprep.subr.mxu0 0.0
    %2371 = vmatpush1.msra.mxu0 0.0
    %2372 = vmatprep.subr.mxu0 0.0
    %2373 = vmatpush1.msra.mxu0 0.0
    %2374 = vmatprep.subr.mxu0 0.0
    %2375 = vmatpush1.msra.mxu0 0.0
    %2376 = vmatprep.subr.mxu0 0.0
    %2377 = vmatpush1.msra.mxu0 0.0
    %2378 = vmatprep.subr.mxu0 0.0
    %2379 = vmatpush1.msra.mxu0 0.0
    %2380 = vmatprep.subr.mxu0 0.0
    %2381 = vmatpush1.msra.mxu0 0.0
    %2382 = vmatprep.subr.mxu0 0.0
    %2383 = vmatpush1.msra.mxu0 0.0
    %2384 = vmatprep.subr.mxu0 0.0
    %2385 = vmatpush1.msra.mxu0 0.0
    %2386 = vmatprep.subr.mxu0 0.0
    %2387 = vmatpush1.msra.mxu0 0.0
    %2388 = vmatprep.subr.mxu0 0.0
    %2389 = vmatpush1.msra.mxu0 0.0
    %2390 = vmatprep.subr.mxu0 0.0
    %2391 = vmatpush1.msra.mxu0 0.0
    %2392 = vmatprep.mubr.f32.mxu0 0.0
    %2393 = vmatmul.mubr.f32.gmra.mrb[0].mxu0 %v2326
    %v2394 = vpop.f32.mrb[0].mxu0
    %v2395 = vadd.f32 0.0, %v2394
    %v2396 = vpop.f32.mrb[0].mxu0
    %2397 = vdwg.mxu0
    %v2399 = vsel %vm1190, %v1886, 0
    %2401 = vmatprep.subr.mxu0 0.0
    %2402 = vmatpush1.msra.mxu0 %v1187
    %2403 = vmatprep.subr.mxu0 0.0
    %2404 = vmatpush1.msra.mxu0 0.0
    %2405 = vmatprep.subr.mxu0 0.0
    %2406 = vmatpush1.msra.mxu0 0.0
    %2407 = vmatprep.subr.mxu0 0.0
    %2408 = vmatpush1.msra.mxu0 0.0
    %2409 = vmatprep.subr.mxu0 0.0
    %2410 = vmatpush1.msra.mxu0 0.0
    %2411 = vmatprep.subr.mxu0 0.0
    %2412 = vmatpush1.msra.mxu0 0.0
    %2413 = vmatprep.subr.mxu0 0.0
    %2414 = vmatpush1.msra.mxu0 0.0
    %2415 = vmatprep.subr.mxu0 0.0
    %2416 = vmatpush1.msra.mxu0 0.0
    %2417 = vmatprep.subr.mxu0 0.0
    %2418 = vmatpush1.msra.mxu0 0.0
    %2419 = vmatprep.subr.mxu0 0.0
    %2420 = vmatpush1.msra.mxu0 0.0
    %2421 = vmatprep.subr.mxu0 0.0
    %2422 = vmatpush1.msra.mxu0 0.0
    %2423 = vmatprep.subr.mxu0 0.0
    %2424 = vmatpush1.msra.mxu0 0.0
    %2425 = vmatprep.subr.mxu0 0.0
    %2426 = vmatpush1.msra.mxu0 0.0
    %2427 = vmatprep.subr.mxu0 0.0
    %2428 = vmatpush1.msra.mxu0 0.0
    %2429 = vmatprep.subr.mxu0 0.0
    %2430 = vmatpush1.msra.mxu0 0.0
    %2431 = vmatprep.subr.mxu0 0.0
    %2432 = vmatpush1.msra.mxu0 0.0
    %2433 = vmatprep.subr.mxu0 0.0
    %2434 = vmatpush1.msra.mxu0 0.0
    %2435 = vmatprep.subr.mxu0 0.0
    %2436 = vmatpush1.msra.mxu0 0.0
    %2437 = vmatprep.subr.mxu0 0.0
    %2438 = vmatpush1.msra.mxu0 0.0
    %2439 = vmatprep.subr.mxu0 0.0
    %2440 = vmatpush1.msra.mxu0 0.0
    %2441 = vmatprep.subr.mxu0 0.0
    %2442 = vmatpush1.msra.mxu0 0.0
    %2443 = vmatprep.subr.mxu0 0.0
    %2444 = vmatpush1.msra.mxu0 0.0
    %2445 = vmatprep.subr.mxu0 0.0
    %2446 = vmatpush1.msra.mxu0 0.0
    %2447 = vmatprep.subr.mxu0 0.0
    %2448 = vmatpush1.msra.mxu0 0.0
    %2449 = vmatprep.subr.mxu0 0.0
    %2450 = vmatpush1.msra.mxu0 0.0
    %2451 = vmatprep.subr.mxu0 0.0
    %2452 = vmatpush1.msra.mxu0 0.0
    %2453 = vmatprep.subr.mxu0 0.0
    %2454 = vmatpush1.msra.mxu0 0.0
    %2455 = vmatprep.subr.mxu0 0.0
    %2456 = vmatpush1.msra.mxu0 0.0
    %2457 = vmatprep.subr.mxu0 0.0
    %2458 = vmatpush1.msra.mxu0 0.0
    %2459 = vmatprep.subr.mxu0 0.0
    %2460 = vmatpush1.msra.mxu0 0.0
    %2461 = vmatprep.subr.mxu0 0.0
    %2462 = vmatpush1.msra.mxu0 0.0
    %2463 = vmatprep.subr.mxu0 0.0
    %2464 = vmatpush1.msra.mxu0 0.0
    %2465 = vmatprep.mubr.f32.mxu0 0.0
    %2466 = vmatmul.mubr.f32.gmra.mrb[0].mxu0 %v2399
    %v2467 = vpop.f32.mrb[0].mxu0
    %v2468 = vadd.f32 0.0, %v2467
    %v2469 = vpop.f32.mrb[0].mxu0
    %2470 = vdwg.mxu0
    %v2471 = vld [vmem:[%s19] sm:$0xff]
    %s2472 = scalar_lea.vmem %s19, 8
    %v2473 = vld [vmem:[%s2472] sm:$0xff]
    %v2475 = vsel %vm1190, %v2103, 0
    %v2478 = vsel %vm1190, %v2176, 0
    %2480 = vmatprep.subr.mxu0 0.0
    %2481 = vmatpush1.msra.mxu0 %v2473
    %2482 = vmatprep.subr.mxu0 0.0
    %2483 = vmatpush1.msra.mxu0 0.0
    %2484 = vmatprep.subr.mxu0 0.0
    %2485 = vmatpush1.msra.mxu0 0.0
    %2486 = vmatprep.subr.mxu0 0.0
    %2487 = vmatpush1.msra.mxu0 0.0
    %2488 = vmatprep.subr.mxu0 0.0
    %2489 = vmatpush1.msra.mxu0 0.0
    %2490 = vmatprep.subr.mxu0 0.0
    %2491 = vmatpush1.msra.mxu0 0.0
    %2492 = vmatprep.subr.mxu0 0.0
    %2493 = vmatpush1.msra.mxu0 0.0
    %2494 = vmatprep.subr.mxu0 0.0
    %2495 = vmatpush1.msra.mxu0 0.0
    %2496 = vmatprep.subr.mxu0 0.0
    %2497 = vmatpush1.msra.mxu0 0.0
    %2498 = vmatprep.subr.mxu0 0.0
    %2499 = vmatpush1.msra.mxu0 0.0
    %2500 = vmatprep.subr.mxu0 0.0
    %2501 = vmatpush1.msra.mxu0 0.0
    %2502 = vmatprep.subr.mxu0 0.0
    %2503 = vmatpush1.msra.mxu0 0.0
    %2504 = vmatprep.subr.mxu0 0.0
    %2505 = vmatpush1.msra.mxu0 0.0
    %2506 = vmatprep.subr.mxu0 0.0
    %2507 = vmatpush1.msra.mxu0 0.0
    %2508 = vmatprep.subr.mxu0 0.0
    %2509 = vmatpush1.msra.mxu0 0.0
    %2510 = vmatprep.subr.mxu0 0.0
    %2511 = vmatpush1.msra.mxu0 0.0
    %2512 = vmatprep.subr.mxu0 0.0
    %2513 = vmatpush1.msra.mxu0 0.0
    %2514 = vmatprep.subr.mxu0 0.0
    %2515 = vmatpush1.msra.mxu0 0.0
    %2516 = vmatprep.subr.mxu0 0.0
    %2517 = vmatpush1.msra.mxu0 0.0
    %2518 = vmatprep.subr.mxu0 0.0
    %2519 = vmatpush1.msra.mxu0 0.0
    %2520 = vmatprep.subr.mxu0 0.0
    %2521 = vmatpush1.msra.mxu0 0.0
    %2522 = vmatprep.subr.mxu0 0.0
    %2523 = vmatpush1.msra.mxu0 0.0
    %2524 = vmatprep.subr.mxu0 0.0
    %2525 = vmatpush1.msra.mxu0 0.0
    %2526 = vmatprep.subr.mxu0 0.0
    %2527 = vmatpush1.msra.mxu0 0.0
    %2528 = vmatprep.subr.mxu0 0.0
    %2529 = vmatpush1.msra.mxu0 0.0
    %2530 = vmatprep.subr.mxu0 0.0
    %2531 = vmatpush1.msra.mxu0 0.0
    %2532 = vmatprep.subr.mxu0 0.0
    %2533 = vmatpush1.msra.mxu0 0.0
    %2534 = vmatprep.subr.mxu0 0.0
    %2535 = vmatpush1.msra.mxu0 0.0
    %2536 = vmatprep.subr.mxu0 0.0
    %2537 = vmatpush1.msra.mxu0 0.0
    %2538 = vmatprep.subr.mxu0 0.0
    %2539 = vmatpush1.msra.mxu0 0.0
    %2540 = vmatprep.subr.mxu0 0.0
    %2541 = vmatpush1.msra.mxu0 0.0
    %2542 = vmatprep.subr.mxu0 0.0
    %2543 = vmatpush1.msra.mxu0 0.0
    %2544 = vmatprep.mubr.f32.mxu0 0.0
    %2545 = vmatmul.mubr.f32.gmra.mrb[0].mxu0 %v2475
    %v2546 = vpop.f32.mrb[0].mxu0
    %v2547 = vadd.f32 0.0, %v2546
    %v2548 = vpop.f32.mrb[0].mxu0
    %2549 = vmatprep.mubr.f32.mxu0 0.0
    %2550 = vmatmul.mubr.f32.gmra.mrb[0].mxu0 %v2478
    %v2551 = vpop.f32.mrb[0].mxu0
    %v2552 = vadd.f32 0.0, %v2551
    %v2553 = vpop.f32.mrb[0].mxu0
    %2554 = vdwg.mxu0
    %v2556 = vsel %vm1190, %v1957, 0
    %v2559 = vsel %vm1190, %v2030, 0
    %2561 = vmatprep.subr.mxu0 0.0
    %2562 = vmatpush1.msra.mxu0 %v2471
    %2563 = vmatprep.subr.mxu0 0.0
    %2564 = vmatpush1.msra.mxu0 0.0
    %2565 = vmatprep.subr.mxu0 0.0
    %2566 = vmatpush1.msra.mxu0 0.0
    %2567 = vmatprep.subr.mxu0 0.0
    %2568 = vmatpush1.msra.mxu0 0.0
    %2569 = vmatprep.subr.mxu0 0.0
    %2570 = vmatpush1.msra.mxu0 0.0
    %2571 = vmatprep.subr.mxu0 0.0
    %2572 = vmatpush1.msra.mxu0 0.0
    %2573 = vmatprep.subr.mxu0 0.0
    %2574 = vmatpush1.msra.mxu0 0.0
    %2575 = vmatprep.subr.mxu0 0.0
    %2576 = vmatpush1.msra.mxu0 0.0
    %2577 = vmatprep.subr.mxu0 0.0
    %2578 = vmatpush1.msra.mxu0 0.0
    %2579 = vmatprep.subr.mxu0 0.0
    %2580 = vmatpush1.msra.mxu0 0.0
    %2581 = vmatprep.subr.mxu0 0.0
    %2582 = vmatpush1.msra.mxu0 0.0
    %2583 = vmatprep.subr.mxu0 0.0
    %2584 = vmatpush1.msra.mxu0 0.0
    %2585 = vmatprep.subr.mxu0 0.0
    %2586 = vmatpush1.msra.mxu0 0.0
    %2587 = vmatprep.subr.mxu0 0.0
    %2588 = vmatpush1.msra.mxu0 0.0
    %2589 = vmatprep.subr.mxu0 0.0
    %2590 = vmatpush1.msra.mxu0 0.0
    %2591 = vmatprep.subr.mxu0 0.0
    %2592 = vmatpush1.msra.mxu0 0.0
    %2593 = vmatprep.subr.mxu0 0.0
    %2594 = vmatpush1.msra.mxu0 0.0
    %2595 = vmatprep.subr.mxu0 0.0
    %2596 = vmatpush1.msra.mxu0 0.0
    %2597 = vmatprep.subr.mxu0 0.0
    %2598 = vmatpush1.msra.mxu0 0.0
    %2599 = vmatprep.subr.mxu0 0.0
    %2600 = vmatpush1.msra.mxu0 0.0
    %2601 = vmatprep.subr.mxu0 0.0
    %2602 = vmatpush1.msra.mxu0 0.0
    %2603 = vmatprep.subr.mxu0 0.0
    %2604 = vmatpush1.msra.mxu0 0.0
    %2605 = vmatprep.subr.mxu0 0.0
    %2606 = vmatpush1.msra.mxu0 0.0
    %2607 = vmatprep.subr.mxu0 0.0
    %2608 = vmatpush1.msra.mxu0 0.0
    %2609 = vmatprep.subr.mxu0 0.0
    %2610 = vmatpush1.msra.mxu0 0.0
    %2611 = vmatprep.subr.mxu0 0.0
    %2612 = vmatpush1.msra.mxu0 0.0
    %2613 = vmatprep.subr.mxu0 0.0
    %2614 = vmatpush1.msra.mxu0 0.0
    %2615 = vmatprep.subr.mxu0 0.0
    %2616 = vmatpush1.msra.mxu0 0.0
    %2617 = vmatprep.subr.mxu0 0.0
    %2618 = vmatpush1.msra.mxu0 0.0
    %2619 = vmatprep.subr.mxu0 0.0
    %2620 = vmatpush1.msra.mxu0 0.0
    %2621 = vmatprep.subr.mxu0 0.0
    %2622 = vmatpush1.msra.mxu0 0.0
    %2623 = vmatprep.subr.mxu0 0.0
    %2624 = vmatpush1.msra.mxu0 0.0
    %2625 = vmatprep.mubr.f32.mxu0 0.0
    %2626 = vmatmul.mubr.f32.gmra.mrb[0].mxu0 %v2556
    %v2627 = vpop.f32.mrb[0].mxu0
    %v2628 = vadd.f32 %v2547, %v2627
    %v2629 = vpop.f32.mrb[0].mxu0
    %2630 = vmatprep.mubr.f32.mxu0 0.0
    %2631 = vmatmul.mubr.f32.gmra.mrb[0].mxu0 %v2559
    %v2632 = vpop.f32.mrb[0].mxu0
    %v2633 = vadd.f32 %v2552, %v2632
    %v2634 = vpop.f32.mrb[0].mxu0
    %2635 = vdwg.mxu0
    %s2636 = scalar_lea.vmem %s19, 16
    %v2637 = vld [vmem:[%s2636] sm:$0xff]
    %v2639 = vsel %vm1190, %v2249, 0
    %v2642 = vsel %vm1190, %v2322, 0
    %2644 = vmatprep.subr.mxu0 0.0
    %2645 = vmatpush1.msra.mxu0 %v2637
    %2646 = vmatprep.subr.mxu0 0.0
    %2647 = vmatpush1.msra.mxu0 0.0
    %2648 = vmatprep.subr.mxu0 0.0
    %2649 = vmatpush1.msra.mxu0 0.0
    %2650 = vmatprep.subr.mxu0 0.0
    %2651 = vmatpush1.msra.mxu0 0.0
    %2652 = vmatprep.subr.mxu0 0.0
    %2653 = vmatpush1.msra.mxu0 0.0
    %2654 = vmatprep.subr.mxu0 0.0
    %2655 = vmatpush1.msra.mxu0 0.0
    %2656 = vmatprep.subr.mxu0 0.0
    %2657 = vmatpush1.msra.mxu0 0.0
    %2658 = vmatprep.subr.mxu0 0.0
    %2659 = vmatpush1.msra.mxu0 0.0
    %2660 = vmatprep.subr.mxu0 0.0
    %2661 = vmatpush1.msra.mxu0 0.0
    %2662 = vmatprep.subr.mxu0 0.0
    %2663 = vmatpush1.msra.mxu0 0.0
    %2664 = vmatprep.subr.mxu0 0.0
    %2665 = vmatpush1.msra.mxu0 0.0
    %2666 = vmatprep.subr.mxu0 0.0
    %2667 = vmatpush1.msra.mxu0 0.0
    %2668 = vmatprep.subr.mxu0 0.0
    %2669 = vmatpush1.msra.mxu0 0.0
    %2670 = vmatprep.subr.mxu0 0.0
    %2671 = vmatpush1.msra.mxu0 0.0
    %2672 = vmatprep.subr.mxu0 0.0
    %2673 = vmatpush1.msra.mxu0 0.0
    %2674 = vmatprep.subr.mxu0 0.0
    %2675 = vmatpush1.msra.mxu0 0.0
    %2676 = vmatprep.subr.mxu0 0.0
    %2677 = vmatpush1.msra.mxu0 0.0
    %2678 = vmatprep.subr.mxu0 0.0
    %2679 = vmatpush1.msra.mxu0 0.0
    %2680 = vmatprep.subr.mxu0 0.0
    %2681 = vmatpush1.msra.mxu0 0.0
    %2682 = vmatprep.subr.mxu0 0.0
    %2683 = vmatpush1.msra.mxu0 0.0
    %2684 = vmatprep.subr.mxu0 0.0
    %2685 = vmatpush1.msra.mxu0 0.0
    %2686 = vmatprep.subr.mxu0 0.0
    %2687 = vmatpush1.msra.mxu0 0.0
    %2688 = vmatprep.subr.mxu0 0.0
    %2689 = vmatpush1.msra.mxu0 0.0
    %2690 = vmatprep.subr.mxu0 0.0
    %2691 = vmatpush1.msra.mxu0 0.0
    %2692 = vmatprep.subr.mxu0 0.0
    %2693 = vmatpush1.msra.mxu0 0.0
    %2694 = vmatprep.subr.mxu0 0.0
    %2695 = vmatpush1.msra.mxu0 0.0
    %2696 = vmatprep.subr.mxu0 0.0
    %2697 = vmatpush1.msra.mxu0 0.0
    %2698 = vmatprep.subr.mxu0 0.0
    %2699 = vmatpush1.msra.mxu0 0.0
    %2700 = vmatprep.subr.mxu0 0.0
    %2701 = vmatpush1.msra.mxu0 0.0
    %2702 = vmatprep.subr.mxu0 0.0
    %2703 = vmatpush1.msra.mxu0 0.0
    %2704 = vmatprep.subr.mxu0 0.0
    %2705 = vmatpush1.msra.mxu0 0.0
    %2706 = vmatprep.subr.mxu0 0.0
    %2707 = vmatpush1.msra.mxu0 0.0
    %2708 = vmatprep.mubr.f32.mxu0 0.0
    %2709 = vmatmul.mubr.f32.gmra.mrb[0].mxu0 %v2639
    %v2710 = vpop.f32.mrb[0].mxu0
    %v2711 = vadd.f32 0.0, %v2710
    %v2712 = vpop.f32.mrb[0].mxu0
    %2713 = vmatprep.mubr.f32.mxu0 0.0
    %2714 = vmatmul.mubr.f32.gmra.mrb[0].mxu0 %v2642
    %v2715 = vpop.f32.mrb[0].mxu0
    %v2716 = vadd.f32 0.0, %v2715
    %v2717 = vpop.f32.mrb[0].mxu0
    %2718 = vdwg.mxu0
    %v2719 = vadd.f32 %v2628, %v2711
    %v2720 = vadd.f32 %v2633, %v2716
    %s2721 = scalar_lea.vmem %s19, 24
    %v2722 = vld [vmem:[%s2721] sm:$0xff]
    %v2724 = vsel %vm1190, %v2395, 0
    %v2727 = vsel %vm1190, %v2468, 0
    %2729 = vmatprep.subr.mxu0 0.0
    %2730 = vmatpush1.msra.mxu0 %v2722
    %2731 = vmatprep.subr.mxu0 0.0
    %2732 = vmatpush1.msra.mxu0 0.0
    %2733 = vmatprep.subr.mxu0 0.0
    %2734 = vmatpush1.msra.mxu0 0.0
    %2735 = vmatprep.subr.mxu0 0.0
    %2736 = vmatpush1.msra.mxu0 0.0
    %2737 = vmatprep.subr.mxu0 0.0
    %2738 = vmatpush1.msra.mxu0 0.0
    %2739 = vmatprep.subr.mxu0 0.0
    %2740 = vmatpush1.msra.mxu0 0.0
    %2741 = vmatprep.subr.mxu0 0.0
    %2742 = vmatpush1.msra.mxu0 0.0
    %2743 = vmatprep.subr.mxu0 0.0
    %2744 = vmatpush1.msra.mxu0 0.0
    %2745 = vmatprep.subr.mxu0 0.0
    %2746 = vmatpush1.msra.mxu0 0.0
    %2747 = vmatprep.subr.mxu0 0.0
    %2748 = vmatpush1.msra.mxu0 0.0
    %2749 = vmatprep.subr.mxu0 0.0
    %2750 = vmatpush1.msra.mxu0 0.0
    %2751 = vmatprep.subr.mxu0 0.0
    %2752 = vmatpush1.msra.mxu0 0.0
    %2753 = vmatprep.subr.mxu0 0.0
    %2754 = vmatpush1.msra.mxu0 0.0
    %2755 = vmatprep.subr.mxu0 0.0
    %2756 = vmatpush1.msra.mxu0 0.0
    %2757 = vmatprep.subr.mxu0 0.0
    %2758 = vmatpush1.msra.mxu0 0.0
    %2759 = vmatprep.subr.mxu0 0.0
    %2760 = vmatpush1.msra.mxu0 0.0
    %2761 = vmatprep.subr.mxu0 0.0
    %2762 = vmatpush1.msra.mxu0 0.0
    %2763 = vmatprep.subr.mxu0 0.0
    %2764 = vmatpush1.msra.mxu0 0.0
    %2765 = vmatprep.subr.mxu0 0.0
    %2766 = vmatpush1.msra.mxu0 0.0
    %2767 = vmatprep.subr.mxu0 0.0
    %2768 = vmatpush1.msra.mxu0 0.0
    %2769 = vmatprep.subr.mxu0 0.0
    %2770 = vmatpush1.msra.mxu0 0.0
    %2771 = vmatprep.subr.mxu0 0.0
    %2772 = vmatpush1.msra.mxu0 0.0
    %2773 = vmatprep.subr.mxu0 0.0
    %2774 = vmatpush1.msra.mxu0 0.0
    %2775 = vmatprep.subr.mxu0 0.0
    %2776 = vmatpush1.msra.mxu0 0.0
    %2777 = vmatprep.subr.mxu0 0.0
    %2778 = vmatpush1.msra.mxu0 0.0
    %2779 = vmatprep.subr.mxu0 0.0
    %2780 = vmatpush1.msra.mxu0 0.0
    %2781 = vmatprep.subr.mxu0 0.0
    %2782 = vmatpush1.msra.mxu0 0.0
    %2783 = vmatprep.subr.mxu0 0.0
    %2784 = vmatpush1.msra.mxu0 0.0
    %2785 = vmatprep.subr.mxu0 0.0
    %2786 = vmatpush1.msra.mxu0 0.0
    %2787 = vmatprep.subr.mxu0 0.0
    %2788 = vmatpush1.msra.mxu0 0.0
    %2789 = vmatprep.subr.mxu0 0.0
    %2790 = vmatpush1.msra.mxu0 0.0
    %2791 = vmatprep.subr.mxu0 0.0
    %2792 = vmatpush1.msra.mxu0 0.0
    %2793 = vmatprep.mubr.f32.mxu0 0.0
    %2794 = vmatmul.mubr.f32.gmra.mrb[0].mxu0 %v2724
    %v2795 = vpop.f32.mrb[0].mxu0
    %v2796 = vadd.f32 0.0, %v2795
    %v2797 = vpop.f32.mrb[0].mxu0
    %2798 = vmatprep.mubr.f32.mxu0 0.0
    %2799 = vmatmul.mubr.f32.gmra.mrb[0].mxu0 %v2727
    %v2800 = vpop.f32.mrb[0].mxu0
    %v2801 = vadd.f32 0.0, %v2800
    %v2802 = vpop.f32.mrb[0].mxu0
    %2803 = vdwg.mxu0
    %v2804 = vadd.f32 %v2719, %v2796
    %v2805 = vadd.f32 %v2720, %v2801
    %v2806 = vld [vmem:[%s21] sm:$0x1]
    %v2808 = vlaneseq
    %v2809 = vshrl.u32 %v2808, 7
    %v2810 = vsub.s32 0, %v2809
    %v2811 = vrot.slane %v2806, %v2810
    %v2813 = vadd.f32 %v2804, %v2811
    %v2814 = vadd.f32 %v2805, %v2811
    %v2815 = vadd.f32 %v128, %v2813
    %v2816 = vadd.f32 %v129, %v2814
    %v2817 = vsel %vm144, %v2815, 0.0
    %2818 = vadd.xlane.f32.xlu0 %v2817
    %v2819 = vpop.xlane.xlu0 %2818
    %v2820 = vsel %vm144, %v2816, 0.0
    %2821 = vadd.xlane.f32.xlu0 %v2820
    %v2822 = vpop.xlane.xlu0 %2821
    %v2823 = vrcp.pop 32.0
    %v2824 = vmul.f32 %v2819, %v2823
    %v2825 = vmul.f32 %v2822, %v2823
    %v2826 = vsub.f32 %v2815, %v2824
    %v2827 = vsub.f32 %v2816, %v2825
    %v2828 = vmul.f32 %v2826, %v2826
    %v2829 = vmul.f32 %v2827, %v2827
    %v2830 = vsel %vm144, %v2828, 0.0
    %2831 = vadd.xlane.f32.xlu0 %v2830
    %v2832 = vpop.xlane.xlu0 %2831
    %v2833 = vsel %vm144, %v2829, 0.0
    %2834 = vadd.xlane.f32.xlu0 %v2833
    %v2835 = vpop.xlane.xlu0 %2834
    %v2836 = vmul.f32 %v2832, %v2823
    %v2837 = vmul.f32 %v2835, %v2823
    %v2838 = vadd.f32 %v2836, 1e-05
    %v2839 = vadd.f32 %v2837, 1e-05
    %v2840 = vrsqrt.pop %v2838
    %v2841 = vrsqrt.pop %v2839
    %v2842 = vmul.f32 %v2826, %v2840
    %v2843 = vmul.f32 %v2827, %v2841
    %v2844 = vld [vmem:[%s23] sm:$0x1]
    %v2846 = vlaneseq
    %v2847 = vshrl.u32 %v2846, 7
    %v2848 = vsub.s32 0, %v2847
    %v2849 = vrot.slane %v2844, %v2848
    %v2851 = vmul.f32 %v2842, %v2849
    %v2852 = vmul.f32 %v2843, %v2849
    %v2853 = vld [vmem:[%s25] sm:$0x1]
    %v2855 = vlaneseq
    %v2856 = vshrl.u32 %v2855, 7
    %v2857 = vsub.s32 0, %v2856
    %v2858 = vrot.slane %v2853, %v2857
    %v2860 = vadd.f32 %v2851, %v2858
    %v2861 = vadd.f32 %v2852, %v2858
    %v2862 = vld [vmem:[%s27] sm:$0xff]
    %v2863 = vld [vmem:[%s27 + $0x8] sm:$0xff]
    %v2864 = vld [vmem:[%s27 + $0x10] sm:$0xff]
    %v2865 = vld [vmem:[%s27 + $0x18] sm:$0xff]
    %v2866 = vld [vmem:[%s29] sm:$0x1]
    %v2868 = vlaneseq
    %v2869 = vshrl.u32 %v2868, 7
    %v2870 = vsub.s32 0, %v2869
    %v2871 = vrot.slane %v2866, %v2870
    %v2874 = vsel %vm144, %v130, 0
    %v2877 = vsel %vm144, %v131, 0
    %2879 = vmatprep.subr.mxu0 0.0
    %2880 = vmatpush1.msra.mxu0 %v2862
    %2881 = vmatprep.subr.mxu0 0.0
    %2882 = vmatpush1.msra.mxu0 %v2863
    %2883 = vmatprep.subr.mxu0 0.0
    %2884 = vmatpush1.msra.mxu0 %v2864
    %2885 = vmatprep.subr.mxu0 0.0
    %2886 = vmatpush1.msra.mxu0 %v2865
    %2887 = vmatprep.subr.mxu0 0.0
    %2888 = vmatpush1.msra.mxu0 0.0
    %2889 = vmatprep.subr.mxu0 0.0
    %2890 = vmatpush1.msra.mxu0 0.0
    %2891 = vmatprep.subr.mxu0 0.0
    %2892 = vmatpush1.msra.mxu0 0.0
    %2893 = vmatprep.subr.mxu0 0.0
    %2894 = vmatpush1.msra.mxu0 0.0
    %2895 = vmatprep.subr.mxu0 0.0
    %2896 = vmatpush1.msra.mxu0 0.0
    %2897 = vmatprep.subr.mxu0 0.0
    %2898 = vmatpush1.msra.mxu0 0.0
    %2899 = vmatprep.subr.mxu0 0.0
    %2900 = vmatpush1.msra.mxu0 0.0
    %2901 = vmatprep.subr.mxu0 0.0
    %2902 = vmatpush1.msra.mxu0 0.0
    %2903 = vmatprep.subr.mxu0 0.0
    %2904 = vmatpush1.msra.mxu0 0.0
    %2905 = vmatprep.subr.mxu0 0.0
    %2906 = vmatpush1.msra.mxu0 0.0
    %2907 = vmatprep.subr.mxu0 0.0
    %2908 = vmatpush1.msra.mxu0 0.0
    %2909 = vmatprep.subr.mxu0 0.0
    %2910 = vmatpush1.msra.mxu0 0.0
    %2911 = vmatprep.subr.mxu0 0.0
    %2912 = vmatpush1.msra.mxu0 0.0
    %2913 = vmatprep.subr.mxu0 0.0
    %2914 = vmatpush1.msra.mxu0 0.0
    %2915 = vmatprep.subr.mxu0 0.0
    %2916 = vmatpush1.msra.mxu0 0.0
    %2917 = vmatprep.subr.mxu0 0.0
    %2918 = vmatpush1.msra.mxu0 0.0
    %2919 = vmatprep.subr.mxu0 0.0
    %2920 = vmatpush1.msra.mxu0 0.0
    %2921 = vmatprep.subr.mxu0 0.0
    %2922 = vmatpush1.msra.mxu0 0.0
    %2923 = vmatprep.subr.mxu0 0.0
    %2924 = vmatpush1.msra.mxu0 0.0
    %2925 = vmatprep.subr.mxu0 0.0
    %2926 = vmatpush1.msra.mxu0 0.0
    %2927 = vmatprep.subr.mxu0 0.0
    %2928 = vmatpush1.msra.mxu0 0.0
    %2929 = vmatprep.subr.mxu0 0.0
    %2930 = vmatpush1.msra.mxu0 0.0
    %2931 = vmatprep.subr.mxu0 0.0
    %2932 = vmatpush1.msra.mxu0 0.0
    %2933 = vmatprep.subr.mxu0 0.0
    %2934 = vmatpush1.msra.mxu0 0.0
    %2935 = vmatprep.subr.mxu0 0.0
    %2936 = vmatpush1.msra.mxu0 0.0
    %2937 = vmatprep.subr.mxu0 0.0
    %2938 = vmatpush1.msra.mxu0 0.0
    %2939 = vmatprep.subr.mxu0 0.0
    %2940 = vmatpush1.msra.mxu0 0.0
    %2941 = vmatprep.subr.mxu0 0.0
    %2942 = vmatpush1.msra.mxu0 0.0
    %2943 = vmatprep.mubr.f32.mxu0 0.0
    %2944 = vmatmul.mubr.f32.gmra.mrb[0].mxu0 %v2874
    %v2945 = vpop.f32.mrb[0].mxu0
    %v2946 = vadd.f32 %v2871, %v2945
    %v2947 = vpop.f32.mrb[0].mxu0
    %2948 = vmatprep.mubr.f32.mxu0 0.0
    %2949 = vmatmul.mubr.f32.gmra.mrb[0].mxu0 %v2877
    %v2950 = vpop.f32.mrb[0].mxu0
    %v2951 = vadd.f32 %v2871, %v2950
    %v2952 = vpop.f32.mrb[0].mxu0
    %2953 = vdwg.mxu0
    %v2954 = vld [vmem:[%s31] sm:$0xff]
    %v2955 = vld [vmem:[%s31 + $0x8] sm:$0xff]
    %v2956 = vld [vmem:[%s31 + $0x10] sm:$0xff]
    %v2957 = vld [vmem:[%s31 + $0x18] sm:$0xff]
    %v2958 = vld [vmem:[%s33] sm:$0x1]
    %v2960 = vlaneseq
    %v2961 = vshrl.u32 %v2960, 7
    %v2962 = vsub.s32 0, %v2961
    %v2963 = vrot.slane %v2958, %v2962
    %v2966 = vsel %vm144, %v2860, 0
    %v2969 = vsel %vm144, %v2861, 0
    %2971 = vmatprep.subr.mxu0 0.0
    %2972 = vmatpush1.msra.mxu0 %v2954
    %2973 = vmatprep.subr.mxu0 0.0
    %2974 = vmatpush1.msra.mxu0 %v2955
    %2975 = vmatprep.subr.mxu0 0.0
    %2976 = vmatpush1.msra.mxu0 %v2956
    %2977 = vmatprep.subr.mxu0 0.0
    %2978 = vmatpush1.msra.mxu0 %v2957
    %2979 = vmatprep.subr.mxu0 0.0
    %2980 = vmatpush1.msra.mxu0 0.0
    %2981 = vmatprep.subr.mxu0 0.0
    %2982 = vmatpush1.msra.mxu0 0.0
    %2983 = vmatprep.subr.mxu0 0.0
    %2984 = vmatpush1.msra.mxu0 0.0
    %2985 = vmatprep.subr.mxu0 0.0
    %2986 = vmatpush1.msra.mxu0 0.0
    %2987 = vmatprep.subr.mxu0 0.0
    %2988 = vmatpush1.msra.mxu0 0.0
    %2989 = vmatprep.subr.mxu0 0.0
    %2990 = vmatpush1.msra.mxu0 0.0
    %2991 = vmatprep.subr.mxu0 0.0
    %2992 = vmatpush1.msra.mxu0 0.0
    %2993 = vmatprep.subr.mxu0 0.0
    %2994 = vmatpush1.msra.mxu0 0.0
    %2995 = vmatprep.subr.mxu0 0.0
    %2996 = vmatpush1.msra.mxu0 0.0
    %2997 = vmatprep.subr.mxu0 0.0
    %2998 = vmatpush1.msra.mxu0 0.0
    %2999 = vmatprep.subr.mxu0 0.0
    %3000 = vmatpush1.msra.mxu0 0.0
    %3001 = vmatprep.subr.mxu0 0.0
    %3002 = vmatpush1.msra.mxu0 0.0
    %3003 = vmatprep.subr.mxu0 0.0
    %3004 = vmatpush1.msra.mxu0 0.0
    %3005 = vmatprep.subr.mxu0 0.0
    %3006 = vmatpush1.msra.mxu0 0.0
    %3007 = vmatprep.subr.mxu0 0.0
    %3008 = vmatpush1.msra.mxu0 0.0
    %3009 = vmatprep.subr.mxu0 0.0
    %3010 = vmatpush1.msra.mxu0 0.0
    %3011 = vmatprep.subr.mxu0 0.0
    %3012 = vmatpush1.msra.mxu0 0.0
    %3013 = vmatprep.subr.mxu0 0.0
    %3014 = vmatpush1.msra.mxu0 0.0
    %3015 = vmatprep.subr.mxu0 0.0
    %3016 = vmatpush1.msra.mxu0 0.0
    %3017 = vmatprep.subr.mxu0 0.0
    %3018 = vmatpush1.msra.mxu0 0.0
    %3019 = vmatprep.subr.mxu0 0.0
    %3020 = vmatpush1.msra.mxu0 0.0
    %3021 = vmatprep.subr.mxu0 0.0
    %3022 = vmatpush1.msra.mxu0 0.0
    %3023 = vmatprep.subr.mxu0 0.0
    %3024 = vmatpush1.msra.mxu0 0.0
    %3025 = vmatprep.subr.mxu0 0.0
    %3026 = vmatpush1.msra.mxu0 0.0
    %3027 = vmatprep.subr.mxu0 0.0
    %3028 = vmatpush1.msra.mxu0 0.0
    %3029 = vmatprep.subr.mxu0 0.0
    %3030 = vmatpush1.msra.mxu0 0.0
    %3031 = vmatprep.subr.mxu0 0.0
    %3032 = vmatpush1.msra.mxu0 0.0
    %3033 = vmatprep.subr.mxu0 0.0
    %3034 = vmatpush1.msra.mxu0 0.0
    %3035 = vmatprep.mubr.f32.mxu0 0.0
    %3036 = vmatmul.mubr.f32.gmra.mrb[0].mxu0 %v2966
    %v3037 = vpop.f32.mrb[0].mxu0
    %v3038 = vadd.f32 %v2963, %v3037
    %v3039 = vpop.f32.mrb[0].mxu0
    %3040 = vmatprep.mubr.f32.mxu0 0.0
    %3041 = vmatmul.mubr.f32.gmra.mrb[0].mxu0 %v2969
    %v3042 = vpop.f32.mrb[0].mxu0
    %v3043 = vadd.f32 %v2963, %v3042
    %v3044 = vpop.f32.mrb[0].mxu0
    %3045 = vdwg.mxu0
    %v3046 = vld [vmem:[%s35] sm:$0xff]
    %v3047 = vld [vmem:[%s35 + $0x8] sm:$0xff]
    %v3048 = vld [vmem:[%s35 + $0x10] sm:$0xff]
    %v3049 = vld [vmem:[%s35 + $0x18] sm:$0xff]
    %v3050 = vld [vmem:[%s37] sm:$0x1]
    %v3052 = vlaneseq
    %v3053 = vshrl.u32 %v3052, 7
    %v3054 = vsub.s32 0, %v3053
    %v3055 = vrot.slane %v3050, %v3054
    %3057 = vmatprep.subr.mxu0 0.0
    %3058 = vmatpush1.msra.mxu0 %v3046
    %3059 = vmatprep.subr.mxu0 0.0
    %3060 = vmatpush1.msra.mxu0 %v3047
    %3061 = vmatprep.subr.mxu0 0.0
    %3062 = vmatpush1.msra.mxu0 %v3048
    %3063 = vmatprep.subr.mxu0 0.0
    %3064 = vmatpush1.msra.mxu0 %v3049
    %3065 = vmatprep.subr.mxu0 0.0
    %3066 = vmatpush1.msra.mxu0 0.0
    %3067 = vmatprep.subr.mxu0 0.0
    %3068 = vmatpush1.msra.mxu0 0.0
    %3069 = vmatprep.subr.mxu0 0.0
    %3070 = vmatpush1.msra.mxu0 0.0
    %3071 = vmatprep.subr.mxu0 0.0
    %3072 = vmatpush1.msra.mxu0 0.0
    %3073 = vmatprep.subr.mxu0 0.0
    %3074 = vmatpush1.msra.mxu0 0.0
    %3075 = vmatprep.subr.mxu0 0.0
    %3076 = vmatpush1.msra.mxu0 0.0
    %3077 = vmatprep.subr.mxu0 0.0
    %3078 = vmatpush1.msra.mxu0 0.0
    %3079 = vmatprep.subr.mxu0 0.0
    %3080 = vmatpush1.msra.mxu0 0.0
    %3081 = vmatprep.subr.mxu0 0.0
    %3082 = vmatpush1.msra.mxu0 0.0
    %3083 = vmatprep.subr.mxu0 0.0
    %3084 = vmatpush1.msra.mxu0 0.0
    %3085 = vmatprep.subr.mxu0 0.0
    %3086 = vmatpush1.msra.mxu0 0.0
    %3087 = vmatprep.subr.mxu0 0.0
    %3088 = vmatpush1.msra.mxu0 0.0
    %3089 = vmatprep.subr.mxu0 0.0
    %3090 = vmatpush1.msra.mxu0 0.0
    %3091 = vmatprep.subr.mxu0 0.0
    %3092 = vmatpush1.msra.mxu0 0.0
    %3093 = vmatprep.subr.mxu0 0.0
    %3094 = vmatpush1.msra.mxu0 0.0
    %3095 = vmatprep.subr.mxu0 0.0
    %3096 = vmatpush1.msra.mxu0 0.0
    %3097 = vmatprep.subr.mxu0 0.0
    %3098 = vmatpush1.msra.mxu0 0.0
    %3099 = vmatprep.subr.mxu0 0.0
    %3100 = vmatpush1.msra.mxu0 0.0
    %3101 = vmatprep.subr.mxu0 0.0
    %3102 = vmatpush1.msra.mxu0 0.0
    %3103 = vmatprep.subr.mxu0 0.0
    %3104 = vmatpush1.msra.mxu0 0.0
    %3105 = vmatprep.subr.mxu0 0.0
    %3106 = vmatpush1.msra.mxu0 0.0
    %3107 = vmatprep.subr.mxu0 0.0
    %3108 = vmatpush1.msra.mxu0 0.0
    %3109 = vmatprep.subr.mxu0 0.0
    %3110 = vmatpush1.msra.mxu0 0.0
    %3111 = vmatprep.subr.mxu0 0.0
    %3112 = vmatpush1.msra.mxu0 0.0
    %3113 = vmatprep.subr.mxu0 0.0
    %3114 = vmatpush1.msra.mxu0 0.0
    %3115 = vmatprep.subr.mxu0 0.0
    %3116 = vmatpush1.msra.mxu0 0.0
    %3117 = vmatprep.subr.mxu0 0.0
    %3118 = vmatpush1.msra.mxu0 0.0
    %3119 = vmatprep.subr.mxu0 0.0
    %3120 = vmatpush1.msra.mxu0 0.0
    %3121 = vmatprep.mubr.f32.mxu0 0.0
    %3122 = vmatmul.mubr.f32.gmra.mrb[0].mxu0 %v2966
    %v3123 = vpop.f32.mrb[0].mxu0
    %v3124 = vadd.f32 %v3055, %v3123
    %v3125 = vpop.f32.mrb[0].mxu0
    %3126 = vmatprep.mubr.f32.mxu0 0.0
    %3127 = vmatmul.mubr.f32.gmra.mrb[0].mxu0 %v2969
    %v3128 = vpop.f32.mrb[0].mxu0
    %v3129 = vadd.f32 %v3055, %v3128
    %v3130 = vpop.f32.mrb[0].mxu0
    %3131 = vdwg.mxu0
    %s3132 = scalar_lea.vmem %s27, 32
    %v3133 = vld [vmem:[%s3132] sm:$0xff]
    %v3134 = vld [vmem:[%s3132 + $0x8] sm:$0xff]
    %v3135 = vld [vmem:[%s3132 + $0x10] sm:$0xff]
    %v3136 = vld [vmem:[%s3132 + $0x18] sm:$0xff]
    %s3137 = scalar_lea.vmem %s29, 1
    %v3138 = vld [vmem:[%s3137] sm:$0x1]
    %v3140 = vlaneseq
    %v3141 = vshrl.u32 %v3140, 7
    %v3142 = vsub.s32 0, %v3141
    %v3143 = vrot.slane %v3138, %v3142
    %3145 = vmatprep.subr.mxu0 0.0
    %3146 = vmatpush1.msra.mxu0 %v3133
    %3147 = vmatprep.subr.mxu0 0.0
    %3148 = vmatpush1.msra.mxu0 %v3134
    %3149 = vmatprep.subr.mxu0 0.0
    %3150 = vmatpush1.msra.mxu0 %v3135
    %3151 = vmatprep.subr.mxu0 0.0
    %3152 = vmatpush1.msra.mxu0 %v3136
    %3153 = vmatprep.subr.mxu0 0.0
    %3154 = vmatpush1.msra.mxu0 0.0
    %3155 = vmatprep.subr.mxu0 0.0
    %3156 = vmatpush1.msra.mxu0 0.0
    %3157 = vmatprep.subr.mxu0 0.0
    %3158 = vmatpush1.msra.mxu0 0.0
    %3159 = vmatprep.subr.mxu0 0.0
    %3160 = vmatpush1.msra.mxu0 0.0
    %3161 = vmatprep.subr.mxu0 0.0
    %3162 = vmatpush1.msra.mxu0 0.0
    %3163 = vmatprep.subr.mxu0 0.0
    %3164 = vmatpush1.msra.mxu0 0.0
    %3165 = vmatprep.subr.mxu0 0.0
    %3166 = vmatpush1.msra.mxu0 0.0
    %3167 = vmatprep.subr.mxu0 0.0
    %3168 = vmatpush1.msra.mxu0 0.0
    %3169 = vmatprep.subr.mxu0 0.0
    %3170 = vmatpush1.msra.mxu0 0.0
    %3171 = vmatprep.subr.mxu0 0.0
    %3172 = vmatpush1.msra.mxu0 0.0
    %3173 = vmatprep.subr.mxu0 0.0
    %3174 = vmatpush1.msra.mxu0 0.0
    %3175 = vmatprep.subr.mxu0 0.0
    %3176 = vmatpush1.msra.mxu0 0.0
    %3177 = vmatprep.subr.mxu0 0.0
    %3178 = vmatpush1.msra.mxu0 0.0
    %3179 = vmatprep.subr.mxu0 0.0
    %3180 = vmatpush1.msra.mxu0 0.0
    %3181 = vmatprep.subr.mxu0 0.0
    %3182 = vmatpush1.msra.mxu0 0.0
    %3183 = vmatprep.subr.mxu0 0.0
    %3184 = vmatpush1.msra.mxu0 0.0
    %3185 = vmatprep.subr.mxu0 0.0
    %3186 = vmatpush1.msra.mxu0 0.0
    %3187 = vmatprep.subr.mxu0 0.0
    %3188 = vmatpush1.msra.mxu0 0.0
    %3189 = vmatprep.subr.mxu0 0.0
    %3190 = vmatpush1.msra.mxu0 0.0
    %3191 = vmatprep.subr.mxu0 0.0
    %3192 = vmatpush1.msra.mxu0 0.0
    %3193 = vmatprep.subr.mxu0 0.0
    %3194 = vmatpush1.msra.mxu0 0.0
    %3195 = vmatprep.subr.mxu0 0.0
    %3196 = vmatpush1.msra.mxu0 0.0
    %3197 = vmatprep.subr.mxu0 0.0
    %3198 = vmatpush1.msra.mxu0 0.0
    %3199 = vmatprep.subr.mxu0 0.0
    %3200 = vmatpush1.msra.mxu0 0.0
    %3201 = vmatprep.subr.mxu0 0.0
    %3202 = vmatpush1.msra.mxu0 0.0
    %3203 = vmatprep.subr.mxu0 0.0
    %3204 = vmatpush1.msra.mxu0 0.0
    %3205 = vmatprep.subr.mxu0 0.0
    %3206 = vmatpush1.msra.mxu0 0.0
    %3207 = vmatprep.subr.mxu0 0.0
    %3208 = vmatpush1.msra.mxu0 0.0
    %3209 = vmatprep.mubr.f32.mxu0 0.0
    %3210 = vmatmul.mubr.f32.gmra.mrb[0].mxu0 %v2874
    %v3211 = vpop.f32.mrb[0].mxu0
    %v3212 = vadd.f32 %v3143, %v3211
    %v3213 = vpop.f32.mrb[0].mxu0
    %3214 = vmatprep.mubr.f32.mxu0 0.0
    %3215 = vmatmul.mubr.f32.gmra.mrb[0].mxu0 %v2877
    %v3216 = vpop.f32.mrb[0].mxu0
    %v3217 = vadd.f32 %v3143, %v3216
    %v3218 = vpop.f32.mrb[0].mxu0
    %3219 = vdwg.mxu0
    %s3220 = scalar_lea.vmem %s31, 32
    %v3221 = vld [vmem:[%s3220] sm:$0xff]
    %v3222 = vld [vmem:[%s3220 + $0x8] sm:$0xff]
    %v3223 = vld [vmem:[%s3220 + $0x10] sm:$0xff]
    %v3224 = vld [vmem:[%s3220 + $0x18] sm:$0xff]
    %s3225 = scalar_lea.vmem %s33, 1
    %v3226 = vld [vmem:[%s3225] sm:$0x1]
    %v3228 = vlaneseq
    %v3229 = vshrl.u32 %v3228, 7
    %v3230 = vsub.s32 0, %v3229
    %v3231 = vrot.slane %v3226, %v3230
    %3233 = vmatprep.subr.mxu0 0.0
    %3234 = vmatpush1.msra.mxu0 %v3221
    %3235 = vmatprep.subr.mxu0 0.0
    %3236 = vmatpush1.msra.mxu0 %v3222
    %3237 = vmatprep.subr.mxu0 0.0
    %3238 = vmatpush1.msra.mxu0 %v3223
    %3239 = vmatprep.subr.mxu0 0.0
    %3240 = vmatpush1.msra.mxu0 %v3224
    %3241 = vmatprep.subr.mxu0 0.0
    %3242 = vmatpush1.msra.mxu0 0.0
    %3243 = vmatprep.subr.mxu0 0.0
    %3244 = vmatpush1.msra.mxu0 0.0
    %3245 = vmatprep.subr.mxu0 0.0
    %3246 = vmatpush1.msra.mxu0 0.0
    %3247 = vmatprep.subr.mxu0 0.0
    %3248 = vmatpush1.msra.mxu0 0.0
    %3249 = vmatprep.subr.mxu0 0.0
    %3250 = vmatpush1.msra.mxu0 0.0
    %3251 = vmatprep.subr.mxu0 0.0
    %3252 = vmatpush1.msra.mxu0 0.0
    %3253 = vmatprep.subr.mxu0 0.0
    %3254 = vmatpush1.msra.mxu0 0.0
    %3255 = vmatprep.subr.mxu0 0.0
    %3256 = vmatpush1.msra.mxu0 0.0
    %3257 = vmatprep.subr.mxu0 0.0
    %3258 = vmatpush1.msra.mxu0 0.0
    %3259 = vmatprep.subr.mxu0 0.0
    %3260 = vmatpush1.msra.mxu0 0.0
    %3261 = vmatprep.subr.mxu0 0.0
    %3262 = vmatpush1.msra.mxu0 0.0
    %3263 = vmatprep.subr.mxu0 0.0
    %3264 = vmatpush1.msra.mxu0 0.0
    %3265 = vmatprep.subr.mxu0 0.0
    %3266 = vmatpush1.msra.mxu0 0.0
    %3267 = vmatprep.subr.mxu0 0.0
    %3268 = vmatpush1.msra.mxu0 0.0
    %3269 = vmatprep.subr.mxu0 0.0
    %3270 = vmatpush1.msra.mxu0 0.0
    %3271 = vmatprep.subr.mxu0 0.0
    %3272 = vmatpush1.msra.mxu0 0.0
    %3273 = vmatprep.subr.mxu0 0.0
    %3274 = vmatpush1.msra.mxu0 0.0
    %3275 = vmatprep.subr.mxu0 0.0
    %3276 = vmatpush1.msra.mxu0 0.0
    %3277 = vmatprep.subr.mxu0 0.0
    %3278 = vmatpush1.msra.mxu0 0.0
    %3279 = vmatprep.subr.mxu0 0.0
    %3280 = vmatpush1.msra.mxu0 0.0
    %3281 = vmatprep.subr.mxu0 0.0
    %3282 = vmatpush1.msra.mxu0 0.0
    %3283 = vmatprep.subr.mxu0 0.0
    %3284 = vmatpush1.msra.mxu0 0.0
    %3285 = vmatprep.subr.mxu0 0.0
    %3286 = vmatpush1.msra.mxu0 0.0
    %3287 = vmatprep.subr.mxu0 0.0
    %3288 = vmatpush1.msra.mxu0 0.0
    %3289 = vmatprep.subr.mxu0 0.0
    %3290 = vmatpush1.msra.mxu0 0.0
    %3291 = vmatprep.subr.mxu0 0.0
    %3292 = vmatpush1.msra.mxu0 0.0
    %3293 = vmatprep.subr.mxu0 0.0
    %3294 = vmatpush1.msra.mxu0 0.0
    %3295 = vmatprep.subr.mxu0 0.0
    %3296 = vmatpush1.msra.mxu0 0.0
    %3297 = vmatprep.mubr.f32.mxu0 0.0
    %3298 = vmatmul.mubr.f32.gmra.mrb[0].mxu0 %v2966
    %v3299 = vpop.f32.mrb[0].mxu0
    %v3300 = vadd.f32 %v3231, %v3299
    %v3301 = vpop.f32.mrb[0].mxu0
    %3302 = vmatprep.mubr.f32.mxu0 0.0
    %3303 = vmatmul.mubr.f32.gmra.mrb[0].mxu0 %v2969
    %v3304 = vpop.f32.mrb[0].mxu0
    %v3305 = vadd.f32 %v3231, %v3304
    %v3306 = vpop.f32.mrb[0].mxu0
    %3307 = vdwg.mxu0
    %s3308 = scalar_lea.vmem %s35, 32
    %v3309 = vld [vmem:[%s3308] sm:$0xff]
    %v3310 = vld [vmem:[%s3308 + $0x8] sm:$0xff]
    %v3311 = vld [vmem:[%s3308 + $0x10] sm:$0xff]
    %v3312 = vld [vmem:[%s3308 + $0x18] sm:$0xff]
    %s3313 = scalar_lea.vmem %s37, 1
    %v3314 = vld [vmem:[%s3313] sm:$0x1]
    %v3316 = vlaneseq
    %v3317 = vshrl.u32 %v3316, 7
    %v3318 = vsub.s32 0, %v3317
    %v3319 = vrot.slane %v3314, %v3318
    %3321 = vmatprep.subr.mxu0 0.0
    %3322 = vmatpush1.msra.mxu0 %v3309
    %3323 = vmatprep.subr.mxu0 0.0
    %3324 = vmatpush1.msra.mxu0 %v3310
    %3325 = vmatprep.subr.mxu0 0.0
    %3326 = vmatpush1.msra.mxu0 %v3311
    %3327 = vmatprep.subr.mxu0 0.0
    %3328 = vmatpush1.msra.mxu0 %v3312
    %3329 = vmatprep.subr.mxu0 0.0
    %3330 = vmatpush1.msra.mxu0 0.0
    %3331 = vmatprep.subr.mxu0 0.0
    %3332 = vmatpush1.msra.mxu0 0.0
    %3333 = vmatprep.subr.mxu0 0.0
    %3334 = vmatpush1.msra.mxu0 0.0
    %3335 = vmatprep.subr.mxu0 0.0
    %3336 = vmatpush1.msra.mxu0 0.0
    %3337 = vmatprep.subr.mxu0 0.0
    %3338 = vmatpush1.msra.mxu0 0.0
    %3339 = vmatprep.subr.mxu0 0.0
    %3340 = vmatpush1.msra.mxu0 0.0
    %3341 = vmatprep.subr.mxu0 0.0
    %3342 = vmatpush1.msra.mxu0 0.0
    %3343 = vmatprep.subr.mxu0 0.0
    %3344 = vmatpush1.msra.mxu0 0.0
    %3345 = vmatprep.subr.mxu0 0.0
    %3346 = vmatpush1.msra.mxu0 0.0
    %3347 = vmatprep.subr.mxu0 0.0
    %3348 = vmatpush1.msra.mxu0 0.0
    %3349 = vmatprep.subr.mxu0 0.0
    %3350 = vmatpush1.msra.mxu0 0.0
    %3351 = vmatprep.subr.mxu0 0.0
    %3352 = vmatpush1.msra.mxu0 0.0
    %3353 = vmatprep.subr.mxu0 0.0
    %3354 = vmatpush1.msra.mxu0 0.0
    %3355 = vmatprep.subr.mxu0 0.0
    %3356 = vmatpush1.msra.mxu0 0.0
    %3357 = vmatprep.subr.mxu0 0.0
    %3358 = vmatpush1.msra.mxu0 0.0
    %3359 = vmatprep.subr.mxu0 0.0
    %3360 = vmatpush1.msra.mxu0 0.0
    %3361 = vmatprep.subr.mxu0 0.0
    %3362 = vmatpush1.msra.mxu0 0.0
    %3363 = vmatprep.subr.mxu0 0.0
    %3364 = vmatpush1.msra.mxu0 0.0
    %3365 = vmatprep.subr.mxu0 0.0
    %3366 = vmatpush1.msra.mxu0 0.0
    %3367 = vmatprep.subr.mxu0 0.0
    %3368 = vmatpush1.msra.mxu0 0.0
    %3369 = vmatprep.subr.mxu0 0.0
    %3370 = vmatpush1.msra.mxu0 0.0
    %3371 = vmatprep.subr.mxu0 0.0
    %3372 = vmatpush1.msra.mxu0 0.0
    %3373 = vmatprep.subr.mxu0 0.0
    %3374 = vmatpush1.msra.mxu0 0.0
    %3375 = vmatprep.subr.mxu0 0.0
    %3376 = vmatpush1.msra.mxu0 0.0
    %3377 = vmatprep.subr.mxu0 0.0
    %3378 = vmatpush1.msra.mxu0 0.0
    %3379 = vmatprep.subr.mxu0 0.0
    %3380 = vmatpush1.msra.mxu0 0.0
    %3381 = vmatprep.subr.mxu0 0.0
    %3382 = vmatpush1.msra.mxu0 0.0
    %3383 = vmatprep.subr.mxu0 0.0
    %3384 = vmatpush1.msra.mxu0 0.0
    %3385 = vmatprep.mubr.f32.mxu0 0.0
    %3386 = vmatmul.mubr.f32.gmra.mrb[0].mxu0 %v2966
    %v3387 = vpop.f32.mrb[0].mxu0
    %v3388 = vadd.f32 %v3319, %v3387
    %v3389 = vpop.f32.mrb[0].mxu0
    %3390 = vmatprep.mubr.f32.mxu0 0.0
    %3391 = vmatmul.mubr.f32.gmra.mrb[0].mxu0 %v2969
    %v3392 = vpop.f32.mrb[0].mxu0
    %v3393 = vadd.f32 %v3319, %v3392
    %v3394 = vpop.f32.mrb[0].mxu0
    %3395 = vdwg.mxu0
    %s3396 = scalar_lea.vmem %s27, 64
    %v3397 = vld [vmem:[%s3396] sm:$0xff]
    %v3398 = vld [vmem:[%s3396 + $0x8] sm:$0xff]
    %v3399 = vld [vmem:[%s3396 + $0x10] sm:$0xff]
    %v3400 = vld [vmem:[%s3396 + $0x18] sm:$0xff]
    %s3401 = scalar_lea.vmem %s29, 2
    %v3402 = vld [vmem:[%s3401] sm:$0x1]
    %v3404 = vlaneseq
    %v3405 = vshrl.u32 %v3404, 7
    %v3406 = vsub.s32 0, %v3405
    %v3407 = vrot.slane %v3402, %v3406
    %3409 = vmatprep.subr.mxu0 0.0
    %3410 = vmatpush1.msra.mxu0 %v3397
    %3411 = vmatprep.subr.mxu0 0.0
    %3412 = vmatpush1.msra.mxu0 %v3398
    %3413 = vmatprep.subr.mxu0 0.0
    %3414 = vmatpush1.msra.mxu0 %v3399
    %3415 = vmatprep.subr.mxu0 0.0
    %3416 = vmatpush1.msra.mxu0 %v3400
    %3417 = vmatprep.subr.mxu0 0.0
    %3418 = vmatpush1.msra.mxu0 0.0
    %3419 = vmatprep.subr.mxu0 0.0
    %3420 = vmatpush1.msra.mxu0 0.0
    %3421 = vmatprep.subr.mxu0 0.0
    %3422 = vmatpush1.msra.mxu0 0.0
    %3423 = vmatprep.subr.mxu0 0.0
    %3424 = vmatpush1.msra.mxu0 0.0
    %3425 = vmatprep.subr.mxu0 0.0
    %3426 = vmatpush1.msra.mxu0 0.0
    %3427 = vmatprep.subr.mxu0 0.0
    %3428 = vmatpush1.msra.mxu0 0.0
    %3429 = vmatprep.subr.mxu0 0.0
    %3430 = vmatpush1.msra.mxu0 0.0
    %3431 = vmatprep.subr.mxu0 0.0
    %3432 = vmatpush1.msra.mxu0 0.0
    %3433 = vmatprep.subr.mxu0 0.0
    %3434 = vmatpush1.msra.mxu0 0.0
    %3435 = vmatprep.subr.mxu0 0.0
    %3436 = vmatpush1.msra.mxu0 0.0
    %3437 = vmatprep.subr.mxu0 0.0
    %3438 = vmatpush1.msra.mxu0 0.0
    %3439 = vmatprep.subr.mxu0 0.0
    %3440 = vmatpush1.msra.mxu0 0.0
    %3441 = vmatprep.subr.mxu0 0.0
    %3442 = vmatpush1.msra.mxu0 0.0
    %3443 = vmatprep.subr.mxu0 0.0
    %3444 = vmatpush1.msra.mxu0 0.0
    %3445 = vmatprep.subr.mxu0 0.0
    %3446 = vmatpush1.msra.mxu0 0.0
    %3447 = vmatprep.subr.mxu0 0.0
    %3448 = vmatpush1.msra.mxu0 0.0
    %3449 = vmatprep.subr.mxu0 0.0
    %3450 = vmatpush1.msra.mxu0 0.0
    %3451 = vmatprep.subr.mxu0 0.0
    %3452 = vmatpush1.msra.mxu0 0.0
    %3453 = vmatprep.subr.mxu0 0.0
    %3454 = vmatpush1.msra.mxu0 0.0
    %3455 = vmatprep.subr.mxu0 0.0
    %3456 = vmatpush1.msra.mxu0 0.0
    %3457 = vmatprep.subr.mxu0 0.0
    %3458 = vmatpush1.msra.mxu0 0.0
    %3459 = vmatprep.subr.mxu0 0.0
    %3460 = vmatpush1.msra.mxu0 0.0
    %3461 = vmatprep.subr.mxu0 0.0
    %3462 = vmatpush1.msra.mxu0 0.0
    %3463 = vmatprep.subr.mxu0 0.0
    %3464 = vmatpush1.msra.mxu0 0.0
    %3465 = vmatprep.subr.mxu0 0.0
    %3466 = vmatpush1.msra.mxu0 0.0
    %3467 = vmatprep.subr.mxu0 0.0
    %3468 = vmatpush1.msra.mxu0 0.0
    %3469 = vmatprep.subr.mxu0 0.0
    %3470 = vmatpush1.msra.mxu0 0.0
    %3471 = vmatprep.subr.mxu0 0.0
    %3472 = vmatpush1.msra.mxu0 0.0
    %3473 = vmatprep.mubr.f32.mxu0 0.0
    %3474 = vmatmul.mubr.f32.gmra.mrb[0].mxu0 %v2874
    %v3475 = vpop.f32.mrb[0].mxu0
    %v3476 = vadd.f32 %v3407, %v3475
    %v3477 = vpop.f32.mrb[0].mxu0
    %3478 = vmatprep.mubr.f32.mxu0 0.0
    %3479 = vmatmul.mubr.f32.gmra.mrb[0].mxu0 %v2877
    %v3480 = vpop.f32.mrb[0].mxu0
    %v3481 = vadd.f32 %v3407, %v3480
    %v3482 = vpop.f32.mrb[0].mxu0
    %3483 = vdwg.mxu0
    %s3484 = scalar_lea.vmem %s31, 64
    %v3485 = vld [vmem:[%s3484] sm:$0xff]
    %v3486 = vld [vmem:[%s3484 + $0x8] sm:$0xff]
    %v3487 = vld [vmem:[%s3484 + $0x10] sm:$0xff]
    %v3488 = vld [vmem:[%s3484 + $0x18] sm:$0xff]
    %s3489 = scalar_lea.vmem %s33, 2
    %v3490 = vld [vmem:[%s3489] sm:$0x1]
    %v3492 = vlaneseq
    %v3493 = vshrl.u32 %v3492, 7
    %v3494 = vsub.s32 0, %v3493
    %v3495 = vrot.slane %v3490, %v3494
    %3497 = vmatprep.subr.mxu0 0.0
    %3498 = vmatpush1.msra.mxu0 %v3485
    %3499 = vmatprep.subr.mxu0 0.0
    %3500 = vmatpush1.msra.mxu0 %v3486
    %3501 = vmatprep.subr.mxu0 0.0
    %3502 = vmatpush1.msra.mxu0 %v3487
    %3503 = vmatprep.subr.mxu0 0.0
    %3504 = vmatpush1.msra.mxu0 %v3488
    %3505 = vmatprep.subr.mxu0 0.0
    %3506 = vmatpush1.msra.mxu0 0.0
    %3507 = vmatprep.subr.mxu0 0.0
    %3508 = vmatpush1.msra.mxu0 0.0
    %3509 = vmatprep.subr.mxu0 0.0
    %3510 = vmatpush1.msra.mxu0 0.0
    %3511 = vmatprep.subr.mxu0 0.0
    %3512 = vmatpush1.msra.mxu0 0.0
    %3513 = vmatprep.subr.mxu0 0.0
    %3514 = vmatpush1.msra.mxu0 0.0
    %3515 = vmatprep.subr.mxu0 0.0
    %3516 = vmatpush1.msra.mxu0 0.0
    %3517 = vmatprep.subr.mxu0 0.0
    %3518 = vmatpush1.msra.mxu0 0.0
    %3519 = vmatprep.subr.mxu0 0.0
    %3520 = vmatpush1.msra.mxu0 0.0
    %3521 = vmatprep.subr.mxu0 0.0
    %3522 = vmatpush1.msra.mxu0 0.0
    %3523 = vmatprep.subr.mxu0 0.0
    %3524 = vmatpush1.msra.mxu0 0.0
    %3525 = vmatprep.subr.mxu0 0.0
    %3526 = vmatpush1.msra.mxu0 0.0
    %3527 = vmatprep.subr.mxu0 0.0
    %3528 = vmatpush1.msra.mxu0 0.0
    %3529 = vmatprep.subr.mxu0 0.0
    %3530 = vmatpush1.msra.mxu0 0.0
    %3531 = vmatprep.subr.mxu0 0.0
    %3532 = vmatpush1.msra.mxu0 0.0
    %3533 = vmatprep.subr.mxu0 0.0
    %3534 = vmatpush1.msra.mxu0 0.0
    %3535 = vmatprep.subr.mxu0 0.0
    %3536 = vmatpush1.msra.mxu0 0.0
    %3537 = vmatprep.subr.mxu0 0.0
    %3538 = vmatpush1.msra.mxu0 0.0
    %3539 = vmatprep.subr.mxu0 0.0
    %3540 = vmatpush1.msra.mxu0 0.0
    %3541 = vmatprep.subr.mxu0 0.0
    %3542 = vmatpush1.msra.mxu0 0.0
    %3543 = vmatprep.subr.mxu0 0.0
    %3544 = vmatpush1.msra.mxu0 0.0
    %3545 = vmatprep.subr.mxu0 0.0
    %3546 = vmatpush1.msra.mxu0 0.0
    %3547 = vmatprep.subr.mxu0 0.0
    %3548 = vmatpush1.msra.mxu0 0.0
    %3549 = vmatprep.subr.mxu0 0.0
    %3550 = vmatpush1.msra.mxu0 0.0
    %3551 = vmatprep.subr.mxu0 0.0
    %3552 = vmatpush1.msra.mxu0 0.0
    %3553 = vmatprep.subr.mxu0 0.0
    %3554 = vmatpush1.msra.mxu0 0.0
    %3555 = vmatprep.subr.mxu0 0.0
    %3556 = vmatpush1.msra.mxu0 0.0
    %3557 = vmatprep.subr.mxu0 0.0
    %3558 = vmatpush1.msra.mxu0 0.0
    %3559 = vmatprep.subr.mxu0 0.0
    %3560 = vmatpush1.msra.mxu0 0.0
    %3561 = vmatprep.mubr.f32.mxu0 0.0
    %3562 = vmatmul.mubr.f32.gmra.mrb[0].mxu0 %v2966
    %v3563 = vpop.f32.mrb[0].mxu0
    %v3564 = vadd.f32 %v3495, %v3563
    %v3565 = vpop.f32.mrb[0].mxu0
    %3566 = vmatprep.mubr.f32.mxu0 0.0
    %3567 = vmatmul.mubr.f32.gmra.mrb[0].mxu0 %v2969
    %v3568 = vpop.f32.mrb[0].mxu0
    %v3569 = vadd.f32 %v3495, %v3568
    %v3570 = vpop.f32.mrb[0].mxu0
    %3571 = vdwg.mxu0
    %s3572 = scalar_lea.vmem %s35, 64
    %v3573 = vld [vmem:[%s3572] sm:$0xff]
    %v3574 = vld [vmem:[%s3572 + $0x8] sm:$0xff]
    %v3575 = vld [vmem:[%s3572 + $0x10] sm:$0xff]
    %v3576 = vld [vmem:[%s3572 + $0x18] sm:$0xff]
    %s3577 = scalar_lea.vmem %s37, 2
    %v3578 = vld [vmem:[%s3577] sm:$0x1]
    %v3580 = vlaneseq
    %v3581 = vshrl.u32 %v3580, 7
    %v3582 = vsub.s32 0, %v3581
    %v3583 = vrot.slane %v3578, %v3582
    %3585 = vmatprep.subr.mxu0 0.0
    %3586 = vmatpush1.msra.mxu0 %v3573
    %3587 = vmatprep.subr.mxu0 0.0
    %3588 = vmatpush1.msra.mxu0 %v3574
    %3589 = vmatprep.subr.mxu0 0.0
    %3590 = vmatpush1.msra.mxu0 %v3575
    %3591 = vmatprep.subr.mxu0 0.0
    %3592 = vmatpush1.msra.mxu0 %v3576
    %3593 = vmatprep.subr.mxu0 0.0
    %3594 = vmatpush1.msra.mxu0 0.0
    %3595 = vmatprep.subr.mxu0 0.0
    %3596 = vmatpush1.msra.mxu0 0.0
    %3597 = vmatprep.subr.mxu0 0.0
    %3598 = vmatpush1.msra.mxu0 0.0
    %3599 = vmatprep.subr.mxu0 0.0
    %3600 = vmatpush1.msra.mxu0 0.0
    %3601 = vmatprep.subr.mxu0 0.0
    %3602 = vmatpush1.msra.mxu0 0.0
    %3603 = vmatprep.subr.mxu0 0.0
    %3604 = vmatpush1.msra.mxu0 0.0
    %3605 = vmatprep.subr.mxu0 0.0
    %3606 = vmatpush1.msra.mxu0 0.0
    %3607 = vmatprep.subr.mxu0 0.0
    %3608 = vmatpush1.msra.mxu0 0.0
    %3609 = vmatprep.subr.mxu0 0.0
    %3610 = vmatpush1.msra.mxu0 0.0
    %3611 = vmatprep.subr.mxu0 0.0
    %3612 = vmatpush1.msra.mxu0 0.0
    %3613 = vmatprep.subr.mxu0 0.0
    %3614 = vmatpush1.msra.mxu0 0.0
    %3615 = vmatprep.subr.mxu0 0.0
    %3616 = vmatpush1.msra.mxu0 0.0
    %3617 = vmatprep.subr.mxu0 0.0
    %3618 = vmatpush1.msra.mxu0 0.0
    %3619 = vmatprep.subr.mxu0 0.0
    %3620 = vmatpush1.msra.mxu0 0.0
    %3621 = vmatprep.subr.mxu0 0.0
    %3622 = vmatpush1.msra.mxu0 0.0
    %3623 = vmatprep.subr.mxu0 0.0
    %3624 = vmatpush1.msra.mxu0 0.0
    %3625 = vmatprep.subr.mxu0 0.0
    %3626 = vmatpush1.msra.mxu0 0.0
    %3627 = vmatprep.subr.mxu0 0.0
    %3628 = vmatpush1.msra.mxu0 0.0
    %3629 = vmatprep.subr.mxu0 0.0
    %3630 = vmatpush1.msra.mxu0 0.0
    %3631 = vmatprep.subr.mxu0 0.0
    %3632 = vmatpush1.msra.mxu0 0.0
    %3633 = vmatprep.subr.mxu0 0.0
    %3634 = vmatpush1.msra.mxu0 0.0
    %3635 = vmatprep.subr.mxu0 0.0
    %3636 = vmatpush1.msra.mxu0 0.0
    %3637 = vmatprep.subr.mxu0 0.0
    %3638 = vmatpush1.msra.mxu0 0.0
    %3639 = vmatprep.subr.mxu0 0.0
    %3640 = vmatpush1.msra.mxu0 0.0
    %3641 = vmatprep.subr.mxu0 0.0
    %3642 = vmatpush1.msra.mxu0 0.0
    %3643 = vmatprep.subr.mxu0 0.0
    %3644 = vmatpush1.msra.mxu0 0.0
    %3645 = vmatprep.subr.mxu0 0.0
    %3646 = vmatpush1.msra.mxu0 0.0
    %3647 = vmatprep.subr.mxu0 0.0
    %3648 = vmatpush1.msra.mxu0 0.0
    %3649 = vmatprep.mubr.f32.mxu0 0.0
    %3650 = vmatmul.mubr.f32.gmra.mrb[0].mxu0 %v2966
    %v3651 = vpop.f32.mrb[0].mxu0
    %v3652 = vadd.f32 %v3583, %v3651
    %v3653 = vpop.f32.mrb[0].mxu0
    %3654 = vmatprep.mubr.f32.mxu0 0.0
    %3655 = vmatmul.mubr.f32.gmra.mrb[0].mxu0 %v2969
    %v3656 = vpop.f32.mrb[0].mxu0
    %v3657 = vadd.f32 %v3583, %v3656
    %v3658 = vpop.f32.mrb[0].mxu0
    %3659 = vdwg.mxu0
    %s3660 = scalar_lea.vmem %s27, 96
    %v3661 = vld [vmem:[%s3660] sm:$0xff]
    %v3662 = vld [vmem:[%s3660 + $0x8] sm:$0xff]
    %v3663 = vld [vmem:[%s3660 + $0x10] sm:$0xff]
    %v3664 = vld [vmem:[%s3660 + $0x18] sm:$0xff]
    %s3665 = scalar_lea.vmem %s29, 3
    %v3666 = vld [vmem:[%s3665] sm:$0x1]
    %v3668 = vlaneseq
    %v3669 = vshrl.u32 %v3668, 7
    %v3670 = vsub.s32 0, %v3669
    %v3671 = vrot.slane %v3666, %v3670
    %3673 = vmatprep.subr.mxu0 0.0
    %3674 = vmatpush1.msra.mxu0 %v3661
    %3675 = vmatprep.subr.mxu0 0.0
    %3676 = vmatpush1.msra.mxu0 %v3662
    %3677 = vmatprep.subr.mxu0 0.0
    %3678 = vmatpush1.msra.mxu0 %v3663
    %3679 = vmatprep.subr.mxu0 0.0
    %3680 = vmatpush1.msra.mxu0 %v3664
    %3681 = vmatprep.subr.mxu0 0.0
    %3682 = vmatpush1.msra.mxu0 0.0
    %3683 = vmatprep.subr.mxu0 0.0
    %3684 = vmatpush1.msra.mxu0 0.0
    %3685 = vmatprep.subr.mxu0 0.0
    %3686 = vmatpush1.msra.mxu0 0.0
    %3687 = vmatprep.subr.mxu0 0.0
    %3688 = vmatpush1.msra.mxu0 0.0
    %3689 = vmatprep.subr.mxu0 0.0
    %3690 = vmatpush1.msra.mxu0 0.0
    %3691 = vmatprep.subr.mxu0 0.0
    %3692 = vmatpush1.msra.mxu0 0.0
    %3693 = vmatprep.subr.mxu0 0.0
    %3694 = vmatpush1.msra.mxu0 0.0
    %3695 = vmatprep.subr.mxu0 0.0
    %3696 = vmatpush1.msra.mxu0 0.0
    %3697 = vmatprep.subr.mxu0 0.0
    %3698 = vmatpush1.msra.mxu0 0.0
    %3699 = vmatprep.subr.mxu0 0.0
    %3700 = vmatpush1.msra.mxu0 0.0
    %3701 = vmatprep.subr.mxu0 0.0
    %3702 = vmatpush1.msra.mxu0 0.0
    %3703 = vmatprep.subr.mxu0 0.0
    %3704 = vmatpush1.msra.mxu0 0.0
    %3705 = vmatprep.subr.mxu0 0.0
    %3706 = vmatpush1.msra.mxu0 0.0
    %3707 = vmatprep.subr.mxu0 0.0
    %3708 = vmatpush1.msra.mxu0 0.0
    %3709 = vmatprep.subr.mxu0 0.0
    %3710 = vmatpush1.msra.mxu0 0.0
    %3711 = vmatprep.subr.mxu0 0.0
    %3712 = vmatpush1.msra.mxu0 0.0
    %3713 = vmatprep.subr.mxu0 0.0
    %3714 = vmatpush1.msra.mxu0 0.0
    %3715 = vmatprep.subr.mxu0 0.0
    %3716 = vmatpush1.msra.mxu0 0.0
    %3717 = vmatprep.subr.mxu0 0.0
    %3718 = vmatpush1.msra.mxu0 0.0
    %3719 = vmatprep.subr.mxu0 0.0
    %3720 = vmatpush1.msra.mxu0 0.0
    %3721 = vmatprep.subr.mxu0 0.0
    %3722 = vmatpush1.msra.mxu0 0.0
    %3723 = vmatprep.subr.mxu0 0.0
    %3724 = vmatpush1.msra.mxu0 0.0
    %3725 = vmatprep.subr.mxu0 0.0
    %3726 = vmatpush1.msra.mxu0 0.0
    %3727 = vmatprep.subr.mxu0 0.0
    %3728 = vmatpush1.msra.mxu0 0.0
    %3729 = vmatprep.subr.mxu0 0.0
    %3730 = vmatpush1.msra.mxu0 0.0
    %3731 = vmatprep.subr.mxu0 0.0
    %3732 = vmatpush1.msra.mxu0 0.0
    %3733 = vmatprep.subr.mxu0 0.0
    %3734 = vmatpush1.msra.mxu0 0.0
    %3735 = vmatprep.subr.mxu0 0.0
    %3736 = vmatpush1.msra.mxu0 0.0
    %3737 = vmatprep.mubr.f32.mxu0 0.0
    %3738 = vmatmul.mubr.f32.gmra.mrb[0].mxu0 %v2874
    %v3739 = vpop.f32.mrb[0].mxu0
    %v3740 = vadd.f32 %v3671, %v3739
    %v3741 = vpop.f32.mrb[0].mxu0
    %3742 = vmatprep.mubr.f32.mxu0 0.0
    %3743 = vmatmul.mubr.f32.gmra.mrb[0].mxu0 %v2877
    %v3744 = vpop.f32.mrb[0].mxu0
    %v3745 = vadd.f32 %v3671, %v3744
    %v3746 = vpop.f32.mrb[0].mxu0
    %3747 = vdwg.mxu0
    %s3748 = scalar_lea.vmem %s31, 96
    %v3749 = vld [vmem:[%s3748] sm:$0xff]
    %v3750 = vld [vmem:[%s3748 + $0x8] sm:$0xff]
    %v3751 = vld [vmem:[%s3748 + $0x10] sm:$0xff]
    %v3752 = vld [vmem:[%s3748 + $0x18] sm:$0xff]
    %s3753 = scalar_lea.vmem %s33, 3
    %v3754 = vld [vmem:[%s3753] sm:$0x1]
    %v3756 = vlaneseq
    %v3757 = vshrl.u32 %v3756, 7
    %v3758 = vsub.s32 0, %v3757
    %v3759 = vrot.slane %v3754, %v3758
    %3761 = vmatprep.subr.mxu0 0.0
    %3762 = vmatpush1.msra.mxu0 %v3749
    %3763 = vmatprep.subr.mxu0 0.0
    %3764 = vmatpush1.msra.mxu0 %v3750
    %3765 = vmatprep.subr.mxu0 0.0
    %3766 = vmatpush1.msra.mxu0 %v3751
    %3767 = vmatprep.subr.mxu0 0.0
    %3768 = vmatpush1.msra.mxu0 %v3752
    %3769 = vmatprep.subr.mxu0 0.0
    %3770 = vmatpush1.msra.mxu0 0.0
    %3771 = vmatprep.subr.mxu0 0.0
    %3772 = vmatpush1.msra.mxu0 0.0
    %3773 = vmatprep.subr.mxu0 0.0
    %3774 = vmatpush1.msra.mxu0 0.0
    %3775 = vmatprep.subr.mxu0 0.0
    %3776 = vmatpush1.msra.mxu0 0.0
    %3777 = vmatprep.subr.mxu0 0.0
    %3778 = vmatpush1.msra.mxu0 0.0
    %3779 = vmatprep.subr.mxu0 0.0
    %3780 = vmatpush1.msra.mxu0 0.0
    %3781 = vmatprep.subr.mxu0 0.0
    %3782 = vmatpush1.msra.mxu0 0.0
    %3783 = vmatprep.subr.mxu0 0.0
    %3784 = vmatpush1.msra.mxu0 0.0
    %3785 = vmatprep.subr.mxu0 0.0
    %3786 = vmatpush1.msra.mxu0 0.0
    %3787 = vmatprep.subr.mxu0 0.0
    %3788 = vmatpush1.msra.mxu0 0.0
    %3789 = vmatprep.subr.mxu0 0.0
    %3790 = vmatpush1.msra.mxu0 0.0
    %3791 = vmatprep.subr.mxu0 0.0
    %3792 = vmatpush1.msra.mxu0 0.0
    %3793 = vmatprep.subr.mxu0 0.0
    %3794 = vmatpush1.msra.mxu0 0.0
    %3795 = vmatprep.subr.mxu0 0.0
    %3796 = vmatpush1.msra.mxu0 0.0
    %3797 = vmatprep.subr.mxu0 0.0
    %3798 = vmatpush1.msra.mxu0 0.0
    %3799 = vmatprep.subr.mxu0 0.0
    %3800 = vmatpush1.msra.mxu0 0.0
    %3801 = vmatprep.subr.mxu0 0.0
    %3802 = vmatpush1.msra.mxu0 0.0
    %3803 = vmatprep.subr.mxu0 0.0
    %3804 = vmatpush1.msra.mxu0 0.0
    %3805 = vmatprep.subr.mxu0 0.0
    %3806 = vmatpush1.msra.mxu0 0.0
    %3807 = vmatprep.subr.mxu0 0.0
    %3808 = vmatpush1.msra.mxu0 0.0
    %3809 = vmatprep.subr.mxu0 0.0
    %3810 = vmatpush1.msra.mxu0 0.0
    %3811 = vmatprep.subr.mxu0 0.0
    %3812 = vmatpush1.msra.mxu0 0.0
    %3813 = vmatprep.subr.mxu0 0.0
    %3814 = vmatpush1.msra.mxu0 0.0
    %3815 = vmatprep.subr.mxu0 0.0
    %3816 = vmatpush1.msra.mxu0 0.0
    %3817 = vmatprep.subr.mxu0 0.0
    %3818 = vmatpush1.msra.mxu0 0.0
    %3819 = vmatprep.subr.mxu0 0.0
    %3820 = vmatpush1.msra.mxu0 0.0
    %3821 = vmatprep.subr.mxu0 0.0
    %3822 = vmatpush1.msra.mxu0 0.0
    %3823 = vmatprep.subr.mxu0 0.0
    %3824 = vmatpush1.msra.mxu0 0.0
    %3825 = vmatprep.mubr.f32.mxu0 0.0
    %3826 = vmatmul.mubr.f32.gmra.mrb[0].mxu0 %v2966
    %v3827 = vpop.f32.mrb[0].mxu0
    %v3828 = vadd.f32 %v3759, %v3827
    %v3829 = vpop.f32.mrb[0].mxu0
    %3830 = vmatprep.mubr.f32.mxu0 0.0
    %3831 = vmatmul.mubr.f32.gmra.mrb[0].mxu0 %v2969
    %v3832 = vpop.f32.mrb[0].mxu0
    %v3833 = vadd.f32 %v3759, %v3832
    %v3834 = vpop.f32.mrb[0].mxu0
    %3835 = vdwg.mxu0
    %s3836 = scalar_lea.vmem %s35, 96
    %v3837 = vld [vmem:[%s3836] sm:$0xff]
    %v3838 = vld [vmem:[%s3836 + $0x8] sm:$0xff]
    %v3839 = vld [vmem:[%s3836 + $0x10] sm:$0xff]
    %v3840 = vld [vmem:[%s3836 + $0x18] sm:$0xff]
    %s3841 = scalar_lea.vmem %s37, 3
    %v3842 = vld [vmem:[%s3841] sm:$0x1]
    %v3844 = vlaneseq
    %v3845 = vshrl.u32 %v3844, 7
    %v3846 = vsub.s32 0, %v3845
    %v3847 = vrot.slane %v3842, %v3846
    %3849 = vmatprep.subr.mxu0 0.0
    %3850 = vmatpush1.msra.mxu0 %v3837
    %3851 = vmatprep.subr.mxu0 0.0
    %3852 = vmatpush1.msra.mxu0 %v3838
    %3853 = vmatprep.subr.mxu0 0.0
    %3854 = vmatpush1.msra.mxu0 %v3839
    %3855 = vmatprep.subr.mxu0 0.0
    %3856 = vmatpush1.msra.mxu0 %v3840
    %3857 = vmatprep.subr.mxu0 0.0
    %3858 = vmatpush1.msra.mxu0 0.0
    %3859 = vmatprep.subr.mxu0 0.0
    %3860 = vmatpush1.msra.mxu0 0.0
    %3861 = vmatprep.subr.mxu0 0.0
    %3862 = vmatpush1.msra.mxu0 0.0
    %3863 = vmatprep.subr.mxu0 0.0
    %3864 = vmatpush1.msra.mxu0 0.0
    %3865 = vmatprep.subr.mxu0 0.0
    %3866 = vmatpush1.msra.mxu0 0.0
    %3867 = vmatprep.subr.mxu0 0.0
    %3868 = vmatpush1.msra.mxu0 0.0
    %3869 = vmatprep.subr.mxu0 0.0
    %3870 = vmatpush1.msra.mxu0 0.0
    %3871 = vmatprep.subr.mxu0 0.0
    %3872 = vmatpush1.msra.mxu0 0.0
    %3873 = vmatprep.subr.mxu0 0.0
    %3874 = vmatpush1.msra.mxu0 0.0
    %3875 = vmatprep.subr.mxu0 0.0
    %3876 = vmatpush1.msra.mxu0 0.0
    %3877 = vmatprep.subr.mxu0 0.0
    %3878 = vmatpush1.msra.mxu0 0.0
    %3879 = vmatprep.subr.mxu0 0.0
    %3880 = vmatpush1.msra.mxu0 0.0
    %3881 = vmatprep.subr.mxu0 0.0
    %3882 = vmatpush1.msra.mxu0 0.0
    %3883 = vmatprep.subr.mxu0 0.0
    %3884 = vmatpush1.msra.mxu0 0.0
    %3885 = vmatprep.subr.mxu0 0.0
    %3886 = vmatpush1.msra.mxu0 0.0
    %3887 = vmatprep.subr.mxu0 0.0
    %3888 = vmatpush1.msra.mxu0 0.0
    %3889 = vmatprep.subr.mxu0 0.0
    %3890 = vmatpush1.msra.mxu0 0.0
    %3891 = vmatprep.subr.mxu0 0.0
    %3892 = vmatpush1.msra.mxu0 0.0
    %3893 = vmatprep.subr.mxu0 0.0
    %3894 = vmatpush1.msra.mxu0 0.0
    %3895 = vmatprep.subr.mxu0 0.0
    %3896 = vmatpush1.msra.mxu0 0.0
    %3897 = vmatprep.subr.mxu0 0.0
    %3898 = vmatpush1.msra.mxu0 0.0
    %3899 = vmatprep.subr.mxu0 0.0
    %3900 = vmatpush1.msra.mxu0 0.0
    %3901 = vmatprep.subr.mxu0 0.0
    %3902 = vmatpush1.msra.mxu0 0.0
    %3903 = vmatprep.subr.mxu0 0.0
    %3904 = vmatpush1.msra.mxu0 0.0
    %3905 = vmatprep.subr.mxu0 0.0
    %3906 = vmatpush1.msra.mxu0 0.0
    %3907 = vmatprep.subr.mxu0 0.0
    %3908 = vmatpush1.msra.mxu0 0.0
    %3909 = vmatprep.subr.mxu0 0.0
    %3910 = vmatpush1.msra.mxu0 0.0
    %3911 = vmatprep.subr.mxu0 0.0
    %3912 = vmatpush1.msra.mxu0 0.0
    %3913 = vmatprep.mubr.f32.mxu0 0.0
    %3914 = vmatmul.mubr.f32.gmra.mrb[0].mxu0 %v2966
    %v3915 = vpop.f32.mrb[0].mxu0
    %v3916 = vadd.f32 %v3847, %v3915
    %v3917 = vpop.f32.mrb[0].mxu0
    %3918 = vmatprep.mubr.f32.mxu0 0.0
    %3919 = vmatmul.mubr.f32.gmra.mrb[0].mxu0 %v2969
    %v3920 = vpop.f32.mrb[0].mxu0
    %v3921 = vadd.f32 %v3847, %v3920
    %v3922 = vpop.f32.mrb[0].mxu0
    %3923 = vdwg.mxu0
    %v3925 = vsel %vm1190, %v2946, 0
    %v3928 = vsel %vm1190, %v3038, 0
    %3930 = vmatprep.subr.mxu0 0.0
    %3931 = vmatpush1.xpose.msra.mxu0 %v3928
    %3932 = vmatprep.subr.mxu0 0.0
    %3933 = vmatpush1.xpose.msra.mxu0 0.0
    %3934 = vmatprep.subr.mxu0 0.0
    %3935 = vmatpush1.xpose.msra.mxu0 0.0
    %3936 = vmatprep.subr.mxu0 0.0
    %3937 = vmatpush1.xpose.msra.mxu0 0.0
    %3938 = vmatprep.subr.mxu0 0.0
    %3939 = vmatpush1.xpose.msra.mxu0 0.0
    %3940 = vmatprep.subr.mxu0 0.0
    %3941 = vmatpush1.xpose.msra.mxu0 0.0
    %3942 = vmatprep.subr.mxu0 0.0
    %3943 = vmatpush1.xpose.msra.mxu0 0.0
    %3944 = vmatprep.subr.mxu0 0.0
    %3945 = vmatpush1.xpose.msra.mxu0 0.0
    %3946 = vmatprep.subr.mxu0 0.0
    %3947 = vmatpush1.xpose.msra.mxu0 0.0
    %3948 = vmatprep.subr.mxu0 0.0
    %3949 = vmatpush1.xpose.msra.mxu0 0.0
    %3950 = vmatprep.subr.mxu0 0.0
    %3951 = vmatpush1.xpose.msra.mxu0 0.0
    %3952 = vmatprep.subr.mxu0 0.0
    %3953 = vmatpush1.xpose.msra.mxu0 0.0
    %3954 = vmatprep.subr.mxu0 0.0
    %3955 = vmatpush1.xpose.msra.mxu0 0.0
    %3956 = vmatprep.subr.mxu0 0.0
    %3957 = vmatpush1.xpose.msra.mxu0 0.0
    %3958 = vmatprep.subr.mxu0 0.0
    %3959 = vmatpush1.xpose.msra.mxu0 0.0
    %3960 = vmatprep.subr.mxu0 0.0
    %3961 = vmatpush1.xpose.msra.mxu0 0.0
    %3962 = vmatprep.subr.mxu0 0.0
    %3963 = vmatpush1.xpose.msra.mxu0 0.0
    %3964 = vmatprep.subr.mxu0 0.0
    %3965 = vmatpush1.xpose.msra.mxu0 0.0
    %3966 = vmatprep.subr.mxu0 0.0
    %3967 = vmatpush1.xpose.msra.mxu0 0.0
    %3968 = vmatprep.subr.mxu0 0.0
    %3969 = vmatpush1.xpose.msra.mxu0 0.0
    %3970 = vmatprep.subr.mxu0 0.0
    %3971 = vmatpush1.xpose.msra.mxu0 0.0
    %3972 = vmatprep.subr.mxu0 0.0
    %3973 = vmatpush1.xpose.msra.mxu0 0.0
    %3974 = vmatprep.subr.mxu0 0.0
    %3975 = vmatpush1.xpose.msra.mxu0 0.0
    %3976 = vmatprep.subr.mxu0 0.0
    %3977 = vmatpush1.xpose.msra.mxu0 0.0
    %3978 = vmatprep.subr.mxu0 0.0
    %3979 = vmatpush1.xpose.msra.mxu0 0.0
    %3980 = vmatprep.subr.mxu0 0.0
    %3981 = vmatpush1.xpose.msra.mxu0 0.0
    %3982 = vmatprep.subr.mxu0 0.0
    %3983 = vmatpush1.xpose.msra.mxu0 0.0
    %3984 = vmatprep.subr.mxu0 0.0
    %3985 = vmatpush1.xpose.msra.mxu0 0.0
    %3986 = vmatprep.subr.mxu0 0.0
    %3987 = vmatpush1.xpose.msra.mxu0 0.0
    %3988 = vmatprep.subr.mxu0 0.0
    %3989 = vmatpush1.xpose.msra.mxu0 0.0
    %3990 = vmatprep.subr.mxu0 0.0
    %3991 = vmatpush1.xpose.msra.mxu0 0.0
    %3992 = vmatprep.subr.mxu0 0.0
    %3993 = vmatpush1.xpose.msra.mxu0 0.0
    %3994 = vmatprep.mubr.f32.mxu0 0.0
    %3995 = vmatmul.mubr.f32.gmra.mrb[0].mxu0 %v3925
    %v3996 = vpop.f32.mrb[0].mxu0
    %v3997 = vadd.f32 %v132, %v3996
    %v3998 = vpop.f32.mrb[0].mxu0
    %3999 = vdwg.mxu0
    %v4001 = vsel %vm1190, %v2951, 0
    %v4004 = vsel %vm1190, %v3043, 0
    %4006 = vmatprep.subr.mxu0 0.0
    %4007 = vmatpush1.xpose.msra.mxu0 %v4004
    %4008 = vmatprep.subr.mxu0 0.0
    %4009 = vmatpush1.xpose.msra.mxu0 0.0
    %4010 = vmatprep.subr.mxu0 0.0
    %4011 = vmatpush1.xpose.msra.mxu0 0.0
    %4012 = vmatprep.subr.mxu0 0.0
    %4013 = vmatpush1.xpose.msra.mxu0 0.0
    %4014 = vmatprep.subr.mxu0 0.0
    %4015 = vmatpush1.xpose.msra.mxu0 0.0
    %4016 = vmatprep.subr.mxu0 0.0
    %4017 = vmatpush1.xpose.msra.mxu0 0.0
    %4018 = vmatprep.subr.mxu0 0.0
    %4019 = vmatpush1.xpose.msra.mxu0 0.0
    %4020 = vmatprep.subr.mxu0 0.0
    %4021 = vmatpush1.xpose.msra.mxu0 0.0
    %4022 = vmatprep.subr.mxu0 0.0
    %4023 = vmatpush1.xpose.msra.mxu0 0.0
    %4024 = vmatprep.subr.mxu0 0.0
    %4025 = vmatpush1.xpose.msra.mxu0 0.0
    %4026 = vmatprep.subr.mxu0 0.0
    %4027 = vmatpush1.xpose.msra.mxu0 0.0
    %4028 = vmatprep.subr.mxu0 0.0
    %4029 = vmatpush1.xpose.msra.mxu0 0.0
    %4030 = vmatprep.subr.mxu0 0.0
    %4031 = vmatpush1.xpose.msra.mxu0 0.0
    %4032 = vmatprep.subr.mxu0 0.0
    %4033 = vmatpush1.xpose.msra.mxu0 0.0
    %4034 = vmatprep.subr.mxu0 0.0
    %4035 = vmatpush1.xpose.msra.mxu0 0.0
    %4036 = vmatprep.subr.mxu0 0.0
    %4037 = vmatpush1.xpose.msra.mxu0 0.0
    %4038 = vmatprep.subr.mxu0 0.0
    %4039 = vmatpush1.xpose.msra.mxu0 0.0
    %4040 = vmatprep.subr.mxu0 0.0
    %4041 = vmatpush1.xpose.msra.mxu0 0.0
    %4042 = vmatprep.subr.mxu0 0.0
    %4043 = vmatpush1.xpose.msra.mxu0 0.0
    %4044 = vmatprep.subr.mxu0 0.0
    %4045 = vmatpush1.xpose.msra.mxu0 0.0
    %4046 = vmatprep.subr.mxu0 0.0
    %4047 = vmatpush1.xpose.msra.mxu0 0.0
    %4048 = vmatprep.subr.mxu0 0.0
    %4049 = vmatpush1.xpose.msra.mxu0 0.0
    %4050 = vmatprep.subr.mxu0 0.0
    %4051 = vmatpush1.xpose.msra.mxu0 0.0
    %4052 = vmatprep.subr.mxu0 0.0
    %4053 = vmatpush1.xpose.msra.mxu0 0.0
    %4054 = vmatprep.subr.mxu0 0.0
    %4055 = vmatpush1.xpose.msra.mxu0 0.0
    %4056 = vmatprep.subr.mxu0 0.0
    %4057 = vmatpush1.xpose.msra.mxu0 0.0
    %4058 = vmatprep.subr.mxu0 0.0
    %4059 = vmatpush1.xpose.msra.mxu0 0.0
    %4060 = vmatprep.subr.mxu0 0.0
    %4061 = vmatpush1.xpose.msra.mxu0 0.0
    %4062 = vmatprep.subr.mxu0 0.0
    %4063 = vmatpush1.xpose.msra.mxu0 0.0
    %4064 = vmatprep.subr.mxu0 0.0
    %4065 = vmatpush1.xpose.msra.mxu0 0.0
    %4066 = vmatprep.subr.mxu0 0.0
    %4067 = vmatpush1.xpose.msra.mxu0 0.0
    %4068 = vmatprep.subr.mxu0 0.0
    %4069 = vmatpush1.xpose.msra.mxu0 0.0
    %4070 = vmatprep.mubr.f32.mxu0 0.0
    %4071 = vmatmul.mubr.f32.gmra.mrb[0].mxu0 %v4001
    %v4072 = vpop.f32.mrb[0].mxu0
    %v4073 = vadd.f32 %v132, %v4072
    %v4074 = vpop.f32.mrb[0].mxu0
    %4075 = vdwg.mxu0
    %v4077 = vsel %vm1190, %v3212, 0
    %v4080 = vsel %vm1190, %v3300, 0
    %4082 = vmatprep.subr.mxu0 0.0
    %4083 = vmatpush1.xpose.msra.mxu0 %v4080
    %4084 = vmatprep.subr.mxu0 0.0
    %4085 = vmatpush1.xpose.msra.mxu0 0.0
    %4086 = vmatprep.subr.mxu0 0.0
    %4087 = vmatpush1.xpose.msra.mxu0 0.0
    %4088 = vmatprep.subr.mxu0 0.0
    %4089 = vmatpush1.xpose.msra.mxu0 0.0
    %4090 = vmatprep.subr.mxu0 0.0
    %4091 = vmatpush1.xpose.msra.mxu0 0.0
    %4092 = vmatprep.subr.mxu0 0.0
    %4093 = vmatpush1.xpose.msra.mxu0 0.0
    %4094 = vmatprep.subr.mxu0 0.0
    %4095 = vmatpush1.xpose.msra.mxu0 0.0
    %4096 = vmatprep.subr.mxu0 0.0
    %4097 = vmatpush1.xpose.msra.mxu0 0.0
    %4098 = vmatprep.subr.mxu0 0.0
    %4099 = vmatpush1.xpose.msra.mxu0 0.0
    %4100 = vmatprep.subr.mxu0 0.0
    %4101 = vmatpush1.xpose.msra.mxu0 0.0
    %4102 = vmatprep.subr.mxu0 0.0
    %4103 = vmatpush1.xpose.msra.mxu0 0.0
    %4104 = vmatprep.subr.mxu0 0.0
    %4105 = vmatpush1.xpose.msra.mxu0 0.0
    %4106 = vmatprep.subr.mxu0 0.0
    %4107 = vmatpush1.xpose.msra.mxu0 0.0
    %4108 = vmatprep.subr.mxu0 0.0
    %4109 = vmatpush1.xpose.msra.mxu0 0.0
    %4110 = vmatprep.subr.mxu0 0.0
    %4111 = vmatpush1.xpose.msra.mxu0 0.0
    %4112 = vmatprep.subr.mxu0 0.0
    %4113 = vmatpush1.xpose.msra.mxu0 0.0
    %4114 = vmatprep.subr.mxu0 0.0
    %4115 = vmatpush1.xpose.msra.mxu0 0.0
    %4116 = vmatprep.subr.mxu0 0.0
    %4117 = vmatpush1.xpose.msra.mxu0 0.0
    %4118 = vmatprep.subr.mxu0 0.0
    %4119 = vmatpush1.xpose.msra.mxu0 0.0
    %4120 = vmatprep.subr.mxu0 0.0
    %4121 = vmatpush1.xpose.msra.mxu0 0.0
    %4122 = vmatprep.subr.mxu0 0.0
    %4123 = vmatpush1.xpose.msra.mxu0 0.0
    %4124 = vmatprep.subr.mxu0 0.0
    %4125 = vmatpush1.xpose.msra.mxu0 0.0
    %4126 = vmatprep.subr.mxu0 0.0
    %4127 = vmatpush1.xpose.msra.mxu0 0.0
    %4128 = vmatprep.subr.mxu0 0.0
    %4129 = vmatpush1.xpose.msra.mxu0 0.0
    %4130 = vmatprep.subr.mxu0 0.0
    %4131 = vmatpush1.xpose.msra.mxu0 0.0
    %4132 = vmatprep.subr.mxu0 0.0
    %4133 = vmatpush1.xpose.msra.mxu0 0.0
    %4134 = vmatprep.subr.mxu0 0.0
    %4135 = vmatpush1.xpose.msra.mxu0 0.0
    %4136 = vmatprep.subr.mxu0 0.0
    %4137 = vmatpush1.xpose.msra.mxu0 0.0
    %4138 = vmatprep.subr.mxu0 0.0
    %4139 = vmatpush1.xpose.msra.mxu0 0.0
    %4140 = vmatprep.subr.mxu0 0.0
    %4141 = vmatpush1.xpose.msra.mxu0 0.0
    %4142 = vmatprep.subr.mxu0 0.0
    %4143 = vmatpush1.xpose.msra.mxu0 0.0
    %4144 = vmatprep.subr.mxu0 0.0
    %4145 = vmatpush1.xpose.msra.mxu0 0.0
    %4146 = vmatprep.mubr.f32.mxu0 0.0
    %4147 = vmatmul.mubr.f32.gmra.mrb[0].mxu0 %v4077
    %v4148 = vpop.f32.mrb[0].mxu0
    %v4149 = vadd.f32 %v132, %v4148
    %v4150 = vpop.f32.mrb[0].mxu0
    %4151 = vdwg.mxu0
    %v4153 = vsel %vm1190, %v3217, 0
    %v4156 = vsel %vm1190, %v3305, 0
    %4158 = vmatprep.subr.mxu0 0.0
    %4159 = vmatpush1.xpose.msra.mxu0 %v4156
    %4160 = vmatprep.subr.mxu0 0.0
    %4161 = vmatpush1.xpose.msra.mxu0 0.0
    %4162 = vmatprep.subr.mxu0 0.0
    %4163 = vmatpush1.xpose.msra.mxu0 0.0
    %4164 = vmatprep.subr.mxu0 0.0
    %4165 = vmatpush1.xpose.msra.mxu0 0.0
    %4166 = vmatprep.subr.mxu0 0.0
    %4167 = vmatpush1.xpose.msra.mxu0 0.0
    %4168 = vmatprep.subr.mxu0 0.0
    %4169 = vmatpush1.xpose.msra.mxu0 0.0
    %4170 = vmatprep.subr.mxu0 0.0
    %4171 = vmatpush1.xpose.msra.mxu0 0.0
    %4172 = vmatprep.subr.mxu0 0.0
    %4173 = vmatpush1.xpose.msra.mxu0 0.0
    %4174 = vmatprep.subr.mxu0 0.0
    %4175 = vmatpush1.xpose.msra.mxu0 0.0
    %4176 = vmatprep.subr.mxu0 0.0
    %4177 = vmatpush1.xpose.msra.mxu0 0.0
    %4178 = vmatprep.subr.mxu0 0.0
    %4179 = vmatpush1.xpose.msra.mxu0 0.0
    %4180 = vmatprep.subr.mxu0 0.0
    %4181 = vmatpush1.xpose.msra.mxu0 0.0
    %4182 = vmatprep.subr.mxu0 0.0
    %4183 = vmatpush1.xpose.msra.mxu0 0.0
    %4184 = vmatprep.subr.mxu0 0.0
    %4185 = vmatpush1.xpose.msra.mxu0 0.0
    %4186 = vmatprep.subr.mxu0 0.0
    %4187 = vmatpush1.xpose.msra.mxu0 0.0
    %4188 = vmatprep.subr.mxu0 0.0
    %4189 = vmatpush1.xpose.msra.mxu0 0.0
    %4190 = vmatprep.subr.mxu0 0.0
    %4191 = vmatpush1.xpose.msra.mxu0 0.0
    %4192 = vmatprep.subr.mxu0 0.0
    %4193 = vmatpush1.xpose.msra.mxu0 0.0
    %4194 = vmatprep.subr.mxu0 0.0
    %4195 = vmatpush1.xpose.msra.mxu0 0.0
    %4196 = vmatprep.subr.mxu0 0.0
    %4197 = vmatpush1.xpose.msra.mxu0 0.0
    %4198 = vmatprep.subr.mxu0 0.0
    %4199 = vmatpush1.xpose.msra.mxu0 0.0
    %4200 = vmatprep.subr.mxu0 0.0
    %4201 = vmatpush1.xpose.msra.mxu0 0.0
    %4202 = vmatprep.subr.mxu0 0.0
    %4203 = vmatpush1.xpose.msra.mxu0 0.0
    %4204 = vmatprep.subr.mxu0 0.0
    %4205 = vmatpush1.xpose.msra.mxu0 0.0
    %4206 = vmatprep.subr.mxu0 0.0
    %4207 = vmatpush1.xpose.msra.mxu0 0.0
    %4208 = vmatprep.subr.mxu0 0.0
    %4209 = vmatpush1.xpose.msra.mxu0 0.0
    %4210 = vmatprep.subr.mxu0 0.0
    %4211 = vmatpush1.xpose.msra.mxu0 0.0
    %4212 = vmatprep.subr.mxu0 0.0
    %4213 = vmatpush1.xpose.msra.mxu0 0.0
    %4214 = vmatprep.subr.mxu0 0.0
    %4215 = vmatpush1.xpose.msra.mxu0 0.0
    %4216 = vmatprep.subr.mxu0 0.0
    %4217 = vmatpush1.xpose.msra.mxu0 0.0
    %4218 = vmatprep.subr.mxu0 0.0
    %4219 = vmatpush1.xpose.msra.mxu0 0.0
    %4220 = vmatprep.subr.mxu0 0.0
    %4221 = vmatpush1.xpose.msra.mxu0 0.0
    %4222 = vmatprep.mubr.f32.mxu0 0.0
    %4223 = vmatmul.mubr.f32.gmra.mrb[0].mxu0 %v4153
    %v4224 = vpop.f32.mrb[0].mxu0
    %v4225 = vadd.f32 %v132, %v4224
    %v4226 = vpop.f32.mrb[0].mxu0
    %4227 = vdwg.mxu0
    %v4229 = vsel %vm1190, %v3476, 0
    %v4232 = vsel %vm1190, %v3564, 0
    %4234 = vmatprep.subr.mxu0 0.0
    %4235 = vmatpush1.xpose.msra.mxu0 %v4232
    %4236 = vmatprep.subr.mxu0 0.0
    %4237 = vmatpush1.xpose.msra.mxu0 0.0
    %4238 = vmatprep.subr.mxu0 0.0
    %4239 = vmatpush1.xpose.msra.mxu0 0.0
    %4240 = vmatprep.subr.mxu0 0.0
    %4241 = vmatpush1.xpose.msra.mxu0 0.0
    %4242 = vmatprep.subr.mxu0 0.0
    %4243 = vmatpush1.xpose.msra.mxu0 0.0
    %4244 = vmatprep.subr.mxu0 0.0
    %4245 = vmatpush1.xpose.msra.mxu0 0.0
    %4246 = vmatprep.subr.mxu0 0.0
    %4247 = vmatpush1.xpose.msra.mxu0 0.0
    %4248 = vmatprep.subr.mxu0 0.0
    %4249 = vmatpush1.xpose.msra.mxu0 0.0
    %4250 = vmatprep.subr.mxu0 0.0
    %4251 = vmatpush1.xpose.msra.mxu0 0.0
    %4252 = vmatprep.subr.mxu0 0.0
    %4253 = vmatpush1.xpose.msra.mxu0 0.0
    %4254 = vmatprep.subr.mxu0 0.0
    %4255 = vmatpush1.xpose.msra.mxu0 0.0
    %4256 = vmatprep.subr.mxu0 0.0
    %4257 = vmatpush1.xpose.msra.mxu0 0.0
    %4258 = vmatprep.subr.mxu0 0.0
    %4259 = vmatpush1.xpose.msra.mxu0 0.0
    %4260 = vmatprep.subr.mxu0 0.0
    %4261 = vmatpush1.xpose.msra.mxu0 0.0
    %4262 = vmatprep.subr.mxu0 0.0
    %4263 = vmatpush1.xpose.msra.mxu0 0.0
    %4264 = vmatprep.subr.mxu0 0.0
    %4265 = vmatpush1.xpose.msra.mxu0 0.0
    %4266 = vmatprep.subr.mxu0 0.0
    %4267 = vmatpush1.xpose.msra.mxu0 0.0
    %4268 = vmatprep.subr.mxu0 0.0
    %4269 = vmatpush1.xpose.msra.mxu0 0.0
    %4270 = vmatprep.subr.mxu0 0.0
    %4271 = vmatpush1.xpose.msra.mxu0 0.0
    %4272 = vmatprep.subr.mxu0 0.0
    %4273 = vmatpush1.xpose.msra.mxu0 0.0
    %4274 = vmatprep.subr.mxu0 0.0
    %4275 = vmatpush1.xpose.msra.mxu0 0.0
    %4276 = vmatprep.subr.mxu0 0.0
    %4277 = vmatpush1.xpose.msra.mxu0 0.0
    %4278 = vmatprep.subr.mxu0 0.0
    %4279 = vmatpush1.xpose.msra.mxu0 0.0
    %4280 = vmatprep.subr.mxu0 0.0
    %4281 = vmatpush1.xpose.msra.mxu0 0.0
    %4282 = vmatprep.subr.mxu0 0.0
    %4283 = vmatpush1.xpose.msra.mxu0 0.0
    %4284 = vmatprep.subr.mxu0 0.0
    %4285 = vmatpush1.xpose.msra.mxu0 0.0
    %4286 = vmatprep.subr.mxu0 0.0
    %4287 = vmatpush1.xpose.msra.mxu0 0.0
    %4288 = vmatprep.subr.mxu0 0.0
    %4289 = vmatpush1.xpose.msra.mxu0 0.0
    %4290 = vmatprep.subr.mxu0 0.0
    %4291 = vmatpush1.xpose.msra.mxu0 0.0
    %4292 = vmatprep.subr.mxu0 0.0
    %4293 = vmatpush1.xpose.msra.mxu0 0.0
    %4294 = vmatprep.subr.mxu0 0.0
    %4295 = vmatpush1.xpose.msra.mxu0 0.0
    %4296 = vmatprep.subr.mxu0 0.0
    %4297 = vmatpush1.xpose.msra.mxu0 0.0
    %4298 = vmatprep.mubr.f32.mxu0 0.0
    %4299 = vmatmul.mubr.f32.gmra.mrb[0].mxu0 %v4229
    %v4300 = vpop.f32.mrb[0].mxu0
    %v4301 = vadd.f32 %v132, %v4300
    %v4302 = vpop.f32.mrb[0].mxu0
    %4303 = vdwg.mxu0
    %v4305 = vsel %vm1190, %v3481, 0
    %v4308 = vsel %vm1190, %v3569, 0
    %4310 = vmatprep.subr.mxu0 0.0
    %4311 = vmatpush1.xpose.msra.mxu0 %v4308
    %4312 = vmatprep.subr.mxu0 0.0
    %4313 = vmatpush1.xpose.msra.mxu0 0.0
    %4314 = vmatprep.subr.mxu0 0.0
    %4315 = vmatpush1.xpose.msra.mxu0 0.0
    %4316 = vmatprep.subr.mxu0 0.0
    %4317 = vmatpush1.xpose.msra.mxu0 0.0
    %4318 = vmatprep.subr.mxu0 0.0
    %4319 = vmatpush1.xpose.msra.mxu0 0.0
    %4320 = vmatprep.subr.mxu0 0.0
    %4321 = vmatpush1.xpose.msra.mxu0 0.0
    %4322 = vmatprep.subr.mxu0 0.0
    %4323 = vmatpush1.xpose.msra.mxu0 0.0
    %4324 = vmatprep.subr.mxu0 0.0
    %4325 = vmatpush1.xpose.msra.mxu0 0.0
    %4326 = vmatprep.subr.mxu0 0.0
    %4327 = vmatpush1.xpose.msra.mxu0 0.0
    %4328 = vmatprep.subr.mxu0 0.0
    %4329 = vmatpush1.xpose.msra.mxu0 0.0
    %4330 = vmatprep.subr.mxu0 0.0
    %4331 = vmatpush1.xpose.msra.mxu0 0.0
    %4332 = vmatprep.subr.mxu0 0.0
    %4333 = vmatpush1.xpose.msra.mxu0 0.0
    %4334 = vmatprep.subr.mxu0 0.0
    %4335 = vmatpush1.xpose.msra.mxu0 0.0
    %4336 = vmatprep.subr.mxu0 0.0
    %4337 = vmatpush1.xpose.msra.mxu0 0.0
    %4338 = vmatprep.subr.mxu0 0.0
    %4339 = vmatpush1.xpose.msra.mxu0 0.0
    %4340 = vmatprep.subr.mxu0 0.0
    %4341 = vmatpush1.xpose.msra.mxu0 0.0
    %4342 = vmatprep.subr.mxu0 0.0
    %4343 = vmatpush1.xpose.msra.mxu0 0.0
    %4344 = vmatprep.subr.mxu0 0.0
    %4345 = vmatpush1.xpose.msra.mxu0 0.0
    %4346 = vmatprep.subr.mxu0 0.0
    %4347 = vmatpush1.xpose.msra.mxu0 0.0
    %4348 = vmatprep.subr.mxu0 0.0
    %4349 = vmatpush1.xpose.msra.mxu0 0.0
    %4350 = vmatprep.subr.mxu0 0.0
    %4351 = vmatpush1.xpose.msra.mxu0 0.0
    %4352 = vmatprep.subr.mxu0 0.0
    %4353 = vmatpush1.xpose.msra.mxu0 0.0
    %4354 = vmatprep.subr.mxu0 0.0
    %4355 = vmatpush1.xpose.msra.mxu0 0.0
    %4356 = vmatprep.subr.mxu0 0.0
    %4357 = vmatpush1.xpose.msra.mxu0 0.0
    %4358 = vmatprep.subr.mxu0 0.0
    %4359 = vmatpush1.xpose.msra.mxu0 0.0
    %4360 = vmatprep.subr.mxu0 0.0
    %4361 = vmatpush1.xpose.msra.mxu0 0.0
    %4362 = vmatprep.subr.mxu0 0.0
    %4363 = vmatpush1.xpose.msra.mxu0 0.0
    %4364 = vmatprep.subr.mxu0 0.0
    %4365 = vmatpush1.xpose.msra.mxu0 0.0
    %4366 = vmatprep.subr.mxu0 0.0
    %4367 = vmatpush1.xpose.msra.mxu0 0.0
    %4368 = vmatprep.subr.mxu0 0.0
    %4369 = vmatpush1.xpose.msra.mxu0 0.0
    %4370 = vmatprep.subr.mxu0 0.0
    %4371 = vmatpush1.xpose.msra.mxu0 0.0
    %4372 = vmatprep.subr.mxu0 0.0
    %4373 = vmatpush1.xpose.msra.mxu0 0.0
    %4374 = vmatprep.mubr.f32.mxu0 0.0
    %4375 = vmatmul.mubr.f32.gmra.mrb[0].mxu0 %v4305
    %v4376 = vpop.f32.mrb[0].mxu0
    %v4377 = vadd.f32 %v132, %v4376
    %v4378 = vpop.f32.mrb[0].mxu0
    %4379 = vdwg.mxu0
    %v4381 = vsel %vm1190, %v3740, 0
    %v4384 = vsel %vm1190, %v3828, 0
    %4386 = vmatprep.subr.mxu0 0.0
    %4387 = vmatpush1.xpose.msra.mxu0 %v4384
    %4388 = vmatprep.subr.mxu0 0.0
    %4389 = vmatpush1.xpose.msra.mxu0 0.0
    %4390 = vmatprep.subr.mxu0 0.0
    %4391 = vmatpush1.xpose.msra.mxu0 0.0
    %4392 = vmatprep.subr.mxu0 0.0
    %4393 = vmatpush1.xpose.msra.mxu0 0.0
    %4394 = vmatprep.subr.mxu0 0.0
    %4395 = vmatpush1.xpose.msra.mxu0 0.0
    %4396 = vmatprep.subr.mxu0 0.0
    %4397 = vmatpush1.xpose.msra.mxu0 0.0
    %4398 = vmatprep.subr.mxu0 0.0
    %4399 = vmatpush1.xpose.msra.mxu0 0.0
    %4400 = vmatprep.subr.mxu0 0.0
    %4401 = vmatpush1.xpose.msra.mxu0 0.0
    %4402 = vmatprep.subr.mxu0 0.0
    %4403 = vmatpush1.xpose.msra.mxu0 0.0
    %4404 = vmatprep.subr.mxu0 0.0
    %4405 = vmatpush1.xpose.msra.mxu0 0.0
    %4406 = vmatprep.subr.mxu0 0.0
    %4407 = vmatpush1.xpose.msra.mxu0 0.0
    %4408 = vmatprep.subr.mxu0 0.0
    %4409 = vmatpush1.xpose.msra.mxu0 0.0
    %4410 = vmatprep.subr.mxu0 0.0
    %4411 = vmatpush1.xpose.msra.mxu0 0.0
    %4412 = vmatprep.subr.mxu0 0.0
    %4413 = vmatpush1.xpose.msra.mxu0 0.0
    %4414 = vmatprep.subr.mxu0 0.0
    %4415 = vmatpush1.xpose.msra.mxu0 0.0
    %4416 = vmatprep.subr.mxu0 0.0
    %4417 = vmatpush1.xpose.msra.mxu0 0.0
    %4418 = vmatprep.subr.mxu0 0.0
    %4419 = vmatpush1.xpose.msra.mxu0 0.0
    %4420 = vmatprep.subr.mxu0 0.0
    %4421 = vmatpush1.xpose.msra.mxu0 0.0
    %4422 = vmatprep.subr.mxu0 0.0
    %4423 = vmatpush1.xpose.msra.mxu0 0.0
    %4424 = vmatprep.subr.mxu0 0.0
    %4425 = vmatpush1.xpose.msra.mxu0 0.0
    %4426 = vmatprep.subr.mxu0 0.0
    %4427 = vmatpush1.xpose.msra.mxu0 0.0
    %4428 = vmatprep.subr.mxu0 0.0
    %4429 = vmatpush1.xpose.msra.mxu0 0.0
    %4430 = vmatprep.subr.mxu0 0.0
    %4431 = vmatpush1.xpose.msra.mxu0 0.0
    %4432 = vmatprep.subr.mxu0 0.0
    %4433 = vmatpush1.xpose.msra.mxu0 0.0
    %4434 = vmatprep.subr.mxu0 0.0
    %4435 = vmatpush1.xpose.msra.mxu0 0.0
    %4436 = vmatprep.subr.mxu0 0.0
    %4437 = vmatpush1.xpose.msra.mxu0 0.0
    %4438 = vmatprep.subr.mxu0 0.0
    %4439 = vmatpush1.xpose.msra.mxu0 0.0
    %4440 = vmatprep.subr.mxu0 0.0
    %4441 = vmatpush1.xpose.msra.mxu0 0.0
    %4442 = vmatprep.subr.mxu0 0.0
    %4443 = vmatpush1.xpose.msra.mxu0 0.0
    %4444 = vmatprep.subr.mxu0 0.0
    %4445 = vmatpush1.xpose.msra.mxu0 0.0
    %4446 = vmatprep.subr.mxu0 0.0
    %4447 = vmatpush1.xpose.msra.mxu0 0.0
    %4448 = vmatprep.subr.mxu0 0.0
    %4449 = vmatpush1.xpose.msra.mxu0 0.0
    %4450 = vmatprep.mubr.f32.mxu0 0.0
    %4451 = vmatmul.mubr.f32.gmra.mrb[0].mxu0 %v4381
    %v4452 = vpop.f32.mrb[0].mxu0
    %v4453 = vadd.f32 %v132, %v4452
    %v4454 = vpop.f32.mrb[0].mxu0
    %4455 = vdwg.mxu0
    %v4457 = vsel %vm1190, %v3745, 0
    %v4460 = vsel %vm1190, %v3833, 0
    %4462 = vmatprep.subr.mxu0 0.0
    %4463 = vmatpush1.xpose.msra.mxu0 %v4460
    %4464 = vmatprep.subr.mxu0 0.0
    %4465 = vmatpush1.xpose.msra.mxu0 0.0
    %4466 = vmatprep.subr.mxu0 0.0
    %4467 = vmatpush1.xpose.msra.mxu0 0.0
    %4468 = vmatprep.subr.mxu0 0.0
    %4469 = vmatpush1.xpose.msra.mxu0 0.0
    %4470 = vmatprep.subr.mxu0 0.0
    %4471 = vmatpush1.xpose.msra.mxu0 0.0
    %4472 = vmatprep.subr.mxu0 0.0
    %4473 = vmatpush1.xpose.msra.mxu0 0.0
    %4474 = vmatprep.subr.mxu0 0.0
    %4475 = vmatpush1.xpose.msra.mxu0 0.0
    %4476 = vmatprep.subr.mxu0 0.0
    %4477 = vmatpush1.xpose.msra.mxu0 0.0
    %4478 = vmatprep.subr.mxu0 0.0
    %4479 = vmatpush1.xpose.msra.mxu0 0.0
    %4480 = vmatprep.subr.mxu0 0.0
    %4481 = vmatpush1.xpose.msra.mxu0 0.0
    %4482 = vmatprep.subr.mxu0 0.0
    %4483 = vmatpush1.xpose.msra.mxu0 0.0
    %4484 = vmatprep.subr.mxu0 0.0
    %4485 = vmatpush1.xpose.msra.mxu0 0.0
    %4486 = vmatprep.subr.mxu0 0.0
    %4487 = vmatpush1.xpose.msra.mxu0 0.0
    %4488 = vmatprep.subr.mxu0 0.0
    %4489 = vmatpush1.xpose.msra.mxu0 0.0
    %4490 = vmatprep.subr.mxu0 0.0
    %4491 = vmatpush1.xpose.msra.mxu0 0.0
    %4492 = vmatprep.subr.mxu0 0.0
    %4493 = vmatpush1.xpose.msra.mxu0 0.0
    %4494 = vmatprep.subr.mxu0 0.0
    %4495 = vmatpush1.xpose.msra.mxu0 0.0
    %4496 = vmatprep.subr.mxu0 0.0
    %4497 = vmatpush1.xpose.msra.mxu0 0.0
    %4498 = vmatprep.subr.mxu0 0.0
    %4499 = vmatpush1.xpose.msra.mxu0 0.0
    %4500 = vmatprep.subr.mxu0 0.0
    %4501 = vmatpush1.xpose.msra.mxu0 0.0
    %4502 = vmatprep.subr.mxu0 0.0
    %4503 = vmatpush1.xpose.msra.mxu0 0.0
    %4504 = vmatprep.subr.mxu0 0.0
    %4505 = vmatpush1.xpose.msra.mxu0 0.0
    %4506 = vmatprep.subr.mxu0 0.0
    %4507 = vmatpush1.xpose.msra.mxu0 0.0
    %4508 = vmatprep.subr.mxu0 0.0
    %4509 = vmatpush1.xpose.msra.mxu0 0.0
    %4510 = vmatprep.subr.mxu0 0.0
    %4511 = vmatpush1.xpose.msra.mxu0 0.0
    %4512 = vmatprep.subr.mxu0 0.0
    %4513 = vmatpush1.xpose.msra.mxu0 0.0
    %4514 = vmatprep.subr.mxu0 0.0
    %4515 = vmatpush1.xpose.msra.mxu0 0.0
    %4516 = vmatprep.subr.mxu0 0.0
    %4517 = vmatpush1.xpose.msra.mxu0 0.0
    %4518 = vmatprep.subr.mxu0 0.0
    %4519 = vmatpush1.xpose.msra.mxu0 0.0
    %4520 = vmatprep.subr.mxu0 0.0
    %4521 = vmatpush1.xpose.msra.mxu0 0.0
    %4522 = vmatprep.subr.mxu0 0.0
    %4523 = vmatpush1.xpose.msra.mxu0 0.0
    %4524 = vmatprep.subr.mxu0 0.0
    %4525 = vmatpush1.xpose.msra.mxu0 0.0
    %4526 = vmatprep.mubr.f32.mxu0 0.0
    %4527 = vmatmul.mubr.f32.gmra.mrb[0].mxu0 %v4457
    %v4528 = vpop.f32.mrb[0].mxu0
    %v4529 = vadd.f32 %v132, %v4528
    %v4530 = vpop.f32.mrb[0].mxu0
    %4531 = vdwg.mxu0
    %v4532 = vsel %vm1190, %v3997, -inf
    %4533 = vmax.xlane.f32.xlu0 %v4532
    %v4534 = vpop.xlane.xlu0 %4533
    %v4535 = vsel %vm1190, %v4073, -inf
    %4536 = vmax.xlane.f32.xlu0 %v4535
    %v4537 = vpop.xlane.xlu0 %4536
    %v4538 = vsel %vm1190, %v4149, -inf
    %4539 = vmax.xlane.f32.xlu0 %v4538
    %v4540 = vpop.xlane.xlu0 %4539
    %v4541 = vsel %vm1190, %v4225, -inf
    %4542 = vmax.xlane.f32.xlu0 %v4541
    %v4543 = vpop.xlane.xlu0 %4542
    %v4544 = vsel %vm1190, %v4301, -inf
    %4545 = vmax.xlane.f32.xlu0 %v4544
    %v4546 = vpop.xlane.xlu0 %4545
    %v4547 = vsel %vm1190, %v4377, -inf
    %4548 = vmax.xlane.f32.xlu0 %v4547
    %v4549 = vpop.xlane.xlu0 %4548
    %v4550 = vsel %vm1190, %v4453, -inf
    %4551 = vmax.xlane.f32.xlu0 %v4550
    %v4552 = vpop.xlane.xlu0 %4551
    %v4553 = vsel %vm1190, %v4529, -inf
    %4554 = vmax.xlane.f32.xlu0 %v4553
    %v4555 = vpop.xlane.xlu0 %4554
    %v4556 = vsub.f32 %v3997, %v4534
    %v4557 = vsub.f32 %v4073, %v4537
    %v4558 = vsub.f32 %v4149, %v4540
    %v4559 = vsub.f32 %v4225, %v4543
    %v4560 = vsub.f32 %v4301, %v4546
    %v4561 = vsub.f32 %v4377, %v4549
    %v4562 = vsub.f32 %v4453, %v4552
    %v4563 = vsub.f32 %v4529, %v4555
    %v4564 = vmul.f32 %v4556, 1.442695
    %v4565 = vpow.pop %v4564
    %v4566 = vmul.f32 %v4557, 1.442695
    %v4567 = vpow.pop %v4566
    %v4568 = vmul.f32 %v4558, 1.442695
    %v4569 = vpow.pop %v4568
    %v4570 = vmul.f32 %v4559, 1.442695
    %v4571 = vpow.pop %v4570
    %v4572 = vmul.f32 %v4560, 1.442695
    %v4573 = vpow.pop %v4572
    %v4574 = vmul.f32 %v4561, 1.442695
    %v4575 = vpow.pop %v4574
    %v4576 = vmul.f32 %v4562, 1.442695
    %v4577 = vpow.pop %v4576
    %v4578 = vmul.f32 %v4563, 1.442695
    %v4579 = vpow.pop %v4578
    %v4580 = vsel %vm1190, %v4565, 0.0
    %4581 = vadd.xlane.f32.xlu0 %v4580
    %v4582 = vpop.xlane.xlu0 %4581
    %v4583 = vsel %vm1190, %v4567, 0.0
    %4584 = vadd.xlane.f32.xlu0 %v4583
    %v4585 = vpop.xlane.xlu0 %4584
    %v4586 = vsel %vm1190, %v4569, 0.0
    %4587 = vadd.xlane.f32.xlu0 %v4586
    %v4588 = vpop.xlane.xlu0 %4587
    %v4589 = vsel %vm1190, %v4571, 0.0
    %4590 = vadd.xlane.f32.xlu0 %v4589
    %v4591 = vpop.xlane.xlu0 %4590
    %v4592 = vsel %vm1190, %v4573, 0.0
    %4593 = vadd.xlane.f32.xlu0 %v4592
    %v4594 = vpop.xlane.xlu0 %4593
    %v4595 = vsel %vm1190, %v4575, 0.0
    %4596 = vadd.xlane.f32.xlu0 %v4595
    %v4597 = vpop.xlane.xlu0 %4596
    %v4598 = vsel %vm1190, %v4577, 0.0
    %4599 = vadd.xlane.f32.xlu0 %v4598
    %v4600 = vpop.xlane.xlu0 %4599
    %v4601 = vsel %vm1190, %v4579, 0.0
    %4602 = vadd.xlane.f32.xlu0 %v4601
    %v4603 = vpop.xlane.xlu0 %4602
    %v4604 = vrcp.pop %v4582
    %v4605 = vrcp.pop %v4585
    %v4606 = vrcp.pop %v4588
    %v4607 = vrcp.pop %v4591
    %v4608 = vrcp.pop %v4594
    %v4609 = vrcp.pop %v4597
    %v4610 = vrcp.pop %v4600
    %v4611 = vrcp.pop %v4603
    %v4612 = vmul.f32 %v4565, %v4604
    %v4613 = vmul.f32 %v4567, %v4605
    %v4614 = vmul.f32 %v4569, %v4606
    %v4615 = vmul.f32 %v4571, %v4607
    %v4616 = vmul.f32 %v4573, %v4608
    %v4617 = vmul.f32 %v4575, %v4609
    %v4618 = vmul.f32 %v4577, %v4610
    %v4619 = vmul.f32 %v4579, %v4611
    %v4621 = vsel %vm1190, %v4612, 0
    %4623 = vmatprep.subr.mxu0 0.0
    %4624 = vmatpush1.msra.mxu0 %v3124
    %4625 = vmatprep.subr.mxu0 0.0
    %4626 = vmatpush1.msra.mxu0 0.0
    %4627 = vmatprep.subr.mxu0 0.0
    %4628 = vmatpush1.msra.mxu0 0.0
    %4629 = vmatprep.subr.mxu0 0.0
    %4630 = vmatpush1.msra.mxu0 0.0
    %4631 = vmatprep.subr.mxu0 0.0
    %4632 = vmatpush1.msra.mxu0 0.0
    %4633 = vmatprep.subr.mxu0 0.0
    %4634 = vmatpush1.msra.mxu0 0.0
    %4635 = vmatprep.subr.mxu0 0.0
    %4636 = vmatpush1.msra.mxu0 0.0
    %4637 = vmatprep.subr.mxu0 0.0
    %4638 = vmatpush1.msra.mxu0 0.0
    %4639 = vmatprep.subr.mxu0 0.0
    %4640 = vmatpush1.msra.mxu0 0.0
    %4641 = vmatprep.subr.mxu0 0.0
    %4642 = vmatpush1.msra.mxu0 0.0
    %4643 = vmatprep.subr.mxu0 0.0
    %4644 = vmatpush1.msra.mxu0 0.0
    %4645 = vmatprep.subr.mxu0 0.0
    %4646 = vmatpush1.msra.mxu0 0.0
    %4647 = vmatprep.subr.mxu0 0.0
    %4648 = vmatpush1.msra.mxu0 0.0
    %4649 = vmatprep.subr.mxu0 0.0
    %4650 = vmatpush1.msra.mxu0 0.0
    %4651 = vmatprep.subr.mxu0 0.0
    %4652 = vmatpush1.msra.mxu0 0.0
    %4653 = vmatprep.subr.mxu0 0.0
    %4654 = vmatpush1.msra.mxu0 0.0
    %4655 = vmatprep.subr.mxu0 0.0
    %4656 = vmatpush1.msra.mxu0 0.0
    %4657 = vmatprep.subr.mxu0 0.0
    %4658 = vmatpush1.msra.mxu0 0.0
    %4659 = vmatprep.subr.mxu0 0.0
    %4660 = vmatpush1.msra.mxu0 0.0
    %4661 = vmatprep.subr.mxu0 0.0
    %4662 = vmatpush1.msra.mxu0 0.0
    %4663 = vmatprep.subr.mxu0 0.0
    %4664 = vmatpush1.msra.mxu0 0.0
    %4665 = vmatprep.subr.mxu0 0.0
    %4666 = vmatpush1.msra.mxu0 0.0
    %4667 = vmatprep.subr.mxu0 0.0
    %4668 = vmatpush1.msra.mxu0 0.0
    %4669 = vmatprep.subr.mxu0 0.0
    %4670 = vmatpush1.msra.mxu0 0.0
    %4671 = vmatprep.subr.mxu0 0.0
    %4672 = vmatpush1.msra.mxu0 0.0
    %4673 = vmatprep.subr.mxu0 0.0
    %4674 = vmatpush1.msra.mxu0 0.0
    %4675 = vmatprep.subr.mxu0 0.0
    %4676 = vmatpush1.msra.mxu0 0.0
    %4677 = vmatprep.subr.mxu0 0.0
    %4678 = vmatpush1.msra.mxu0 0.0
    %4679 = vmatprep.subr.mxu0 0.0
    %4680 = vmatpush1.msra.mxu0 0.0
    %4681 = vmatprep.subr.mxu0 0.0
    %4682 = vmatpush1.msra.mxu0 0.0
    %4683 = vmatprep.subr.mxu0 0.0
    %4684 = vmatpush1.msra.mxu0 0.0
    %4685 = vmatprep.subr.mxu0 0.0
    %4686 = vmatpush1.msra.mxu0 0.0
    %4687 = vmatprep.mubr.f32.mxu0 0.0
    %4688 = vmatmul.mubr.f32.gmra.mrb[0].mxu0 %v4621
    %v4689 = vpop.f32.mrb[0].mxu0
    %v4690 = vadd.f32 0.0, %v4689
    %v4691 = vpop.f32.mrb[0].mxu0
    %4692 = vdwg.mxu0
    %v4694 = vsel %vm1190, %v4613, 0
    %4696 = vmatprep.subr.mxu0 0.0
    %4697 = vmatpush1.msra.mxu0 %v3129
    %4698 = vmatprep.subr.mxu0 0.0
    %4699 = vmatpush1.msra.mxu0 0.0
    %4700 = vmatprep.subr.mxu0 0.0
    %4701 = vmatpush1.msra.mxu0 0.0
    %4702 = vmatprep.subr.mxu0 0.0
    %4703 = vmatpush1.msra.mxu0 0.0
    %4704 = vmatprep.subr.mxu0 0.0
    %4705 = vmatpush1.msra.mxu0 0.0
    %4706 = vmatprep.subr.mxu0 0.0
    %4707 = vmatpush1.msra.mxu0 0.0
    %4708 = vmatprep.subr.mxu0 0.0
    %4709 = vmatpush1.msra.mxu0 0.0
    %4710 = vmatprep.subr.mxu0 0.0
    %4711 = vmatpush1.msra.mxu0 0.0
    %4712 = vmatprep.subr.mxu0 0.0
    %4713 = vmatpush1.msra.mxu0 0.0
    %4714 = vmatprep.subr.mxu0 0.0
    %4715 = vmatpush1.msra.mxu0 0.0
    %4716 = vmatprep.subr.mxu0 0.0
    %4717 = vmatpush1.msra.mxu0 0.0
    %4718 = vmatprep.subr.mxu0 0.0
    %4719 = vmatpush1.msra.mxu0 0.0
    %4720 = vmatprep.subr.mxu0 0.0
    %4721 = vmatpush1.msra.mxu0 0.0
    %4722 = vmatprep.subr.mxu0 0.0
    %4723 = vmatpush1.msra.mxu0 0.0
    %4724 = vmatprep.subr.mxu0 0.0
    %4725 = vmatpush1.msra.mxu0 0.0
    %4726 = vmatprep.subr.mxu0 0.0
    %4727 = vmatpush1.msra.mxu0 0.0
    %4728 = vmatprep.subr.mxu0 0.0
    %4729 = vmatpush1.msra.mxu0 0.0
    %4730 = vmatprep.subr.mxu0 0.0
    %4731 = vmatpush1.msra.mxu0 0.0
    %4732 = vmatprep.subr.mxu0 0.0
    %4733 = vmatpush1.msra.mxu0 0.0
    %4734 = vmatprep.subr.mxu0 0.0
    %4735 = vmatpush1.msra.mxu0 0.0
    %4736 = vmatprep.subr.mxu0 0.0
    %4737 = vmatpush1.msra.mxu0 0.0
    %4738 = vmatprep.subr.mxu0 0.0
    %4739 = vmatpush1.msra.mxu0 0.0
    %4740 = vmatprep.subr.mxu0 0.0
    %4741 = vmatpush1.msra.mxu0 0.0
    %4742 = vmatprep.subr.mxu0 0.0
    %4743 = vmatpush1.msra.mxu0 0.0
    %4744 = vmatprep.subr.mxu0 0.0
    %4745 = vmatpush1.msra.mxu0 0.0
    %4746 = vmatprep.subr.mxu0 0.0
    %4747 = vmatpush1.msra.mxu0 0.0
    %4748 = vmatprep.subr.mxu0 0.0
    %4749 = vmatpush1.msra.mxu0 0.0
    %4750 = vmatprep.subr.mxu0 0.0
    %4751 = vmatpush1.msra.mxu0 0.0
    %4752 = vmatprep.subr.mxu0 0.0
    %4753 = vmatpush1.msra.mxu0 0.0
    %4754 = vmatprep.subr.mxu0 0.0
    %4755 = vmatpush1.msra.mxu0 0.0
    %4756 = vmatprep.subr.mxu0 0.0
    %4757 = vmatpush1.msra.mxu0 0.0
    %4758 = vmatprep.subr.mxu0 0.0
    %4759 = vmatpush1.msra.mxu0 0.0
    %4760 = vmatprep.mubr.f32.mxu0 0.0
    %4761 = vmatmul.mubr.f32.gmra.mrb[0].mxu0 %v4694
    %v4762 = vpop.f32.mrb[0].mxu0
    %v4763 = vadd.f32 0.0, %v4762
    %v4764 = vpop.f32.mrb[0].mxu0
    %4765 = vdwg.mxu0
    %v4767 = vsel %vm1190, %v4614, 0
    %4769 = vmatprep.subr.mxu0 0.0
    %4770 = vmatpush1.msra.mxu0 %v3388
    %4771 = vmatprep.subr.mxu0 0.0
    %4772 = vmatpush1.msra.mxu0 0.0
    %4773 = vmatprep.subr.mxu0 0.0
    %4774 = vmatpush1.msra.mxu0 0.0
    %4775 = vmatprep.subr.mxu0 0.0
    %4776 = vmatpush1.msra.mxu0 0.0
    %4777 = vmatprep.subr.mxu0 0.0
    %4778 = vmatpush1.msra.mxu0 0.0
    %4779 = vmatprep.subr.mxu0 0.0
    %4780 = vmatpush1.msra.mxu0 0.0
    %4781 = vmatprep.subr.mxu0 0.0
    %4782 = vmatpush1.msra.mxu0 0.0
    %4783 = vmatprep.subr.mxu0 0.0
    %4784 = vmatpush1.msra.mxu0 0.0
    %4785 = vmatprep.subr.mxu0 0.0
    %4786 = vmatpush1.msra.mxu0 0.0
    %4787 = vmatprep.subr.mxu0 0.0
    %4788 = vmatpush1.msra.mxu0 0.0
    %4789 = vmatprep.subr.mxu0 0.0
    %4790 = vmatpush1.msra.mxu0 0.0
    %4791 = vmatprep.subr.mxu0 0.0
    %4792 = vmatpush1.msra.mxu0 0.0
    %4793 = vmatprep.subr.mxu0 0.0
    %4794 = vmatpush1.msra.mxu0 0.0
    %4795 = vmatprep.subr.mxu0 0.0
    %4796 = vmatpush1.msra.mxu0 0.0
    %4797 = vmatprep.subr.mxu0 0.0
    %4798 = vmatpush1.msra.mxu0 0.0
    %4799 = vmatprep.subr.mxu0 0.0
    %4800 = vmatpush1.msra.mxu0 0.0
    %4801 = vmatprep.subr.mxu0 0.0
    %4802 = vmatpush1.msra.mxu0 0.0
    %4803 = vmatprep.subr.mxu0 0.0
    %4804 = vmatpush1.msra.mxu0 0.0
    %4805 = vmatprep.subr.mxu0 0.0
    %4806 = vmatpush1.msra.mxu0 0.0
    %4807 = vmatprep.subr.mxu0 0.0
    %4808 = vmatpush1.msra.mxu0 0.0
    %4809 = vmatprep.subr.mxu0 0.0
    %4810 = vmatpush1.msra.mxu0 0.0
    %4811 = vmatprep.subr.mxu0 0.0
    %4812 = vmatpush1.msra.mxu0 0.0
    %4813 = vmatprep.subr.mxu0 0.0
    %4814 = vmatpush1.msra.mxu0 0.0
    %4815 = vmatprep.subr.mxu0 0.0
    %4816 = vmatpush1.msra.mxu0 0.0
    %4817 = vmatprep.subr.mxu0 0.0
    %4818 = vmatpush1.msra.mxu0 0.0
    %4819 = vmatprep.subr.mxu0 0.0
    %4820 = vmatpush1.msra.mxu0 0.0
    %4821 = vmatprep.subr.mxu0 0.0
    %4822 = vmatpush1.msra.mxu0 0.0
    %4823 = vmatprep.subr.mxu0 0.0
    %4824 = vmatpush1.msra.mxu0 0.0
    %4825 = vmatprep.subr.mxu0 0.0
    %4826 = vmatpush1.msra.mxu0 0.0
    %4827 = vmatprep.subr.mxu0 0.0
    %4828 = vmatpush1.msra.mxu0 0.0
    %4829 = vmatprep.subr.mxu0 0.0
    %4830 = vmatpush1.msra.mxu0 0.0
    %4831 = vmatprep.subr.mxu0 0.0
    %4832 = vmatpush1.msra.mxu0 0.0
    %4833 = vmatprep.mubr.f32.mxu0 0.0
    %4834 = vmatmul.mubr.f32.gmra.mrb[0].mxu0 %v4767
    %v4835 = vpop.f32.mrb[0].mxu0
    %v4836 = vadd.f32 0.0, %v4835
    %v4837 = vpop.f32.mrb[0].mxu0
    %4838 = vdwg.mxu0
    %v4840 = vsel %vm1190, %v4615, 0
    %4842 = vmatprep.subr.mxu0 0.0
    %4843 = vmatpush1.msra.mxu0 %v3393
    %4844 = vmatprep.subr.mxu0 0.0
    %4845 = vmatpush1.msra.mxu0 0.0
    %4846 = vmatprep.subr.mxu0 0.0
    %4847 = vmatpush1.msra.mxu0 0.0
    %4848 = vmatprep.subr.mxu0 0.0
    %4849 = vmatpush1.msra.mxu0 0.0
    %4850 = vmatprep.subr.mxu0 0.0
    %4851 = vmatpush1.msra.mxu0 0.0
    %4852 = vmatprep.subr.mxu0 0.0
    %4853 = vmatpush1.msra.mxu0 0.0
    %4854 = vmatprep.subr.mxu0 0.0
    %4855 = vmatpush1.msra.mxu0 0.0
    %4856 = vmatprep.subr.mxu0 0.0
    %4857 = vmatpush1.msra.mxu0 0.0
    %4858 = vmatprep.subr.mxu0 0.0
    %4859 = vmatpush1.msra.mxu0 0.0
    %4860 = vmatprep.subr.mxu0 0.0
    %4861 = vmatpush1.msra.mxu0 0.0
    %4862 = vmatprep.subr.mxu0 0.0
    %4863 = vmatpush1.msra.mxu0 0.0
    %4864 = vmatprep.subr.mxu0 0.0
    %4865 = vmatpush1.msra.mxu0 0.0
    %4866 = vmatprep.subr.mxu0 0.0
    %4867 = vmatpush1.msra.mxu0 0.0
    %4868 = vmatprep.subr.mxu0 0.0
    %4869 = vmatpush1.msra.mxu0 0.0
    %4870 = vmatprep.subr.mxu0 0.0
    %4871 = vmatpush1.msra.mxu0 0.0
    %4872 = vmatprep.subr.mxu0 0.0
    %4873 = vmatpush1.msra.mxu0 0.0
    %4874 = vmatprep.subr.mxu0 0.0
    %4875 = vmatpush1.msra.mxu0 0.0
    %4876 = vmatprep.subr.mxu0 0.0
    %4877 = vmatpush1.msra.mxu0 0.0
    %4878 = vmatprep.subr.mxu0 0.0
    %4879 = vmatpush1.msra.mxu0 0.0
    %4880 = vmatprep.subr.mxu0 0.0
    %4881 = vmatpush1.msra.mxu0 0.0
    %4882 = vmatprep.subr.mxu0 0.0
    %4883 = vmatpush1.msra.mxu0 0.0
    %4884 = vmatprep.subr.mxu0 0.0
    %4885 = vmatpush1.msra.mxu0 0.0
    %4886 = vmatprep.subr.mxu0 0.0
    %4887 = vmatpush1.msra.mxu0 0.0
    %4888 = vmatprep.subr.mxu0 0.0
    %4889 = vmatpush1.msra.mxu0 0.0
    %4890 = vmatprep.subr.mxu0 0.0
    %4891 = vmatpush1.msra.mxu0 0.0
    %4892 = vmatprep.subr.mxu0 0.0
    %4893 = vmatpush1.msra.mxu0 0.0
    %4894 = vmatprep.subr.mxu0 0.0
    %4895 = vmatpush1.msra.mxu0 0.0
    %4896 = vmatprep.subr.mxu0 0.0
    %4897 = vmatpush1.msra.mxu0 0.0
    %4898 = vmatprep.subr.mxu0 0.0
    %4899 = vmatpush1.msra.mxu0 0.0
    %4900 = vmatprep.subr.mxu0 0.0
    %4901 = vmatpush1.msra.mxu0 0.0
    %4902 = vmatprep.subr.mxu0 0.0
    %4903 = vmatpush1.msra.mxu0 0.0
    %4904 = vmatprep.subr.mxu0 0.0
    %4905 = vmatpush1.msra.mxu0 0.0
    %4906 = vmatprep.mubr.f32.mxu0 0.0
    %4907 = vmatmul.mubr.f32.gmra.mrb[0].mxu0 %v4840
    %v4908 = vpop.f32.mrb[0].mxu0
    %v4909 = vadd.f32 0.0, %v4908
    %v4910 = vpop.f32.mrb[0].mxu0
    %4911 = vdwg.mxu0
    %v4913 = vsel %vm1190, %v4616, 0
    %4915 = vmatprep.subr.mxu0 0.0
    %4916 = vmatpush1.msra.mxu0 %v3652
    %4917 = vmatprep.subr.mxu0 0.0
    %4918 = vmatpush1.msra.mxu0 0.0
    %4919 = vmatprep.subr.mxu0 0.0
    %4920 = vmatpush1.msra.mxu0 0.0
    %4921 = vmatprep.subr.mxu0 0.0
    %4922 = vmatpush1.msra.mxu0 0.0
    %4923 = vmatprep.subr.mxu0 0.0
    %4924 = vmatpush1.msra.mxu0 0.0
    %4925 = vmatprep.subr.mxu0 0.0
    %4926 = vmatpush1.msra.mxu0 0.0
    %4927 = vmatprep.subr.mxu0 0.0
    %4928 = vmatpush1.msra.mxu0 0.0
    %4929 = vmatprep.subr.mxu0 0.0
    %4930 = vmatpush1.msra.mxu0 0.0
    %4931 = vmatprep.subr.mxu0 0.0
    %4932 = vmatpush1.msra.mxu0 0.0
    %4933 = vmatprep.subr.mxu0 0.0
    %4934 = vmatpush1.msra.mxu0 0.0
    %4935 = vmatprep.subr.mxu0 0.0
    %4936 = vmatpush1.msra.mxu0 0.0
    %4937 = vmatprep.subr.mxu0 0.0
    %4938 = vmatpush1.msra.mxu0 0.0
    %4939 = vmatprep.subr.mxu0 0.0
    %4940 = vmatpush1.msra.mxu0 0.0
    %4941 = vmatprep.subr.mxu0 0.0
    %4942 = vmatpush1.msra.mxu0 0.0
    %4943 = vmatprep.subr.mxu0 0.0
    %4944 = vmatpush1.msra.mxu0 0.0
    %4945 = vmatprep.subr.mxu0 0.0
    %4946 = vmatpush1.msra.mxu0 0.0
    %4947 = vmatprep.subr.mxu0 0.0
    %4948 = vmatpush1.msra.mxu0 0.0
    %4949 = vmatprep.subr.mxu0 0.0
    %4950 = vmatpush1.msra.mxu0 0.0
    %4951 = vmatprep.subr.mxu0 0.0
    %4952 = vmatpush1.msra.mxu0 0.0
    %4953 = vmatprep.subr.mxu0 0.0
    %4954 = vmatpush1.msra.mxu0 0.0
    %4955 = vmatprep.subr.mxu0 0.0
    %4956 = vmatpush1.msra.mxu0 0.0
    %4957 = vmatprep.subr.mxu0 0.0
    %4958 = vmatpush1.msra.mxu0 0.0
    %4959 = vmatprep.subr.mxu0 0.0
    %4960 = vmatpush1.msra.mxu0 0.0
    %4961 = vmatprep.subr.mxu0 0.0
    %4962 = vmatpush1.msra.mxu0 0.0
    %4963 = vmatprep.subr.mxu0 0.0
    %4964 = vmatpush1.msra.mxu0 0.0
    %4965 = vmatprep.subr.mxu0 0.0
    %4966 = vmatpush1.msra.mxu0 0.0
    %4967 = vmatprep.subr.mxu0 0.0
    %4968 = vmatpush1.msra.mxu0 0.0
    %4969 = vmatprep.subr.mxu0 0.0
    %4970 = vmatpush1.msra.mxu0 0.0
    %4971 = vmatprep.subr.mxu0 0.0
    %4972 = vmatpush1.msra.mxu0 0.0
    %4973 = vmatprep.subr.mxu0 0.0
    %4974 = vmatpush1.msra.mxu0 0.0
    %4975 = vmatprep.subr.mxu0 0.0
    %4976 = vmatpush1.msra.mxu0 0.0
    %4977 = vmatprep.subr.mxu0 0.0
    %4978 = vmatpush1.msra.mxu0 0.0
    %4979 = vmatprep.mubr.f32.mxu0 0.0
    %4980 = vmatmul.mubr.f32.gmra.mrb[0].mxu0 %v4913
    %v4981 = vpop.f32.mrb[0].mxu0
    %v4982 = vadd.f32 0.0, %v4981
    %v4983 = vpop.f32.mrb[0].mxu0
    %4984 = vdwg.mxu0
    %v4986 = vsel %vm1190, %v4617, 0
    %4988 = vmatprep.subr.mxu0 0.0
    %4989 = vmatpush1.msra.mxu0 %v3657
    %4990 = vmatprep.subr.mxu0 0.0
    %4991 = vmatpush1.msra.mxu0 0.0
    %4992 = vmatprep.subr.mxu0 0.0
    %4993 = vmatpush1.msra.mxu0 0.0
    %4994 = vmatprep.subr.mxu0 0.0
    %4995 = vmatpush1.msra.mxu0 0.0
    %4996 = vmatprep.subr.mxu0 0.0
    %4997 = vmatpush1.msra.mxu0 0.0
    %4998 = vmatprep.subr.mxu0 0.0
    %4999 = vmatpush1.msra.mxu0 0.0
    %5000 = vmatprep.subr.mxu0 0.0
    %5001 = vmatpush1.msra.mxu0 0.0
    %5002 = vmatprep.subr.mxu0 0.0
    %5003 = vmatpush1.msra.mxu0 0.0
    %5004 = vmatprep.subr.mxu0 0.0
    %5005 = vmatpush1.msra.mxu0 0.0
    %5006 = vmatprep.subr.mxu0 0.0
    %5007 = vmatpush1.msra.mxu0 0.0
    %5008 = vmatprep.subr.mxu0 0.0
    %5009 = vmatpush1.msra.mxu0 0.0
    %5010 = vmatprep.subr.mxu0 0.0
    %5011 = vmatpush1.msra.mxu0 0.0
    %5012 = vmatprep.subr.mxu0 0.0
    %5013 = vmatpush1.msra.mxu0 0.0
    %5014 = vmatprep.subr.mxu0 0.0
    %5015 = vmatpush1.msra.mxu0 0.0
    %5016 = vmatprep.subr.mxu0 0.0
    %5017 = vmatpush1.msra.mxu0 0.0
    %5018 = vmatprep.subr.mxu0 0.0
    %5019 = vmatpush1.msra.mxu0 0.0
    %5020 = vmatprep.subr.mxu0 0.0
    %5021 = vmatpush1.msra.mxu0 0.0
    %5022 = vmatprep.subr.mxu0 0.0
    %5023 = vmatpush1.msra.mxu0 0.0
    %5024 = vmatprep.subr.mxu0 0.0
    %5025 = vmatpush1.msra.mxu0 0.0
    %5026 = vmatprep.subr.mxu0 0.0
    %5027 = vmatpush1.msra.mxu0 0.0
    %5028 = vmatprep.subr.mxu0 0.0
    %5029 = vmatpush1.msra.mxu0 0.0
    %5030 = vmatprep.subr.mxu0 0.0
    %5031 = vmatpush1.msra.mxu0 0.0
    %5032 = vmatprep.subr.mxu0 0.0
    %5033 = vmatpush1.msra.mxu0 0.0
    %5034 = vmatprep.subr.mxu0 0.0
    %5035 = vmatpush1.msra.mxu0 0.0
    %5036 = vmatprep.subr.mxu0 0.0
    %5037 = vmatpush1.msra.mxu0 0.0
    %5038 = vmatprep.subr.mxu0 0.0
    %5039 = vmatpush1.msra.mxu0 0.0
    %5040 = vmatprep.subr.mxu0 0.0
    %5041 = vmatpush1.msra.mxu0 0.0
    %5042 = vmatprep.subr.mxu0 0.0
    %5043 = vmatpush1.msra.mxu0 0.0
    %5044 = vmatprep.subr.mxu0 0.0
    %5045 = vmatpush1.msra.mxu0 0.0
    %5046 = vmatprep.subr.mxu0 0.0
    %5047 = vmatpush1.msra.mxu0 0.0
    %5048 = vmatprep.subr.mxu0 0.0
    %5049 = vmatpush1.msra.mxu0 0.0
    %5050 = vmatprep.subr.mxu0 0.0
    %5051 = vmatpush1.msra.mxu0 0.0
    %5052 = vmatprep.mubr.f32.mxu0 0.0
    %5053 = vmatmul.mubr.f32.gmra.mrb[0].mxu0 %v4986
    %v5054 = vpop.f32.mrb[0].mxu0
    %v5055 = vadd.f32 0.0, %v5054
    %v5056 = vpop.f32.mrb[0].mxu0
    %5057 = vdwg.mxu0
    %v5059 = vsel %vm1190, %v4618, 0
    %5061 = vmatprep.subr.mxu0 0.0
    %5062 = vmatpush1.msra.mxu0 %v3916
    %5063 = vmatprep.subr.mxu0 0.0
    %5064 = vmatpush1.msra.mxu0 0.0
    %5065 = vmatprep.subr.mxu0 0.0
    %5066 = vmatpush1.msra.mxu0 0.0
    %5067 = vmatprep.subr.mxu0 0.0
    %5068 = vmatpush1.msra.mxu0 0.0
    %5069 = vmatprep.subr.mxu0 0.0
    %5070 = vmatpush1.msra.mxu0 0.0
    %5071 = vmatprep.subr.mxu0 0.0
    %5072 = vmatpush1.msra.mxu0 0.0
    %5073 = vmatprep.subr.mxu0 0.0
    %5074 = vmatpush1.msra.mxu0 0.0
    %5075 = vmatprep.subr.mxu0 0.0
    %5076 = vmatpush1.msra.mxu0 0.0
    %5077 = vmatprep.subr.mxu0 0.0
    %5078 = vmatpush1.msra.mxu0 0.0
    %5079 = vmatprep.subr.mxu0 0.0
    %5080 = vmatpush1.msra.mxu0 0.0
    %5081 = vmatprep.subr.mxu0 0.0
    %5082 = vmatpush1.msra.mxu0 0.0
    %5083 = vmatprep.subr.mxu0 0.0
    %5084 = vmatpush1.msra.mxu0 0.0
    %5085 = vmatprep.subr.mxu0 0.0
    %5086 = vmatpush1.msra.mxu0 0.0
    %5087 = vmatprep.subr.mxu0 0.0
    %5088 = vmatpush1.msra.mxu0 0.0
    %5089 = vmatprep.subr.mxu0 0.0
    %5090 = vmatpush1.msra.mxu0 0.0
    %5091 = vmatprep.subr.mxu0 0.0
    %5092 = vmatpush1.msra.mxu0 0.0
    %5093 = vmatprep.subr.mxu0 0.0
    %5094 = vmatpush1.msra.mxu0 0.0
    %5095 = vmatprep.subr.mxu0 0.0
    %5096 = vmatpush1.msra.mxu0 0.0
    %5097 = vmatprep.subr.mxu0 0.0
    %5098 = vmatpush1.msra.mxu0 0.0
    %5099 = vmatprep.subr.mxu0 0.0
    %5100 = vmatpush1.msra.mxu0 0.0
    %5101 = vmatprep.subr.mxu0 0.0
    %5102 = vmatpush1.msra.mxu0 0.0
    %5103 = vmatprep.subr.mxu0 0.0
    %5104 = vmatpush1.msra.mxu0 0.0
    %5105 = vmatprep.subr.mxu0 0.0
    %5106 = vmatpush1.msra.mxu0 0.0
    %5107 = vmatprep.subr.mxu0 0.0
    %5108 = vmatpush1.msra.mxu0 0.0
    %5109 = vmatprep.subr.mxu0 0.0
    %5110 = vmatpush1.msra.mxu0 0.0
    %5111 = vmatprep.subr.mxu0 0.0
    %5112 = vmatpush1.msra.mxu0 0.0
    %5113 = vmatprep.subr.mxu0 0.0
    %5114 = vmatpush1.msra.mxu0 0.0
    %5115 = vmatprep.subr.mxu0 0.0
    %5116 = vmatpush1.msra.mxu0 0.0
    %5117 = vmatprep.subr.mxu0 0.0
    %5118 = vmatpush1.msra.mxu0 0.0
    %5119 = vmatprep.subr.mxu0 0.0
    %5120 = vmatpush1.msra.mxu0 0.0
    %5121 = vmatprep.subr.mxu0 0.0
    %5122 = vmatpush1.msra.mxu0 0.0
    %5123 = vmatprep.subr.mxu0 0.0
    %5124 = vmatpush1.msra.mxu0 0.0
    %5125 = vmatprep.mubr.f32.mxu0 0.0
    %5126 = vmatmul.mubr.f32.gmra.mrb[0].mxu0 %v5059
    %v5127 = vpop.f32.mrb[0].mxu0
    %v5128 = vadd.f32 0.0, %v5127
    %v5129 = vpop.f32.mrb[0].mxu0
    %5130 = vdwg.mxu0
    %v5132 = vsel %vm1190, %v4619, 0
    %5134 = vmatprep.subr.mxu0 0.0
    %5135 = vmatpush1.msra.mxu0 %v3921
    %5136 = vmatprep.subr.mxu0 0.0
    %5137 = vmatpush1.msra.mxu0 0.0
    %5138 = vmatprep.subr.mxu0 0.0
    %5139 = vmatpush1.msra.mxu0 0.0
    %5140 = vmatprep.subr.mxu0 0.0
    %5141 = vmatpush1.msra.mxu0 0.0
    %5142 = vmatprep.subr.mxu0 0.0
    %5143 = vmatpush1.msra.mxu0 0.0
    %5144 = vmatprep.subr.mxu0 0.0
    %5145 = vmatpush1.msra.mxu0 0.0
    %5146 = vmatprep.subr.mxu0 0.0
    %5147 = vmatpush1.msra.mxu0 0.0
    %5148 = vmatprep.subr.mxu0 0.0
    %5149 = vmatpush1.msra.mxu0 0.0
    %5150 = vmatprep.subr.mxu0 0.0
    %5151 = vmatpush1.msra.mxu0 0.0
    %5152 = vmatprep.subr.mxu0 0.0
    %5153 = vmatpush1.msra.mxu0 0.0
    %5154 = vmatprep.subr.mxu0 0.0
    %5155 = vmatpush1.msra.mxu0 0.0
    %5156 = vmatprep.subr.mxu0 0.0
    %5157 = vmatpush1.msra.mxu0 0.0
    %5158 = vmatprep.subr.mxu0 0.0
    %5159 = vmatpush1.msra.mxu0 0.0
    %5160 = vmatprep.subr.mxu0 0.0
    %5161 = vmatpush1.msra.mxu0 0.0
    %5162 = vmatprep.subr.mxu0 0.0
    %5163 = vmatpush1.msra.mxu0 0.0
    %5164 = vmatprep.subr.mxu0 0.0
    %5165 = vmatpush1.msra.mxu0 0.0
    %5166 = vmatprep.subr.mxu0 0.0
    %5167 = vmatpush1.msra.mxu0 0.0
    %5168 = vmatprep.subr.mxu0 0.0
    %5169 = vmatpush1.msra.mxu0 0.0
    %5170 = vmatprep.subr.mxu0 0.0
    %5171 = vmatpush1.msra.mxu0 0.0
    %5172 = vmatprep.subr.mxu0 0.0
    %5173 = vmatpush1.msra.mxu0 0.0
    %5174 = vmatprep.subr.mxu0 0.0
    %5175 = vmatpush1.msra.mxu0 0.0
    %5176 = vmatprep.subr.mxu0 0.0
    %5177 = vmatpush1.msra.mxu0 0.0
    %5178 = vmatprep.subr.mxu0 0.0
    %5179 = vmatpush1.msra.mxu0 0.0
    %5180 = vmatprep.subr.mxu0 0.0
    %5181 = vmatpush1.msra.mxu0 0.0
    %5182 = vmatprep.subr.mxu0 0.0
    %5183 = vmatpush1.msra.mxu0 0.0
    %5184 = vmatprep.subr.mxu0 0.0
    %5185 = vmatpush1.msra.mxu0 0.0
    %5186 = vmatprep.subr.mxu0 0.0
    %5187 = vmatpush1.msra.mxu0 0.0
    %5188 = vmatprep.subr.mxu0 0.0
    %5189 = vmatpush1.msra.mxu0 0.0
    %5190 = vmatprep.subr.mxu0 0.0
    %5191 = vmatpush1.msra.mxu0 0.0
    %5192 = vmatprep.subr.mxu0 0.0
    %5193 = vmatpush1.msra.mxu0 0.0
    %5194 = vmatprep.subr.mxu0 0.0
    %5195 = vmatpush1.msra.mxu0 0.0
    %5196 = vmatprep.subr.mxu0 0.0
    %5197 = vmatpush1.msra.mxu0 0.0
    %5198 = vmatprep.mubr.f32.mxu0 0.0
    %5199 = vmatmul.mubr.f32.gmra.mrb[0].mxu0 %v5132
    %v5200 = vpop.f32.mrb[0].mxu0
    %v5201 = vadd.f32 0.0, %v5200
    %v5202 = vpop.f32.mrb[0].mxu0
    %5203 = vdwg.mxu0
    %v5204 = vld [vmem:[%s39] sm:$0xff]
    %s5205 = scalar_lea.vmem %s39, 8
    %v5206 = vld [vmem:[%s5205] sm:$0xff]
    %v5208 = vsel %vm1190, %v4836, 0
    %v5211 = vsel %vm1190, %v4909, 0
    %5213 = vmatprep.subr.mxu0 0.0
    %5214 = vmatpush1.msra.mxu0 %v5206
    %5215 = vmatprep.subr.mxu0 0.0
    %5216 = vmatpush1.msra.mxu0 0.0
    %5217 = vmatprep.subr.mxu0 0.0
    %5218 = vmatpush1.msra.mxu0 0.0
    %5219 = vmatprep.subr.mxu0 0.0
    %5220 = vmatpush1.msra.mxu0 0.0
    %5221 = vmatprep.subr.mxu0 0.0
    %5222 = vmatpush1.msra.mxu0 0.0
    %5223 = vmatprep.subr.mxu0 0.0
    %5224 = vmatpush1.msra.mxu0 0.0
    %5225 = vmatprep.subr.mxu0 0.0
    %5226 = vmatpush1.msra.mxu0 0.0
    %5227 = vmatprep.subr.mxu0 0.0
    %5228 = vmatpush1.msra.mxu0 0.0
    %5229 = vmatprep.subr.mxu0 0.0
    %5230 = vmatpush1.msra.mxu0 0.0
    %5231 = vmatprep.subr.mxu0 0.0
    %5232 = vmatpush1.msra.mxu0 0.0
    %5233 = vmatprep.subr.mxu0 0.0
    %5234 = vmatpush1.msra.mxu0 0.0
    %5235 = vmatprep.subr.mxu0 0.0
    %5236 = vmatpush1.msra.mxu0 0.0
    %5237 = vmatprep.subr.mxu0 0.0
    %5238 = vmatpush1.msra.mxu0 0.0
    %5239 = vmatprep.subr.mxu0 0.0
    %5240 = vmatpush1.msra.mxu0 0.0
    %5241 = vmatprep.subr.mxu0 0.0
    %5242 = vmatpush1.msra.mxu0 0.0
    %5243 = vmatprep.subr.mxu0 0.0
    %5244 = vmatpush1.msra.mxu0 0.0
    %5245 = vmatprep.subr.mxu0 0.0
    %5246 = vmatpush1.msra.mxu0 0.0
    %5247 = vmatprep.subr.mxu0 0.0
    %5248 = vmatpush1.msra.mxu0 0.0
    %5249 = vmatprep.subr.mxu0 0.0
    %5250 = vmatpush1.msra.mxu0 0.0
    %5251 = vmatprep.subr.mxu0 0.0
    %5252 = vmatpush1.msra.mxu0 0.0
    %5253 = vmatprep.subr.mxu0 0.0
    %5254 = vmatpush1.msra.mxu0 0.0
    %5255 = vmatprep.subr.mxu0 0.0
    %5256 = vmatpush1.msra.mxu0 0.0
    %5257 = vmatprep.subr.mxu0 0.0
    %5258 = vmatpush1.msra.mxu0 0.0
    %5259 = vmatprep.subr.mxu0 0.0
    %5260 = vmatpush1.msra.mxu0 0.0
    %5261 = vmatprep.subr.mxu0 0.0
    %5262 = vmatpush1.msra.mxu0 0.0
    %5263 = vmatprep.subr.mxu0 0.0
    %5264 = vmatpush1.msra.mxu0 0.0
    %5265 = vmatprep.subr.mxu0 0.0
    %5266 = vmatpush1.msra.mxu0 0.0
    %5267 = vmatprep.subr.mxu0 0.0
    %5268 = vmatpush1.msra.mxu0 0.0
    %5269 = vmatprep.subr.mxu0 0.0
    %5270 = vmatpush1.msra.mxu0 0.0
    %5271 = vmatprep.subr.mxu0 0.0
    %5272 = vmatpush1.msra.mxu0 0.0
    %5273 = vmatprep.subr.mxu0 0.0
    %5274 = vmatpush1.msra.mxu0 0.0
    %5275 = vmatprep.subr.mxu0 0.0
    %5276 = vmatpush1.msra.mxu0 0.0
    %5277 = vmatprep.mubr.f32.mxu0 0.0
    %5278 = vmatmul.mubr.f32.gmra.mrb[0].mxu0 %v5208
    %v5279 = vpop.f32.mrb[0].mxu0
    %v5280 = vadd.f32 0.0, %v5279
    %v5281 = vpop.f32.mrb[0].mxu0
    %5282 = vmatprep.mubr.f32.mxu0 0.0
    %5283 = vmatmul.mubr.f32.gmra.mrb[0].mxu0 %v5211
    %v5284 = vpop.f32.mrb[0].mxu0
    %v5285 = vadd.f32 0.0, %v5284
    %v5286 = vpop.f32.mrb[0].mxu0
    %5287 = vdwg.mxu0
    %v5289 = vsel %vm1190, %v4690, 0
    %v5292 = vsel %vm1190, %v4763, 0
    %5294 = vmatprep.subr.mxu0 0.0
    %5295 = vmatpush1.msra.mxu0 %v5204
    %5296 = vmatprep.subr.mxu0 0.0
    %5297 = vmatpush1.msra.mxu0 0.0
    %5298 = vmatprep.subr.mxu0 0.0
    %5299 = vmatpush1.msra.mxu0 0.0
    %5300 = vmatprep.subr.mxu0 0.0
    %5301 = vmatpush1.msra.mxu0 0.0
    %5302 = vmatprep.subr.mxu0 0.0
    %5303 = vmatpush1.msra.mxu0 0.0
    %5304 = vmatprep.subr.mxu0 0.0
    %5305 = vmatpush1.msra.mxu0 0.0
    %5306 = vmatprep.subr.mxu0 0.0
    %5307 = vmatpush1.msra.mxu0 0.0
    %5308 = vmatprep.subr.mxu0 0.0
    %5309 = vmatpush1.msra.mxu0 0.0
    %5310 = vmatprep.subr.mxu0 0.0
    %5311 = vmatpush1.msra.mxu0 0.0
    %5312 = vmatprep.subr.mxu0 0.0
    %5313 = vmatpush1.msra.mxu0 0.0
    %5314 = vmatprep.subr.mxu0 0.0
    %5315 = vmatpush1.msra.mxu0 0.0
    %5316 = vmatprep.subr.mxu0 0.0
    %5317 = vmatpush1.msra.mxu0 0.0
    %5318 = vmatprep.subr.mxu0 0.0
    %5319 = vmatpush1.msra.mxu0 0.0
    %5320 = vmatprep.subr.mxu0 0.0
    %5321 = vmatpush1.msra.mxu0 0.0
    %5322 = vmatprep.subr.mxu0 0.0
    %5323 = vmatpush1.msra.mxu0 0.0
    %5324 = vmatprep.subr.mxu0 0.0
    %5325 = vmatpush1.msra.mxu0 0.0
    %5326 = vmatprep.subr.mxu0 0.0
    %5327 = vmatpush1.msra.mxu0 0.0
    %5328 = vmatprep.subr.mxu0 0.0
    %5329 = vmatpush1.msra.mxu0 0.0
    %5330 = vmatprep.subr.mxu0 0.0
    %5331 = vmatpush1.msra.mxu0 0.0
    %5332 = vmatprep.subr.mxu0 0.0
    %5333 = vmatpush1.msra.mxu0 0.0
    %5334 = vmatprep.subr.mxu0 0.0
    %5335 = vmatpush1.msra.mxu0 0.0
    %5336 = vmatprep.subr.mxu0 0.0
    %5337 = vmatpush1.msra.mxu0 0.0
    %5338 = vmatprep.subr.mxu0 0.0
    %5339 = vmatpush1.msra.mxu0 0.0
    %5340 = vmatprep.subr.mxu0 0.0
    %5341 = vmatpush1.msra.mxu0 0.0
    %5342 = vmatprep.subr.mxu0 0.0
    %5343 = vmatpush1.msra.mxu0 0.0
    %5344 = vmatprep.subr.mxu0 0.0
    %5345 = vmatpush1.msra.mxu0 0.0
    %5346 = vmatprep.subr.mxu0 0.0
    %5347 = vmatpush1.msra.mxu0 0.0
    %5348 = vmatprep.subr.mxu0 0.0
    %5349 = vmatpush1.msra.mxu0 0.0
    %5350 = vmatprep.subr.mxu0 0.0
    %5351 = vmatpush1.msra.mxu0 0.0
    %5352 = vmatprep.subr.mxu0 0.0
    %5353 = vmatpush1.msra.mxu0 0.0
    %5354 = vmatprep.subr.mxu0 0.0
    %5355 = vmatpush1.msra.mxu0 0.0
    %5356 = vmatprep.subr.mxu0 0.0
    %5357 = vmatpush1.msra.mxu0 0.0
    %5358 = vmatprep.mubr.f32.mxu0 0.0
    %5359 = vmatmul.mubr.f32.gmra.mrb[0].mxu0 %v5289
    %v5360 = vpop.f32.mrb[0].mxu0
    %v5361 = vadd.f32 %v5280, %v5360
    %v5362 = vpop.f32.mrb[0].mxu0
    %5363 = vmatprep.mubr.f32.mxu0 0.0
    %5364 = vmatmul.mubr.f32.gmra.mrb[0].mxu0 %v5292
    %v5365 = vpop.f32.mrb[0].mxu0
    %v5366 = vadd.f32 %v5285, %v5365
    %v5367 = vpop.f32.mrb[0].mxu0
    %5368 = vdwg.mxu0
    %s5369 = scalar_lea.vmem %s39, 16
    %v5370 = vld [vmem:[%s5369] sm:$0xff]
    %v5372 = vsel %vm1190, %v4982, 0
    %v5375 = vsel %vm1190, %v5055, 0
    %5377 = vmatprep.subr.mxu0 0.0
    %5378 = vmatpush1.msra.mxu0 %v5370
    %5379 = vmatprep.subr.mxu0 0.0
    %5380 = vmatpush1.msra.mxu0 0.0
    %5381 = vmatprep.subr.mxu0 0.0
    %5382 = vmatpush1.msra.mxu0 0.0
    %5383 = vmatprep.subr.mxu0 0.0
    %5384 = vmatpush1.msra.mxu0 0.0
    %5385 = vmatprep.subr.mxu0 0.0
    %5386 = vmatpush1.msra.mxu0 0.0
    %5387 = vmatprep.subr.mxu0 0.0
    %5388 = vmatpush1.msra.mxu0 0.0
    %5389 = vmatprep.subr.mxu0 0.0
    %5390 = vmatpush1.msra.mxu0 0.0
    %5391 = vmatprep.subr.mxu0 0.0
    %5392 = vmatpush1.msra.mxu0 0.0
    %5393 = vmatprep.subr.mxu0 0.0
    %5394 = vmatpush1.msra.mxu0 0.0
    %5395 = vmatprep.subr.mxu0 0.0
    %5396 = vmatpush1.msra.mxu0 0.0
    %5397 = vmatprep.subr.mxu0 0.0
    %5398 = vmatpush1.msra.mxu0 0.0
    %5399 = vmatprep.subr.mxu0 0.0
    %5400 = vmatpush1.msra.mxu0 0.0
    %5401 = vmatprep.subr.mxu0 0.0
    %5402 = vmatpush1.msra.mxu0 0.0
    %5403 = vmatprep.subr.mxu0 0.0
    %5404 = vmatpush1.msra.mxu0 0.0
    %5405 = vmatprep.subr.mxu0 0.0
    %5406 = vmatpush1.msra.mxu0 0.0
    %5407 = vmatprep.subr.mxu0 0.0
    %5408 = vmatpush1.msra.mxu0 0.0
    %5409 = vmatprep.subr.mxu0 0.0
    %5410 = vmatpush1.msra.mxu0 0.0
    %5411 = vmatprep.subr.mxu0 0.0
    %5412 = vmatpush1.msra.mxu0 0.0
    %5413 = vmatprep.subr.mxu0 0.0
    %5414 = vmatpush1.msra.mxu0 0.0
    %5415 = vmatprep.subr.mxu0 0.0
    %5416 = vmatpush1.msra.mxu0 0.0
    %5417 = vmatprep.subr.mxu0 0.0
    %5418 = vmatpush1.msra.mxu0 0.0
    %5419 = vmatprep.subr.mxu0 0.0
    %5420 = vmatpush1.msra.mxu0 0.0
    %5421 = vmatprep.subr.mxu0 0.0
    %5422 = vmatpush1.msra.mxu0 0.0
    %5423 = vmatprep.subr.mxu0 0.0
    %5424 = vmatpush1.msra.mxu0 0.0
    %5425 = vmatprep.subr.mxu0 0.0
    %5426 = vmatpush1.msra.mxu0 0.0
    %5427 = vmatprep.subr.mxu0 0.0
    %5428 = vmatpush1.msra.mxu0 0.0
    %5429 = vmatprep.subr.mxu0 0.0
    %5430 = vmatpush1.msra.mxu0 0.0
    %5431 = vmatprep.subr.mxu0 0.0
    %5432 = vmatpush1.msra.mxu0 0.0
    %5433 = vmatprep.subr.mxu0 0.0
    %5434 = vmatpush1.msra.mxu0 0.0
    %5435 = vmatprep.subr.mxu0 0.0
    %5436 = vmatpush1.msra.mxu0 0.0
    %5437 = vmatprep.subr.mxu0 0.0
    %5438 = vmatpush1.msra.mxu0 0.0
    %5439 = vmatprep.subr.mxu0 0.0
    %5440 = vmatpush1.msra.mxu0 0.0
    %5441 = vmatprep.mubr.f32.mxu0 0.0
    %5442 = vmatmul.mubr.f32.gmra.mrb[0].mxu0 %v5372
    %v5443 = vpop.f32.mrb[0].mxu0
    %v5444 = vadd.f32 0.0, %v5443
    %v5445 = vpop.f32.mrb[0].mxu0
    %5446 = vmatprep.mubr.f32.mxu0 0.0
    %5447 = vmatmul.mubr.f32.gmra.mrb[0].mxu0 %v5375
    %v5448 = vpop.f32.mrb[0].mxu0
    %v5449 = vadd.f32 0.0, %v5448
    %v5450 = vpop.f32.mrb[0].mxu0
    %5451 = vdwg.mxu0
    %v5452 = vadd.f32 %v5361, %v5444
    %v5453 = vadd.f32 %v5366, %v5449
    %s5454 = scalar_lea.vmem %s39, 24
    %v5455 = vld [vmem:[%s5454] sm:$0xff]
    %v5457 = vsel %vm1190, %v5128, 0
    %v5460 = vsel %vm1190, %v5201, 0
    %5462 = vmatprep.subr.mxu0 0.0
    %5463 = vmatpush1.msra.mxu0 %v5455
    %5464 = vmatprep.subr.mxu0 0.0
    %5465 = vmatpush1.msra.mxu0 0.0
    %5466 = vmatprep.subr.mxu0 0.0
    %5467 = vmatpush1.msra.mxu0 0.0
    %5468 = vmatprep.subr.mxu0 0.0
    %5469 = vmatpush1.msra.mxu0 0.0
    %5470 = vmatprep.subr.mxu0 0.0
    %5471 = vmatpush1.msra.mxu0 0.0
    %5472 = vmatprep.subr.mxu0 0.0
    %5473 = vmatpush1.msra.mxu0 0.0
    %5474 = vmatprep.subr.mxu0 0.0
    %5475 = vmatpush1.msra.mxu0 0.0
    %5476 = vmatprep.subr.mxu0 0.0
    %5477 = vmatpush1.msra.mxu0 0.0
    %5478 = vmatprep.subr.mxu0 0.0
    %5479 = vmatpush1.msra.mxu0 0.0
    %5480 = vmatprep.subr.mxu0 0.0
    %5481 = vmatpush1.msra.mxu0 0.0
    %5482 = vmatprep.subr.mxu0 0.0
    %5483 = vmatpush1.msra.mxu0 0.0
    %5484 = vmatprep.subr.mxu0 0.0
    %5485 = vmatpush1.msra.mxu0 0.0
    %5486 = vmatprep.subr.mxu0 0.0
    %5487 = vmatpush1.msra.mxu0 0.0
    %5488 = vmatprep.subr.mxu0 0.0
    %5489 = vmatpush1.msra.mxu0 0.0
    %5490 = vmatprep.subr.mxu0 0.0
    %5491 = vmatpush1.msra.mxu0 0.0
    %5492 = vmatprep.subr.mxu0 0.0
    %5493 = vmatpush1.msra.mxu0 0.0
    %5494 = vmatprep.subr.mxu0 0.0
    %5495 = vmatpush1.msra.mxu0 0.0
    %5496 = vmatprep.subr.mxu0 0.0
    %5497 = vmatpush1.msra.mxu0 0.0
    %5498 = vmatprep.subr.mxu0 0.0
    %5499 = vmatpush1.msra.mxu0 0.0
    %5500 = vmatprep.subr.mxu0 0.0
    %5501 = vmatpush1.msra.mxu0 0.0
    %5502 = vmatprep.subr.mxu0 0.0
    %5503 = vmatpush1.msra.mxu0 0.0
    %5504 = vmatprep.subr.mxu0 0.0
    %5505 = vmatpush1.msra.mxu0 0.0
    %5506 = vmatprep.subr.mxu0 0.0
    %5507 = vmatpush1.msra.mxu0 0.0
    %5508 = vmatprep.subr.mxu0 0.0
    %5509 = vmatpush1.msra.mxu0 0.0
    %5510 = vmatprep.subr.mxu0 0.0
    %5511 = vmatpush1.msra.mxu0 0.0
    %5512 = vmatprep.subr.mxu0 0.0
    %5513 = vmatpush1.msra.mxu0 0.0
    %5514 = vmatprep.subr.mxu0 0.0
    %5515 = vmatpush1.msra.mxu0 0.0
    %5516 = vmatprep.subr.mxu0 0.0
    %5517 = vmatpush1.msra.mxu0 0.0
    %5518 = vmatprep.subr.mxu0 0.0
    %5519 = vmatpush1.msra.mxu0 0.0
    %5520 = vmatprep.subr.mxu0 0.0
    %5521 = vmatpush1.msra.mxu0 0.0
    %5522 = vmatprep.subr.mxu0 0.0
    %5523 = vmatpush1.msra.mxu0 0.0
    %5524 = vmatprep.subr.mxu0 0.0
    %5525 = vmatpush1.msra.mxu0 0.0
    %5526 = vmatprep.mubr.f32.mxu0 0.0
    %5527 = vmatmul.mubr.f32.gmra.mrb[0].mxu0 %v5457
    %v5528 = vpop.f32.mrb[0].mxu0
    %v5529 = vadd.f32 0.0, %v5528
    %v5530 = vpop.f32.mrb[0].mxu0
    %5531 = vmatprep.mubr.f32.mxu0 0.0
    %5532 = vmatmul.mubr.f32.gmra.mrb[0].mxu0 %v5460
    %v5533 = vpop.f32.mrb[0].mxu0
    %v5534 = vadd.f32 0.0, %v5533
    %v5535 = vpop.f32.mrb[0].mxu0
    %5536 = vdwg.mxu0
    %v5537 = vadd.f32 %v5452, %v5529
    %v5538 = vadd.f32 %v5453, %v5534
    %v5539 = vld [vmem:[%s41] sm:$0x1]
    %v5541 = vlaneseq
    %v5542 = vshrl.u32 %v5541, 7
    %v5543 = vsub.s32 0, %v5542
    %v5544 = vrot.slane %v5539, %v5543
    %v5546 = vadd.f32 %v5537, %v5544
    %v5547 = vadd.f32 %v5538, %v5544
    %v5548 = vadd.f32 %v2860, %v5546
    %v5549 = vadd.f32 %v2861, %v5547
    %v5550 = vsel %vm144, %v5548, 0.0
    %5551 = vadd.xlane.f32.xlu0 %v5550
    %v5552 = vpop.xlane.xlu0 %5551
    %v5553 = vsel %vm144, %v5549, 0.0
    %5554 = vadd.xlane.f32.xlu0 %v5553
    %v5555 = vpop.xlane.xlu0 %5554
    %v5556 = vmul.f32 %v5552, %v2823
    %v5557 = vmul.f32 %v5555, %v2823
    %v5558 = vsub.f32 %v5548, %v5556
    %v5559 = vsub.f32 %v5549, %v5557
    %v5560 = vmul.f32 %v5558, %v5558
    %v5561 = vmul.f32 %v5559, %v5559
    %v5562 = vsel %vm144, %v5560, 0.0
    %5563 = vadd.xlane.f32.xlu0 %v5562
    %v5564 = vpop.xlane.xlu0 %5563
    %v5565 = vsel %vm144, %v5561, 0.0
    %5566 = vadd.xlane.f32.xlu0 %v5565
    %v5567 = vpop.xlane.xlu0 %5566
    %v5568 = vmul.f32 %v5564, %v2823
    %v5569 = vmul.f32 %v5567, %v2823
    %v5570 = vadd.f32 %v5568, 1e-05
    %v5571 = vadd.f32 %v5569, 1e-05
    %v5572 = vrsqrt.pop %v5570
    %v5573 = vrsqrt.pop %v5571
    %v5574 = vmul.f32 %v5558, %v5572
    %v5575 = vmul.f32 %v5559, %v5573
    %v5576 = vld [vmem:[%s43] sm:$0x1]
    %v5578 = vlaneseq
    %v5579 = vshrl.u32 %v5578, 7
    %v5580 = vsub.s32 0, %v5579
    %v5581 = vrot.slane %v5576, %v5580
    %v5583 = vmul.f32 %v5574, %v5581
    %v5584 = vmul.f32 %v5575, %v5581
    %v5585 = vld [vmem:[%s45] sm:$0x1]
    %v5587 = vlaneseq
    %v5588 = vshrl.u32 %v5587, 7
    %v5589 = vsub.s32 0, %v5588
    %v5590 = vrot.slane %v5585, %v5589
    %v5592 = vadd.f32 %v5583, %v5590
    %v5593 = vadd.f32 %v5584, %v5590
    %v5594 = vld [vmem:[%s47] sm:$0xff]
    %v5595 = vld [vmem:[%s47 + $0x8] sm:$0xff]
    %v5596 = vld [vmem:[%s47 + $0x10] sm:$0xff]
    %v5597 = vld [vmem:[%s47 + $0x18] sm:$0xff]
    %v5598 = vld [vmem:[%s49] sm:$0x1]
    %v5600 = vlaneseq
    %v5601 = vshrl.u32 %v5600, 7
    %v5602 = vsub.s32 0, %v5601
    %v5603 = vrot.slane %v5598, %v5602
    %v5606 = vsel %vm144, %v5592, 0
    %v5609 = vsel %vm144, %v5593, 0
    %5611 = vmatprep.subr.mxu0 0.0
    %5612 = vmatpush1.msra.mxu0 %v5594
    %5613 = vmatprep.subr.mxu0 0.0
    %5614 = vmatpush1.msra.mxu0 %v5595
    %5615 = vmatprep.subr.mxu0 0.0
    %5616 = vmatpush1.msra.mxu0 %v5596
    %5617 = vmatprep.subr.mxu0 0.0
    %5618 = vmatpush1.msra.mxu0 %v5597
    %5619 = vmatprep.subr.mxu0 0.0
    %5620 = vmatpush1.msra.mxu0 0.0
    %5621 = vmatprep.subr.mxu0 0.0
    %5622 = vmatpush1.msra.mxu0 0.0
    %5623 = vmatprep.subr.mxu0 0.0
    %5624 = vmatpush1.msra.mxu0 0.0
    %5625 = vmatprep.subr.mxu0 0.0
    %5626 = vmatpush1.msra.mxu0 0.0
    %5627 = vmatprep.subr.mxu0 0.0
    %5628 = vmatpush1.msra.mxu0 0.0
    %5629 = vmatprep.subr.mxu0 0.0
    %5630 = vmatpush1.msra.mxu0 0.0
    %5631 = vmatprep.subr.mxu0 0.0
    %5632 = vmatpush1.msra.mxu0 0.0
    %5633 = vmatprep.subr.mxu0 0.0
    %5634 = vmatpush1.msra.mxu0 0.0
    %5635 = vmatprep.subr.mxu0 0.0
    %5636 = vmatpush1.msra.mxu0 0.0
    %5637 = vmatprep.subr.mxu0 0.0
    %5638 = vmatpush1.msra.mxu0 0.0
    %5639 = vmatprep.subr.mxu0 0.0
    %5640 = vmatpush1.msra.mxu0 0.0
    %5641 = vmatprep.subr.mxu0 0.0
    %5642 = vmatpush1.msra.mxu0 0.0
    %5643 = vmatprep.subr.mxu0 0.0
    %5644 = vmatpush1.msra.mxu0 0.0
    %5645 = vmatprep.subr.mxu0 0.0
    %5646 = vmatpush1.msra.mxu0 0.0
    %5647 = vmatprep.subr.mxu0 0.0
    %5648 = vmatpush1.msra.mxu0 0.0
    %5649 = vmatprep.subr.mxu0 0.0
    %5650 = vmatpush1.msra.mxu0 0.0
    %5651 = vmatprep.subr.mxu0 0.0
    %5652 = vmatpush1.msra.mxu0 0.0
    %5653 = vmatprep.subr.mxu0 0.0
    %5654 = vmatpush1.msra.mxu0 0.0
    %5655 = vmatprep.subr.mxu0 0.0
    %5656 = vmatpush1.msra.mxu0 0.0
    %5657 = vmatprep.subr.mxu0 0.0
    %5658 = vmatpush1.msra.mxu0 0.0
    %5659 = vmatprep.subr.mxu0 0.0
    %5660 = vmatpush1.msra.mxu0 0.0
    %5661 = vmatprep.subr.mxu0 0.0
    %5662 = vmatpush1.msra.mxu0 0.0
    %5663 = vmatprep.subr.mxu0 0.0
    %5664 = vmatpush1.msra.mxu0 0.0
    %5665 = vmatprep.subr.mxu0 0.0
    %5666 = vmatpush1.msra.mxu0 0.0
    %5667 = vmatprep.subr.mxu0 0.0
    %5668 = vmatpush1.msra.mxu0 0.0
    %5669 = vmatprep.subr.mxu0 0.0
    %5670 = vmatpush1.msra.mxu0 0.0
    %5671 = vmatprep.subr.mxu0 0.0
    %5672 = vmatpush1.msra.mxu0 0.0
    %5673 = vmatprep.subr.mxu0 0.0
    %5674 = vmatpush1.msra.mxu0 0.0
    %5675 = vmatprep.mubr.f32.mxu0 0.0
    %5676 = vmatmul.mubr.f32.gmra.mrb[0].mxu0 %v5606
    %v5677 = vpop.f32.mrb[0].mxu0
    %v5678 = vadd.f32 %v5603, %v5677
    %v5679 = vpop.f32.mrb[0].mxu0
    %5680 = vmatprep.mubr.f32.mxu0 0.0
    %5681 = vmatmul.mubr.f32.gmra.mrb[0].mxu0 %v5609
    %v5682 = vpop.f32.mrb[0].mxu0
    %v5683 = vadd.f32 %v5603, %v5682
    %v5684 = vpop.f32.mrb[0].mxu0
    %5685 = vdwg.mxu0
    %v5686 = vmax.f32 %v5678, 0.0
    %v5687 = vmax.f32 %v5683, 0.0
    %v5688 = vld [vmem:[%s51] sm:$0xff]
    %v5689 = vld [vmem:[%s51 + $0x8] sm:$0xff]
    %v5690 = vld [vmem:[%s51 + $0x10] sm:$0xff]
    %v5691 = vld [vmem:[%s51 + $0x18] sm:$0xff]
    %v5692 = vld [vmem:[%s53] sm:$0x1]
    %v5694 = vlaneseq
    %v5695 = vshrl.u32 %v5694, 7
    %v5696 = vsub.s32 0, %v5695
    %v5697 = vrot.slane %v5692, %v5696
    %v5700 = vsel %vm144, %v5686, 0
    %v5703 = vsel %vm144, %v5687, 0
    %5705 = vmatprep.subr.mxu0 0.0
    %5706 = vmatpush1.msra.mxu0 %v5688
    %5707 = vmatprep.subr.mxu0 0.0
    %5708 = vmatpush1.msra.mxu0 %v5689
    %5709 = vmatprep.subr.mxu0 0.0
    %5710 = vmatpush1.msra.mxu0 %v5690
    %5711 = vmatprep.subr.mxu0 0.0
    %5712 = vmatpush1.msra.mxu0 %v5691
    %5713 = vmatprep.subr.mxu0 0.0
    %5714 = vmatpush1.msra.mxu0 0.0
    %5715 = vmatprep.subr.mxu0 0.0
    %5716 = vmatpush1.msra.mxu0 0.0
    %5717 = vmatprep.subr.mxu0 0.0
    %5718 = vmatpush1.msra.mxu0 0.0
    %5719 = vmatprep.subr.mxu0 0.0
    %5720 = vmatpush1.msra.mxu0 0.0
    %5721 = vmatprep.subr.mxu0 0.0
    %5722 = vmatpush1.msra.mxu0 0.0
    %5723 = vmatprep.subr.mxu0 0.0
    %5724 = vmatpush1.msra.mxu0 0.0
    %5725 = vmatprep.subr.mxu0 0.0
    %5726 = vmatpush1.msra.mxu0 0.0
    %5727 = vmatprep.subr.mxu0 0.0
    %5728 = vmatpush1.msra.mxu0 0.0
    %5729 = vmatprep.subr.mxu0 0.0
    %5730 = vmatpush1.msra.mxu0 0.0
    %5731 = vmatprep.subr.mxu0 0.0
    %5732 = vmatpush1.msra.mxu0 0.0
    %5733 = vmatprep.subr.mxu0 0.0
    %5734 = vmatpush1.msra.mxu0 0.0
    %5735 = vmatprep.subr.mxu0 0.0
    %5736 = vmatpush1.msra.mxu0 0.0
    %5737 = vmatprep.subr.mxu0 0.0
    %5738 = vmatpush1.msra.mxu0 0.0
    %5739 = vmatprep.subr.mxu0 0.0
    %5740 = vmatpush1.msra.mxu0 0.0
    %5741 = vmatprep.subr.mxu0 0.0
    %5742 = vmatpush1.msra.mxu0 0.0
    %5743 = vmatprep.subr.mxu0 0.0
    %5744 = vmatpush1.msra.mxu0 0.0
    %5745 = vmatprep.subr.mxu0 0.0
    %5746 = vmatpush1.msra.mxu0 0.0
    %5747 = vmatprep.subr.mxu0 0.0
    %5748 = vmatpush1.msra.mxu0 0.0
    %5749 = vmatprep.subr.mxu0 0.0
    %5750 = vmatpush1.msra.mxu0 0.0
    %5751 = vmatprep.subr.mxu0 0.0
    %5752 = vmatpush1.msra.mxu0 0.0
    %5753 = vmatprep.subr.mxu0 0.0
    %5754 = vmatpush1.msra.mxu0 0.0
    %5755 = vmatprep.subr.mxu0 0.0
    %5756 = vmatpush1.msra.mxu0 0.0
    %5757 = vmatprep.subr.mxu0 0.0
    %5758 = vmatpush1.msra.mxu0 0.0
    %5759 = vmatprep.subr.mxu0 0.0
    %5760 = vmatpush1.msra.mxu0 0.0
    %5761 = vmatprep.subr.mxu0 0.0
    %5762 = vmatpush1.msra.mxu0 0.0
    %5763 = vmatprep.subr.mxu0 0.0
    %5764 = vmatpush1.msra.mxu0 0.0
    %5765 = vmatprep.subr.mxu0 0.0
    %5766 = vmatpush1.msra.mxu0 0.0
    %5767 = vmatprep.subr.mxu0 0.0
    %5768 = vmatpush1.msra.mxu0 0.0
    %5769 = vmatprep.mubr.f32.mxu0 0.0
    %5770 = vmatmul.mubr.f32.gmra.mrb[0].mxu0 %v5700
    %v5771 = vpop.f32.mrb[0].mxu0
    %v5772 = vadd.f32 %v5697, %v5771
    %v5773 = vpop.f32.mrb[0].mxu0
    %5774 = vmatprep.mubr.f32.mxu0 0.0
    %5775 = vmatmul.mubr.f32.gmra.mrb[0].mxu0 %v5703
    %v5776 = vpop.f32.mrb[0].mxu0
    %v5777 = vadd.f32 %v5697, %v5776
    %v5778 = vpop.f32.mrb[0].mxu0
    %5779 = vdwg.mxu0
    %v5780 = vadd.f32 %v5592, %v5772
    %v5781 = vadd.f32 %v5593, %v5777
    %v5782 = vsel %vm144, %v5780, 0.0
    %5783 = vadd.xlane.f32.xlu0 %v5782
    %v5784 = vpop.xlane.xlu0 %5783
    %v5785 = vsel %vm144, %v5781, 0.0
    %5786 = vadd.xlane.f32.xlu0 %v5785
    %v5787 = vpop.xlane.xlu0 %5786
    %v5788 = vmul.f32 %v5784, %v2823
    %v5789 = vmul.f32 %v5787, %v2823
    %v5790 = vsub.f32 %v5780, %v5788
    %v5791 = vsub.f32 %v5781, %v5789
    %v5792 = vmul.f32 %v5790, %v5790
    %v5793 = vmul.f32 %v5791, %v5791
    %v5794 = vsel %vm144, %v5792, 0.0
    %5795 = vadd.xlane.f32.xlu0 %v5794
    %v5796 = vpop.xlane.xlu0 %5795
    %v5797 = vsel %vm144, %v5793, 0.0
    %5798 = vadd.xlane.f32.xlu0 %v5797
    %v5799 = vpop.xlane.xlu0 %5798
    %v5800 = vmul.f32 %v5796, %v2823
    %v5801 = vmul.f32 %v5799, %v2823
    %v5802 = vadd.f32 %v5800, 1e-05
    %v5803 = vadd.f32 %v5801, 1e-05
    %v5804 = vrsqrt.pop %v5802
    %v5805 = vrsqrt.pop %v5803
    %v5806 = vmul.f32 %v5790, %v5804
    %v5807 = vmul.f32 %v5791, %v5805
    %v5808 = vld [vmem:[%s55] sm:$0x1]
    %v5810 = vlaneseq
    %v5811 = vshrl.u32 %v5810, 7
    %v5812 = vsub.s32 0, %v5811
    %v5813 = vrot.slane %v5808, %v5812
    %v5815 = vmul.f32 %v5806, %v5813
    %v5816 = vmul.f32 %v5807, %v5813
    %v5817 = vld [vmem:[%s57] sm:$0x1]
    %v5819 = vlaneseq
    %v5820 = vshrl.u32 %v5819, 7
    %v5821 = vsub.s32 0, %v5820
    %v5822 = vrot.slane %v5817, %v5821
    %v5824 = vadd.f32 %v5815, %v5822
    %v5825 = vadd.f32 %v5816, %v5822
    %5826 = vst.msk [vmem:[#allocation2] sm:$0xff] %vm144, %v5824
    %5827 = vst.msk [vmem:[#allocation2 + $0x8] sm:$0xff] %vm144, %v5825
    %5828 = vst.msk [vmem:[%s61] sm:$0xff] %vm1190, %v1879
    %5829 = vst.msk [vmem:[%s61 + $0x8] sm:$0xff] %vm1190, %v1880
    %5830 = vst.msk [vmem:[%s61 + $0x10] sm:$0xff] %vm1190, %v1881
    %5831 = vst.msk [vmem:[%s61 + $0x18] sm:$0xff] %vm1190, %v1882
    %5832 = vst.msk [vmem:[%s61 + $0x20] sm:$0xff] %vm1190, %v1883
    %5833 = vst.msk [vmem:[%s61 + $0x28] sm:$0xff] %vm1190, %v1884
    %5834 = vst.msk [vmem:[%s61 + $0x30] sm:$0xff] %vm1190, %v1885
    %5835 = vst.msk [vmem:[%s61 + $0x38] sm:$0xff] %vm1190, %v1886
    %5836 = vst.msk [vmem:[%s63] sm:$0xff] %vm1190, %v4612
    %5837 = vst.msk [vmem:[%s63 + $0x8] sm:$0xff] %vm1190, %v4613
    %5838 = vst.msk [vmem:[%s63 + $0x10] sm:$0xff] %vm1190, %v4614
    %5839 = vst.msk [vmem:[%s63 + $0x18] sm:$0xff] %vm1190, %v4615
    %5840 = vst.msk [vmem:[%s63 + $0x20] sm:$0xff] %vm1190, %v4616
    %5841 = vst.msk [vmem:[%s63 + $0x28] sm:$0xff] %vm1190, %v4617
    %5842 = vst.msk [vmem:[%s63 + $0x30] sm:$0xff] %vm1190, %v4618
    %5843 = vst.msk [vmem:[%s63 + $0x38] sm:$0xff] %vm1190, %v4619
    // Predicated region
    $region118: #{decoder_layer_shuffle_forward.1} parent=1 // pred_check
      _
    $region119: #{decoder_layer_shuffle_forward.1} parent=1 // pred_check_branch
      %5845 = sbr.rel (0) target = $region121
    $region120: #{decoder_layer_shuffle_forward.1} parent=1 // pred_region
      %s5847 = ssub.s32 256, 256
      %5848 = vsyncadd [#allocation3], %s5847
      %s5849 = sshll.u32 [#allocation2], 4
      %s5850 = int_to_ptr.vmem [resolvable:$true] %s5849
      %5855 = dma.vmem_to_hbm [thread:$0]  %s5850, 256, %s59, [#allocation3], 128, 128, 8
    $region121: #{decoder_layer_shuffle_forward.1} parent=1 // pred_fallthru
      _
    // Predicated region
    $region122: #{decoder_layer_shuffle_forward.1} parent=1 // pred_check
      _
    $region123: #{decoder_layer_shuffle_forward.1} parent=1 // pred_check_branch
      %5857 = sbr.rel (0) target = $region125
    $region124: #{decoder_layer_shuffle_forward.1} parent=1 // pred_region
      _
    $region125: #{decoder_layer_shuffle_forward.1} parent=1 // pred_fallthru
      _
    // Predicated region
    $region126: #{decoder_layer_shuffle_forward.1} parent=1 // pred_check
      _
    $region127: #{decoder_layer_shuffle_forward.1} parent=1 // pred_check_branch
      %5859 = sbr.rel (0) target = $region129
    $region128: #{decoder_layer_shuffle_forward.1} parent=1 // pred_region
      _
    $region129: #{decoder_layer_shuffle_forward.1} parent=1 // pred_fallthru
      _
    // Predicated region
    $region130: #{decoder_layer_shuffle_forward.1} parent=1 // pred_check
      _
    $region131: #{decoder_layer_shuffle_forward.1} parent=1 // pred_check_branch
      %5861 = sbr.rel (0) target = $region133
    $region132: #{decoder_layer_shuffle_forward.1} parent=1 // pred_region
      %5862 = dma.done [#allocation3], 256
    $region133: #{decoder_layer_shuffle_forward.1} parent=1 // pred_fallthru
      _
    // Predicated region
    $region134: #{decoder_layer_shuffle_forward.1} parent=1 // pred_check
      _
    $region135: #{decoder_layer_shuffle_forward.1} parent=1 // pred_check_branch
      %5864 = sbr.rel (0) target = $region137
    $region136: #{decoder_layer_shuffle_forward.1} parent=1 // pred_region
      _
    $region137: #{decoder_layer_shuffle_forward.1} parent=1 // pred_fallthru
      _
    // Predicated region
    $region138: #{decoder_layer_shuffle_forward.1} parent=1 // pred_check
      _
    $region139: #{decoder_layer_shuffle_forward.1} parent=1 // pred_check_branch
      %5866 = sbr.rel (0) target = $region141
    $region140: #{decoder_layer_shuffle_forward.1} parent=1 // pred_region
      _
    $region141: #{decoder_layer_shuffle_forward.1} parent=1 // pred_fallthru
      _
    %5867 = vsyncpa [#allocation3], 1

</llo_original>
